<compile_context>
chip_gen: v7x
topology: tpu7x:2x2x1
jax: 0.10.0
libtpu: 0.0.40
codegen_flags: <defaults>
</compile_context>

<pallas_src>
import jax
import jax.numpy as jnp
from jax.experimental import pallas as pl
from jax.experimental.pallas import tpu as pltpu


def _round_up(x, m):
    return (x + m - 1) // m * m


# ----------------------------------------------------------------------------
# Pallas kernels
# ----------------------------------------------------------------------------
def _conv_relu_pool_kernel(p_ref, w_ref, b_ref, o_ref):
    """Fused conv-as-matmul + bias + ReLU + 2x2 max-pool.

    p_ref: (4, TM, Kp) bf16 -- 4 spatial phases of each 2x2 pooling window
    w_ref: (Kp, Np)    bf16 -- weights, K and Cout zero-padded to x128
    b_ref: (1, Np)     f32  -- bias (zero-padded)
    o_ref: (TM, Np)    bf16 -- one row per *pooled* output pixel (lane-dense)
    """
    _, tm, kp = p_ref.shape
    npad = o_ref.shape[-1]
    # Merge the 4 phases into one long MXU stream (sublane-major merge, free;
    # TM is a multiple of 8 so slab boundaries are sublane-aligned).
    p = p_ref[...].reshape(4 * tm, kp)
    y = jnp.dot(p, w_ref[...], preferred_element_type=jnp.float32)
    y = y.reshape(4, tm, npad)
    # 2x2 max-pool across the phases; bias + ReLU hoisted out of the phase loop
    # (both commute with max).
    best = jnp.maximum(jnp.maximum(y[0], y[1]), jnp.maximum(y[2], y[3]))
    o_ref[...] = jnp.maximum(best + b_ref[...], 0.0).astype(o_ref.dtype)


def _fc_tail_kernel(x_ref, w1_ref, b1_ref, w2_ref, b2_ref, w3_ref, b3_ref, o_ref):
    """fc1+ReLU -> fc2+ReLU -> head fused; intermediates never leave VMEM."""
    h = jnp.dot(x_ref[...], w1_ref[...], preferred_element_type=jnp.float32) + b1_ref[...]
    h = jnp.maximum(h, 0.0).astype(jnp.bfloat16)
    h = jnp.dot(h, w2_ref[...], preferred_element_type=jnp.float32) + b2_ref[...]
    h = jnp.maximum(h, 0.0).astype(jnp.bfloat16)
    o = jnp.dot(h, w3_ref[...], preferred_element_type=jnp.float32) + b3_ref[...]
    o_ref[...] = o.astype(o_ref.dtype)


_COMPILER_PARAMS = pltpu.CompilerParams(
    dimension_semantics=("parallel",),       # M / batch tiles are independent
    vmem_limit_bytes=40 * 1024 * 1024,       # safe on v7x (64 MiB phys), ample on v5e/v6e
)


def _tile(m, tmax):
    """Tile size: multiple of 8, capped at tmax, and sized so the parallel grid
    axis has >=2 steps whenever possible (both v7x TensorCores get work)."""
    return max(8, min(tmax, _round_up(pl.cdiv(m, 2), 8)))


# ----------------------------------------------------------------------------
# Wrappers around pallas_call
# ----------------------------------------------------------------------------
def conv_relu_pool(x_nhwc, w, b, *, kh=5, kw=5, tm_max=1024):
    """Conv2d(kh x kw, valid) + ReLU + MaxPool2d(2) on an NHWC activation.

    w: (kh*kw*Cin, Cout) with row order (kh, kw, Cin);  b: (Cout,)
    Returns the pooled NHWC activation (B, OH//2, OW//2, Cout) in bf16.
    """
    B, H, W, C = x_nhwc.shape
    cout = w.shape[1]
    OH, OW = H - kh + 1, W - kw + 1
    POH, POW = OH // 2, OW // 2              # MaxPool2d(2) floor mode

    # Phase-separated im2col built in bf16 from strided slices (no big
    # relayout-style transpose): for phase d=(dh,dw) and tap (i,j) we take the
    # stride-2 window x[:, dh+i::2, dw+j::2, :] cropped to the pooled extent.
    # TODO(synk): a fully in-kernel patch gather (manual DMA over NHWC tiles)
    # would remove this XLA-side im2col materialization entirely.
    xb = x_nhwc.astype(jnp.bfloat16)
    phases = []
    for dh in range(2):
        for dw in range(2):
            taps = [xb[:, dh + i::2, dw + j::2, :][:, :POH, :POW, :]
                    for i in range(kh) for j in range(kw)]
            phases.append(jnp.stack(taps, axis=-2))       # (B, POH, POW, T, C)
    p = jnp.stack(phases, axis=0).reshape(4, B * POH * POW, kh * kw * C)

    M, K = p.shape[1], p.shape[2]
    Kp = _round_up(K, 128)                   # lane-align the contraction dim
    Np = _round_up(cout, 128)                # lane-dense output stores
    TM = _tile(M, tm_max)                    # M tile, multiple of 8 sublanes
    Mp = _round_up(M, TM)

    p = jnp.pad(p, ((0, 0), (0, Mp - M), (0, Kp - K)))
    w_p = jnp.pad(w.astype(jnp.bfloat16), ((0, Kp - K), (0, Np - cout)))
    b_p = jnp.pad(b.astype(jnp.float32), ((0, Np - cout),)).reshape(1, Np)

    out = pl.pallas_call(
        _conv_relu_pool_kernel,
        out_shape=jax.ShapeDtypeStruct((Mp, Np), jnp.bfloat16),
        grid=(Mp // TM,),
        in_specs=[
            pl.BlockSpec((4, TM, Kp), lambda i: (0, i, 0)),
            pl.BlockSpec((Kp, Np), lambda i: (0, 0)),
            pl.BlockSpec((1, Np), lambda i: (0, 0)),
        ],
        out_specs=pl.BlockSpec((TM, Np), lambda i: (i, 0)),
        compiler_params=_COMPILER_PARAMS,
    )(p, w_p, b_p)

    return out[:M, :cout].reshape(B, POH, POW, cout)


def fc_tail(feat, w1, b1, w2, b2, w3, b3, *, tb_max=256):
    """Fused fc1(+ReLU) -> fc2(+ReLU) -> head as a single pallas_call.

    All contraction / output dims are zero-padded to multiples of 128 and the
    matmul operands are bf16 (f32 accumulation + f32 bias/ReLU epilogues).
    """
    B, Din = feat.shape
    H1, H2, NC = w1.shape[1], w2.shape[1], w3.shape[1]
    Dp = _round_up(Din, 128)                 # 800 -> 896
    H1p = _round_up(H1, 128)                 # 800 -> 896
    H2p = _round_up(H2, 128)                 # 500 -> 512
    Np = _round_up(NC, 128)                  # 10  -> 128
    TB = _tile(B, tb_max)
    Bp = _round_up(B, TB)

    x = jnp.pad(feat.astype(jnp.bfloat16), ((0, Bp - B), (0, Dp - Din)))
    w1p = jnp.pad(w1.astype(jnp.bfloat16), ((0, Dp - Din), (0, H1p - H1)))
    b1p = jnp.pad(b1.astype(jnp.float32), ((0, H1p - H1),)).reshape(1, H1p)
    w2p = jnp.pad(w2.astype(jnp.bfloat16), ((0, H1p - H1), (0, H2p - H2)))
    b2p = jnp.pad(b2.astype(jnp.float32), ((0, H2p - H2),)).reshape(1, H2p)
    w3p = jnp.pad(w3.astype(jnp.bfloat16), ((0, H2p - H2), (0, Np - NC)))
    b3p = jnp.pad(b3.astype(jnp.float32), ((0, Np - NC),)).reshape(1, Np)

    out = pl.pallas_call(
        _fc_tail_kernel,
        out_shape=jax.ShapeDtypeStruct((Bp, Np), jnp.float32),
        grid=(Bp // TB,),
        in_specs=[
            pl.BlockSpec((TB, Dp), lambda i: (i, 0)),
            pl.BlockSpec((Dp, H1p), lambda i: (0, 0)),
            pl.BlockSpec((1, H1p), lambda i: (0, 0)),
            pl.BlockSpec((H1p, H2p), lambda i: (0, 0)),
            pl.BlockSpec((1, H2p), lambda i: (0, 0)),
            pl.BlockSpec((H2p, Np), lambda i: (0, 0)),
            pl.BlockSpec((1, Np), lambda i: (0, 0)),
        ],
        out_specs=pl.BlockSpec((TB, Np), lambda i: (i, 0)),
        compiler_params=_COMPILER_PARAMS,
    )(x, w1p, b1p, w2p, b2p, w3p, b3p)

    return out[:B, :NC]


# ----------------------------------------------------------------------------
# Parameter init (deterministic, PyTorch-style uniform(-1/sqrt(fan_in), ...))
# ----------------------------------------------------------------------------
def _uniform(key, shape, fan_in):
    bound = 1.0 / jnp.sqrt(jnp.float32(fan_in))
    return jax.random.uniform(key, shape, jnp.float32, -bound, bound)


def init_params(key, in_channels=3, num_classes=10, dim=800):
    ks = jax.random.split(key, 10)
    p = {}
    # conv weights stored matmul-ready: (KH*KW*Cin, Cout), row order (kh, kw, c)
    p["w1"] = _uniform(ks[0], (5 * 5 * in_channels, 16), 5 * 5 * in_channels)
    p["b1"] = _uniform(ks[1], (16,), 5 * 5 * in_channels)
    p["w2"] = _uniform(ks[2], (5 * 5 * 16, 32), 5 * 5 * 16)
    p["b2"] = _uniform(ks[3], (32,), 5 * 5 * 16)
    # linear weights stored as (in, out)  (== PyTorch (out, in) transposed)
    p["fc1_w"] = _uniform(ks[4], (dim, 800), dim)
    p["fc1_b"] = _uniform(ks[5], (800,), dim)
    p["fc2_w"] = _uniform(ks[6], (800, 500), 800)
    p["fc2_b"] = _uniform(ks[7], (500,), 800)
    p["head_w"] = _uniform(ks[8], (500, num_classes), 500)
    p["head_b"] = _uniform(ks[9], (num_classes,), 500)
    return p


# ----------------------------------------------------------------------------
# Forward pass
# ----------------------------------------------------------------------------
@jax.jit
def pfmcnn4_forward(params, x_nchw):
    # Accept NCHW like the PyTorch module; compute in NHWC (C on the lane dim).
    x = jnp.transpose(x_nchw, (0, 2, 3, 1))

    y = conv_relu_pool(x, params["w1"], params["b1"])    # (B, 14, 14, 16) bf16
    y = conv_relu_pool(y, params["w2"], params["b2"])    # (B, 5, 5, 32)  bf16

    # torch.flatten(out, 1) flattens NCHW as (C, H, W) -> transpose back first.
    B = y.shape[0]
    feat = jnp.transpose(y, (0, 3, 1, 2)).reshape(B, -1)  # (B, 800)

    return fc_tail(feat, params["fc1_w"], params["fc1_b"],
                   params["fc2_w"], params["fc2_b"],
                   params["head_w"], params["head_b"])


# ----------------------------------------------------------------------------
# Plain-JAX reference (independent path: lax.conv + reduce_window, f32)
# ----------------------------------------------------------------------------
def _reference_forward(params, x_nchw):
    x = jnp.transpose(x_nchw, (0, 2, 3, 1)).astype(jnp.float32)
    hi = jax.lax.Precision.HIGHEST

    def conv_block(x, w_flat, b):
        c_in, c_out = x.shape[-1], w_flat.shape[1]
        w4 = w_flat.reshape(5, 5, c_in, c_out)            # HWIO
        y = jax.lax.conv_general_dilated(
            x, w4, window_strides=(1, 1), padding="VALID",
            dimension_numbers=("NHWC", "HWIO", "NHWC"), precision=hi)
        y = jnp.maximum(y + b, 0.0)
        return jax.lax.reduce_window(y, -jnp.inf, jax.lax.max,
                                     (1, 2, 2, 1), (1, 2, 2, 1), "VALID")

    y = conv_block(x, params["w1"], params["b1"])
    y = conv_block(y, params["w2"], params["b2"])
    feat = jnp.transpose(y, (0, 3, 1, 2)).reshape(y.shape[0], -1)
    h = jnp.maximum(jnp.dot(feat, params["fc1_w"], precision=hi) + params["fc1_b"], 0.0)
    h = jnp.maximum(jnp.dot(h, params["fc2_w"], precision=hi) + params["fc2_b"], 0.0)
    return jnp.dot(h, params["head_w"], precision=hi) + params["head_b"]


if __name__ == "__main__":
    key = jax.random.PRNGKey(0)
    k_x, k_p = jax.random.split(key)

    # Input consistent with the module defaults (dim=800 => 3x32x32 input).
    B, Cin, H, W = 2, 3, 32, 32
    x = jax.random.normal(k_x, (B, Cin, H, W), jnp.float32)
    params = init_params(k_p, in_channels=Cin, num_classes=10, dim=800)

    out = pfmcnn4_forward(params, x)
    out = jax.block_until_ready(out)
    assert out.shape == (B, 10), out.shape
    assert bool(jnp.all(jnp.isfinite(out)))

    # Cross-check against an independent plain-JAX f32 implementation.
    # Tolerance relaxed for bf16 matmul operands (f32 accumulation keeps the
    # error ~1e-3 at these logit magnitudes).
    ref = _reference_forward(params, x)
    err = float(jnp.max(jnp.abs(out - ref)))
    scale = float(jnp.max(jnp.abs(ref)))
    assert err < 1e-2 + 2e-2 * scale, f"max abs err vs reference: {err} (ref scale {scale})"

    print("KERNEL_OK")
</pallas_src>

<mosaic_0001>
module attributes {stable_mosaic.version = 11 : i64} {
  func.func @_conv_relu_pool_kernel(%arg0: i32, %arg1: memref<4x200x128xbf16, #tpu.memory_space<vmem>>, %arg2: memref<128x128xbf16, #tpu.memory_space<vmem>>, %arg3: memref<1x128xf32, #tpu.memory_space<vmem>>, %arg4: memref<200x128xbf16, #tpu.memory_space<vmem>>) attributes {dimension_semantics = [#tpu.dimension_semantics<parallel>], iteration_bounds = array<i64: 2>, scalar_prefetch = 0 : i64, scratch_operands = 0 : i64, tpu.core_type = #tpu.core_type<tc>, window_params = [{transform_indices = @transform_0, window_bounds = array<i64: 4, 200, 128>}, {pipeline_mode = #tpu.pipeline_mode<synchronous>, transform_indices = @transform_1, window_bounds = array<i64: 128, 128>}, {pipeline_mode = #tpu.pipeline_mode<synchronous>, transform_indices = @transform_2, window_bounds = array<i64: 1, 128>}, {transform_indices = @transform_3, window_bounds = array<i64: 200, 128>}]} {
    %c0 = arith.constant 0 : index
    %c0_0 = arith.constant 0 : index
    %c0_1 = arith.constant 0 : index
    %0 = vector.load %arg1[%c0, %c0_0, %c0_1] : memref<4x200x128xbf16, #tpu.memory_space<vmem>>, vector<4x200x128xbf16>
    %1 = vector.shape_cast %0 : vector<4x200x128xbf16> to vector<800x128xbf16>
    %c0_2 = arith.constant 0 : index
    %c0_3 = arith.constant 0 : index
    %2 = vector.load %arg2[%c0_2, %c0_3] : memref<128x128xbf16, #tpu.memory_space<vmem>>, vector<128x128xbf16>
    %cst = arith.constant dense<0.000000e+00> : vector<800x128xf32>
    %3 = tpu.matmul %1, %2, %cst {dimension_numbers = #tpu.dot_dimension_numbers<[1], [0], [0], [1], [0, 0, 1, 1], [], []>} : vector<800x128xbf16>, vector<128x128xbf16>, vector<800x128xf32> -> vector<800x128xf32>
    %4 = vector.shape_cast %3 : vector<800x128xf32> to vector<4x200x128xf32>
    %5 = vector.extract_strided_slice %4 {offsets = [0, 0, 0], sizes = [1, 200, 128], strides = [1, 1, 1]} : vector<4x200x128xf32> to vector<1x200x128xf32>
    %6 = vector.shape_cast %5 : vector<1x200x128xf32> to vector<200x128xf32>
    %7 = vector.extract_strided_slice %4 {offsets = [1, 0, 0], sizes = [1, 200, 128], strides = [1, 1, 1]} : vector<4x200x128xf32> to vector<1x200x128xf32>
    %8 = vector.shape_cast %7 : vector<1x200x128xf32> to vector<200x128xf32>
    %9 = arith.maximumf %6, %8 : vector<200x128xf32>
    %10 = vector.extract_strided_slice %4 {offsets = [2, 0, 0], sizes = [1, 200, 128], strides = [1, 1, 1]} : vector<4x200x128xf32> to vector<1x200x128xf32>
    %11 = vector.shape_cast %10 : vector<1x200x128xf32> to vector<200x128xf32>
    %12 = vector.extract_strided_slice %4 {offsets = [3, 0, 0], sizes = [1, 200, 128], strides = [1, 1, 1]} : vector<4x200x128xf32> to vector<1x200x128xf32>
    %13 = vector.shape_cast %12 : vector<1x200x128xf32> to vector<200x128xf32>
    %14 = arith.maximumf %11, %13 : vector<200x128xf32>
    %15 = arith.maximumf %9, %14 : vector<200x128xf32>
    %c0_4 = arith.constant 0 : index
    %c0_5 = arith.constant 0 : index
    %16 = vector.load %arg3[%c0_4, %c0_5] : memref<1x128xf32, #tpu.memory_space<vmem>>, vector<1x128xf32>
    %17 = vector.broadcast %16 : vector<1x128xf32> to vector<200x128xf32>
    %18 = arith.addf %15, %17 : vector<200x128xf32>
    %cst_6 = arith.constant 0.000000e+00 : f32
    %19 = vector.broadcast %cst_6 : f32 to vector<200x128xf32>
    %20 = arith.maximumf %18, %19 : vector<200x128xf32>
    %21 = arith.truncf %20 : vector<200x128xf32> to vector<200x128xbf16>
    %c0_7 = arith.constant 0 : index
    %c0_8 = arith.constant 0 : index
    %22 = vector.load %arg4[%c0_7, %c0_8] : memref<200x128xbf16, #tpu.memory_space<vmem>>, vector<200x128xbf16>
    tpu.vector_store %arg4[%c0_7, %c0_8], %21 {strides = array<i32>} : memref<200x128xbf16, #tpu.memory_space<vmem>>, vector<200x128xbf16>,
    return
  }
  func.func @transform_0(%arg0: i32) -> (i32, i32, i32) {
    %c0_i32 = arith.constant 0 : i32
    %c0_i32_0 = arith.constant 0 : i32
    %c0_i32_1 = arith.constant 0 : i32
    return %c0_i32, %arg0, %c0_i32_0 : i32, i32, i32
  }
  func.func @transform_1(%arg0: i32) -> (i32, i32) {
    %c0_i32 = arith.constant 0 : i32
    %c0_i32_0 = arith.constant 0 : i32
    %c0_i32_1 = arith.constant 0 : i32
    return %c0_i32, %c0_i32_0 : i32, i32
  }
  func.func @transform_2(%arg0: i32) -> (i32, i32) {
    %c0_i32 = arith.constant 0 : i32
    %c0_i32_0 = arith.constant 0 : i32
    %c0_i32_1 = arith.constant 0 : i32
    return %c0_i32, %c0_i32_0 : i32, i32
  }
  func.func @transform_3(%arg0: i32) -> (i32, i32) {
    %c0_i32 = arith.constant 0 : i32
    %c0_i32_0 = arith.constant 0 : i32
    return %arg0, %c0_i32 : i32, i32
  }
}

module attributes {stable_mosaic.version = 11 : i64} {
  func.func @_conv_relu_pool_kernel(%arg0: i32, %arg1: memref<4x32x512xbf16, #tpu.memory_space<vmem>>, %arg2: memref<512x128xbf16, #tpu.memory_space<vmem>>, %arg3: memref<1x128xf32, #tpu.memory_space<vmem>>, %arg4: memref<32x128xbf16, #tpu.memory_space<vmem>>) attributes {dimension_semantics = [#tpu.dimension_semantics<parallel>], iteration_bounds = array<i64: 2>, scalar_prefetch = 0 : i64, scratch_operands = 0 : i64, tpu.core_type = #tpu.core_type<tc>, window_params = [{transform_indices = @transform_0, window_bounds = array<i64: 4, 32, 512>}, {pipeline_mode = #tpu.pipeline_mode<synchronous>, transform_indices = @transform_1, window_bounds = array<i64: 512, 128>}, {pipeline_mode = #tpu.pipeline_mode<synchronous>, transform_indices = @transform_2, window_bounds = array<i64: 1, 128>}, {transform_indices = @transform_3, window_bounds = array<i64: 32, 128>}]} {
    %c0 = arith.constant 0 : index
    %c0_0 = arith.constant 0 : index
    %c0_1 = arith.constant 0 : index
    %0 = vector.load %arg1[%c0, %c0_0, %c0_1] : memref<4x32x512xbf16, #tpu.memory_space<vmem>>, vector<4x32x512xbf16>
    %1 = vector.shape_cast %0 : vector<4x32x512xbf16> to vector<128x512xbf16>
    %c0_2 = arith.constant 0 : index
    %c0_3 = arith.constant 0 : index
    %2 = vector.load %arg2[%c0_2, %c0_3] : memref<512x128xbf16, #tpu.memory_space<vmem>>, vector<512x128xbf16>
    %cst = arith.constant dense<0.000000e+00> : vector<128x128xf32>
    %3 = tpu.matmul %1, %2, %cst {dimension_numbers = #tpu.dot_dimension_numbers<[1], [0], [0], [1], [0, 0, 1, 1], [], []>} : vector<128x512xbf16>, vector<512x128xbf16>, vector<128x128xf32> -> vector<128x128xf32>
    %4 = vector.shape_cast %3 : vector<128x128xf32> to vector<4x32x128xf32>
    %5 = vector.extract_strided_slice %4 {offsets = [0, 0, 0], sizes = [1, 32, 128], strides = [1, 1, 1]} : vector<4x32x128xf32> to vector<1x32x128xf32>
    %6 = vector.shape_cast %5 : vector<1x32x128xf32> to vector<32x128xf32>
    %7 = vector.extract_strided_slice %4 {offsets = [1, 0, 0], sizes = [1, 32, 128], strides = [1, 1, 1]} : vector<4x32x128xf32> to vector<1x32x128xf32>
    %8 = vector.shape_cast %7 : vector<1x32x128xf32> to vector<32x128xf32>
    %9 = arith.maximumf %6, %8 : vector<32x128xf32>
    %10 = vector.extract_strided_slice %4 {offsets = [2, 0, 0], sizes = [1, 32, 128], strides = [1, 1, 1]} : vector<4x32x128xf32> to vector<1x32x128xf32>
    %11 = vector.shape_cast %10 : vector<1x32x128xf32> to vector<32x128xf32>
    %12 = vector.extract_strided_slice %4 {offsets = [3, 0, 0], sizes = [1, 32, 128], strides = [1, 1, 1]} : vector<4x32x128xf32> to vector<1x32x128xf32>
    %13 = vector.shape_cast %12 : vector<1x32x128xf32> to vector<32x128xf32>
    %14 = arith.maximumf %11, %13 : vector<32x128xf32>
    %15 = arith.maximumf %9, %14 : vector<32x128xf32>
    %c0_4 = arith.constant 0 : index
    %c0_5 = arith.constant 0 : index
    %16 = vector.load %arg3[%c0_4, %c0_5] : memref<1x128xf32, #tpu.memory_space<vmem>>, vector<1x128xf32>
    %17 = vector.broadcast %16 : vector<1x128xf32> to vector<32x128xf32>
    %18 = arith.addf %15, %17 : vector<32x128xf32>
    %cst_6 = arith.constant 0.000000e+00 : f32
    %19 = vector.broadcast %cst_6 : f32 to vector<32x128xf32>
    %20 = arith.maximumf %18, %19 : vector<32x128xf32>
    %21 = arith.truncf %20 : vector<32x128xf32> to vector<32x128xbf16>
    %c0_7 = arith.constant 0 : index
    %c0_8 = arith.constant 0 : index
    %22 = vector.load %arg4[%c0_7, %c0_8] : memref<32x128xbf16, #tpu.memory_space<vmem>>, vector<32x128xbf16>
    tpu.vector_store %arg4[%c0_7, %c0_8], %21 {strides = array<i32>} : memref<32x128xbf16, #tpu.memory_space<vmem>>, vector<32x128xbf16>,
    return
  }
  func.func @transform_0(%arg0: i32) -> (i32, i32, i32) {
    %c0_i32 = arith.constant 0 : i32
    %c0_i32_0 = arith.constant 0 : i32
    %c0_i32_1 = arith.constant 0 : i32
    return %c0_i32, %arg0, %c0_i32_0 : i32, i32, i32
  }
  func.func @transform_1(%arg0: i32) -> (i32, i32) {
    %c0_i32 = arith.constant 0 : i32
    %c0_i32_0 = arith.constant 0 : i32
    %c0_i32_1 = arith.constant 0 : i32
    return %c0_i32, %c0_i32_0 : i32, i32
  }
  func.func @transform_2(%arg0: i32) -> (i32, i32) {
    %c0_i32 = arith.constant 0 : i32
    %c0_i32_0 = arith.constant 0 : i32
    %c0_i32_1 = arith.constant 0 : i32
    return %c0_i32, %c0_i32_0 : i32, i32
  }
  func.func @transform_3(%arg0: i32) -> (i32, i32) {
    %c0_i32 = arith.constant 0 : i32
    %c0_i32_0 = arith.constant 0 : i32
    return %arg0, %c0_i32 : i32, i32
  }
}

module attributes {stable_mosaic.version = 11 : i64} {
  func.func @_fc_tail_kernel(%arg0: i32, %arg1: memref<8x896xbf16, #tpu.memory_space<vmem>>, %arg2: memref<896x896xbf16, #tpu.memory_space<vmem>>, %arg3: memref<1x896xf32, #tpu.memory_space<vmem>>, %arg4: memref<896x512xbf16, #tpu.memory_space<vmem>>, %arg5: memref<1x512xf32, #tpu.memory_space<vmem>>, %arg6: memref<512x128xbf16, #tpu.memory_space<vmem>>, %arg7: memref<1x128xf32, #tpu.memory_space<vmem>>, %arg8: memref<8x128xf32, #tpu.memory_space<vmem>>) attributes {dimension_semantics = [#tpu.dimension_semantics<parallel>], iteration_bounds = array<i64: 1>, scalar_prefetch = 0 : i64, scratch_operands = 0 : i64, tpu.core_type = #tpu.core_type<tc>, window_params = [{transform_indices = @transform_0, window_bounds = array<i64: 8, 896>}, {pipeline_mode = #tpu.pipeline_mode<synchronous>, transform_indices = @transform_1, window_bounds = array<i64: 896, 896>}, {pipeline_mode = #tpu.pipeline_mode<synchronous>, transform_indices = @transform_2, window_bounds = array<i64: 1, 896>}, {pipeline_mode = #tpu.pipeline_mode<synchronous>, transform_indices = @transform_3, window_bounds = array<i64: 896, 512>}, {pipeline_mode = #tpu.pipeline_mode<synchronous>, transform_indices = @transform_4, window_bounds = array<i64: 1, 512>}, {pipeline_mode = #tpu.pipeline_mode<synchronous>, transform_indices = @transform_5, window_bounds = array<i64: 512, 128>}, {pipeline_mode = #tpu.pipeline_mode<synchronous>, transform_indices = @transform_6, window_bounds = array<i64: 1, 128>}, {transform_indices = @transform_7, window_bounds = array<i64: 8, 128>}]} {
    %c0 = arith.constant 0 : index
    %c0_0 = arith.constant 0 : index
    %0 = vector.load %arg1[%c0, %c0_0] : memref<8x896xbf16, #tpu.memory_space<vmem>>, vector<8x896xbf16>
    %c0_1 = arith.constant 0 : index
    %c0_2 = arith.constant 0 : index
    %1 = vector.load %arg2[%c0_1, %c0_2] : memref<896x896xbf16, #tpu.memory_space<vmem>>, vector<896x896xbf16>
    %cst = arith.constant dense<0.000000e+00> : vector<8x896xf32>
    %2 = tpu.matmul %0, %1, %cst {dimension_numbers = #tpu.dot_dimension_numbers<[1], [0], [0], [1], [0, 0, 1, 1], [], []>} : vector<8x896xbf16>, vector<896x896xbf16>, vector<8x896xf32> -> vector<8x896xf32>
    %c0_3 = arith.constant 0 : index
    %c0_4 = arith.constant 0 : index
    %3 = vector.load %arg3[%c0_3, %c0_4] : memref<1x896xf32, #tpu.memory_space<vmem>>, vector<1x896xf32>
    %4 = vector.broadcast %3 : vector<1x896xf32> to vector<8x896xf32>
    %5 = arith.addf %2, %4 : vector<8x896xf32>
    %cst_5 = arith.constant 0.000000e+00 : f32
    %6 = vector.broadcast %cst_5 : f32 to vector<8x896xf32>
    %7 = arith.maximumf %5, %6 : vector<8x896xf32>
    %8 = arith.truncf %7 : vector<8x896xf32> to vector<8x896xbf16>
    %c0_6 = arith.constant 0 : index
    %c0_7 = arith.constant 0 : index
    %9 = vector.load %arg4[%c0_6, %c0_7] : memref<896x512xbf16, #tpu.memory_space<vmem>>, vector<896x512xbf16>
    %cst_8 = arith.constant dense<0.000000e+00> : vector<8x512xf32>
    %10 = tpu.matmul %8, %9, %cst_8 {dimension_numbers = #tpu.dot_dimension_numbers<[1], [0], [0], [1], [0, 0, 1, 1], [], []>} : vector<8x896xbf16>, vector<896x512xbf16>, vector<8x512xf32> -> vector<8x512xf32>
    %c0_9 = arith.constant 0 : index
    %c0_10 = arith.constant 0 : index
    %11 = vector.load %arg5[%c0_9, %c0_10] : memref<1x512xf32, #tpu.memory_space<vmem>>, vector<1x512xf32>
    %12 = vector.broadcast %11 : vector<1x512xf32> to vector<8x512xf32>
    %13 = arith.addf %10, %12 : vector<8x512xf32>
    %cst_11 = arith.constant 0.000000e+00 : f32
    %14 = vector.broadcast %cst_11 : f32 to vector<8x512xf32>
    %15 = arith.maximumf %13, %14 : vector<8x512xf32>
    %16 = arith.truncf %15 : vector<8x512xf32> to vector<8x512xbf16>
    %c0_12 = arith.constant 0 : index
    %c0_13 = arith.constant 0 : index
    %17 = vector.load %arg6[%c0_12, %c0_13] : memref<512x128xbf16, #tpu.memory_space<vmem>>, vector<512x128xbf16>
    %cst_14 = arith.constant dense<0.000000e+00> : vector<8x128xf32>
    %18 = tpu.matmul %16, %17, %cst_14 {dimension_numbers = #tpu.dot_dimension_numbers<[1], [0], [0], [1], [0, 0, 1, 1], [], []>} : vector<8x512xbf16>, vector<512x128xbf16>, vector<8x128xf32> -> vector<8x128xf32>
    %c0_15 = arith.constant 0 : index
    %c0_16 = arith.constant 0 : index
    %19 = vector.load %arg7[%c0_15, %c0_16] : memref<1x128xf32, #tpu.memory_space<vmem>>, vector<1x128xf32>
    %20 = vector.broadcast %19 : vector<1x128xf32> to vector<8x128xf32>
    %21 = arith.addf %18, %20 : vector<8x128xf32>
    %c0_17 = arith.constant 0 : index
    %c0_18 = arith.constant 0 : index
    %22 = vector.load %arg8[%c0_17, %c0_18] : memref<8x128xf32, #tpu.memory_space<vmem>>, vector<8x128xf32>
    tpu.vector_store %arg8[%c0_17, %c0_18], %21 {strides = array<i32>} : memref<8x128xf32, #tpu.memory_space<vmem>>, vector<8x128xf32>,
    return
  }
  func.func @transform_0(%arg0: i32) -> (i32, i32) {
    %c0_i32 = arith.constant 0 : i32
    %c0_i32_0 = arith.constant 0 : i32
    return %arg0, %c0_i32 : i32, i32
  }
  func.func @transform_1(%arg0: i32) -> (i32, i32) {
    %c0_i32 = arith.constant 0 : i32
    %c0_i32_0 = arith.constant 0 : i32
    %c0_i32_1 = arith.constant 0 : i32
    return %c0_i32, %c0_i32_0 : i32, i32
  }
  func.func @transform_2(%arg0: i32) -> (i32, i32) {
    %c0_i32 = arith.constant 0 : i32
    %c0_i32_0 = arith.constant 0 : i32
    %c0_i32_1 = arith.constant 0 : i32
    return %c0_i32, %c0_i32_0 : i32, i32
  }
  func.func @transform_3(%arg0: i32) -> (i32, i32) {
    %c0_i32 = arith.constant 0 : i32
    %c0_i32_0 = arith.constant 0 : i32
    %c0_i32_1 = arith.constant 0 : i32
    return %c0_i32, %c0_i32_0 : i32, i32
  }
  func.func @transform_4(%arg0: i32) -> (i32, i32) {
    %c0_i32 = arith.constant 0 : i32
    %c0_i32_0 = arith.constant 0 : i32
    %c0_i32_1 = arith.constant 0 : i32
    return %c0_i32, %c0_i32_0 : i32, i32
  }
  func.func @transform_5(%arg0: i32) -> (i32, i32) {
    %c0_i32 = arith.constant 0 : i32
    %c0_i32_0 = arith.constant 0 : i32
    %c0_i32_1 = arith.constant 0 : i32
    return %c0_i32, %c0_i32_0 : i32, i32
  }
  func.func @transform_6(%arg0: i32) -> (i32, i32) {
    %c0_i32 = arith.constant 0 : i32
    %c0_i32_0 = arith.constant 0 : i32
    %c0_i32_1 = arith.constant 0 : i32
    return %c0_i32, %c0_i32_0 : i32, i32
  }
  func.func @transform_7(%arg0: i32) -> (i32, i32) {
    %c0_i32 = arith.constant 0 : i32
    %c0_i32_0 = arith.constant 0 : i32
    return %arg0, %c0_i32 : i32, i32
  }
}

</mosaic_0001>

<llo_original>
// kernel: pfmcnn4_forward.3
$region0: #{pfmcnn4_forward.3}
  #allocation0 [shape = 'u32[]', space=smem, size = 0x4, offset = 0x4, fixed_abs, tag = 'smem constant byte address 0x4 - core index']
  #allocation1 [shape = 'u32[144,128]{1,0:T(1,128)}', space=vmem, size = 0x12000, scoped, tag = 'internal scratch']
  %s0 = inlined_call_operand.vmem [shape: bf16[4,400,128], index: 0, kind: input, shape index: {}]
  %s1 = inlined_call_operand.vmem [shape: bf16[128,128], index: 1, kind: input, shape index: {}]
  %s2 = inlined_call_operand.vmem [shape: f32[1,128], index: 2, kind: input, shape index: {}]
  %s3 = inlined_call_operand.vmem [shape: bf16[400,128], index: 3, kind: output, shape index: {}]
  %s4 = sld [smem:[#allocation0]]
  $region86: #{pfmcnn4_forward.3} parent=0
    _
  %s6 = ssub.s32 1, %s4
  %s7 = scalar_select 0, %s6, %s4
  $region1: #{pfmcnn4_forward.3} parent=0
    #allocation2 [shape = 'u8[409600]{0}', space=vmem, size = 0x64000, scoped, tag = 'input window, operand 0']
    loop: start=0, step=1, limit=4
    $region2: #{pfmcnn4_forward.3} parent=1 // loop_pre_header
      _
    $region3: #{pfmcnn4_forward.3} parent=1 // loop_header
      %s9 = sphi 0, %s13
      %p10 = scmp.ge.s32.totalorder %s9, 4
      %s19 = sphi 0, %s21
      %s22 = sphi 0, %s19
      %s23 = sphi 0, %s22
      %s39 = sphi 0, %s23
      %s43 = sphi 0, %s43
      %s45 = sphi 0, %s43
      %s46 = sphi 0, %s45
      %s60 = sphi 0, %s46
      %s64 = sphi 0, %s64
      %s66 = sphi 0, %s64
      %s67 = sphi 0, %s66
      %s81 = sphi 0, %s67
      %s87 = sphi 0, %s89
      %s90 = sphi 0, %s87
      %s91 = sphi 0, %s90
      %s107 = sphi 0, %s91
    $region4: #{pfmcnn4_forward.3} parent=1 // loop_header_branch
      %12 = sbr.rel (%p10) target = $region8
    $region5: #{pfmcnn4_forward.3} parent=1 // loop_body
      %s14 = ssub.s32 %s9, 1
      %s15 = ssub.s32 %s9, 2
      %s16 = sadd.s32 %s9, 1
      %s17 = ssub.s32 %s9, %s16
      %p18 = scmp.eq.s32.totalorder %s17, 0
      %s20 = sadd.s32 %s19, 1
      %s21 = scalar_select %p18, %s19, %s20
      %p24 = pneg %p18
      %p25 = scmp.eq.s32.totalorder %s9, 1
      %p26 = por %p24, %p25
      %p27 = scmp.ne.s32.totalorder %s19, %s22
      %p28 = scmp.eq.s32.totalorder %s9, 0
      %p29 = por %p27, %p28
      %p30 = scmp.ne.s32.totalorder %s19, %s22
      %p31 = scmp.eq.s32.totalorder %s14, 1
      %p32 = por %p30, %p31
      %p33 = scmp.ne.s32.totalorder %s22, %s23
      %p34 = scmp.eq.s32.totalorder %s14, 0
      %p35 = por %p33, %p34
      %p36 = scmp.ne.s32.totalorder %s22, %s23
      %p37 = scmp.eq.s32.totalorder %s15, 1
      %p38 = por %p36, %p37
      %p40 = scmp.ne.s32.totalorder %s23, %s39
      %p41 = scmp.eq.s32.totalorder %s15, 0
      %p42 = por %p40, %p41
      %s44 = sadd.s32 %s43, 1
      %p47 = scmp.eq.s32.totalorder %s9, 1
      %p48 = scmp.ne.s32.totalorder %s43, %s45
      %p49 = scmp.eq.s32.totalorder %s9, 0
      %p50 = por %p48, %p49
      %p51 = scmp.ne.s32.totalorder %s43, %s45
      %p52 = scmp.eq.s32.totalorder %s14, 1
      %p53 = por %p51, %p52
      %p54 = scmp.ne.s32.totalorder %s45, %s46
      %p55 = scmp.eq.s32.totalorder %s14, 0
      %p56 = por %p54, %p55
      %p57 = scmp.ne.s32.totalorder %s45, %s46
      %p58 = scmp.eq.s32.totalorder %s15, 1
      %p59 = por %p57, %p58
      %p61 = scmp.ne.s32.totalorder %s46, %s60
      %p62 = scmp.eq.s32.totalorder %s15, 0
      %p63 = por %p61, %p62
      %s65 = sadd.s32 %s64, 1
      %p68 = scmp.eq.s32.totalorder %s9, 1
      %p69 = scmp.ne.s32.totalorder %s64, %s66
      %p70 = scmp.eq.s32.totalorder %s9, 0
      %p71 = por %p69, %p70
      %p72 = scmp.ne.s32.totalorder %s64, %s66
      %p73 = scmp.eq.s32.totalorder %s14, 1
      %p74 = por %p72, %p73
      %p75 = scmp.ne.s32.totalorder %s66, %s67
      %p76 = scmp.eq.s32.totalorder %s14, 0
      %p77 = por %p75, %p76
      %p78 = scmp.ne.s32.totalorder %s66, %s67
      %p79 = scmp.eq.s32.totalorder %s15, 1
      %p80 = por %p78, %p79
      %p82 = scmp.ne.s32.totalorder %s67, %s81
      %p83 = scmp.eq.s32.totalorder %s15, 0
      %p84 = por %p82, %p83
      %s85 = ssub.s32 %s9, %s16
      %p86 = scmp.eq.s32.totalorder %s85, 0
      %s88 = sadd.s32 %s87, 1
      %s89 = scalar_select %p86, %s87, %s88
      %p92 = pneg %p86
      %p93 = scmp.eq.s32.totalorder %s9, 1
      %p94 = por %p92, %p93
      %p95 = scmp.ne.s32.totalorder %s87, %s90
      %p96 = scmp.eq.s32.totalorder %s9, 0
      %p97 = por %p95, %p96
      %p98 = scmp.ne.s32.totalorder %s87, %s90
      %p99 = scmp.eq.s32.totalorder %s14, 1
      %p100 = por %p98, %p99
      %p101 = scmp.ne.s32.totalorder %s90, %s91
      %p102 = scmp.eq.s32.totalorder %s14, 0
      %p103 = por %p101, %p102
      %p104 = scmp.ne.s32.totalorder %s90, %s91
      %p105 = scmp.eq.s32.totalorder %s15, 1
      %p106 = por %p104, %p105
      %p108 = scmp.ne.s32.totalorder %s91, %s107
      %p109 = scmp.eq.s32.totalorder %s15, 0
      %p110 = por %p108, %p109
      %p111 = scmp.le.s32.totalorder 1, %s9
      %p112 = scmp.lt.s32.totalorder %s9, 3
      %p113 = pnand %p111, %p112
      %p114 = pneg %p113
      // Predicated region
      $region9: #{pfmcnn4_forward.3} parent=5 // pred_check
        _
      $region10: #{pfmcnn4_forward.3} parent=5 // pred_check_branch
        %116 = sbr.rel (%p113) target = $region12
      $region11: #{pfmcnn4_forward.3} parent=5 // pred_region
        %s117 = ssub.s32 %s9, 1
        // Predicated region
        $region13: #{pfmcnn4_forward.3} parent=11 // pred_check
          %p118 = pneg %p56
        $region14: #{pfmcnn4_forward.3} parent=11 // pred_check_branch
          %120 = sbr.rel (%p118) target = $region16
        $region15: #{pfmcnn4_forward.3} parent=11 // pred_region
          _
        $region16: #{pfmcnn4_forward.3} parent=11 // pred_fallthru
          _
        // Predicated region
        $region17: #{pfmcnn4_forward.3} parent=11 // pred_check
          %p121 = pneg %p77
        $region18: #{pfmcnn4_forward.3} parent=11 // pred_check_branch
          %123 = sbr.rel (%p121) target = $region20
        $region19: #{pfmcnn4_forward.3} parent=11 // pred_region
          _
        $region20: #{pfmcnn4_forward.3} parent=11 // pred_fallthru
          _
      $region12: #{pfmcnn4_forward.3} parent=5 // pred_fallthru
        _
      %p124 = scmp.lt.s32.totalorder %s9, 2
      // Predicated region
      $region21: #{pfmcnn4_forward.3} parent=5 // pred_check
        %p125 = pneg %p124
      $region22: #{pfmcnn4_forward.3} parent=5 // pred_check_branch
        %127 = sbr.rel (%p125) target = $region24
      $region23: #{pfmcnn4_forward.3} parent=5 // pred_region
        // Predicated region
        $region25: #{pfmcnn4_forward.3} parent=23 // pred_check
          %p128 = pneg %p29
        $region26: #{pfmcnn4_forward.3} parent=23 // pred_check_branch
          %130 = sbr.rel (%p128) target = $region28
        $region27: #{pfmcnn4_forward.3} parent=23 // pred_region
          %s131 = sand.u32 %s19, 1
          %s132 = sand.u32 %s19, 1
          %s133 = smul.addr %s132, 400
          %s134 = scalar_lea.vmem [#allocation2], %s133
          %s135 = smul.u32 25, %s9
          %s136 = smul.addr %s135, 4
          %s137 = scalar_lea.vmem %s0, %s136
          // Predicated region
          $region29: #{pfmcnn4_forward.3} parent=27 // pred_check
            _
          $region30: #{pfmcnn4_forward.3} parent=27 // pred_check_branch
            %139 = sbr.rel (0) target = $region32
          $region31: #{pfmcnn4_forward.3} parent=27 // pred_region
            // Predicated region
            $region33: #{pfmcnn4_forward.3} parent=31 // pred_check
              _
            $region34: #{pfmcnn4_forward.3} parent=31 // pred_check_branch
              %141 = sbr.rel target = $region36
            $region35: #{pfmcnn4_forward.3} parent=31 // pred_region
              // Predicated region
              $region48: #{pfmcnn4_forward.3} parent=35 // pred_check
                _
              $region49: #{pfmcnn4_forward.3} parent=35 // pred_check_branch
                %354 = sbr.rel (0) target = $region51
              $region50: #{pfmcnn4_forward.3} parent=35 // pred_region
                loop: start=0, step=1, limit=1
                $region52: #{pfmcnn4_forward.3} parent=50 // loop_pre_header
                  _
                $region53: #{pfmcnn4_forward.3} parent=50 // loop_header
                  %s356 = sphi 0, %s360
                  %p357 = scmp.ge.s32.totalorder %s356, 1
                  %s361 = sphi %s137, %s137
                  %s362 = sphi %s134, %s134
                $region54: #{pfmcnn4_forward.3} parent=50 // loop_header_branch
                  %359 = sbr.rel (%p357) target = $region58
                $region55: #{pfmcnn4_forward.3} parent=50 // loop_body
                  _
                $region56: #{pfmcnn4_forward.3} parent=50 // loop_footer
                  %s360 = sadd.s32 1, %s356
                $region57: #{pfmcnn4_forward.3} parent=50 // loop_footer_branch
                  %355 = sbr.rel target = $region53
                $region58: #{pfmcnn4_forward.3} parent=50 // loop_exit
                  _
                loop: start=0, step=1, limit=1
                $region59: #{pfmcnn4_forward.3} parent=50 // loop_pre_header
                  _
                $region60: #{pfmcnn4_forward.3} parent=50 // loop_header
                  %s365 = sphi 0, %s369
                  %p366 = scmp.ge.s32.totalorder %s365, 1
                  %s370 = sphi %s137, %s137
                  %s371 = sphi %s134, %s134
                $region61: #{pfmcnn4_forward.3} parent=50 // loop_header_branch
                  %368 = sbr.rel (%p366) target = $region65
                $region62: #{pfmcnn4_forward.3} parent=50 // loop_body
                  %v372 = vld [vmem:[%s370] sm:$0xf]
                  %373 = vst [vmem:[%s371] sm:$0xf] %v372
                  %v374 = vld [vmem:[%s370 + $0x4] sm:$0xf]
                  %375 = vst [vmem:[%s371 + $0x4] sm:$0xf] %v374
                  %v376 = vld [vmem:[%s370 + $0x8] sm:$0xf]
                  %377 = vst [vmem:[%s371 + $0x8] sm:$0xf] %v376
                  %v378 = vld [vmem:[%s370 + $0xc] sm:$0xf]
                  %379 = vst [vmem:[%s371 + $0xc] sm:$0xf] %v378
                  %v380 = vld [vmem:[%s370 + $0x10] sm:$0xf]
                  %381 = vst [vmem:[%s371 + $0x10] sm:$0xf] %v380
                  %v382 = vld [vmem:[%s370 + $0x14] sm:$0xf]
                  %383 = vst [vmem:[%s371 + $0x14] sm:$0xf] %v382
                  %v384 = vld [vmem:[%s370 + $0x18] sm:$0xf]
                  %385 = vst [vmem:[%s371 + $0x18] sm:$0xf] %v384
                  %v386 = vld [vmem:[%s370 + $0x1c] sm:$0xf]
                  %387 = vst [vmem:[%s371 + $0x1c] sm:$0xf] %v386
                  %v388 = vld [vmem:[%s370 + $0x20] sm:$0xf]
                  %389 = vst [vmem:[%s371 + $0x20] sm:$0xf] %v388
                  %v390 = vld [vmem:[%s370 + $0x24] sm:$0xf]
                  %391 = vst [vmem:[%s371 + $0x24] sm:$0xf] %v390
                  %v392 = vld [vmem:[%s370 + $0x28] sm:$0xf]
                  %393 = vst [vmem:[%s371 + $0x28] sm:$0xf] %v392
                  %v394 = vld [vmem:[%s370 + $0x2c] sm:$0xf]
                  %395 = vst [vmem:[%s371 + $0x2c] sm:$0xf] %v394
                  %v396 = vld [vmem:[%s370 + $0x30] sm:$0xf]
                  %397 = vst [vmem:[%s371 + $0x30] sm:$0xf] %v396
                  %v398 = vld [vmem:[%s370 + $0x34] sm:$0xf]
                  %399 = vst [vmem:[%s371 + $0x34] sm:$0xf] %v398
                  %v400 = vld [vmem:[%s370 + $0x38] sm:$0xf]
                  %401 = vst [vmem:[%s371 + $0x38] sm:$0xf] %v400
                  %v402 = vld [vmem:[%s370 + $0x3c] sm:$0xf]
                  %403 = vst [vmem:[%s371 + $0x3c] sm:$0xf] %v402
                  %v404 = vld [vmem:[%s370 + $0x40] sm:$0xf]
                  %405 = vst [vmem:[%s371 + $0x40] sm:$0xf] %v404
                  %v406 = vld [vmem:[%s370 + $0x44] sm:$0xf]
                  %407 = vst [vmem:[%s371 + $0x44] sm:$0xf] %v406
                  %v408 = vld [vmem:[%s370 + $0x48] sm:$0xf]
                  %409 = vst [vmem:[%s371 + $0x48] sm:$0xf] %v408
                  %v410 = vld [vmem:[%s370 + $0x4c] sm:$0xf]
                  %411 = vst [vmem:[%s371 + $0x4c] sm:$0xf] %v410
                  %v412 = vld [vmem:[%s370 + $0x50] sm:$0xf]
                  %413 = vst [vmem:[%s371 + $0x50] sm:$0xf] %v412
                  %v414 = vld [vmem:[%s370 + $0x54] sm:$0xf]
                  %415 = vst [vmem:[%s371 + $0x54] sm:$0xf] %v414
                  %v416 = vld [vmem:[%s370 + $0x58] sm:$0xf]
                  %417 = vst [vmem:[%s371 + $0x58] sm:$0xf] %v416
                  %v418 = vld [vmem:[%s370 + $0x5c] sm:$0xf]
                  %419 = vst [vmem:[%s371 + $0x5c] sm:$0xf] %v418
                  %v420 = vld [vmem:[%s370 + $0x60] sm:$0xf]
                  %421 = vst [vmem:[%s371 + $0x60] sm:$0xf] %v420
                  %v422 = vld [vmem:[%s370 + $0xc8] sm:$0xf]
                  %423 = vst [vmem:[%s371 + $0x64] sm:$0xf] %v422
                  %v424 = vld [vmem:[%s370 + $0xcc] sm:$0xf]
                  %425 = vst [vmem:[%s371 + $0x68] sm:$0xf] %v424
                  %v426 = vld [vmem:[%s370 + $0xd0] sm:$0xf]
                  %427 = vst [vmem:[%s371 + $0x6c] sm:$0xf] %v426
                  %v428 = vld [vmem:[%s370 + $0xd4] sm:$0xf]
                  %429 = vst [vmem:[%s371 + $0x70] sm:$0xf] %v428
                  %v430 = vld [vmem:[%s370 + $0xd8] sm:$0xf]
                  %431 = vst [vmem:[%s371 + $0x74] sm:$0xf] %v430
                  %v432 = vld [vmem:[%s370 + $0xdc] sm:$0xf]
                  %433 = vst [vmem:[%s371 + $0x78] sm:$0xf] %v432
                  %v434 = vld [vmem:[%s370 + $0xe0] sm:$0xf]
                  %435 = vst [vmem:[%s371 + $0x7c] sm:$0xf] %v434
                  %v436 = vld [vmem:[%s370 + $0xe4] sm:$0xf]
                  %437 = vst [vmem:[%s371 + $0x80] sm:$0xf] %v436
                  %v438 = vld [vmem:[%s370 + $0xe8] sm:$0xf]
                  %439 = vst [vmem:[%s371 + $0x84] sm:$0xf] %v438
                  %v440 = vld [vmem:[%s370 + $0xec] sm:$0xf]
                  %441 = vst [vmem:[%s371 + $0x88] sm:$0xf] %v440
                  %v442 = vld [vmem:[%s370 + $0xf0] sm:$0xf]
                  %443 = vst [vmem:[%s371 + $0x8c] sm:$0xf] %v442
                  %v444 = vld [vmem:[%s370 + $0xf4] sm:$0xf]
                  %445 = vst [vmem:[%s371 + $0x90] sm:$0xf] %v444
                  %v446 = vld [vmem:[%s370 + $0xf8] sm:$0xf]
                  %447 = vst [vmem:[%s371 + $0x94] sm:$0xf] %v446
                  %v448 = vld [vmem:[%s370 + $0xfc] sm:$0xf]
                  %449 = vst [vmem:[%s371 + $0x98] sm:$0xf] %v448
                  %v450 = vld [vmem:[%s370 + $0x100] sm:$0xf]
                  %451 = vst [vmem:[%s371 + $0x9c] sm:$0xf] %v450
                  %v452 = vld [vmem:[%s370 + $0x104] sm:$0xf]
                  %453 = vst [vmem:[%s371 + $0xa0] sm:$0xf] %v452
                  %v454 = vld [vmem:[%s370 + $0x108] sm:$0xf]
                  %455 = vst [vmem:[%s371 + $0xa4] sm:$0xf] %v454
                  %v456 = vld [vmem:[%s370 + $0x10c] sm:$0xf]
                  %457 = vst [vmem:[%s371 + $0xa8] sm:$0xf] %v456
                  %v458 = vld [vmem:[%s370 + $0x110] sm:$0xf]
                  %459 = vst [vmem:[%s371 + $0xac] sm:$0xf] %v458
                  %v460 = vld [vmem:[%s370 + $0x114] sm:$0xf]
                  %461 = vst [vmem:[%s371 + $0xb0] sm:$0xf] %v460
                  %v462 = vld [vmem:[%s370 + $0x118] sm:$0xf]
                  %463 = vst [vmem:[%s371 + $0xb4] sm:$0xf] %v462
                  %v464 = vld [vmem:[%s370 + $0x11c] sm:$0xf]
                  %465 = vst [vmem:[%s371 + $0xb8] sm:$0xf] %v464
                  %v466 = vld [vmem:[%s370 + $0x120] sm:$0xf]
                  %467 = vst [vmem:[%s371 + $0xbc] sm:$0xf] %v466
                  %v468 = vld [vmem:[%s370 + $0x124] sm:$0xf]
                  %469 = vst [vmem:[%s371 + $0xc0] sm:$0xf] %v468
                  %v470 = vld [vmem:[%s370 + $0x128] sm:$0xf]
                  %471 = vst [vmem:[%s371 + $0xc4] sm:$0xf] %v470
                  %v472 = vld [vmem:[%s370 + $0x190] sm:$0xf]
                  %473 = vst [vmem:[%s371 + $0xc8] sm:$0xf] %v472
                  %v474 = vld [vmem:[%s370 + $0x194] sm:$0xf]
                  %475 = vst [vmem:[%s371 + $0xcc] sm:$0xf] %v474
                  %v476 = vld [vmem:[%s370 + $0x198] sm:$0xf]
                  %477 = vst [vmem:[%s371 + $0xd0] sm:$0xf] %v476
                  %v478 = vld [vmem:[%s370 + $0x19c] sm:$0xf]
                  %479 = vst [vmem:[%s371 + $0xd4] sm:$0xf] %v478
                  %v480 = vld [vmem:[%s370 + $0x1a0] sm:$0xf]
                  %481 = vst [vmem:[%s371 + $0xd8] sm:$0xf] %v480
                  %v482 = vld [vmem:[%s370 + $0x1a4] sm:$0xf]
                  %483 = vst [vmem:[%s371 + $0xdc] sm:$0xf] %v482
                  %v484 = vld [vmem:[%s370 + $0x1a8] sm:$0xf]
                  %485 = vst [vmem:[%s371 + $0xe0] sm:$0xf] %v484
                  %v486 = vld [vmem:[%s370 + $0x1ac] sm:$0xf]
                  %487 = vst [vmem:[%s371 + $0xe4] sm:$0xf] %v486
                  %v488 = vld [vmem:[%s370 + $0x1b0] sm:$0xf]
                  %489 = vst [vmem:[%s371 + $0xe8] sm:$0xf] %v488
                  %v490 = vld [vmem:[%s370 + $0x1b4] sm:$0xf]
                  %491 = vst [vmem:[%s371 + $0xec] sm:$0xf] %v490
                  %v492 = vld [vmem:[%s370 + $0x1b8] sm:$0xf]
                  %493 = vst [vmem:[%s371 + $0xf0] sm:$0xf] %v492
                  %v494 = vld [vmem:[%s370 + $0x1bc] sm:$0xf]
                  %495 = vst [vmem:[%s371 + $0xf4] sm:$0xf] %v494
                  %v496 = vld [vmem:[%s370 + $0x1c0] sm:$0xf]
                  %497 = vst [vmem:[%s371 + $0xf8] sm:$0xf] %v496
                  %v498 = vld [vmem:[%s370 + $0x1c4] sm:$0xf]
                  %499 = vst [vmem:[%s371 + $0xfc] sm:$0xf] %v498
                  %v500 = vld [vmem:[%s370 + $0x1c8] sm:$0xf]
                  %501 = vst [vmem:[%s371 + $0x100] sm:$0xf] %v500
                  %v502 = vld [vmem:[%s370 + $0x1cc] sm:$0xf]
                  %503 = vst [vmem:[%s371 + $0x104] sm:$0xf] %v502
                  %v504 = vld [vmem:[%s370 + $0x1d0] sm:$0xf]
                  %505 = vst [vmem:[%s371 + $0x108] sm:$0xf] %v504
                  %v506 = vld [vmem:[%s370 + $0x1d4] sm:$0xf]
                  %507 = vst [vmem:[%s371 + $0x10c] sm:$0xf] %v506
                  %v508 = vld [vmem:[%s370 + $0x1d8] sm:$0xf]
                  %509 = vst [vmem:[%s371 + $0x110] sm:$0xf] %v508
                  %v510 = vld [vmem:[%s370 + $0x1dc] sm:$0xf]
                  %511 = vst [vmem:[%s371 + $0x114] sm:$0xf] %v510
                  %v512 = vld [vmem:[%s370 + $0x1e0] sm:$0xf]
                  %513 = vst [vmem:[%s371 + $0x118] sm:$0xf] %v512
                  %v514 = vld [vmem:[%s370 + $0x1e4] sm:$0xf]
                  %515 = vst [vmem:[%s371 + $0x11c] sm:$0xf] %v514
                  %v516 = vld [vmem:[%s370 + $0x1e8] sm:$0xf]
                  %517 = vst [vmem:[%s371 + $0x120] sm:$0xf] %v516
                  %v518 = vld [vmem:[%s370 + $0x1ec] sm:$0xf]
                  %519 = vst [vmem:[%s371 + $0x124] sm:$0xf] %v518
                  %v520 = vld [vmem:[%s370 + $0x1f0] sm:$0xf]
                  %521 = vst [vmem:[%s371 + $0x128] sm:$0xf] %v520
                  %v522 = vld [vmem:[%s370 + $0x258] sm:$0xf]
                  %523 = vst [vmem:[%s371 + $0x12c] sm:$0xf] %v522
                  %v524 = vld [vmem:[%s370 + $0x25c] sm:$0xf]
                  %525 = vst [vmem:[%s371 + $0x130] sm:$0xf] %v524
                  %v526 = vld [vmem:[%s370 + $0x260] sm:$0xf]
                  %527 = vst [vmem:[%s371 + $0x134] sm:$0xf] %v526
                  %v528 = vld [vmem:[%s370 + $0x264] sm:$0xf]
                  %529 = vst [vmem:[%s371 + $0x138] sm:$0xf] %v528
                  %v530 = vld [vmem:[%s370 + $0x268] sm:$0xf]
                  %531 = vst [vmem:[%s371 + $0x13c] sm:$0xf] %v530
                  %v532 = vld [vmem:[%s370 + $0x26c] sm:$0xf]
                  %533 = vst [vmem:[%s371 + $0x140] sm:$0xf] %v532
                  %v534 = vld [vmem:[%s370 + $0x270] sm:$0xf]
                  %535 = vst [vmem:[%s371 + $0x144] sm:$0xf] %v534
                  %v536 = vld [vmem:[%s370 + $0x274] sm:$0xf]
                  %537 = vst [vmem:[%s371 + $0x148] sm:$0xf] %v536
                  %v538 = vld [vmem:[%s370 + $0x278] sm:$0xf]
                  %539 = vst [vmem:[%s371 + $0x14c] sm:$0xf] %v538
                  %v540 = vld [vmem:[%s370 + $0x27c] sm:$0xf]
                  %541 = vst [vmem:[%s371 + $0x150] sm:$0xf] %v540
                  %v542 = vld [vmem:[%s370 + $0x280] sm:$0xf]
                  %543 = vst [vmem:[%s371 + $0x154] sm:$0xf] %v542
                  %v544 = vld [vmem:[%s370 + $0x284] sm:$0xf]
                  %545 = vst [vmem:[%s371 + $0x158] sm:$0xf] %v544
                  %v546 = vld [vmem:[%s370 + $0x288] sm:$0xf]
                  %547 = vst [vmem:[%s371 + $0x15c] sm:$0xf] %v546
                  %v548 = vld [vmem:[%s370 + $0x28c] sm:$0xf]
                  %549 = vst [vmem:[%s371 + $0x160] sm:$0xf] %v548
                  %v550 = vld [vmem:[%s370 + $0x290] sm:$0xf]
                  %551 = vst [vmem:[%s371 + $0x164] sm:$0xf] %v550
                  %v552 = vld [vmem:[%s370 + $0x294] sm:$0xf]
                  %553 = vst [vmem:[%s371 + $0x168] sm:$0xf] %v552
                  %v554 = vld [vmem:[%s370 + $0x298] sm:$0xf]
                  %555 = vst [vmem:[%s371 + $0x16c] sm:$0xf] %v554
                  %v556 = vld [vmem:[%s370 + $0x29c] sm:$0xf]
                  %557 = vst [vmem:[%s371 + $0x170] sm:$0xf] %v556
                  %v558 = vld [vmem:[%s370 + $0x2a0] sm:$0xf]
                  %559 = vst [vmem:[%s371 + $0x174] sm:$0xf] %v558
                  %v560 = vld [vmem:[%s370 + $0x2a4] sm:$0xf]
                  %561 = vst [vmem:[%s371 + $0x178] sm:$0xf] %v560
                  %v562 = vld [vmem:[%s370 + $0x2a8] sm:$0xf]
                  %563 = vst [vmem:[%s371 + $0x17c] sm:$0xf] %v562
                  %v564 = vld [vmem:[%s370 + $0x2ac] sm:$0xf]
                  %565 = vst [vmem:[%s371 + $0x180] sm:$0xf] %v564
                  %v566 = vld [vmem:[%s370 + $0x2b0] sm:$0xf]
                  %567 = vst [vmem:[%s371 + $0x184] sm:$0xf] %v566
                  %v568 = vld [vmem:[%s370 + $0x2b4] sm:$0xf]
                  %569 = vst [vmem:[%s371 + $0x188] sm:$0xf] %v568
                  %v570 = vld [vmem:[%s370 + $0x2b8] sm:$0xf]
                  %571 = vst [vmem:[%s371 + $0x18c] sm:$0xf] %v570
                $region63: #{pfmcnn4_forward.3} parent=50 // loop_footer
                  %s369 = sadd.s32 1, %s365
                $region64: #{pfmcnn4_forward.3} parent=50 // loop_footer_branch
                  %364 = sbr.rel target = $region60
                $region65: #{pfmcnn4_forward.3} parent=50 // loop_exit
                  _
              $region51: #{pfmcnn4_forward.3} parent=35 // pred_fallthru
                _
            $region36: #{pfmcnn4_forward.3} parent=31 // pred_fallthru
              _
            // Predicated region
            $region37: #{pfmcnn4_forward.3} parent=31 // pred_check
              _
            $region38: #{pfmcnn4_forward.3} parent=31 // pred_check_branch
              %143 = sbr.rel (0) target = $region40
            $region39: #{pfmcnn4_forward.3} parent=31 // pred_region
              loop: start=0, step=1, limit=1
              $region41: #{pfmcnn4_forward.3} parent=39 // loop_pre_header
                _
              $region42: #{pfmcnn4_forward.3} parent=39 // loop_header
                %s146 = sphi 0, %s150
                %p147 = scmp.ge.s32.totalorder %s146, 1
                %s151 = sphi %s137, %s137
                %s152 = sphi %s134, %s134
              $region43: #{pfmcnn4_forward.3} parent=39 // loop_header_branch
                %149 = sbr.rel (%p147) target = $region47
              $region44: #{pfmcnn4_forward.3} parent=39 // loop_body
                %v153 = vld [vmem:[%s151] sm:$0xf]
                %154 = vst [vmem:[%s152] sm:$0xf] %v153
                %v155 = vld [vmem:[%s151 + $0x4] sm:$0xf]
                %156 = vst [vmem:[%s152 + $0x4] sm:$0xf] %v155
                %v157 = vld [vmem:[%s151 + $0x8] sm:$0xf]
                %158 = vst [vmem:[%s152 + $0x8] sm:$0xf] %v157
                %v159 = vld [vmem:[%s151 + $0xc] sm:$0xf]
                %160 = vst [vmem:[%s152 + $0xc] sm:$0xf] %v159
                %v161 = vld [vmem:[%s151 + $0x10] sm:$0xf]
                %162 = vst [vmem:[%s152 + $0x10] sm:$0xf] %v161
                %v163 = vld [vmem:[%s151 + $0x14] sm:$0xf]
                %164 = vst [vmem:[%s152 + $0x14] sm:$0xf] %v163
                %v165 = vld [vmem:[%s151 + $0x18] sm:$0xf]
                %166 = vst [vmem:[%s152 + $0x18] sm:$0xf] %v165
                %v167 = vld [vmem:[%s151 + $0x1c] sm:$0xf]
                %168 = vst [vmem:[%s152 + $0x1c] sm:$0xf] %v167
                %v169 = vld [vmem:[%s151 + $0x20] sm:$0xf]
                %170 = vst [vmem:[%s152 + $0x20] sm:$0xf] %v169
                %v171 = vld [vmem:[%s151 + $0x24] sm:$0xf]
                %172 = vst [vmem:[%s152 + $0x24] sm:$0xf] %v171
                %v173 = vld [vmem:[%s151 + $0x28] sm:$0xf]
                %174 = vst [vmem:[%s152 + $0x28] sm:$0xf] %v173
                %v175 = vld [vmem:[%s151 + $0x2c] sm:$0xf]
                %176 = vst [vmem:[%s152 + $0x2c] sm:$0xf] %v175
                %v177 = vld [vmem:[%s151 + $0x30] sm:$0xf]
                %178 = vst [vmem:[%s152 + $0x30] sm:$0xf] %v177
                %v179 = vld [vmem:[%s151 + $0x34] sm:$0xf]
                %180 = vst [vmem:[%s152 + $0x34] sm:$0xf] %v179
                %v181 = vld [vmem:[%s151 + $0x38] sm:$0xf]
                %182 = vst [vmem:[%s152 + $0x38] sm:$0xf] %v181
                %v183 = vld [vmem:[%s151 + $0x3c] sm:$0xf]
                %184 = vst [vmem:[%s152 + $0x3c] sm:$0xf] %v183
                %v185 = vld [vmem:[%s151 + $0x40] sm:$0xf]
                %186 = vst [vmem:[%s152 + $0x40] sm:$0xf] %v185
                %v187 = vld [vmem:[%s151 + $0x44] sm:$0xf]
                %188 = vst [vmem:[%s152 + $0x44] sm:$0xf] %v187
                %v189 = vld [vmem:[%s151 + $0x48] sm:$0xf]
                %190 = vst [vmem:[%s152 + $0x48] sm:$0xf] %v189
                %v191 = vld [vmem:[%s151 + $0x4c] sm:$0xf]
                %192 = vst [vmem:[%s152 + $0x4c] sm:$0xf] %v191
                %v193 = vld [vmem:[%s151 + $0x50] sm:$0xf]
                %194 = vst [vmem:[%s152 + $0x50] sm:$0xf] %v193
                %v195 = vld [vmem:[%s151 + $0x54] sm:$0xf]
                %196 = vst [vmem:[%s152 + $0x54] sm:$0xf] %v195
                %v197 = vld [vmem:[%s151 + $0x58] sm:$0xf]
                %198 = vst [vmem:[%s152 + $0x58] sm:$0xf] %v197
                %v199 = vld [vmem:[%s151 + $0x5c] sm:$0xf]
                %200 = vst [vmem:[%s152 + $0x5c] sm:$0xf] %v199
                %v201 = vld [vmem:[%s151 + $0x60] sm:$0xf]
                %202 = vst [vmem:[%s152 + $0x60] sm:$0xf] %v201
                %v203 = vld [vmem:[%s151 + $0xc8] sm:$0xf]
                %204 = vst [vmem:[%s152 + $0x64] sm:$0xf] %v203
                %v205 = vld [vmem:[%s151 + $0xcc] sm:$0xf]
                %206 = vst [vmem:[%s152 + $0x68] sm:$0xf] %v205
                %v207 = vld [vmem:[%s151 + $0xd0] sm:$0xf]
                %208 = vst [vmem:[%s152 + $0x6c] sm:$0xf] %v207
                %v209 = vld [vmem:[%s151 + $0xd4] sm:$0xf]
                %210 = vst [vmem:[%s152 + $0x70] sm:$0xf] %v209
                %v211 = vld [vmem:[%s151 + $0xd8] sm:$0xf]
                %212 = vst [vmem:[%s152 + $0x74] sm:$0xf] %v211
                %v213 = vld [vmem:[%s151 + $0xdc] sm:$0xf]
                %214 = vst [vmem:[%s152 + $0x78] sm:$0xf] %v213
                %v215 = vld [vmem:[%s151 + $0xe0] sm:$0xf]
                %216 = vst [vmem:[%s152 + $0x7c] sm:$0xf] %v215
                %v217 = vld [vmem:[%s151 + $0xe4] sm:$0xf]
                %218 = vst [vmem:[%s152 + $0x80] sm:$0xf] %v217
                %v219 = vld [vmem:[%s151 + $0xe8] sm:$0xf]
                %220 = vst [vmem:[%s152 + $0x84] sm:$0xf] %v219
                %v221 = vld [vmem:[%s151 + $0xec] sm:$0xf]
                %222 = vst [vmem:[%s152 + $0x88] sm:$0xf] %v221
                %v223 = vld [vmem:[%s151 + $0xf0] sm:$0xf]
                %224 = vst [vmem:[%s152 + $0x8c] sm:$0xf] %v223
                %v225 = vld [vmem:[%s151 + $0xf4] sm:$0xf]
                %226 = vst [vmem:[%s152 + $0x90] sm:$0xf] %v225
                %v227 = vld [vmem:[%s151 + $0xf8] sm:$0xf]
                %228 = vst [vmem:[%s152 + $0x94] sm:$0xf] %v227
                %v229 = vld [vmem:[%s151 + $0xfc] sm:$0xf]
                %230 = vst [vmem:[%s152 + $0x98] sm:$0xf] %v229
                %v231 = vld [vmem:[%s151 + $0x100] sm:$0xf]
                %232 = vst [vmem:[%s152 + $0x9c] sm:$0xf] %v231
                %v233 = vld [vmem:[%s151 + $0x104] sm:$0xf]
                %234 = vst [vmem:[%s152 + $0xa0] sm:$0xf] %v233
                %v235 = vld [vmem:[%s151 + $0x108] sm:$0xf]
                %236 = vst [vmem:[%s152 + $0xa4] sm:$0xf] %v235
                %v237 = vld [vmem:[%s151 + $0x10c] sm:$0xf]
                %238 = vst [vmem:[%s152 + $0xa8] sm:$0xf] %v237
                %v239 = vld [vmem:[%s151 + $0x110] sm:$0xf]
                %240 = vst [vmem:[%s152 + $0xac] sm:$0xf] %v239
                %v241 = vld [vmem:[%s151 + $0x114] sm:$0xf]
                %242 = vst [vmem:[%s152 + $0xb0] sm:$0xf] %v241
                %v243 = vld [vmem:[%s151 + $0x118] sm:$0xf]
                %244 = vst [vmem:[%s152 + $0xb4] sm:$0xf] %v243
                %v245 = vld [vmem:[%s151 + $0x11c] sm:$0xf]
                %246 = vst [vmem:[%s152 + $0xb8] sm:$0xf] %v245
                %v247 = vld [vmem:[%s151 + $0x120] sm:$0xf]
                %248 = vst [vmem:[%s152 + $0xbc] sm:$0xf] %v247
                %v249 = vld [vmem:[%s151 + $0x124] sm:$0xf]
                %250 = vst [vmem:[%s152 + $0xc0] sm:$0xf] %v249
                %v251 = vld [vmem:[%s151 + $0x128] sm:$0xf]
                %252 = vst [vmem:[%s152 + $0xc4] sm:$0xf] %v251
                %v253 = vld [vmem:[%s151 + $0x190] sm:$0xf]
                %254 = vst [vmem:[%s152 + $0xc8] sm:$0xf] %v253
                %v255 = vld [vmem:[%s151 + $0x194] sm:$0xf]
                %256 = vst [vmem:[%s152 + $0xcc] sm:$0xf] %v255
                %v257 = vld [vmem:[%s151 + $0x198] sm:$0xf]
                %258 = vst [vmem:[%s152 + $0xd0] sm:$0xf] %v257
                %v259 = vld [vmem:[%s151 + $0x19c] sm:$0xf]
                %260 = vst [vmem:[%s152 + $0xd4] sm:$0xf] %v259
                %v261 = vld [vmem:[%s151 + $0x1a0] sm:$0xf]
                %262 = vst [vmem:[%s152 + $0xd8] sm:$0xf] %v261
                %v263 = vld [vmem:[%s151 + $0x1a4] sm:$0xf]
                %264 = vst [vmem:[%s152 + $0xdc] sm:$0xf] %v263
                %v265 = vld [vmem:[%s151 + $0x1a8] sm:$0xf]
                %266 = vst [vmem:[%s152 + $0xe0] sm:$0xf] %v265
                %v267 = vld [vmem:[%s151 + $0x1ac] sm:$0xf]
                %268 = vst [vmem:[%s152 + $0xe4] sm:$0xf] %v267
                %v269 = vld [vmem:[%s151 + $0x1b0] sm:$0xf]
                %270 = vst [vmem:[%s152 + $0xe8] sm:$0xf] %v269
                %v271 = vld [vmem:[%s151 + $0x1b4] sm:$0xf]
                %272 = vst [vmem:[%s152 + $0xec] sm:$0xf] %v271
                %v273 = vld [vmem:[%s151 + $0x1b8] sm:$0xf]
                %274 = vst [vmem:[%s152 + $0xf0] sm:$0xf] %v273
                %v275 = vld [vmem:[%s151 + $0x1bc] sm:$0xf]
                %276 = vst [vmem:[%s152 + $0xf4] sm:$0xf] %v275
                %v277 = vld [vmem:[%s151 + $0x1c0] sm:$0xf]
                %278 = vst [vmem:[%s152 + $0xf8] sm:$0xf] %v277
                %v279 = vld [vmem:[%s151 + $0x1c4] sm:$0xf]
                %280 = vst [vmem:[%s152 + $0xfc] sm:$0xf] %v279
                %v281 = vld [vmem:[%s151 + $0x1c8] sm:$0xf]
                %282 = vst [vmem:[%s152 + $0x100] sm:$0xf] %v281
                %v283 = vld [vmem:[%s151 + $0x1cc] sm:$0xf]
                %284 = vst [vmem:[%s152 + $0x104] sm:$0xf] %v283
                %v285 = vld [vmem:[%s151 + $0x1d0] sm:$0xf]
                %286 = vst [vmem:[%s152 + $0x108] sm:$0xf] %v285
                %v287 = vld [vmem:[%s151 + $0x1d4] sm:$0xf]
                %288 = vst [vmem:[%s152 + $0x10c] sm:$0xf] %v287
                %v289 = vld [vmem:[%s151 + $0x1d8] sm:$0xf]
                %290 = vst [vmem:[%s152 + $0x110] sm:$0xf] %v289
                %v291 = vld [vmem:[%s151 + $0x1dc] sm:$0xf]
                %292 = vst [vmem:[%s152 + $0x114] sm:$0xf] %v291
                %v293 = vld [vmem:[%s151 + $0x1e0] sm:$0xf]
                %294 = vst [vmem:[%s152 + $0x118] sm:$0xf] %v293
                %v295 = vld [vmem:[%s151 + $0x1e4] sm:$0xf]
                %296 = vst [vmem:[%s152 + $0x11c] sm:$0xf] %v295
                %v297 = vld [vmem:[%s151 + $0x1e8] sm:$0xf]
                %298 = vst [vmem:[%s152 + $0x120] sm:$0xf] %v297
                %v299 = vld [vmem:[%s151 + $0x1ec] sm:$0xf]
                %300 = vst [vmem:[%s152 + $0x124] sm:$0xf] %v299
                %v301 = vld [vmem:[%s151 + $0x1f0] sm:$0xf]
                %302 = vst [vmem:[%s152 + $0x128] sm:$0xf] %v301
                %v303 = vld [vmem:[%s151 + $0x258] sm:$0xf]
                %304 = vst [vmem:[%s152 + $0x12c] sm:$0xf] %v303
                %v305 = vld [vmem:[%s151 + $0x25c] sm:$0xf]
                %306 = vst [vmem:[%s152 + $0x130] sm:$0xf] %v305
                %v307 = vld [vmem:[%s151 + $0x260] sm:$0xf]
                %308 = vst [vmem:[%s152 + $0x134] sm:$0xf] %v307
                %v309 = vld [vmem:[%s151 + $0x264] sm:$0xf]
                %310 = vst [vmem:[%s152 + $0x138] sm:$0xf] %v309
                %v311 = vld [vmem:[%s151 + $0x268] sm:$0xf]
                %312 = vst [vmem:[%s152 + $0x13c] sm:$0xf] %v311
                %v313 = vld [vmem:[%s151 + $0x26c] sm:$0xf]
                %314 = vst [vmem:[%s152 + $0x140] sm:$0xf] %v313
                %v315 = vld [vmem:[%s151 + $0x270] sm:$0xf]
                %316 = vst [vmem:[%s152 + $0x144] sm:$0xf] %v315
                %v317 = vld [vmem:[%s151 + $0x274] sm:$0xf]
                %318 = vst [vmem:[%s152 + $0x148] sm:$0xf] %v317
                %v319 = vld [vmem:[%s151 + $0x278] sm:$0xf]
                %320 = vst [vmem:[%s152 + $0x14c] sm:$0xf] %v319
                %v321 = vld [vmem:[%s151 + $0x27c] sm:$0xf]
                %322 = vst [vmem:[%s152 + $0x150] sm:$0xf] %v321
                %v323 = vld [vmem:[%s151 + $0x280] sm:$0xf]
                %324 = vst [vmem:[%s152 + $0x154] sm:$0xf] %v323
                %v325 = vld [vmem:[%s151 + $0x284] sm:$0xf]
                %326 = vst [vmem:[%s152 + $0x158] sm:$0xf] %v325
                %v327 = vld [vmem:[%s151 + $0x288] sm:$0xf]
                %328 = vst [vmem:[%s152 + $0x15c] sm:$0xf] %v327
                %v329 = vld [vmem:[%s151 + $0x28c] sm:$0xf]
                %330 = vst [vmem:[%s152 + $0x160] sm:$0xf] %v329
                %v331 = vld [vmem:[%s151 + $0x290] sm:$0xf]
                %332 = vst [vmem:[%s152 + $0x164] sm:$0xf] %v331
                %v333 = vld [vmem:[%s151 + $0x294] sm:$0xf]
                %334 = vst [vmem:[%s152 + $0x168] sm:$0xf] %v333
                %v335 = vld [vmem:[%s151 + $0x298] sm:$0xf]
                %336 = vst [vmem:[%s152 + $0x16c] sm:$0xf] %v335
                %v337 = vld [vmem:[%s151 + $0x29c] sm:$0xf]
                %338 = vst [vmem:[%s152 + $0x170] sm:$0xf] %v337
                %v339 = vld [vmem:[%s151 + $0x2a0] sm:$0xf]
                %340 = vst [vmem:[%s152 + $0x174] sm:$0xf] %v339
                %v341 = vld [vmem:[%s151 + $0x2a4] sm:$0xf]
                %342 = vst [vmem:[%s152 + $0x178] sm:$0xf] %v341
                %v343 = vld [vmem:[%s151 + $0x2a8] sm:$0xf]
                %344 = vst [vmem:[%s152 + $0x17c] sm:$0xf] %v343
                %v345 = vld [vmem:[%s151 + $0x2ac] sm:$0xf]
                %346 = vst [vmem:[%s152 + $0x180] sm:$0xf] %v345
                %v347 = vld [vmem:[%s151 + $0x2b0] sm:$0xf]
                %348 = vst [vmem:[%s152 + $0x184] sm:$0xf] %v347
                %v349 = vld [vmem:[%s151 + $0x2b4] sm:$0xf]
                %350 = vst [vmem:[%s152 + $0x188] sm:$0xf] %v349
                %v351 = vld [vmem:[%s151 + $0x2b8] sm:$0xf]
                %352 = vst [vmem:[%s152 + $0x18c] sm:$0xf] %v351
              $region45: #{pfmcnn4_forward.3} parent=39 // loop_footer
                %s150 = sadd.s32 1, %s146
              $region46: #{pfmcnn4_forward.3} parent=39 // loop_footer_branch
                %145 = sbr.rel target = $region42
              $region47: #{pfmcnn4_forward.3} parent=39 // loop_exit
                _
            $region40: #{pfmcnn4_forward.3} parent=31 // pred_fallthru
              _
          $region32: #{pfmcnn4_forward.3} parent=27 // pred_fallthru
            _
          %572 = vnop
        $region28: #{pfmcnn4_forward.3} parent=23 // pred_fallthru
          _
      $region24: #{pfmcnn4_forward.3} parent=5 // pred_fallthru
        _
      %p573 = scmp.le.s32.totalorder 1, %s9
      %p574 = scmp.lt.s32.totalorder %s9, 3
      %p575 = pnand %p573, %p574
      %p576 = pneg %p575
      // Predicated region
      $region66: #{pfmcnn4_forward.3} parent=5 // pred_check
        _
      $region67: #{pfmcnn4_forward.3} parent=5 // pred_check_branch
        %578 = sbr.rel (%p575) target = $region69
      $region68: #{pfmcnn4_forward.3} parent=5 // pred_region
        %s579 = ssub.s32 %s9, 1
        %s580 = sand.u32 %s22, 1
        %s581 = sand.u32 %s22, 1
        %s582 = smul.addr %s581, 400
        %s583 = scalar_lea.vmem [#allocation2], %s582
        // Predicated region
        $region70: #{pfmcnn4_forward.3} parent=68 // pred_check
          %p584 = pneg %p35
        $region71: #{pfmcnn4_forward.3} parent=68 // pred_check_branch
          %586 = sbr.rel (%p584) target = $region73
        $region72: #{pfmcnn4_forward.3} parent=68 // pred_region
          _
        $region73: #{pfmcnn4_forward.3} parent=68 // pred_fallthru
          _
        %s587 = sand.u32 %s22, 1
        %s588 = sand.u32 %s22, 1
        %s589 = smul.addr %s588, 400
        %s590 = scalar_lea.vmem [#allocation2], %s589
        %p591 = pneg %p35
        %p592 = pneg %p32
        %p593 = pneg %p56
        %p594 = pneg %p53
        %p595 = pneg %p77
        %p596 = pneg %p74
        %p597 = pneg %p103
        %p598 = pneg %p100
        %s599 = smul.u32 25, %s14
        %p600 = scmp.lt.s32.totalorder %s599, 49
        %s601 = scalar_select %p600, %s599, 49
        %s602 = smul.addr %s601, 4
        %s603 = scalar_lea.vmem %s3, %s602
        %s604 = smul.u32 25, %s14
        %s605 = smul.u32 25, %s14
        %p606 = scmp.lt.s32.totalorder %s605, 49
        %s607 = scalar_select %p606, %s605, 49
        %s608 = smul.addr %s607, 4
        %s609 = scalar_lea.vmem %s3, %s608
        %s610 = smul.u32 25, %s14
        %v612 = vld [vmem:[%s583] sm:$0xf]
        %v613 = vld [vmem:[%s583 + $0x4] sm:$0xf]
        %v614 = vld [vmem:[%s583 + $0x8] sm:$0xf]
        %v615 = vld [vmem:[%s583 + $0xc] sm:$0xf]
        %v616 = vld [vmem:[%s583 + $0x10] sm:$0xf]
        %v617 = vld [vmem:[%s583 + $0x14] sm:$0xf]
        %v618 = vld [vmem:[%s583 + $0x18] sm:$0xf]
        %v619 = vld [vmem:[%s583 + $0x1c] sm:$0xf]
        %v620 = vld [vmem:[%s583 + $0x20] sm:$0xf]
        %v621 = vld [vmem:[%s583 + $0x24] sm:$0xf]
        %v622 = vld [vmem:[%s583 + $0x28] sm:$0xf]
        %v623 = vld [vmem:[%s583 + $0x2c] sm:$0xf]
        %v624 = vld [vmem:[%s583 + $0x30] sm:$0xf]
        %v625 = vld [vmem:[%s583 + $0x34] sm:$0xf]
        %v626 = vld [vmem:[%s583 + $0x38] sm:$0xf]
        %v627 = vld [vmem:[%s583 + $0x3c] sm:$0xf]
        %v628 = vld [vmem:[%s583 + $0x40] sm:$0xf]
        %v629 = vld [vmem:[%s583 + $0x44] sm:$0xf]
        %v630 = vld [vmem:[%s583 + $0x48] sm:$0xf]
        %v631 = vld [vmem:[%s583 + $0x4c] sm:$0xf]
        %v632 = vld [vmem:[%s583 + $0x50] sm:$0xf]
        %v633 = vld [vmem:[%s583 + $0x54] sm:$0xf]
        %v634 = vld [vmem:[%s583 + $0x58] sm:$0xf]
        %v635 = vld [vmem:[%s583 + $0x5c] sm:$0xf]
        %v636 = vld [vmem:[%s583 + $0x60] sm:$0xf]
        %v637 = vld [vmem:[%s583 + $0x64] sm:$0xf]
        %v638 = vld [vmem:[%s583 + $0x68] sm:$0xf]
        %v639 = vld [vmem:[%s583 + $0x6c] sm:$0xf]
        %v640 = vld [vmem:[%s583 + $0x70] sm:$0xf]
        %v641 = vld [vmem:[%s583 + $0x74] sm:$0xf]
        %v642 = vld [vmem:[%s583 + $0x78] sm:$0xf]
        %v643 = vld [vmem:[%s583 + $0x7c] sm:$0xf]
        %v644 = vld [vmem:[%s583 + $0x80] sm:$0xf]
        %v645 = vld [vmem:[%s583 + $0x84] sm:$0xf]
        %v646 = vld [vmem:[%s583 + $0x88] sm:$0xf]
        %v647 = vld [vmem:[%s583 + $0x8c] sm:$0xf]
        %v648 = vld [vmem:[%s583 + $0x90] sm:$0xf]
        %v649 = vld [vmem:[%s583 + $0x94] sm:$0xf]
        %v650 = vld [vmem:[%s583 + $0x98] sm:$0xf]
        %v651 = vld [vmem:[%s583 + $0x9c] sm:$0xf]
        %v652 = vld [vmem:[%s583 + $0xa0] sm:$0xf]
        %v653 = vld [vmem:[%s583 + $0xa4] sm:$0xf]
        %v654 = vld [vmem:[%s583 + $0xa8] sm:$0xf]
        %v655 = vld [vmem:[%s583 + $0xac] sm:$0xf]
        %v656 = vld [vmem:[%s583 + $0xb0] sm:$0xf]
        %v657 = vld [vmem:[%s583 + $0xb4] sm:$0xf]
        %v658 = vld [vmem:[%s583 + $0xb8] sm:$0xf]
        %v659 = vld [vmem:[%s583 + $0xbc] sm:$0xf]
        %v660 = vld [vmem:[%s583 + $0xc0] sm:$0xf]
        %v661 = vld [vmem:[%s583 + $0xc4] sm:$0xf]
        %v662 = vld [vmem:[%s583 + $0xc8] sm:$0xf]
        %v663 = vld [vmem:[%s583 + $0xcc] sm:$0xf]
        %v664 = vld [vmem:[%s583 + $0xd0] sm:$0xf]
        %v665 = vld [vmem:[%s583 + $0xd4] sm:$0xf]
        %v666 = vld [vmem:[%s583 + $0xd8] sm:$0xf]
        %v667 = vld [vmem:[%s583 + $0xdc] sm:$0xf]
        %v668 = vld [vmem:[%s583 + $0xe0] sm:$0xf]
        %v669 = vld [vmem:[%s583 + $0xe4] sm:$0xf]
        %v670 = vld [vmem:[%s583 + $0xe8] sm:$0xf]
        %v671 = vld [vmem:[%s583 + $0xec] sm:$0xf]
        %v672 = vld [vmem:[%s583 + $0xf0] sm:$0xf]
        %v673 = vld [vmem:[%s583 + $0xf4] sm:$0xf]
        %v674 = vld [vmem:[%s583 + $0xf8] sm:$0xf]
        %v675 = vld [vmem:[%s583 + $0xfc] sm:$0xf]
        %v676 = vld [vmem:[%s583 + $0x100] sm:$0xf]
        %v677 = vld [vmem:[%s583 + $0x104] sm:$0xf]
        %v678 = vld [vmem:[%s583 + $0x108] sm:$0xf]
        %v679 = vld [vmem:[%s583 + $0x10c] sm:$0xf]
        %v680 = vld [vmem:[%s583 + $0x110] sm:$0xf]
        %v681 = vld [vmem:[%s583 + $0x114] sm:$0xf]
        %v682 = vld [vmem:[%s583 + $0x118] sm:$0xf]
        %v683 = vld [vmem:[%s583 + $0x11c] sm:$0xf]
        %v684 = vld [vmem:[%s583 + $0x120] sm:$0xf]
        %v685 = vld [vmem:[%s583 + $0x124] sm:$0xf]
        %v686 = vld [vmem:[%s583 + $0x128] sm:$0xf]
        %v687 = vld [vmem:[%s583 + $0x12c] sm:$0xf]
        %v688 = vld [vmem:[%s583 + $0x130] sm:$0xf]
        %v689 = vld [vmem:[%s583 + $0x134] sm:$0xf]
        %v690 = vld [vmem:[%s583 + $0x138] sm:$0xf]
        %v691 = vld [vmem:[%s583 + $0x13c] sm:$0xf]
        %v692 = vld [vmem:[%s583 + $0x140] sm:$0xf]
        %v693 = vld [vmem:[%s583 + $0x144] sm:$0xf]
        %v694 = vld [vmem:[%s583 + $0x148] sm:$0xf]
        %v695 = vld [vmem:[%s583 + $0x14c] sm:$0xf]
        %v696 = vld [vmem:[%s583 + $0x150] sm:$0xf]
        %v697 = vld [vmem:[%s583 + $0x154] sm:$0xf]
        %v698 = vld [vmem:[%s583 + $0x158] sm:$0xf]
        %v699 = vld [vmem:[%s583 + $0x15c] sm:$0xf]
        %v700 = vld [vmem:[%s583 + $0x160] sm:$0xf]
        %v701 = vld [vmem:[%s583 + $0x164] sm:$0xf]
        %v702 = vld [vmem:[%s583 + $0x168] sm:$0xf]
        %v703 = vld [vmem:[%s583 + $0x16c] sm:$0xf]
        %v704 = vld [vmem:[%s583 + $0x170] sm:$0xf]
        %v705 = vld [vmem:[%s583 + $0x174] sm:$0xf]
        %v706 = vld [vmem:[%s583 + $0x178] sm:$0xf]
        %v707 = vld [vmem:[%s583 + $0x17c] sm:$0xf]
        %v708 = vld [vmem:[%s583 + $0x180] sm:$0xf]
        %v709 = vld [vmem:[%s583 + $0x184] sm:$0xf]
        %v710 = vld [vmem:[%s583 + $0x188] sm:$0xf]
        %v711 = vld [vmem:[%s583 + $0x18c] sm:$0xf]
        %v712 = vld [vmem:[%s1] sm:$0xf]
        %v713 = vld [vmem:[%s1 + $0x4] sm:$0xf]
        %v714 = vld [vmem:[%s1 + $0x8] sm:$0xf]
        %v715 = vld [vmem:[%s1 + $0xc] sm:$0xf]
        %v716 = vld [vmem:[%s1 + $0x10] sm:$0xf]
        %v717 = vld [vmem:[%s1 + $0x14] sm:$0xf]
        %v718 = vld [vmem:[%s1 + $0x18] sm:$0xf]
        %v719 = vld [vmem:[%s1 + $0x1c] sm:$0xf]
        %v720 = vld [vmem:[%s1 + $0x20] sm:$0xf]
        %v721 = vld [vmem:[%s1 + $0x24] sm:$0xf]
        %v722 = vld [vmem:[%s1 + $0x28] sm:$0xf]
        %v723 = vld [vmem:[%s1 + $0x2c] sm:$0xf]
        %v724 = vld [vmem:[%s1 + $0x30] sm:$0xf]
        %v725 = vld [vmem:[%s1 + $0x34] sm:$0xf]
        %v726 = vld [vmem:[%s1 + $0x38] sm:$0xf]
        %v727 = vld [vmem:[%s1 + $0x3c] sm:$0xf]
        %v828 = vunpack.c.l.b16 %v612
        %v829 = vunpack.c.l.b16 %v613
        %v830 = vunpack.c.l.b16 %v614
        %v831 = vunpack.c.l.b16 %v615
        %v832 = vunpack.c.l.b16 %v616
        %v833 = vunpack.c.l.b16 %v617
        %v834 = vunpack.c.l.b16 %v618
        %v835 = vunpack.c.l.b16 %v619
        %v836 = vunpack.c.l.b16 %v620
        %v837 = vunpack.c.l.b16 %v621
        %v838 = vunpack.c.l.b16 %v622
        %v839 = vunpack.c.l.b16 %v623
        %v840 = vunpack.c.l.b16 %v624
        %v841 = vunpack.c.l.b16 %v625
        %v842 = vunpack.c.l.b16 %v626
        %v843 = vunpack.c.l.b16 %v627
        %v844 = vunpack.c.l.b16 %v628
        %v845 = vunpack.c.l.b16 %v629
        %v846 = vunpack.c.l.b16 %v630
        %v847 = vunpack.c.l.b16 %v631
        %v848 = vunpack.c.l.b16 %v632
        %v849 = vunpack.c.l.b16 %v633
        %v850 = vunpack.c.l.b16 %v634
        %v851 = vunpack.c.l.b16 %v635
        %v852 = vunpack.c.l.b16 %v636
        %v853 = vunpack.c.l.b16 %v637
        %v854 = vunpack.c.l.b16 %v638
        %v855 = vunpack.c.l.b16 %v639
        %v856 = vunpack.c.l.b16 %v640
        %v857 = vunpack.c.l.b16 %v641
        %v858 = vunpack.c.l.b16 %v642
        %v859 = vunpack.c.l.b16 %v643
        %v860 = vunpack.c.l.b16 %v644
        %v861 = vunpack.c.l.b16 %v645
        %v862 = vunpack.c.l.b16 %v646
        %v863 = vunpack.c.l.b16 %v647
        %v864 = vunpack.c.l.b16 %v648
        %v865 = vunpack.c.l.b16 %v649
        %v866 = vunpack.c.l.b16 %v650
        %v867 = vunpack.c.l.b16 %v651
        %v868 = vunpack.c.l.b16 %v652
        %v869 = vunpack.c.l.b16 %v653
        %v870 = vunpack.c.l.b16 %v654
        %v871 = vunpack.c.l.b16 %v655
        %v872 = vunpack.c.l.b16 %v656
        %v873 = vunpack.c.l.b16 %v657
        %v874 = vunpack.c.l.b16 %v658
        %v875 = vunpack.c.l.b16 %v659
        %v876 = vunpack.c.l.b16 %v660
        %v877 = vunpack.c.l.b16 %v661
        %v878 = vunpack.c.l.b16 %v662
        %v879 = vunpack.c.l.b16 %v663
        %v880 = vunpack.c.l.b16 %v664
        %v881 = vunpack.c.l.b16 %v665
        %v882 = vunpack.c.l.b16 %v666
        %v883 = vunpack.c.l.b16 %v667
        %v884 = vunpack.c.l.b16 %v668
        %v885 = vunpack.c.l.b16 %v669
        %v886 = vunpack.c.l.b16 %v670
        %v887 = vunpack.c.l.b16 %v671
        %v888 = vunpack.c.l.b16 %v672
        %v889 = vunpack.c.l.b16 %v673
        %v890 = vunpack.c.l.b16 %v674
        %v891 = vunpack.c.l.b16 %v675
        %v892 = vunpack.c.l.b16 %v676
        %v893 = vunpack.c.l.b16 %v677
        %v894 = vunpack.c.l.b16 %v678
        %v895 = vunpack.c.l.b16 %v679
        %v896 = vunpack.c.l.b16 %v680
        %v897 = vunpack.c.l.b16 %v681
        %v898 = vunpack.c.l.b16 %v682
        %v899 = vunpack.c.l.b16 %v683
        %v900 = vunpack.c.l.b16 %v684
        %v901 = vunpack.c.l.b16 %v685
        %v902 = vunpack.c.l.b16 %v686
        %v903 = vunpack.c.l.b16 %v687
        %v904 = vunpack.c.l.b16 %v688
        %v905 = vunpack.c.l.b16 %v689
        %v906 = vunpack.c.l.b16 %v690
        %v907 = vunpack.c.l.b16 %v691
        %v908 = vunpack.c.l.b16 %v692
        %v909 = vunpack.c.l.b16 %v693
        %v910 = vunpack.c.l.b16 %v694
        %v911 = vunpack.c.l.b16 %v695
        %v912 = vunpack.c.l.b16 %v696
        %v913 = vunpack.c.l.b16 %v697
        %v914 = vunpack.c.l.b16 %v698
        %v915 = vunpack.c.l.b16 %v699
        %v916 = vunpack.c.l.b16 %v700
        %v917 = vunpack.c.l.b16 %v701
        %v918 = vunpack.c.l.b16 %v702
        %v919 = vunpack.c.l.b16 %v703
        %v920 = vunpack.c.l.b16 %v704
        %v921 = vunpack.c.l.b16 %v705
        %v922 = vunpack.c.l.b16 %v706
        %v923 = vunpack.c.l.b16 %v707
        %v924 = vunpack.c.l.b16 %v708
        %v925 = vunpack.c.l.b16 %v709
        %v926 = vunpack.c.l.b16 %v710
        %v927 = vunpack.c.l.b16 %v711
        %v928 = vpack.c.b16 %v829, %v828
        %v929 = vpack.c.b16 %v831, %v830
        %v930 = vpack.c.b16 %v833, %v832
        %v931 = vpack.c.b16 %v835, %v834
        %v932 = vpack.c.b16 %v837, %v836
        %v933 = vpack.c.b16 %v839, %v838
        %v934 = vpack.c.b16 %v841, %v840
        %v935 = vpack.c.b16 %v843, %v842
        %v936 = vpack.c.b16 %v845, %v844
        %v937 = vpack.c.b16 %v847, %v846
        %v938 = vpack.c.b16 %v849, %v848
        %v939 = vpack.c.b16 %v851, %v850
        %v940 = vpack.c.b16 %v853, %v852
        %v941 = vpack.c.b16 %v855, %v854
        %v942 = vpack.c.b16 %v857, %v856
        %v943 = vpack.c.b16 %v859, %v858
        %v944 = vpack.c.b16 %v861, %v860
        %v945 = vpack.c.b16 %v863, %v862
        %v946 = vpack.c.b16 %v865, %v864
        %v947 = vpack.c.b16 %v867, %v866
        %v948 = vpack.c.b16 %v869, %v868
        %v949 = vpack.c.b16 %v871, %v870
        %v950 = vpack.c.b16 %v873, %v872
        %v951 = vpack.c.b16 %v875, %v874
        %v952 = vpack.c.b16 %v877, %v876
        %v953 = vpack.c.b16 %v879, %v878
        %v954 = vpack.c.b16 %v881, %v880
        %v955 = vpack.c.b16 %v883, %v882
        %v956 = vpack.c.b16 %v885, %v884
        %v957 = vpack.c.b16 %v887, %v886
        %v958 = vpack.c.b16 %v889, %v888
        %v959 = vpack.c.b16 %v891, %v890
        %v960 = vpack.c.b16 %v893, %v892
        %v961 = vpack.c.b16 %v895, %v894
        %v962 = vpack.c.b16 %v897, %v896
        %v963 = vpack.c.b16 %v899, %v898
        %v964 = vpack.c.b16 %v901, %v900
        %v965 = vpack.c.b16 %v903, %v902
        %v966 = vpack.c.b16 %v905, %v904
        %v967 = vpack.c.b16 %v907, %v906
        %v968 = vpack.c.b16 %v909, %v908
        %v969 = vpack.c.b16 %v911, %v910
        %v970 = vpack.c.b16 %v913, %v912
        %v971 = vpack.c.b16 %v915, %v914
        %v972 = vpack.c.b16 %v917, %v916
        %v973 = vpack.c.b16 %v919, %v918
        %v974 = vpack.c.b16 %v921, %v920
        %v975 = vpack.c.b16 %v923, %v922
        %v976 = vpack.c.b16 %v925, %v924
        %v977 = vpack.c.b16 %v927, %v926
        %v1044 = vunpack.c.l.b16 %v712
        %v1045 = vunpack.c.l.b16 %v713
        %v1046 = vunpack.c.l.b16 %v714
        %v1047 = vunpack.c.l.b16 %v715
        %v1048 = vunpack.c.l.b16 %v716
        %v1049 = vunpack.c.l.b16 %v717
        %v1050 = vunpack.c.l.b16 %v718
        %v1051 = vunpack.c.l.b16 %v719
        %v1052 = vunpack.c.l.b16 %v720
        %v1053 = vunpack.c.l.b16 %v721
        %v1054 = vunpack.c.l.b16 %v722
        %v1055 = vunpack.c.l.b16 %v723
        %v1056 = vunpack.c.l.b16 %v724
        %v1057 = vunpack.c.l.b16 %v725
        %v1058 = vunpack.c.l.b16 %v726
        %v1059 = vunpack.c.l.b16 %v727
        %v1060 = vpack.c.b16 %v1045, %v1044
        %v1061 = vpack.c.b16 %v1047, %v1046
        %v1062 = vpack.c.b16 %v1049, %v1048
        %v1063 = vpack.c.b16 %v1051, %v1050
        %v1064 = vpack.c.b16 %v1053, %v1052
        %v1065 = vpack.c.b16 %v1055, %v1054
        %v1066 = vpack.c.b16 %v1057, %v1056
        %v1067 = vpack.c.b16 %v1059, %v1058
        %1076 = vmatprep.subr.bf16.mxu0 0
        %1077 = vmatpush1.bf16.msra.mxu0 %v1060
        %1078 = vmatprep.subr.bf16.mxu0 0
        %1079 = vmatpush1.bf16.msra.mxu0 %v1061
        %1080 = vmatprep.subr.bf16.mxu0 0
        %1081 = vmatpush1.bf16.msra.mxu0 %v1062
        %1082 = vmatprep.subr.bf16.mxu0 0
        %1083 = vmatpush1.bf16.msra.mxu0 %v1063
        %1084 = vmatprep.subr.bf16.mxu0 0
        %1085 = vmatpush1.bf16.msra.mxu0 %v1064
        %1086 = vmatprep.subr.bf16.mxu0 0
        %1087 = vmatpush1.bf16.msra.mxu0 %v1065
        %1088 = vmatprep.subr.bf16.mxu0 0
        %1089 = vmatpush1.bf16.msra.mxu0 %v1066
        %1090 = vmatprep.subr.bf16.mxu0 0
        %1091 = vmatpush1.bf16.msra.mxu0 %v1067
        %1092 = vmatprep.subr.bf16.mxu0 0
        %1093 = vmatpush1.bf16.msra.mxu0 0
        %1094 = vmatprep.subr.bf16.mxu0 0
        %1095 = vmatpush1.bf16.msra.mxu0 0
        %1096 = vmatprep.subr.bf16.mxu0 0
        %1097 = vmatpush1.bf16.msra.mxu0 0
        %1098 = vmatprep.subr.bf16.mxu0 0
        %1099 = vmatpush1.bf16.msra.mxu0 0
        %1100 = vmatprep.subr.bf16.mxu0 0
        %1101 = vmatpush1.bf16.msra.mxu0 0
        %1102 = vmatprep.subr.bf16.mxu0 0
        %1103 = vmatpush1.bf16.msra.mxu0 0
        %1104 = vmatprep.subr.bf16.mxu0 0
        %1105 = vmatpush1.bf16.msra.mxu0 0
        %1106 = vmatprep.subr.bf16.mxu0 0
        %1107 = vmatpush1.bf16.msra.mxu0 0
        %1108 = vmatprep.mubr.bf16.mxu0 0
        %1109 = vmatmul.mubr.bf16.gmra.mrb[0].mxu0 %v928
        %v1110 = vpop.f32.mrb[0].mxu0
        %v1111 = vadd.f32 0.0, %v1110
        %v1112 = vpop.f32.mrb[0].mxu0
        %v1113 = vpop.f32.mrb[0].mxu0
        %v1114 = vadd.f32 0.0, %v1113
        %v1115 = vpop.f32.mrb[0].mxu0
        %1116 = vmatprep.mubr.bf16.mxu0 0
        %1117 = vmatmul.mubr.bf16.gmra.mrb[0].mxu0 %v929
        %v1118 = vpop.f32.mrb[0].mxu0
        %v1119 = vadd.f32 0.0, %v1118
        %v1120 = vpop.f32.mrb[0].mxu0
        %v1121 = vpop.f32.mrb[0].mxu0
        %v1122 = vadd.f32 0.0, %v1121
        %v1123 = vpop.f32.mrb[0].mxu0
        %1124 = vmatprep.mubr.bf16.mxu0 0
        %1125 = vmatmul.mubr.bf16.gmra.mrb[0].mxu0 %v930
        %v1126 = vpop.f32.mrb[0].mxu0
        %v1127 = vadd.f32 0.0, %v1126
        %v1128 = vpop.f32.mrb[0].mxu0
        %v1129 = vpop.f32.mrb[0].mxu0
        %v1130 = vadd.f32 0.0, %v1129
        %v1131 = vpop.f32.mrb[0].mxu0
        %1132 = vmatprep.mubr.bf16.mxu0 0
        %1133 = vmatmul.mubr.bf16.gmra.mrb[0].mxu0 %v931
        %v1134 = vpop.f32.mrb[0].mxu0
        %v1135 = vadd.f32 0.0, %v1134
        %v1136 = vpop.f32.mrb[0].mxu0
        %v1137 = vpop.f32.mrb[0].mxu0
        %v1138 = vadd.f32 0.0, %v1137
        %v1139 = vpop.f32.mrb[0].mxu0
        %1140 = vmatprep.mubr.bf16.mxu0 0
        %1141 = vmatmul.mubr.bf16.gmra.mrb[0].mxu0 %v932
        %v1142 = vpop.f32.mrb[0].mxu0
        %v1143 = vadd.f32 0.0, %v1142
        %v1144 = vpop.f32.mrb[0].mxu0
        %v1145 = vpop.f32.mrb[0].mxu0
        %v1146 = vadd.f32 0.0, %v1145
        %v1147 = vpop.f32.mrb[0].mxu0
        %1148 = vmatprep.mubr.bf16.mxu0 0
        %1149 = vmatmul.mubr.bf16.gmra.mrb[0].mxu0 %v933
        %v1150 = vpop.f32.mrb[0].mxu0
        %v1151 = vadd.f32 0.0, %v1150
        %v1152 = vpop.f32.mrb[0].mxu0
        %v1153 = vpop.f32.mrb[0].mxu0
        %v1154 = vadd.f32 0.0, %v1153
        %v1155 = vpop.f32.mrb[0].mxu0
        %1156 = vmatprep.mubr.bf16.mxu0 0
        %1157 = vmatmul.mubr.bf16.gmra.mrb[0].mxu0 %v934
        %v1158 = vpop.f32.mrb[0].mxu0
        %v1159 = vadd.f32 0.0, %v1158
        %v1160 = vpop.f32.mrb[0].mxu0
        %v1161 = vpop.f32.mrb[0].mxu0
        %v1162 = vadd.f32 0.0, %v1161
        %v1163 = vpop.f32.mrb[0].mxu0
        %1164 = vmatprep.mubr.bf16.mxu0 0
        %1165 = vmatmul.mubr.bf16.gmra.mrb[0].mxu0 %v935
        %v1166 = vpop.f32.mrb[0].mxu0
        %v1167 = vadd.f32 0.0, %v1166
        %v1168 = vpop.f32.mrb[0].mxu0
        %v1169 = vpop.f32.mrb[0].mxu0
        %v1170 = vadd.f32 0.0, %v1169
        %v1171 = vpop.f32.mrb[0].mxu0
        %1172 = vmatprep.mubr.bf16.mxu0 0
        %1173 = vmatmul.mubr.bf16.gmra.mrb[0].mxu0 %v936
        %v1174 = vpop.f32.mrb[0].mxu0
        %v1175 = vadd.f32 0.0, %v1174
        %v1176 = vpop.f32.mrb[0].mxu0
        %v1177 = vpop.f32.mrb[0].mxu0
        %v1178 = vadd.f32 0.0, %v1177
        %v1179 = vpop.f32.mrb[0].mxu0
        %1180 = vmatprep.mubr.bf16.mxu0 0
        %1181 = vmatmul.mubr.bf16.gmra.mrb[0].mxu0 %v937
        %v1182 = vpop.f32.mrb[0].mxu0
        %v1183 = vadd.f32 0.0, %v1182
        %v1184 = vpop.f32.mrb[0].mxu0
        %v1185 = vpop.f32.mrb[0].mxu0
        %v1186 = vadd.f32 0.0, %v1185
        %v1187 = vpop.f32.mrb[0].mxu0
        %1188 = vmatprep.mubr.bf16.mxu0 0
        %1189 = vmatmul.mubr.bf16.gmra.mrb[0].mxu0 %v938
        %v1190 = vpop.f32.mrb[0].mxu0
        %v1191 = vadd.f32 0.0, %v1190
        %v1192 = vpop.f32.mrb[0].mxu0
        %v1193 = vpop.f32.mrb[0].mxu0
        %v1194 = vadd.f32 0.0, %v1193
        %v1195 = vpop.f32.mrb[0].mxu0
        %1196 = vmatprep.mubr.bf16.mxu0 0
        %1197 = vmatmul.mubr.bf16.gmra.mrb[0].mxu0 %v939
        %v1198 = vpop.f32.mrb[0].mxu0
        %v1199 = vadd.f32 0.0, %v1198
        %v1200 = vpop.f32.mrb[0].mxu0
        %v1201 = vpop.f32.mrb[0].mxu0
        %v1202 = vadd.f32 0.0, %v1201
        %v1203 = vpop.f32.mrb[0].mxu0
        %1204 = vmatprep.mubr.bf16.mxu0 0
        %1205 = vmatmul.mubr.bf16.gmra.mrb[0].mxu0 %v940
        %v1206 = vpop.f32.mrb[0].mxu0
        %v1207 = vadd.f32 0.0, %v1206
        %v1208 = vpop.f32.mrb[0].mxu0
        %v1209 = vpop.f32.mrb[0].mxu0
        %v1210 = vadd.f32 0.0, %v1209
        %v1211 = vpop.f32.mrb[0].mxu0
        %1212 = vmatprep.mubr.bf16.mxu0 0
        %1213 = vmatmul.mubr.bf16.gmra.mrb[0].mxu0 %v941
        %v1214 = vpop.f32.mrb[0].mxu0
        %v1215 = vadd.f32 0.0, %v1214
        %v1216 = vpop.f32.mrb[0].mxu0
        %v1217 = vpop.f32.mrb[0].mxu0
        %v1218 = vadd.f32 0.0, %v1217
        %v1219 = vpop.f32.mrb[0].mxu0
        %1220 = vmatprep.mubr.bf16.mxu0 0
        %1221 = vmatmul.mubr.bf16.gmra.mrb[0].mxu0 %v942
        %v1222 = vpop.f32.mrb[0].mxu0
        %v1223 = vadd.f32 0.0, %v1222
        %v1224 = vpop.f32.mrb[0].mxu0
        %v1225 = vpop.f32.mrb[0].mxu0
        %v1226 = vadd.f32 0.0, %v1225
        %v1227 = vpop.f32.mrb[0].mxu0
        %1228 = vmatprep.mubr.bf16.mxu0 0
        %1229 = vmatmul.mubr.bf16.gmra.mrb[0].mxu0 %v943
        %v1230 = vpop.f32.mrb[0].mxu0
        %v1231 = vadd.f32 0.0, %v1230
        %v1232 = vpop.f32.mrb[0].mxu0
        %v1233 = vpop.f32.mrb[0].mxu0
        %v1234 = vadd.f32 0.0, %v1233
        %v1235 = vpop.f32.mrb[0].mxu0
        %1236 = vmatprep.mubr.bf16.mxu0 0
        %1237 = vmatmul.mubr.bf16.gmra.mrb[0].mxu0 %v944
        %v1238 = vpop.f32.mrb[0].mxu0
        %v1239 = vadd.f32 0.0, %v1238
        %v1240 = vpop.f32.mrb[0].mxu0
        %v1241 = vpop.f32.mrb[0].mxu0
        %v1242 = vadd.f32 0.0, %v1241
        %v1243 = vpop.f32.mrb[0].mxu0
        %1244 = vmatprep.mubr.bf16.mxu0 0
        %1245 = vmatmul.mubr.bf16.gmra.mrb[0].mxu0 %v945
        %v1246 = vpop.f32.mrb[0].mxu0
        %v1247 = vadd.f32 0.0, %v1246
        %v1248 = vpop.f32.mrb[0].mxu0
        %v1249 = vpop.f32.mrb[0].mxu0
        %v1250 = vadd.f32 0.0, %v1249
        %v1251 = vpop.f32.mrb[0].mxu0
        %1252 = vmatprep.mubr.bf16.mxu0 0
        %1253 = vmatmul.mubr.bf16.gmra.mrb[0].mxu0 %v946
        %v1254 = vpop.f32.mrb[0].mxu0
        %v1255 = vadd.f32 0.0, %v1254
        %v1256 = vpop.f32.mrb[0].mxu0
        %v1257 = vpop.f32.mrb[0].mxu0
        %v1258 = vadd.f32 0.0, %v1257
        %v1259 = vpop.f32.mrb[0].mxu0
        %1260 = vmatprep.mubr.bf16.mxu0 0
        %1261 = vmatmul.mubr.bf16.gmra.mrb[0].mxu0 %v947
        %v1262 = vpop.f32.mrb[0].mxu0
        %v1263 = vadd.f32 0.0, %v1262
        %v1264 = vpop.f32.mrb[0].mxu0
        %v1265 = vpop.f32.mrb[0].mxu0
        %v1266 = vadd.f32 0.0, %v1265
        %v1267 = vpop.f32.mrb[0].mxu0
        %1268 = vmatprep.mubr.bf16.mxu0 0
        %1269 = vmatmul.mubr.bf16.gmra.mrb[0].mxu0 %v948
        %v1270 = vpop.f32.mrb[0].mxu0
        %v1271 = vadd.f32 0.0, %v1270
        %v1272 = vpop.f32.mrb[0].mxu0
        %v1273 = vpop.f32.mrb[0].mxu0
        %v1274 = vadd.f32 0.0, %v1273
        %v1275 = vpop.f32.mrb[0].mxu0
        %1276 = vmatprep.mubr.bf16.mxu0 0
        %1277 = vmatmul.mubr.bf16.gmra.mrb[0].mxu0 %v949
        %v1278 = vpop.f32.mrb[0].mxu0
        %v1279 = vadd.f32 0.0, %v1278
        %v1280 = vpop.f32.mrb[0].mxu0
        %v1281 = vpop.f32.mrb[0].mxu0
        %v1282 = vadd.f32 0.0, %v1281
        %v1283 = vpop.f32.mrb[0].mxu0
        %1284 = vmatprep.mubr.bf16.mxu0 0
        %1285 = vmatmul.mubr.bf16.gmra.mrb[0].mxu0 %v950
        %v1286 = vpop.f32.mrb[0].mxu0
        %v1287 = vadd.f32 0.0, %v1286
        %v1288 = vpop.f32.mrb[0].mxu0
        %v1289 = vpop.f32.mrb[0].mxu0
        %v1290 = vadd.f32 0.0, %v1289
        %v1291 = vpop.f32.mrb[0].mxu0
        %1292 = vmatprep.mubr.bf16.mxu0 0
        %1293 = vmatmul.mubr.bf16.gmra.mrb[0].mxu0 %v951
        %v1294 = vpop.f32.mrb[0].mxu0
        %v1295 = vadd.f32 0.0, %v1294
        %v1296 = vpop.f32.mrb[0].mxu0
        %v1297 = vpop.f32.mrb[0].mxu0
        %v1298 = vadd.f32 0.0, %v1297
        %v1299 = vpop.f32.mrb[0].mxu0
        %1300 = vmatprep.mubr.bf16.mxu0 0
        %1301 = vmatmul.mubr.bf16.gmra.mrb[0].mxu0 %v952
        %v1302 = vpop.f32.mrb[0].mxu0
        %v1303 = vadd.f32 0.0, %v1302
        %v1304 = vpop.f32.mrb[0].mxu0
        %v1305 = vpop.f32.mrb[0].mxu0
        %v1306 = vadd.f32 0.0, %v1305
        %v1307 = vpop.f32.mrb[0].mxu0
        %1308 = vmatprep.mubr.bf16.mxu0 0
        %1309 = vmatmul.mubr.bf16.gmra.mrb[0].mxu0 %v953
        %v1310 = vpop.f32.mrb[0].mxu0
        %v1311 = vadd.f32 0.0, %v1310
        %v1312 = vpop.f32.mrb[0].mxu0
        %v1313 = vpop.f32.mrb[0].mxu0
        %v1314 = vadd.f32 0.0, %v1313
        %v1315 = vpop.f32.mrb[0].mxu0
        %1316 = vmatprep.mubr.bf16.mxu0 0
        %1317 = vmatmul.mubr.bf16.gmra.mrb[0].mxu0 %v954
        %v1318 = vpop.f32.mrb[0].mxu0
        %v1319 = vadd.f32 0.0, %v1318
        %v1320 = vpop.f32.mrb[0].mxu0
        %v1321 = vpop.f32.mrb[0].mxu0
        %v1322 = vadd.f32 0.0, %v1321
        %v1323 = vpop.f32.mrb[0].mxu0
        %1324 = vmatprep.mubr.bf16.mxu0 0
        %1325 = vmatmul.mubr.bf16.gmra.mrb[0].mxu0 %v955
        %v1326 = vpop.f32.mrb[0].mxu0
        %v1327 = vadd.f32 0.0, %v1326
        %v1328 = vpop.f32.mrb[0].mxu0
        %v1329 = vpop.f32.mrb[0].mxu0
        %v1330 = vadd.f32 0.0, %v1329
        %v1331 = vpop.f32.mrb[0].mxu0
        %1332 = vmatprep.mubr.bf16.mxu0 0
        %1333 = vmatmul.mubr.bf16.gmra.mrb[0].mxu0 %v956
        %v1334 = vpop.f32.mrb[0].mxu0
        %v1335 = vadd.f32 0.0, %v1334
        %v1336 = vpop.f32.mrb[0].mxu0
        %v1337 = vpop.f32.mrb[0].mxu0
        %v1338 = vadd.f32 0.0, %v1337
        %v1339 = vpop.f32.mrb[0].mxu0
        %1340 = vmatprep.mubr.bf16.mxu0 0
        %1341 = vmatmul.mubr.bf16.gmra.mrb[0].mxu0 %v957
        %v1342 = vpop.f32.mrb[0].mxu0
        %v1343 = vadd.f32 0.0, %v1342
        %v1344 = vpop.f32.mrb[0].mxu0
        %v1345 = vpop.f32.mrb[0].mxu0
        %v1346 = vadd.f32 0.0, %v1345
        %v1347 = vpop.f32.mrb[0].mxu0
        %1348 = vmatprep.mubr.bf16.mxu0 0
        %1349 = vmatmul.mubr.bf16.gmra.mrb[0].mxu0 %v958
        %v1350 = vpop.f32.mrb[0].mxu0
        %v1351 = vadd.f32 0.0, %v1350
        %v1352 = vpop.f32.mrb[0].mxu0
        %v1353 = vpop.f32.mrb[0].mxu0
        %v1354 = vadd.f32 0.0, %v1353
        %v1355 = vpop.f32.mrb[0].mxu0
        %1356 = vmatprep.mubr.bf16.mxu0 0
        %1357 = vmatmul.mubr.bf16.gmra.mrb[0].mxu0 %v959
        %v1358 = vpop.f32.mrb[0].mxu0
        %v1359 = vadd.f32 0.0, %v1358
        %v1360 = vpop.f32.mrb[0].mxu0
        %v1361 = vpop.f32.mrb[0].mxu0
        %v1362 = vadd.f32 0.0, %v1361
        %v1363 = vpop.f32.mrb[0].mxu0
        %1364 = vmatprep.mubr.bf16.mxu0 0
        %1365 = vmatmul.mubr.bf16.gmra.mrb[0].mxu0 %v960
        %v1366 = vpop.f32.mrb[0].mxu0
        %v1367 = vadd.f32 0.0, %v1366
        %v1368 = vpop.f32.mrb[0].mxu0
        %v1369 = vpop.f32.mrb[0].mxu0
        %v1370 = vadd.f32 0.0, %v1369
        %v1371 = vpop.f32.mrb[0].mxu0
        %1372 = vmatprep.mubr.bf16.mxu0 0
        %1373 = vmatmul.mubr.bf16.gmra.mrb[0].mxu0 %v961
        %v1374 = vpop.f32.mrb[0].mxu0
        %v1375 = vadd.f32 0.0, %v1374
        %v1376 = vpop.f32.mrb[0].mxu0
        %v1377 = vpop.f32.mrb[0].mxu0
        %v1378 = vadd.f32 0.0, %v1377
        %v1379 = vpop.f32.mrb[0].mxu0
        %1380 = vmatprep.mubr.bf16.mxu0 0
        %1381 = vmatmul.mubr.bf16.gmra.mrb[0].mxu0 %v962
        %v1382 = vpop.f32.mrb[0].mxu0
        %v1383 = vadd.f32 0.0, %v1382
        %v1384 = vpop.f32.mrb[0].mxu0
        %v1385 = vpop.f32.mrb[0].mxu0
        %v1386 = vadd.f32 0.0, %v1385
        %v1387 = vpop.f32.mrb[0].mxu0
        %1388 = vmatprep.mubr.bf16.mxu0 0
        %1389 = vmatmul.mubr.bf16.gmra.mrb[0].mxu0 %v963
        %v1390 = vpop.f32.mrb[0].mxu0
        %v1391 = vadd.f32 0.0, %v1390
        %v1392 = vpop.f32.mrb[0].mxu0
        %v1393 = vpop.f32.mrb[0].mxu0
        %v1394 = vadd.f32 0.0, %v1393
        %v1395 = vpop.f32.mrb[0].mxu0
        %1396 = vmatprep.mubr.bf16.mxu0 0
        %1397 = vmatmul.mubr.bf16.gmra.mrb[0].mxu0 %v964
        %v1398 = vpop.f32.mrb[0].mxu0
        %v1399 = vadd.f32 0.0, %v1398
        %v1400 = vpop.f32.mrb[0].mxu0
        %v1401 = vpop.f32.mrb[0].mxu0
        %v1402 = vadd.f32 0.0, %v1401
        %v1403 = vpop.f32.mrb[0].mxu0
        %1404 = vmatprep.mubr.bf16.mxu0 0
        %1405 = vmatmul.mubr.bf16.gmra.mrb[0].mxu0 %v965
        %v1406 = vpop.f32.mrb[0].mxu0
        %v1407 = vadd.f32 0.0, %v1406
        %v1408 = vpop.f32.mrb[0].mxu0
        %v1409 = vpop.f32.mrb[0].mxu0
        %v1410 = vadd.f32 0.0, %v1409
        %v1411 = vpop.f32.mrb[0].mxu0
        %1412 = vmatprep.mubr.bf16.mxu0 0
        %1413 = vmatmul.mubr.bf16.gmra.mrb[0].mxu0 %v966
        %v1414 = vpop.f32.mrb[0].mxu0
        %v1415 = vadd.f32 0.0, %v1414
        %v1416 = vpop.f32.mrb[0].mxu0
        %v1417 = vpop.f32.mrb[0].mxu0
        %v1418 = vadd.f32 0.0, %v1417
        %v1419 = vpop.f32.mrb[0].mxu0
        %1420 = vmatprep.mubr.bf16.mxu0 0
        %1421 = vmatmul.mubr.bf16.gmra.mrb[0].mxu0 %v967
        %v1422 = vpop.f32.mrb[0].mxu0
        %v1423 = vadd.f32 0.0, %v1422
        %v1424 = vpop.f32.mrb[0].mxu0
        %v1425 = vpop.f32.mrb[0].mxu0
        %v1426 = vadd.f32 0.0, %v1425
        %v1427 = vpop.f32.mrb[0].mxu0
        %1428 = vmatprep.mubr.bf16.mxu0 0
        %1429 = vmatmul.mubr.bf16.gmra.mrb[0].mxu0 %v968
        %v1430 = vpop.f32.mrb[0].mxu0
        %v1431 = vadd.f32 0.0, %v1430
        %v1432 = vpop.f32.mrb[0].mxu0
        %v1433 = vpop.f32.mrb[0].mxu0
        %v1434 = vadd.f32 0.0, %v1433
        %v1435 = vpop.f32.mrb[0].mxu0
        %1436 = vmatprep.mubr.bf16.mxu0 0
        %1437 = vmatmul.mubr.bf16.gmra.mrb[0].mxu0 %v969
        %v1438 = vpop.f32.mrb[0].mxu0
        %v1439 = vadd.f32 0.0, %v1438
        %v1440 = vpop.f32.mrb[0].mxu0
        %v1441 = vpop.f32.mrb[0].mxu0
        %v1442 = vadd.f32 0.0, %v1441
        %v1443 = vpop.f32.mrb[0].mxu0
        %1444 = vmatprep.mubr.bf16.mxu0 0
        %1445 = vmatmul.mubr.bf16.gmra.mrb[0].mxu0 %v970
        %v1446 = vpop.f32.mrb[0].mxu0
        %v1447 = vadd.f32 0.0, %v1446
        %v1448 = vpop.f32.mrb[0].mxu0
        %v1449 = vpop.f32.mrb[0].mxu0
        %v1450 = vadd.f32 0.0, %v1449
        %v1451 = vpop.f32.mrb[0].mxu0
        %1452 = vmatprep.mubr.bf16.mxu0 0
        %1453 = vmatmul.mubr.bf16.gmra.mrb[0].mxu0 %v971
        %v1454 = vpop.f32.mrb[0].mxu0
        %v1455 = vadd.f32 0.0, %v1454
        %v1456 = vpop.f32.mrb[0].mxu0
        %v1457 = vpop.f32.mrb[0].mxu0
        %v1458 = vadd.f32 0.0, %v1457
        %v1459 = vpop.f32.mrb[0].mxu0
        %1460 = vmatprep.mubr.bf16.mxu0 0
        %1461 = vmatmul.mubr.bf16.gmra.mrb[0].mxu0 %v972
        %v1462 = vpop.f32.mrb[0].mxu0
        %v1463 = vadd.f32 0.0, %v1462
        %v1464 = vpop.f32.mrb[0].mxu0
        %v1465 = vpop.f32.mrb[0].mxu0
        %v1466 = vadd.f32 0.0, %v1465
        %v1467 = vpop.f32.mrb[0].mxu0
        %1468 = vmatprep.mubr.bf16.mxu0 0
        %1469 = vmatmul.mubr.bf16.gmra.mrb[0].mxu0 %v973
        %v1470 = vpop.f32.mrb[0].mxu0
        %v1471 = vadd.f32 0.0, %v1470
        %v1472 = vpop.f32.mrb[0].mxu0
        %v1473 = vpop.f32.mrb[0].mxu0
        %v1474 = vadd.f32 0.0, %v1473
        %v1475 = vpop.f32.mrb[0].mxu0
        %1476 = vmatprep.mubr.bf16.mxu0 0
        %1477 = vmatmul.mubr.bf16.gmra.mrb[0].mxu0 %v974
        %v1478 = vpop.f32.mrb[0].mxu0
        %v1479 = vadd.f32 0.0, %v1478
        %v1480 = vpop.f32.mrb[0].mxu0
        %v1481 = vpop.f32.mrb[0].mxu0
        %v1482 = vadd.f32 0.0, %v1481
        %v1483 = vpop.f32.mrb[0].mxu0
        %1484 = vmatprep.mubr.bf16.mxu0 0
        %1485 = vmatmul.mubr.bf16.gmra.mrb[0].mxu0 %v975
        %v1486 = vpop.f32.mrb[0].mxu0
        %v1487 = vadd.f32 0.0, %v1486
        %v1488 = vpop.f32.mrb[0].mxu0
        %v1489 = vpop.f32.mrb[0].mxu0
        %v1490 = vadd.f32 0.0, %v1489
        %v1491 = vpop.f32.mrb[0].mxu0
        %1492 = vmatprep.mubr.bf16.mxu0 0
        %1493 = vmatmul.mubr.bf16.gmra.mrb[0].mxu0 %v976
        %v1494 = vpop.f32.mrb[0].mxu0
        %v1495 = vadd.f32 0.0, %v1494
        %v1496 = vpop.f32.mrb[0].mxu0
        %v1497 = vpop.f32.mrb[0].mxu0
        %v1498 = vadd.f32 0.0, %v1497
        %v1499 = vpop.f32.mrb[0].mxu0
        %1500 = vmatprep.mubr.bf16.mxu0 0
        %1501 = vmatmul.mubr.bf16.gmra.mrb[0].mxu0 %v977
        %v1502 = vpop.f32.mrb[0].mxu0
        %v1503 = vadd.f32 0.0, %v1502
        %v1504 = vpop.f32.mrb[0].mxu0
        %v1505 = vpop.f32.mrb[0].mxu0
        %v1506 = vadd.f32 0.0, %v1505
        %v1507 = vpop.f32.mrb[0].mxu0
        %1508 = vdwg.mxu0
        %v1509 = vmax.f32 %v1111, %v1210
        %v1510 = vmax.f32 %v1114, %v1215
        %v1511 = vmax.f32 %v1119, %v1218
        %v1512 = vmax.f32 %v1122, %v1223
        %v1513 = vmax.f32 %v1127, %v1226
        %v1514 = vmax.f32 %v1130, %v1231
        %v1515 = vmax.f32 %v1135, %v1234
        %v1516 = vmax.f32 %v1138, %v1239
        %v1517 = vmax.f32 %v1143, %v1242
        %v1518 = vmax.f32 %v1146, %v1247
        %v1519 = vmax.f32 %v1151, %v1250
        %v1520 = vmax.f32 %v1154, %v1255
        %v1521 = vmax.f32 %v1159, %v1258
        %v1522 = vmax.f32 %v1162, %v1263
        %v1523 = vmax.f32 %v1167, %v1266
        %v1524 = vmax.f32 %v1170, %v1271
        %v1525 = vmax.f32 %v1175, %v1274
        %v1526 = vmax.f32 %v1178, %v1279
        %v1527 = vmax.f32 %v1183, %v1282
        %v1528 = vmax.f32 %v1186, %v1287
        %v1529 = vmax.f32 %v1191, %v1290
        %v1530 = vmax.f32 %v1194, %v1295
        %v1531 = vmax.f32 %v1199, %v1298
        %v1532 = vmax.f32 %v1202, %v1303
        %v1533 = vmax.f32 %v1207, %v1306
        %v1534 = vmax.f32 %v1311, %v1410
        %v1535 = vmax.f32 %v1314, %v1415
        %v1536 = vmax.f32 %v1319, %v1418
        %v1537 = vmax.f32 %v1322, %v1423
        %v1538 = vmax.f32 %v1327, %v1426
        %v1539 = vmax.f32 %v1330, %v1431
        %v1540 = vmax.f32 %v1335, %v1434
        %v1541 = vmax.f32 %v1338, %v1439
        %v1542 = vmax.f32 %v1343, %v1442
        %v1543 = vmax.f32 %v1346, %v1447
        %v1544 = vmax.f32 %v1351, %v1450
        %v1545 = vmax.f32 %v1354, %v1455
        %v1546 = vmax.f32 %v1359, %v1458
        %v1547 = vmax.f32 %v1362, %v1463
        %v1548 = vmax.f32 %v1367, %v1466
        %v1549 = vmax.f32 %v1370, %v1471
        %v1550 = vmax.f32 %v1375, %v1474
        %v1551 = vmax.f32 %v1378, %v1479
        %v1552 = vmax.f32 %v1383, %v1482
        %v1553 = vmax.f32 %v1386, %v1487
        %v1554 = vmax.f32 %v1391, %v1490
        %v1555 = vmax.f32 %v1394, %v1495
        %v1556 = vmax.f32 %v1399, %v1498
        %v1557 = vmax.f32 %v1402, %v1503
        %v1558 = vmax.f32 %v1407, %v1506
        %v1559 = vmax.f32 %v1509, %v1534
        %v1560 = vmax.f32 %v1510, %v1535
        %v1561 = vmax.f32 %v1511, %v1536
        %v1562 = vmax.f32 %v1512, %v1537
        %v1563 = vmax.f32 %v1513, %v1538
        %v1564 = vmax.f32 %v1514, %v1539
        %v1565 = vmax.f32 %v1515, %v1540
        %v1566 = vmax.f32 %v1516, %v1541
        %v1567 = vmax.f32 %v1517, %v1542
        %v1568 = vmax.f32 %v1518, %v1543
        %v1569 = vmax.f32 %v1519, %v1544
        %v1570 = vmax.f32 %v1520, %v1545
        %v1571 = vmax.f32 %v1521, %v1546
        %v1572 = vmax.f32 %v1522, %v1547
        %v1573 = vmax.f32 %v1523, %v1548
        %v1574 = vmax.f32 %v1524, %v1549
        %v1575 = vmax.f32 %v1525, %v1550
        %v1576 = vmax.f32 %v1526, %v1551
        %v1577 = vmax.f32 %v1527, %v1552
        %v1578 = vmax.f32 %v1528, %v1553
        %v1579 = vmax.f32 %v1529, %v1554
        %v1580 = vmax.f32 %v1530, %v1555
        %v1581 = vmax.f32 %v1531, %v1556
        %v1582 = vmax.f32 %v1532, %v1557
        %v1583 = vmax.f32 %v1533, %v1558
        %v1584 = vld [vmem:[%s2] sm:$0x1]
        %v1586 = vlaneseq
        %v1587 = vshrl.u32 %v1586, 7
        %v1588 = vsub.s32 0, %v1587
        %v1589 = vrot.slane %v1584, %v1588
        %v1591 = vadd.f32 %v1559, %v1589
        %v1592 = vadd.f32 %v1560, %v1589
        %v1593 = vadd.f32 %v1561, %v1589
        %v1594 = vadd.f32 %v1562, %v1589
        %v1595 = vadd.f32 %v1563, %v1589
        %v1596 = vadd.f32 %v1564, %v1589
        %v1597 = vadd.f32 %v1565, %v1589
        %v1598 = vadd.f32 %v1566, %v1589
        %v1599 = vadd.f32 %v1567, %v1589
        %v1600 = vadd.f32 %v1568, %v1589
        %v1601 = vadd.f32 %v1569, %v1589
        %v1602 = vadd.f32 %v1570, %v1589
        %v1603 = vadd.f32 %v1571, %v1589
        %v1604 = vadd.f32 %v1572, %v1589
        %v1605 = vadd.f32 %v1573, %v1589
        %v1606 = vadd.f32 %v1574, %v1589
        %v1607 = vadd.f32 %v1575, %v1589
        %v1608 = vadd.f32 %v1576, %v1589
        %v1609 = vadd.f32 %v1577, %v1589
        %v1610 = vadd.f32 %v1578, %v1589
        %v1611 = vadd.f32 %v1579, %v1589
        %v1612 = vadd.f32 %v1580, %v1589
        %v1613 = vadd.f32 %v1581, %v1589
        %v1614 = vadd.f32 %v1582, %v1589
        %v1615 = vadd.f32 %v1583, %v1589
        %v1616 = vmax.f32 %v1591, 0.0
        %v1617 = vmax.f32 %v1592, 0.0
        %v1618 = vmax.f32 %v1593, 0.0
        %v1619 = vmax.f32 %v1594, 0.0
        %v1620 = vmax.f32 %v1595, 0.0
        %v1621 = vmax.f32 %v1596, 0.0
        %v1622 = vmax.f32 %v1597, 0.0
        %v1623 = vmax.f32 %v1598, 0.0
        %v1624 = vmax.f32 %v1599, 0.0
        %v1625 = vmax.f32 %v1600, 0.0
        %v1626 = vmax.f32 %v1601, 0.0
        %v1627 = vmax.f32 %v1602, 0.0
        %v1628 = vmax.f32 %v1603, 0.0
        %v1629 = vmax.f32 %v1604, 0.0
        %v1630 = vmax.f32 %v1605, 0.0
        %v1631 = vmax.f32 %v1606, 0.0
        %v1632 = vmax.f32 %v1607, 0.0
        %v1633 = vmax.f32 %v1608, 0.0
        %v1634 = vmax.f32 %v1609, 0.0
        %v1635 = vmax.f32 %v1610, 0.0
        %v1636 = vmax.f32 %v1611, 0.0
        %v1637 = vmax.f32 %v1612, 0.0
        %v1638 = vmax.f32 %v1613, 0.0
        %v1639 = vmax.f32 %v1614, 0.0
        %v1640 = vmax.f32 %v1615, 0.0
        %v1641 = vpack.c.bf16 %v1617, %v1616
        %v1642 = vpack.c.bf16 %v1619, %v1618
        %v1643 = vpack.c.bf16 %v1621, %v1620
        %v1644 = vpack.c.bf16 %v1623, %v1622
        %v1645 = vpack.c.bf16 %v1625, %v1624
        %v1646 = vpack.c.bf16 %v1627, %v1626
        %v1647 = vpack.c.bf16 %v1629, %v1628
        %v1648 = vpack.c.bf16 %v1631, %v1630
        %v1649 = vpack.c.bf16 %v1633, %v1632
        %v1650 = vpack.c.bf16 %v1635, %v1634
        %v1651 = vpack.c.bf16 %v1637, %v1636
        %v1652 = vpack.c.bf16 %v1639, %v1638
        %v1653 = vpack.c.bf16 %v1640, %v1640
        %v1667 = vunpack.c.l.b16 %v1641
        %v1668 = vunpack.c.h.b16 %v1641
        %v1669 = vunpack.c.l.b16 %v1642
        %v1670 = vunpack.c.h.b16 %v1642
        %v1671 = vunpack.c.l.b16 %v1643
        %v1672 = vunpack.c.h.b16 %v1643
        %v1673 = vunpack.c.l.b16 %v1644
        %v1674 = vunpack.c.h.b16 %v1644
        %v1675 = vunpack.c.l.b16 %v1645
        %v1676 = vunpack.c.h.b16 %v1645
        %v1677 = vunpack.c.l.b16 %v1646
        %v1678 = vunpack.c.h.b16 %v1646
        %v1679 = vunpack.c.l.b16 %v1647
        %v1680 = vunpack.c.h.b16 %v1647
        %v1681 = vunpack.c.l.b16 %v1648
        %v1682 = vunpack.c.h.b16 %v1648
        %v1683 = vunpack.c.l.b16 %v1649
        %v1684 = vunpack.c.h.b16 %v1649
        %v1685 = vunpack.c.l.b16 %v1650
        %v1686 = vunpack.c.h.b16 %v1650
        %v1687 = vunpack.c.l.b16 %v1651
        %v1688 = vunpack.c.h.b16 %v1651
        %v1689 = vunpack.c.l.b16 %v1652
        %v1690 = vunpack.c.h.b16 %v1652
        %v1691 = vunpack.c.l.b16 %v1653
        %v1692 = vpack.c.b16 %v1667, %v1667
        %v1693 = vpack.c.b16 %v1668, %v1668
        %v1694 = vpack.c.b16 %v1669, %v1669
        %v1695 = vpack.c.b16 %v1670, %v1670
        %v1696 = vpack.c.b16 %v1671, %v1671
        %v1697 = vpack.c.b16 %v1672, %v1672
        %v1698 = vpack.c.b16 %v1673, %v1673
        %v1699 = vpack.c.b16 %v1674, %v1674
        %v1700 = vpack.c.b16 %v1675, %v1675
        %v1701 = vpack.c.b16 %v1676, %v1676
        %v1702 = vpack.c.b16 %v1677, %v1677
        %v1703 = vpack.c.b16 %v1678, %v1678
        %v1704 = vpack.c.b16 %v1679, %v1679
        %v1705 = vpack.c.b16 %v1680, %v1680
        %v1706 = vpack.c.b16 %v1681, %v1681
        %v1707 = vpack.c.b16 %v1682, %v1682
        %v1708 = vpack.c.b16 %v1683, %v1683
        %v1709 = vpack.c.b16 %v1684, %v1684
        %v1710 = vpack.c.b16 %v1685, %v1685
        %v1711 = vpack.c.b16 %v1686, %v1686
        %v1712 = vpack.c.b16 %v1687, %v1687
        %v1713 = vpack.c.b16 %v1688, %v1688
        %v1714 = vpack.c.b16 %v1689, %v1689
        %v1715 = vpack.c.b16 %v1690, %v1690
        %v1716 = vpack.c.b16 %v1691, %v1691
        %1742 = vst [vmem:[%s609] sm:$0xf] %v1692
        %1743 = vst [vmem:[%s609 + $0x4] sm:$0xf] %v1693
        %1744 = vst [vmem:[%s609 + $0x8] sm:$0xf] %v1694
        %1745 = vst [vmem:[%s609 + $0xc] sm:$0xf] %v1695
        %1746 = vst [vmem:[%s609 + $0x10] sm:$0xf] %v1696
        %1747 = vst [vmem:[%s609 + $0x14] sm:$0xf] %v1697
        %1748 = vst [vmem:[%s609 + $0x18] sm:$0xf] %v1698
        %1749 = vst [vmem:[%s609 + $0x1c] sm:$0xf] %v1699
        %1750 = vst [vmem:[%s609 + $0x20] sm:$0xf] %v1700
        %1751 = vst [vmem:[%s609 + $0x24] sm:$0xf] %v1701
        %1752 = vst [vmem:[%s609 + $0x28] sm:$0xf] %v1702
        %1753 = vst [vmem:[%s609 + $0x2c] sm:$0xf] %v1703
        %1754 = vst [vmem:[%s609 + $0x30] sm:$0xf] %v1704
        %1755 = vst [vmem:[%s609 + $0x34] sm:$0xf] %v1705
        %1756 = vst [vmem:[%s609 + $0x38] sm:$0xf] %v1706
        %1757 = vst [vmem:[%s609 + $0x3c] sm:$0xf] %v1707
        %1758 = vst [vmem:[%s609 + $0x40] sm:$0xf] %v1708
        %1759 = vst [vmem:[%s609 + $0x44] sm:$0xf] %v1709
        %1760 = vst [vmem:[%s609 + $0x48] sm:$0xf] %v1710
        %1761 = vst [vmem:[%s609 + $0x4c] sm:$0xf] %v1711
        %1762 = vst [vmem:[%s609 + $0x50] sm:$0xf] %v1712
        %1763 = vst [vmem:[%s609 + $0x54] sm:$0xf] %v1713
        %1764 = vst [vmem:[%s609 + $0x58] sm:$0xf] %v1714
        %1765 = vst [vmem:[%s609 + $0x5c] sm:$0xf] %v1715
        %1766 = vst [vmem:[%s609 + $0x60] sm:$0xf] %v1716
        %s1767 = smul.u32 25, %s14
        %p1768 = scmp.lt.s32.totalorder %s1767, 49
        %s1769 = scalar_select %p1768, %s1767, 49
        %s1770 = smul.addr %s1769, 4
        %s1771 = scalar_lea.vmem %s3, %s1770
        // Predicated region
        $region74: #{pfmcnn4_forward.3} parent=68 // pred_check
          %p1772 = pneg %p100
        $region75: #{pfmcnn4_forward.3} parent=68 // pred_check_branch
          %1774 = sbr.rel (%p1772) target = $region77
        $region76: #{pfmcnn4_forward.3} parent=68 // pred_region
          %s1775 = smul.u32 25, %s14
        $region77: #{pfmcnn4_forward.3} parent=68 // pred_fallthru
          _
      $region69: #{pfmcnn4_forward.3} parent=5 // pred_fallthru
        _
      %p1776 = scmp.le.s32.totalorder 2, %s9
      // Predicated region
      $region78: #{pfmcnn4_forward.3} parent=5 // pred_check
        %p1777 = pneg %p1776
      $region79: #{pfmcnn4_forward.3} parent=5 // pred_check_branch
        %1779 = sbr.rel (%p1777) target = $region81
      $region80: #{pfmcnn4_forward.3} parent=5 // pred_region
        %s1780 = ssub.s32 %s9, 2
        // Predicated region
        $region82: #{pfmcnn4_forward.3} parent=80 // pred_check
          %p1781 = pneg %p106
        $region83: #{pfmcnn4_forward.3} parent=80 // pred_check_branch
          %1783 = sbr.rel (%p1781) target = $region85
        $region84: #{pfmcnn4_forward.3} parent=80 // pred_region
          %s1784 = smul.u32 25, %s15
          %p1785 = scmp.lt.s32.totalorder %s1784, 49
          %s1786 = scalar_select %p1785, %s1784, 49
          %s1787 = smul.addr %s1786, 4
          %s1788 = scalar_lea.vmem %s3, %s1787
        $region85: #{pfmcnn4_forward.3} parent=80 // pred_fallthru
          _
      $region81: #{pfmcnn4_forward.3} parent=5 // pred_fallthru
        _
    $region6: #{pfmcnn4_forward.3} parent=1 // loop_footer
      %s13 = sadd.s32 1, %s9
    $region7: #{pfmcnn4_forward.3} parent=1 // loop_footer_branch
      %8 = sbr.rel target = $region3
    $region8: #{pfmcnn4_forward.3} parent=1 // loop_exit
      _

// kernel: pfmcnn4_forward.4
$region0: #{pfmcnn4_forward.4}
  #allocation0 [shape = 'u32[]', space=smem, size = 0x4, offset = 0x4, fixed_abs, tag = 'smem constant byte address 0x4 - core index']
  #allocation1 [shape = 'u32[144,128]{1,0:T(1,128)}', space=vmem, size = 0x12000, scoped, tag = 'internal scratch']
  %s0 = inlined_call_operand.vmem [shape: bf16[4,64,512], index: 0, kind: input, shape index: {}]
  %s1 = inlined_call_operand.vmem [shape: bf16[512,128], index: 1, kind: input, shape index: {}]
  %s2 = inlined_call_operand.vmem [shape: f32[1,128], index: 2, kind: input, shape index: {}]
  %s3 = inlined_call_operand.vmem [shape: bf16[64,128], index: 3, kind: output, shape index: {}]
  %s4 = sld [smem:[#allocation0]]
  $region68: #{pfmcnn4_forward.4} parent=0
    _
  %s6 = ssub.s32 1, %s4
  %s7 = scalar_select 0, %s6, %s4
  $region1: #{pfmcnn4_forward.4} parent=0
    #allocation2 [shape = 'u8[262144]{0}', space=vmem, size = 0x40000, scoped, tag = 'input window, operand 0']
    loop: start=0, step=1, limit=4
    $region2: #{pfmcnn4_forward.4} parent=1 // loop_pre_header
      _
    $region3: #{pfmcnn4_forward.4} parent=1 // loop_header
      %s9 = sphi 0, %s13
      %p10 = scmp.ge.s32.totalorder %s9, 4
      %s19 = sphi 0, %s21
      %s22 = sphi 0, %s19
      %s23 = sphi 0, %s22
      %s39 = sphi 0, %s23
      %s43 = sphi 0, %s43
      %s45 = sphi 0, %s43
      %s46 = sphi 0, %s45
      %s60 = sphi 0, %s46
      %s64 = sphi 0, %s64
      %s66 = sphi 0, %s64
      %s67 = sphi 0, %s66
      %s81 = sphi 0, %s67
      %s87 = sphi 0, %s89
      %s90 = sphi 0, %s87
      %s91 = sphi 0, %s90
      %s107 = sphi 0, %s91
    $region4: #{pfmcnn4_forward.4} parent=1 // loop_header_branch
      %12 = sbr.rel (%p10) target = $region8
    $region5: #{pfmcnn4_forward.4} parent=1 // loop_body
      %s14 = ssub.s32 %s9, 1
      %s15 = ssub.s32 %s9, 2
      %s16 = sadd.s32 %s9, 1
      %s17 = ssub.s32 %s9, %s16
      %p18 = scmp.eq.s32.totalorder %s17, 0
      %s20 = sadd.s32 %s19, 1
      %s21 = scalar_select %p18, %s19, %s20
      %p24 = pneg %p18
      %p25 = scmp.eq.s32.totalorder %s9, 1
      %p26 = por %p24, %p25
      %p27 = scmp.ne.s32.totalorder %s19, %s22
      %p28 = scmp.eq.s32.totalorder %s9, 0
      %p29 = por %p27, %p28
      %p30 = scmp.ne.s32.totalorder %s19, %s22
      %p31 = scmp.eq.s32.totalorder %s14, 1
      %p32 = por %p30, %p31
      %p33 = scmp.ne.s32.totalorder %s22, %s23
      %p34 = scmp.eq.s32.totalorder %s14, 0
      %p35 = por %p33, %p34
      %p36 = scmp.ne.s32.totalorder %s22, %s23
      %p37 = scmp.eq.s32.totalorder %s15, 1
      %p38 = por %p36, %p37
      %p40 = scmp.ne.s32.totalorder %s23, %s39
      %p41 = scmp.eq.s32.totalorder %s15, 0
      %p42 = por %p40, %p41
      %s44 = sadd.s32 %s43, 1
      %p47 = scmp.eq.s32.totalorder %s9, 1
      %p48 = scmp.ne.s32.totalorder %s43, %s45
      %p49 = scmp.eq.s32.totalorder %s9, 0
      %p50 = por %p48, %p49
      %p51 = scmp.ne.s32.totalorder %s43, %s45
      %p52 = scmp.eq.s32.totalorder %s14, 1
      %p53 = por %p51, %p52
      %p54 = scmp.ne.s32.totalorder %s45, %s46
      %p55 = scmp.eq.s32.totalorder %s14, 0
      %p56 = por %p54, %p55
      %p57 = scmp.ne.s32.totalorder %s45, %s46
      %p58 = scmp.eq.s32.totalorder %s15, 1
      %p59 = por %p57, %p58
      %p61 = scmp.ne.s32.totalorder %s46, %s60
      %p62 = scmp.eq.s32.totalorder %s15, 0
      %p63 = por %p61, %p62
      %s65 = sadd.s32 %s64, 1
      %p68 = scmp.eq.s32.totalorder %s9, 1
      %p69 = scmp.ne.s32.totalorder %s64, %s66
      %p70 = scmp.eq.s32.totalorder %s9, 0
      %p71 = por %p69, %p70
      %p72 = scmp.ne.s32.totalorder %s64, %s66
      %p73 = scmp.eq.s32.totalorder %s14, 1
      %p74 = por %p72, %p73
      %p75 = scmp.ne.s32.totalorder %s66, %s67
      %p76 = scmp.eq.s32.totalorder %s14, 0
      %p77 = por %p75, %p76
      %p78 = scmp.ne.s32.totalorder %s66, %s67
      %p79 = scmp.eq.s32.totalorder %s15, 1
      %p80 = por %p78, %p79
      %p82 = scmp.ne.s32.totalorder %s67, %s81
      %p83 = scmp.eq.s32.totalorder %s15, 0
      %p84 = por %p82, %p83
      %s85 = ssub.s32 %s9, %s16
      %p86 = scmp.eq.s32.totalorder %s85, 0
      %s88 = sadd.s32 %s87, 1
      %s89 = scalar_select %p86, %s87, %s88
      %p92 = pneg %p86
      %p93 = scmp.eq.s32.totalorder %s9, 1
      %p94 = por %p92, %p93
      %p95 = scmp.ne.s32.totalorder %s87, %s90
      %p96 = scmp.eq.s32.totalorder %s9, 0
      %p97 = por %p95, %p96
      %p98 = scmp.ne.s32.totalorder %s87, %s90
      %p99 = scmp.eq.s32.totalorder %s14, 1
      %p100 = por %p98, %p99
      %p101 = scmp.ne.s32.totalorder %s90, %s91
      %p102 = scmp.eq.s32.totalorder %s14, 0
      %p103 = por %p101, %p102
      %p104 = scmp.ne.s32.totalorder %s90, %s91
      %p105 = scmp.eq.s32.totalorder %s15, 1
      %p106 = por %p104, %p105
      %p108 = scmp.ne.s32.totalorder %s91, %s107
      %p109 = scmp.eq.s32.totalorder %s15, 0
      %p110 = por %p108, %p109
      %p111 = scmp.le.s32.totalorder 1, %s9
      %p112 = scmp.lt.s32.totalorder %s9, 3
      %p113 = pnand %p111, %p112
      %p114 = pneg %p113
      // Predicated region
      $region9: #{pfmcnn4_forward.4} parent=5 // pred_check
        _
      $region10: #{pfmcnn4_forward.4} parent=5 // pred_check_branch
        %116 = sbr.rel (%p113) target = $region12
      $region11: #{pfmcnn4_forward.4} parent=5 // pred_region
        %s117 = ssub.s32 %s9, 1
        // Predicated region
        $region13: #{pfmcnn4_forward.4} parent=11 // pred_check
          %p118 = pneg %p56
        $region14: #{pfmcnn4_forward.4} parent=11 // pred_check_branch
          %120 = sbr.rel (%p118) target = $region16
        $region15: #{pfmcnn4_forward.4} parent=11 // pred_region
          _
        $region16: #{pfmcnn4_forward.4} parent=11 // pred_fallthru
          _
        // Predicated region
        $region17: #{pfmcnn4_forward.4} parent=11 // pred_check
          %p121 = pneg %p77
        $region18: #{pfmcnn4_forward.4} parent=11 // pred_check_branch
          %123 = sbr.rel (%p121) target = $region20
        $region19: #{pfmcnn4_forward.4} parent=11 // pred_region
          _
        $region20: #{pfmcnn4_forward.4} parent=11 // pred_fallthru
          _
      $region12: #{pfmcnn4_forward.4} parent=5 // pred_fallthru
        _
      %p124 = scmp.lt.s32.totalorder %s9, 2
      // Predicated region
      $region21: #{pfmcnn4_forward.4} parent=5 // pred_check
        %p125 = pneg %p124
      $region22: #{pfmcnn4_forward.4} parent=5 // pred_check_branch
        %127 = sbr.rel (%p125) target = $region24
      $region23: #{pfmcnn4_forward.4} parent=5 // pred_region
        // Predicated region
        $region25: #{pfmcnn4_forward.4} parent=23 // pred_check
          %p128 = pneg %p29
        $region26: #{pfmcnn4_forward.4} parent=23 // pred_check_branch
          %130 = sbr.rel (%p128) target = $region28
        $region27: #{pfmcnn4_forward.4} parent=23 // pred_region
          %s131 = sand.u32 %s19, 1
          %s132 = sand.u32 %s19, 1
          %s133 = smul.addr %s132, 256
          %s134 = scalar_lea.vmem [#allocation2], %s133
          %s135 = smul.u32 4, %s9
          %s136 = smul.addr %s135, 4
          %s137 = smul.addr %s136, 4
          %s138 = scalar_lea.vmem %s0, %s137
          // Predicated region
          $region29: #{pfmcnn4_forward.4} parent=27 // pred_check
            _
          $region30: #{pfmcnn4_forward.4} parent=27 // pred_check_branch
            %140 = sbr.rel (0) target = $region32
          $region31: #{pfmcnn4_forward.4} parent=27 // pred_region
            // Predicated region
            $region33: #{pfmcnn4_forward.4} parent=31 // pred_check
              _
            $region34: #{pfmcnn4_forward.4} parent=31 // pred_check_branch
              %142 = sbr.rel (0) target = $region36
            $region35: #{pfmcnn4_forward.4} parent=31 // pred_region
              loop: start=0, step=1, limit=1
              $region37: #{pfmcnn4_forward.4} parent=35 // loop_pre_header
                _
              $region38: #{pfmcnn4_forward.4} parent=35 // loop_header
                %s144 = sphi 0, %s148
                %p145 = scmp.ge.s32.totalorder %s144, 1
                %s149 = sphi %s138, %s138
                %s150 = sphi %s134, %s134
              $region39: #{pfmcnn4_forward.4} parent=35 // loop_header_branch
                %147 = sbr.rel (%p145) target = $region43
              $region40: #{pfmcnn4_forward.4} parent=35 // loop_body
                %v151 = vld [vmem:[%s149] sm:$0xff]
                %152 = vst [vmem:[%s150] sm:$0xff] %v151
                %v153 = vld [vmem:[%s149 + $0x8] sm:$0xff]
                %154 = vst [vmem:[%s150 + $0x8] sm:$0xff] %v153
                %v155 = vld [vmem:[%s149 + $0x10] sm:$0xff]
                %156 = vst [vmem:[%s150 + $0x10] sm:$0xff] %v155
                %v157 = vld [vmem:[%s149 + $0x18] sm:$0xff]
                %158 = vst [vmem:[%s150 + $0x18] sm:$0xff] %v157
                %v159 = vld [vmem:[%s149 + $0x20] sm:$0xff]
                %160 = vst [vmem:[%s150 + $0x20] sm:$0xff] %v159
                %v161 = vld [vmem:[%s149 + $0x28] sm:$0xff]
                %162 = vst [vmem:[%s150 + $0x28] sm:$0xff] %v161
                %v163 = vld [vmem:[%s149 + $0x30] sm:$0xff]
                %164 = vst [vmem:[%s150 + $0x30] sm:$0xff] %v163
                %v165 = vld [vmem:[%s149 + $0x38] sm:$0xff]
                %166 = vst [vmem:[%s150 + $0x38] sm:$0xff] %v165
                %v167 = vld [vmem:[%s149 + $0x80] sm:$0xff]
                %168 = vst [vmem:[%s150 + $0x40] sm:$0xff] %v167
                %v169 = vld [vmem:[%s149 + $0x88] sm:$0xff]
                %170 = vst [vmem:[%s150 + $0x48] sm:$0xff] %v169
                %v171 = vld [vmem:[%s149 + $0x90] sm:$0xff]
                %172 = vst [vmem:[%s150 + $0x50] sm:$0xff] %v171
                %v173 = vld [vmem:[%s149 + $0x98] sm:$0xff]
                %174 = vst [vmem:[%s150 + $0x58] sm:$0xff] %v173
                %v175 = vld [vmem:[%s149 + $0xa0] sm:$0xff]
                %176 = vst [vmem:[%s150 + $0x60] sm:$0xff] %v175
                %v177 = vld [vmem:[%s149 + $0xa8] sm:$0xff]
                %178 = vst [vmem:[%s150 + $0x68] sm:$0xff] %v177
                %v179 = vld [vmem:[%s149 + $0xb0] sm:$0xff]
                %180 = vst [vmem:[%s150 + $0x70] sm:$0xff] %v179
                %v181 = vld [vmem:[%s149 + $0xb8] sm:$0xff]
                %182 = vst [vmem:[%s150 + $0x78] sm:$0xff] %v181
                %v183 = vld [vmem:[%s149 + $0x100] sm:$0xff]
                %184 = vst [vmem:[%s150 + $0x80] sm:$0xff] %v183
                %v185 = vld [vmem:[%s149 + $0x108] sm:$0xff]
                %186 = vst [vmem:[%s150 + $0x88] sm:$0xff] %v185
                %v187 = vld [vmem:[%s149 + $0x110] sm:$0xff]
                %188 = vst [vmem:[%s150 + $0x90] sm:$0xff] %v187
                %v189 = vld [vmem:[%s149 + $0x118] sm:$0xff]
                %190 = vst [vmem:[%s150 + $0x98] sm:$0xff] %v189
                %v191 = vld [vmem:[%s149 + $0x120] sm:$0xff]
                %192 = vst [vmem:[%s150 + $0xa0] sm:$0xff] %v191
                %v193 = vld [vmem:[%s149 + $0x128] sm:$0xff]
                %194 = vst [vmem:[%s150 + $0xa8] sm:$0xff] %v193
                %v195 = vld [vmem:[%s149 + $0x130] sm:$0xff]
                %196 = vst [vmem:[%s150 + $0xb0] sm:$0xff] %v195
                %v197 = vld [vmem:[%s149 + $0x138] sm:$0xff]
                %198 = vst [vmem:[%s150 + $0xb8] sm:$0xff] %v197
                %v199 = vld [vmem:[%s149 + $0x180] sm:$0xff]
                %200 = vst [vmem:[%s150 + $0xc0] sm:$0xff] %v199
                %v201 = vld [vmem:[%s149 + $0x188] sm:$0xff]
                %202 = vst [vmem:[%s150 + $0xc8] sm:$0xff] %v201
                %v203 = vld [vmem:[%s149 + $0x190] sm:$0xff]
                %204 = vst [vmem:[%s150 + $0xd0] sm:$0xff] %v203
                %v205 = vld [vmem:[%s149 + $0x198] sm:$0xff]
                %206 = vst [vmem:[%s150 + $0xd8] sm:$0xff] %v205
                %v207 = vld [vmem:[%s149 + $0x1a0] sm:$0xff]
                %208 = vst [vmem:[%s150 + $0xe0] sm:$0xff] %v207
                %v209 = vld [vmem:[%s149 + $0x1a8] sm:$0xff]
                %210 = vst [vmem:[%s150 + $0xe8] sm:$0xff] %v209
                %v211 = vld [vmem:[%s149 + $0x1b0] sm:$0xff]
                %212 = vst [vmem:[%s150 + $0xf0] sm:$0xff] %v211
                %v213 = vld [vmem:[%s149 + $0x1b8] sm:$0xff]
                %214 = vst [vmem:[%s150 + $0xf8] sm:$0xff] %v213
              $region41: #{pfmcnn4_forward.4} parent=35 // loop_footer
                %s148 = sadd.s32 1, %s144
              $region42: #{pfmcnn4_forward.4} parent=35 // loop_footer_branch
                %143 = sbr.rel target = $region38
              $region43: #{pfmcnn4_forward.4} parent=35 // loop_exit
                _
            $region36: #{pfmcnn4_forward.4} parent=31 // pred_fallthru
              _
            // Predicated region
            $region44: #{pfmcnn4_forward.4} parent=31 // pred_check
              _
            $region45: #{pfmcnn4_forward.4} parent=31 // pred_check_branch
              %216 = sbr.rel target = $region47
            $region46: #{pfmcnn4_forward.4} parent=31 // pred_region
              _
            $region47: #{pfmcnn4_forward.4} parent=31 // pred_fallthru
              _
          $region32: #{pfmcnn4_forward.4} parent=27 // pred_fallthru
            _
          %217 = vnop
        $region28: #{pfmcnn4_forward.4} parent=23 // pred_fallthru
          _
      $region24: #{pfmcnn4_forward.4} parent=5 // pred_fallthru
        _
      %p218 = scmp.le.s32.totalorder 1, %s9
      %p219 = scmp.lt.s32.totalorder %s9, 3
      %p220 = pnand %p218, %p219
      %p221 = pneg %p220
      // Predicated region
      $region48: #{pfmcnn4_forward.4} parent=5 // pred_check
        _
      $region49: #{pfmcnn4_forward.4} parent=5 // pred_check_branch
        %223 = sbr.rel (%p220) target = $region51
      $region50: #{pfmcnn4_forward.4} parent=5 // pred_region
        %s224 = ssub.s32 %s9, 1
        %s225 = sand.u32 %s22, 1
        %s226 = sand.u32 %s22, 1
        %s227 = smul.addr %s226, 256
        %s228 = scalar_lea.vmem [#allocation2], %s227
        // Predicated region
        $region52: #{pfmcnn4_forward.4} parent=50 // pred_check
          %p229 = pneg %p35
        $region53: #{pfmcnn4_forward.4} parent=50 // pred_check_branch
          %231 = sbr.rel (%p229) target = $region55
        $region54: #{pfmcnn4_forward.4} parent=50 // pred_region
          _
        $region55: #{pfmcnn4_forward.4} parent=50 // pred_fallthru
          _
        %s232 = sand.u32 %s22, 1
        %s233 = sand.u32 %s22, 1
        %s234 = smul.addr %s233, 256
        %s235 = scalar_lea.vmem [#allocation2], %s234
        %p236 = pneg %p35
        %p237 = pneg %p32
        %p238 = pneg %p56
        %p239 = pneg %p53
        %p240 = pneg %p77
        %p241 = pneg %p74
        %p242 = pneg %p103
        %p243 = pneg %p100
        %s244 = smul.u32 4, %s14
        %p245 = scmp.lt.s32.totalorder %s244, 7
        %s246 = scalar_select %p245, %s244, 7
        %s247 = smul.addr %s246, 4
        %s248 = scalar_lea.vmem %s3, %s247
        %s249 = smul.u32 4, %s14
        %s250 = smul.u32 4, %s14
        %p251 = scmp.lt.s32.totalorder %s250, 7
        %s252 = scalar_select %p251, %s250, 7
        %s253 = smul.addr %s252, 4
        %s254 = scalar_lea.vmem %s3, %s253
        %s255 = smul.u32 4, %s14
        %v257 = vld [vmem:[%s228] sm:$0xff]
        %v258 = vld [vmem:[%s228 + $0x8] sm:$0xff]
        %v259 = vld [vmem:[%s228 + $0x10] sm:$0xff]
        %v260 = vld [vmem:[%s228 + $0x18] sm:$0xff]
        %v261 = vld [vmem:[%s228 + $0x20] sm:$0xff]
        %v262 = vld [vmem:[%s228 + $0x28] sm:$0xff]
        %v263 = vld [vmem:[%s228 + $0x30] sm:$0xff]
        %v264 = vld [vmem:[%s228 + $0x38] sm:$0xff]
        %v265 = vld [vmem:[%s228 + $0x40] sm:$0xff]
        %v266 = vld [vmem:[%s228 + $0x48] sm:$0xff]
        %v267 = vld [vmem:[%s228 + $0x50] sm:$0xff]
        %v268 = vld [vmem:[%s228 + $0x58] sm:$0xff]
        %v269 = vld [vmem:[%s228 + $0x60] sm:$0xff]
        %v270 = vld [vmem:[%s228 + $0x68] sm:$0xff]
        %v271 = vld [vmem:[%s228 + $0x70] sm:$0xff]
        %v272 = vld [vmem:[%s228 + $0x78] sm:$0xff]
        %v273 = vld [vmem:[%s228 + $0x80] sm:$0xff]
        %v274 = vld [vmem:[%s228 + $0x88] sm:$0xff]
        %v275 = vld [vmem:[%s228 + $0x90] sm:$0xff]
        %v276 = vld [vmem:[%s228 + $0x98] sm:$0xff]
        %v277 = vld [vmem:[%s228 + $0xa0] sm:$0xff]
        %v278 = vld [vmem:[%s228 + $0xa8] sm:$0xff]
        %v279 = vld [vmem:[%s228 + $0xb0] sm:$0xff]
        %v280 = vld [vmem:[%s228 + $0xb8] sm:$0xff]
        %v281 = vld [vmem:[%s228 + $0xc0] sm:$0xff]
        %v282 = vld [vmem:[%s228 + $0xc8] sm:$0xff]
        %v283 = vld [vmem:[%s228 + $0xd0] sm:$0xff]
        %v284 = vld [vmem:[%s228 + $0xd8] sm:$0xff]
        %v285 = vld [vmem:[%s228 + $0xe0] sm:$0xff]
        %v286 = vld [vmem:[%s228 + $0xe8] sm:$0xff]
        %v287 = vld [vmem:[%s228 + $0xf0] sm:$0xff]
        %v288 = vld [vmem:[%s228 + $0xf8] sm:$0xff]
        %v289 = vld [vmem:[%s1] sm:$0xf]
        %v290 = vld [vmem:[%s1 + $0x4] sm:$0xf]
        %v291 = vld [vmem:[%s1 + $0x8] sm:$0xf]
        %v292 = vld [vmem:[%s1 + $0xc] sm:$0xf]
        %v293 = vld [vmem:[%s1 + $0x10] sm:$0xf]
        %v294 = vld [vmem:[%s1 + $0x14] sm:$0xf]
        %v295 = vld [vmem:[%s1 + $0x18] sm:$0xf]
        %v296 = vld [vmem:[%s1 + $0x1c] sm:$0xf]
        %v297 = vld [vmem:[%s1 + $0x20] sm:$0xf]
        %v298 = vld [vmem:[%s1 + $0x24] sm:$0xf]
        %v299 = vld [vmem:[%s1 + $0x28] sm:$0xf]
        %v300 = vld [vmem:[%s1 + $0x2c] sm:$0xf]
        %v301 = vld [vmem:[%s1 + $0x30] sm:$0xf]
        %v302 = vld [vmem:[%s1 + $0x34] sm:$0xf]
        %v303 = vld [vmem:[%s1 + $0x38] sm:$0xf]
        %v304 = vld [vmem:[%s1 + $0x3c] sm:$0xf]
        %v305 = vld [vmem:[%s1 + $0x40] sm:$0xf]
        %v306 = vld [vmem:[%s1 + $0x44] sm:$0xf]
        %v307 = vld [vmem:[%s1 + $0x48] sm:$0xf]
        %v308 = vld [vmem:[%s1 + $0x4c] sm:$0xf]
        %v309 = vld [vmem:[%s1 + $0x50] sm:$0xf]
        %v310 = vld [vmem:[%s1 + $0x54] sm:$0xf]
        %v311 = vld [vmem:[%s1 + $0x58] sm:$0xf]
        %v312 = vld [vmem:[%s1 + $0x5c] sm:$0xf]
        %v313 = vld [vmem:[%s1 + $0x60] sm:$0xf]
        %v314 = vld [vmem:[%s1 + $0x64] sm:$0xf]
        %v315 = vld [vmem:[%s1 + $0x68] sm:$0xf]
        %v316 = vld [vmem:[%s1 + $0x6c] sm:$0xf]
        %v317 = vld [vmem:[%s1 + $0x70] sm:$0xf]
        %v318 = vld [vmem:[%s1 + $0x74] sm:$0xf]
        %v319 = vld [vmem:[%s1 + $0x78] sm:$0xf]
        %v320 = vld [vmem:[%s1 + $0x7c] sm:$0xf]
        %v321 = vld [vmem:[%s1 + $0x80] sm:$0xf]
        %v322 = vld [vmem:[%s1 + $0x84] sm:$0xf]
        %v323 = vld [vmem:[%s1 + $0x88] sm:$0xf]
        %v324 = vld [vmem:[%s1 + $0x8c] sm:$0xf]
        %v325 = vld [vmem:[%s1 + $0x90] sm:$0xf]
        %v326 = vld [vmem:[%s1 + $0x94] sm:$0xf]
        %v327 = vld [vmem:[%s1 + $0x98] sm:$0xf]
        %v328 = vld [vmem:[%s1 + $0x9c] sm:$0xf]
        %v329 = vld [vmem:[%s1 + $0xa0] sm:$0xf]
        %v330 = vld [vmem:[%s1 + $0xa4] sm:$0xf]
        %v331 = vld [vmem:[%s1 + $0xa8] sm:$0xf]
        %v332 = vld [vmem:[%s1 + $0xac] sm:$0xf]
        %v333 = vld [vmem:[%s1 + $0xb0] sm:$0xf]
        %v334 = vld [vmem:[%s1 + $0xb4] sm:$0xf]
        %v335 = vld [vmem:[%s1 + $0xb8] sm:$0xf]
        %v336 = vld [vmem:[%s1 + $0xbc] sm:$0xf]
        %v337 = vld [vmem:[%s1 + $0xc0] sm:$0xf]
        %v338 = vld [vmem:[%s1 + $0xc4] sm:$0xf]
        %v339 = vld [vmem:[%s1 + $0xc8] sm:$0xf]
        %v340 = vld [vmem:[%s1 + $0xcc] sm:$0xf]
        %v341 = vld [vmem:[%s1 + $0xd0] sm:$0xf]
        %v342 = vld [vmem:[%s1 + $0xd4] sm:$0xf]
        %v343 = vld [vmem:[%s1 + $0xd8] sm:$0xf]
        %v344 = vld [vmem:[%s1 + $0xdc] sm:$0xf]
        %v345 = vld [vmem:[%s1 + $0xe0] sm:$0xf]
        %v346 = vld [vmem:[%s1 + $0xe4] sm:$0xf]
        %v347 = vld [vmem:[%s1 + $0xe8] sm:$0xf]
        %v348 = vld [vmem:[%s1 + $0xec] sm:$0xf]
        %v349 = vld [vmem:[%s1 + $0xf0] sm:$0xf]
        %v350 = vld [vmem:[%s1 + $0xf4] sm:$0xf]
        %v351 = vld [vmem:[%s1 + $0xf8] sm:$0xf]
        %v352 = vld [vmem:[%s1 + $0xfc] sm:$0xf]
        %v385 = vunpack.c.l.b16 %v257
        %v386 = vunpack.c.h.b16 %v257
        %v387 = vunpack.c.l.b16 %v258
        %v388 = vunpack.c.h.b16 %v258
        %v389 = vunpack.c.l.b16 %v259
        %v390 = vunpack.c.h.b16 %v259
        %v391 = vunpack.c.l.b16 %v260
        %v392 = vunpack.c.h.b16 %v260
        %v393 = vunpack.c.l.b16 %v261
        %v394 = vunpack.c.h.b16 %v261
        %v395 = vunpack.c.l.b16 %v262
        %v396 = vunpack.c.h.b16 %v262
        %v397 = vunpack.c.l.b16 %v263
        %v398 = vunpack.c.h.b16 %v263
        %v399 = vunpack.c.l.b16 %v264
        %v400 = vunpack.c.h.b16 %v264
        %v401 = vunpack.c.l.b16 %v265
        %v402 = vunpack.c.h.b16 %v265
        %v403 = vunpack.c.l.b16 %v266
        %v404 = vunpack.c.h.b16 %v266
        %v405 = vunpack.c.l.b16 %v267
        %v406 = vunpack.c.h.b16 %v267
        %v407 = vunpack.c.l.b16 %v268
        %v408 = vunpack.c.h.b16 %v268
        %v409 = vunpack.c.l.b16 %v269
        %v410 = vunpack.c.h.b16 %v269
        %v411 = vunpack.c.l.b16 %v270
        %v412 = vunpack.c.h.b16 %v270
        %v413 = vunpack.c.l.b16 %v271
        %v414 = vunpack.c.h.b16 %v271
        %v415 = vunpack.c.l.b16 %v272
        %v416 = vunpack.c.h.b16 %v272
        %v417 = vunpack.c.l.b16 %v273
        %v418 = vunpack.c.h.b16 %v273
        %v419 = vunpack.c.l.b16 %v274
        %v420 = vunpack.c.h.b16 %v274
        %v421 = vunpack.c.l.b16 %v275
        %v422 = vunpack.c.h.b16 %v275
        %v423 = vunpack.c.l.b16 %v276
        %v424 = vunpack.c.h.b16 %v276
        %v425 = vunpack.c.l.b16 %v277
        %v426 = vunpack.c.h.b16 %v277
        %v427 = vunpack.c.l.b16 %v278
        %v428 = vunpack.c.h.b16 %v278
        %v429 = vunpack.c.l.b16 %v279
        %v430 = vunpack.c.h.b16 %v279
        %v431 = vunpack.c.l.b16 %v280
        %v432 = vunpack.c.h.b16 %v280
        %v433 = vunpack.c.l.b16 %v281
        %v434 = vunpack.c.h.b16 %v281
        %v435 = vunpack.c.l.b16 %v282
        %v436 = vunpack.c.h.b16 %v282
        %v437 = vunpack.c.l.b16 %v283
        %v438 = vunpack.c.h.b16 %v283
        %v439 = vunpack.c.l.b16 %v284
        %v440 = vunpack.c.h.b16 %v284
        %v441 = vunpack.c.l.b16 %v285
        %v442 = vunpack.c.h.b16 %v285
        %v443 = vunpack.c.l.b16 %v286
        %v444 = vunpack.c.h.b16 %v286
        %v445 = vunpack.c.l.b16 %v287
        %v446 = vunpack.c.h.b16 %v287
        %v447 = vunpack.c.l.b16 %v288
        %v448 = vunpack.c.h.b16 %v288
        %v449 = vpack.c.b16 %v389, %v385
        %v450 = vpack.c.b16 %v390, %v386
        %v451 = vpack.c.b16 %v391, %v387
        %v452 = vpack.c.b16 %v392, %v388
        %v453 = vpack.c.b16 %v397, %v393
        %v454 = vpack.c.b16 %v398, %v394
        %v455 = vpack.c.b16 %v399, %v395
        %v456 = vpack.c.b16 %v400, %v396
        %v457 = vpack.c.b16 %v405, %v401
        %v458 = vpack.c.b16 %v406, %v402
        %v459 = vpack.c.b16 %v407, %v403
        %v460 = vpack.c.b16 %v408, %v404
        %v461 = vpack.c.b16 %v413, %v409
        %v462 = vpack.c.b16 %v414, %v410
        %v463 = vpack.c.b16 %v415, %v411
        %v464 = vpack.c.b16 %v416, %v412
        %v465 = vpack.c.b16 %v421, %v417
        %v466 = vpack.c.b16 %v422, %v418
        %v467 = vpack.c.b16 %v423, %v419
        %v468 = vpack.c.b16 %v424, %v420
        %v469 = vpack.c.b16 %v429, %v425
        %v470 = vpack.c.b16 %v430, %v426
        %v471 = vpack.c.b16 %v431, %v427
        %v472 = vpack.c.b16 %v432, %v428
        %v473 = vpack.c.b16 %v437, %v433
        %v474 = vpack.c.b16 %v438, %v434
        %v475 = vpack.c.b16 %v439, %v435
        %v476 = vpack.c.b16 %v440, %v436
        %v477 = vpack.c.b16 %v445, %v441
        %v478 = vpack.c.b16 %v446, %v442
        %v479 = vpack.c.b16 %v447, %v443
        %v480 = vpack.c.b16 %v448, %v444
        %v577 = vunpack.c.l.b16 %v289
        %v578 = vunpack.c.l.b16 %v290
        %v579 = vunpack.c.l.b16 %v291
        %v580 = vunpack.c.l.b16 %v292
        %v581 = vunpack.c.l.b16 %v293
        %v582 = vunpack.c.l.b16 %v294
        %v583 = vunpack.c.l.b16 %v295
        %v584 = vunpack.c.l.b16 %v296
        %v585 = vunpack.c.l.b16 %v297
        %v586 = vunpack.c.l.b16 %v298
        %v587 = vunpack.c.l.b16 %v299
        %v588 = vunpack.c.l.b16 %v300
        %v589 = vunpack.c.l.b16 %v301
        %v590 = vunpack.c.l.b16 %v302
        %v591 = vunpack.c.l.b16 %v303
        %v592 = vunpack.c.l.b16 %v304
        %v593 = vunpack.c.l.b16 %v305
        %v594 = vunpack.c.l.b16 %v306
        %v595 = vunpack.c.l.b16 %v307
        %v596 = vunpack.c.l.b16 %v308
        %v597 = vunpack.c.l.b16 %v309
        %v598 = vunpack.c.l.b16 %v310
        %v599 = vunpack.c.l.b16 %v311
        %v600 = vunpack.c.l.b16 %v312
        %v601 = vunpack.c.l.b16 %v313
        %v602 = vunpack.c.l.b16 %v314
        %v603 = vunpack.c.l.b16 %v315
        %v604 = vunpack.c.l.b16 %v316
        %v605 = vunpack.c.l.b16 %v317
        %v606 = vunpack.c.l.b16 %v318
        %v607 = vunpack.c.l.b16 %v319
        %v608 = vunpack.c.l.b16 %v320
        %v609 = vunpack.c.l.b16 %v321
        %v610 = vunpack.c.l.b16 %v322
        %v611 = vunpack.c.l.b16 %v323
        %v612 = vunpack.c.l.b16 %v324
        %v613 = vunpack.c.l.b16 %v325
        %v614 = vunpack.c.l.b16 %v326
        %v615 = vunpack.c.l.b16 %v327
        %v616 = vunpack.c.l.b16 %v328
        %v617 = vunpack.c.l.b16 %v329
        %v618 = vunpack.c.l.b16 %v330
        %v619 = vunpack.c.l.b16 %v331
        %v620 = vunpack.c.l.b16 %v332
        %v621 = vunpack.c.l.b16 %v333
        %v622 = vunpack.c.l.b16 %v334
        %v623 = vunpack.c.l.b16 %v335
        %v624 = vunpack.c.l.b16 %v336
        %v625 = vunpack.c.l.b16 %v337
        %v626 = vunpack.c.l.b16 %v338
        %v627 = vunpack.c.l.b16 %v339
        %v628 = vunpack.c.l.b16 %v340
        %v629 = vunpack.c.l.b16 %v341
        %v630 = vunpack.c.l.b16 %v342
        %v631 = vunpack.c.l.b16 %v343
        %v632 = vunpack.c.l.b16 %v344
        %v633 = vunpack.c.l.b16 %v345
        %v634 = vunpack.c.l.b16 %v346
        %v635 = vunpack.c.l.b16 %v347
        %v636 = vunpack.c.l.b16 %v348
        %v637 = vunpack.c.l.b16 %v349
        %v638 = vunpack.c.l.b16 %v350
        %v639 = vunpack.c.l.b16 %v351
        %v640 = vunpack.c.l.b16 %v352
        %v641 = vpack.c.b16 %v578, %v577
        %v642 = vpack.c.b16 %v580, %v579
        %v643 = vpack.c.b16 %v582, %v581
        %v644 = vpack.c.b16 %v584, %v583
        %v645 = vpack.c.b16 %v586, %v585
        %v646 = vpack.c.b16 %v588, %v587
        %v647 = vpack.c.b16 %v590, %v589
        %v648 = vpack.c.b16 %v592, %v591
        %v649 = vpack.c.b16 %v594, %v593
        %v650 = vpack.c.b16 %v596, %v595
        %v651 = vpack.c.b16 %v598, %v597
        %v652 = vpack.c.b16 %v600, %v599
        %v653 = vpack.c.b16 %v602, %v601
        %v654 = vpack.c.b16 %v604, %v603
        %v655 = vpack.c.b16 %v606, %v605
        %v656 = vpack.c.b16 %v608, %v607
        %v657 = vpack.c.b16 %v610, %v609
        %v658 = vpack.c.b16 %v612, %v611
        %v659 = vpack.c.b16 %v614, %v613
        %v660 = vpack.c.b16 %v616, %v615
        %v661 = vpack.c.b16 %v618, %v617
        %v662 = vpack.c.b16 %v620, %v619
        %v663 = vpack.c.b16 %v622, %v621
        %v664 = vpack.c.b16 %v624, %v623
        %v665 = vpack.c.b16 %v626, %v625
        %v666 = vpack.c.b16 %v628, %v627
        %v667 = vpack.c.b16 %v630, %v629
        %v668 = vpack.c.b16 %v632, %v631
        %v669 = vpack.c.b16 %v634, %v633
        %v670 = vpack.c.b16 %v636, %v635
        %v671 = vpack.c.b16 %v638, %v637
        %v672 = vpack.c.b16 %v640, %v639
        %705 = vmatprep.subr.bf16.mxu0 0
        %706 = vmatpush1.bf16.msra.mxu0 %v641
        %707 = vmatprep.subr.bf16.mxu0 0
        %708 = vmatpush1.bf16.msra.mxu0 %v642
        %709 = vmatprep.subr.bf16.mxu0 0
        %710 = vmatpush1.bf16.msra.mxu0 %v643
        %711 = vmatprep.subr.bf16.mxu0 0
        %712 = vmatpush1.bf16.msra.mxu0 %v644
        %713 = vmatprep.subr.bf16.mxu0 0
        %714 = vmatpush1.bf16.msra.mxu0 %v645
        %715 = vmatprep.subr.bf16.mxu0 0
        %716 = vmatpush1.bf16.msra.mxu0 %v646
        %717 = vmatprep.subr.bf16.mxu0 0
        %718 = vmatpush1.bf16.msra.mxu0 %v647
        %719 = vmatprep.subr.bf16.mxu0 0
        %720 = vmatpush1.bf16.msra.mxu0 %v648
        %721 = vmatprep.subr.bf16.mxu0 0
        %722 = vmatpush1.bf16.msra.mxu0 %v649
        %723 = vmatprep.subr.bf16.mxu0 0
        %724 = vmatpush1.bf16.msra.mxu0 %v650
        %725 = vmatprep.subr.bf16.mxu0 0
        %726 = vmatpush1.bf16.msra.mxu0 %v651
        %727 = vmatprep.subr.bf16.mxu0 0
        %728 = vmatpush1.bf16.msra.mxu0 %v652
        %729 = vmatprep.subr.bf16.mxu0 0
        %730 = vmatpush1.bf16.msra.mxu0 %v653
        %731 = vmatprep.subr.bf16.mxu0 0
        %732 = vmatpush1.bf16.msra.mxu0 %v654
        %733 = vmatprep.subr.bf16.mxu0 0
        %734 = vmatpush1.bf16.msra.mxu0 %v655
        %735 = vmatprep.subr.bf16.mxu0 0
        %736 = vmatpush1.bf16.msra.mxu0 %v656
        %737 = vmatprep.mubr.bf16.mxu0 %v450
        %738 = vmatmul.mubr.bf16.gmra.mrb[0].mxu0 %v449
        %v739 = vpop.f32.mrb[0].mxu0
        %v740 = vadd.f32 0.0, %v739
        %v741 = vpop.f32.mrb[0].mxu0
        %v742 = vpop.f32.mrb[0].mxu0
        %v743 = vadd.f32 0.0, %v742
        %v744 = vpop.f32.mrb[0].mxu0
        %745 = vmatprep.mubr.bf16.mxu0 %v454
        %746 = vmatmul.mubr.bf16.gmra.mrb[0].mxu0 %v453
        %v747 = vpop.f32.mrb[0].mxu0
        %v748 = vadd.f32 0.0, %v747
        %v749 = vpop.f32.mrb[0].mxu0
        %v750 = vpop.f32.mrb[0].mxu0
        %v751 = vadd.f32 0.0, %v750
        %v752 = vpop.f32.mrb[0].mxu0
        %753 = vmatprep.mubr.bf16.mxu0 %v458
        %754 = vmatmul.mubr.bf16.gmra.mrb[0].mxu0 %v457
        %v755 = vpop.f32.mrb[0].mxu0
        %v756 = vadd.f32 0.0, %v755
        %v757 = vpop.f32.mrb[0].mxu0
        %v758 = vpop.f32.mrb[0].mxu0
        %v759 = vadd.f32 0.0, %v758
        %v760 = vpop.f32.mrb[0].mxu0
        %761 = vmatprep.mubr.bf16.mxu0 %v462
        %762 = vmatmul.mubr.bf16.gmra.mrb[0].mxu0 %v461
        %v763 = vpop.f32.mrb[0].mxu0
        %v764 = vadd.f32 0.0, %v763
        %v765 = vpop.f32.mrb[0].mxu0
        %v766 = vpop.f32.mrb[0].mxu0
        %v767 = vadd.f32 0.0, %v766
        %v768 = vpop.f32.mrb[0].mxu0
        %769 = vmatprep.mubr.bf16.mxu0 %v466
        %770 = vmatmul.mubr.bf16.gmra.mrb[0].mxu0 %v465
        %v771 = vpop.f32.mrb[0].mxu0
        %v772 = vadd.f32 0.0, %v771
        %v773 = vpop.f32.mrb[0].mxu0
        %v774 = vpop.f32.mrb[0].mxu0
        %v775 = vadd.f32 0.0, %v774
        %v776 = vpop.f32.mrb[0].mxu0
        %777 = vmatprep.mubr.bf16.mxu0 %v470
        %778 = vmatmul.mubr.bf16.gmra.mrb[0].mxu0 %v469
        %v779 = vpop.f32.mrb[0].mxu0
        %v780 = vadd.f32 0.0, %v779
        %v781 = vpop.f32.mrb[0].mxu0
        %v782 = vpop.f32.mrb[0].mxu0
        %v783 = vadd.f32 0.0, %v782
        %v784 = vpop.f32.mrb[0].mxu0
        %785 = vmatprep.mubr.bf16.mxu0 %v474
        %786 = vmatmul.mubr.bf16.gmra.mrb[0].mxu0 %v473
        %v787 = vpop.f32.mrb[0].mxu0
        %v788 = vadd.f32 0.0, %v787
        %v789 = vpop.f32.mrb[0].mxu0
        %v790 = vpop.f32.mrb[0].mxu0
        %v791 = vadd.f32 0.0, %v790
        %v792 = vpop.f32.mrb[0].mxu0
        %793 = vmatprep.mubr.bf16.mxu0 %v478
        %794 = vmatmul.mubr.bf16.gmra.mrb[0].mxu0 %v477
        %v795 = vpop.f32.mrb[0].mxu0
        %v796 = vadd.f32 0.0, %v795
        %v797 = vpop.f32.mrb[0].mxu0
        %v798 = vpop.f32.mrb[0].mxu0
        %v799 = vadd.f32 0.0, %v798
        %v800 = vpop.f32.mrb[0].mxu0
        %801 = vdwg.mxu0
        %802 = vmatprep.subr.bf16.mxu0 0
        %803 = vmatpush1.bf16.msra.mxu0 %v657
        %804 = vmatprep.subr.bf16.mxu0 0
        %805 = vmatpush1.bf16.msra.mxu0 %v658
        %806 = vmatprep.subr.bf16.mxu0 0
        %807 = vmatpush1.bf16.msra.mxu0 %v659
        %808 = vmatprep.subr.bf16.mxu0 0
        %809 = vmatpush1.bf16.msra.mxu0 %v660
        %810 = vmatprep.subr.bf16.mxu0 0
        %811 = vmatpush1.bf16.msra.mxu0 %v661
        %812 = vmatprep.subr.bf16.mxu0 0
        %813 = vmatpush1.bf16.msra.mxu0 %v662
        %814 = vmatprep.subr.bf16.mxu0 0
        %815 = vmatpush1.bf16.msra.mxu0 %v663
        %816 = vmatprep.subr.bf16.mxu0 0
        %817 = vmatpush1.bf16.msra.mxu0 %v664
        %818 = vmatprep.subr.bf16.mxu0 0
        %819 = vmatpush1.bf16.msra.mxu0 %v665
        %820 = vmatprep.subr.bf16.mxu0 0
        %821 = vmatpush1.bf16.msra.mxu0 %v666
        %822 = vmatprep.subr.bf16.mxu0 0
        %823 = vmatpush1.bf16.msra.mxu0 %v667
        %824 = vmatprep.subr.bf16.mxu0 0
        %825 = vmatpush1.bf16.msra.mxu0 %v668
        %826 = vmatprep.subr.bf16.mxu0 0
        %827 = vmatpush1.bf16.msra.mxu0 %v669
        %828 = vmatprep.subr.bf16.mxu0 0
        %829 = vmatpush1.bf16.msra.mxu0 %v670
        %830 = vmatprep.subr.bf16.mxu0 0
        %831 = vmatpush1.bf16.msra.mxu0 %v671
        %832 = vmatprep.subr.bf16.mxu0 0
        %833 = vmatpush1.bf16.msra.mxu0 %v672
        %834 = vmatprep.mubr.bf16.mxu0 %v452
        %835 = vmatmul.mubr.bf16.gmra.mrb[0].mxu0 %v451
        %v836 = vpop.f32.mrb[0].mxu0
        %v837 = vadd.f32 %v740, %v836
        %v838 = vpop.f32.mrb[0].mxu0
        %v839 = vpop.f32.mrb[0].mxu0
        %v840 = vadd.f32 %v743, %v839
        %v841 = vpop.f32.mrb[0].mxu0
        %842 = vmatprep.mubr.bf16.mxu0 %v456
        %843 = vmatmul.mubr.bf16.gmra.mrb[0].mxu0 %v455
        %v844 = vpop.f32.mrb[0].mxu0
        %v845 = vadd.f32 %v748, %v844
        %v846 = vpop.f32.mrb[0].mxu0
        %v847 = vpop.f32.mrb[0].mxu0
        %v848 = vadd.f32 %v751, %v847
        %v849 = vpop.f32.mrb[0].mxu0
        %850 = vmatprep.mubr.bf16.mxu0 %v460
        %851 = vmatmul.mubr.bf16.gmra.mrb[0].mxu0 %v459
        %v852 = vpop.f32.mrb[0].mxu0
        %v853 = vadd.f32 %v756, %v852
        %v854 = vpop.f32.mrb[0].mxu0
        %v855 = vpop.f32.mrb[0].mxu0
        %v856 = vadd.f32 %v759, %v855
        %v857 = vpop.f32.mrb[0].mxu0
        %858 = vmatprep.mubr.bf16.mxu0 %v464
        %859 = vmatmul.mubr.bf16.gmra.mrb[0].mxu0 %v463
        %v860 = vpop.f32.mrb[0].mxu0
        %v861 = vadd.f32 %v764, %v860
        %v862 = vpop.f32.mrb[0].mxu0
        %v863 = vpop.f32.mrb[0].mxu0
        %v864 = vadd.f32 %v767, %v863
        %v865 = vpop.f32.mrb[0].mxu0
        %866 = vmatprep.mubr.bf16.mxu0 %v468
        %867 = vmatmul.mubr.bf16.gmra.mrb[0].mxu0 %v467
        %v868 = vpop.f32.mrb[0].mxu0
        %v869 = vadd.f32 %v772, %v868
        %v870 = vpop.f32.mrb[0].mxu0
        %v871 = vpop.f32.mrb[0].mxu0
        %v872 = vadd.f32 %v775, %v871
        %v873 = vpop.f32.mrb[0].mxu0
        %874 = vmatprep.mubr.bf16.mxu0 %v472
        %875 = vmatmul.mubr.bf16.gmra.mrb[0].mxu0 %v471
        %v876 = vpop.f32.mrb[0].mxu0
        %v877 = vadd.f32 %v780, %v876
        %v878 = vpop.f32.mrb[0].mxu0
        %v879 = vpop.f32.mrb[0].mxu0
        %v880 = vadd.f32 %v783, %v879
        %v881 = vpop.f32.mrb[0].mxu0
        %882 = vmatprep.mubr.bf16.mxu0 %v476
        %883 = vmatmul.mubr.bf16.gmra.mrb[0].mxu0 %v475
        %v884 = vpop.f32.mrb[0].mxu0
        %v885 = vadd.f32 %v788, %v884
        %v886 = vpop.f32.mrb[0].mxu0
        %v887 = vpop.f32.mrb[0].mxu0
        %v888 = vadd.f32 %v791, %v887
        %v889 = vpop.f32.mrb[0].mxu0
        %890 = vmatprep.mubr.bf16.mxu0 %v480
        %891 = vmatmul.mubr.bf16.gmra.mrb[0].mxu0 %v479
        %v892 = vpop.f32.mrb[0].mxu0
        %v893 = vadd.f32 %v796, %v892
        %v894 = vpop.f32.mrb[0].mxu0
        %v895 = vpop.f32.mrb[0].mxu0
        %v896 = vadd.f32 %v799, %v895
        %v897 = vpop.f32.mrb[0].mxu0
        %898 = vdwg.mxu0
        %v899 = vmax.f32 %v837, %v853
        %v900 = vmax.f32 %v840, %v856
        %v901 = vmax.f32 %v845, %v861
        %v902 = vmax.f32 %v848, %v864
        %v903 = vmax.f32 %v869, %v885
        %v904 = vmax.f32 %v872, %v888
        %v905 = vmax.f32 %v877, %v893
        %v906 = vmax.f32 %v880, %v896
        %v907 = vmax.f32 %v899, %v903
        %v908 = vmax.f32 %v900, %v904
        %v909 = vmax.f32 %v901, %v905
        %v910 = vmax.f32 %v902, %v906
        %v911 = vld [vmem:[%s2] sm:$0x1]
        %v913 = vlaneseq
        %v914 = vshrl.u32 %v913, 7
        %v915 = vsub.s32 0, %v914
        %v916 = vrot.slane %v911, %v915
        %v918 = vadd.f32 %v907, %v916
        %v919 = vadd.f32 %v908, %v916
        %v920 = vadd.f32 %v909, %v916
        %v921 = vadd.f32 %v910, %v916
        %v922 = vmax.f32 %v918, 0.0
        %v923 = vmax.f32 %v919, 0.0
        %v924 = vmax.f32 %v920, 0.0
        %v925 = vmax.f32 %v921, 0.0
        %v926 = vpack.c.bf16 %v923, %v922
        %v927 = vpack.c.bf16 %v925, %v924
        %v930 = vunpack.c.l.b16 %v926
        %v931 = vunpack.c.h.b16 %v926
        %v932 = vunpack.c.l.b16 %v927
        %v933 = vunpack.c.h.b16 %v927
        %v934 = vpack.c.b16 %v930, %v930
        %v935 = vpack.c.b16 %v931, %v931
        %v936 = vpack.c.b16 %v932, %v932
        %v937 = vpack.c.b16 %v933, %v933
        %942 = vst [vmem:[%s254] sm:$0xf] %v934
        %943 = vst [vmem:[%s254 + $0x4] sm:$0xf] %v935
        %944 = vst [vmem:[%s254 + $0x8] sm:$0xf] %v936
        %945 = vst [vmem:[%s254 + $0xc] sm:$0xf] %v937
        %s946 = smul.u32 4, %s14
        %p947 = scmp.lt.s32.totalorder %s946, 7
        %s948 = scalar_select %p947, %s946, 7
        %s949 = smul.addr %s948, 4
        %s950 = scalar_lea.vmem %s3, %s949
        // Predicated region
        $region56: #{pfmcnn4_forward.4} parent=50 // pred_check
          %p951 = pneg %p100
        $region57: #{pfmcnn4_forward.4} parent=50 // pred_check_branch
          %953 = sbr.rel (%p951) target = $region59
        $region58: #{pfmcnn4_forward.4} parent=50 // pred_region
          %s954 = smul.u32 4, %s14
        $region59: #{pfmcnn4_forward.4} parent=50 // pred_fallthru
          _
      $region51: #{pfmcnn4_forward.4} parent=5 // pred_fallthru
        _
      %p955 = scmp.le.s32.totalorder 2, %s9
      // Predicated region
      $region60: #{pfmcnn4_forward.4} parent=5 // pred_check
        %p956 = pneg %p955
      $region61: #{pfmcnn4_forward.4} parent=5 // pred_check_branch
        %958 = sbr.rel (%p956) target = $region63
      $region62: #{pfmcnn4_forward.4} parent=5 // pred_region
        %s959 = ssub.s32 %s9, 2
        // Predicated region
        $region64: #{pfmcnn4_forward.4} parent=62 // pred_check
          %p960 = pneg %p106
        $region65: #{pfmcnn4_forward.4} parent=62 // pred_check_branch
          %962 = sbr.rel (%p960) target = $region67
        $region66: #{pfmcnn4_forward.4} parent=62 // pred_region
          %s963 = smul.u32 4, %s15
          %p964 = scmp.lt.s32.totalorder %s963, 7
          %s965 = scalar_select %p964, %s963, 7
          %s966 = smul.addr %s965, 4
          %s967 = scalar_lea.vmem %s3, %s966
        $region67: #{pfmcnn4_forward.4} parent=62 // pred_fallthru
          _
      $region63: #{pfmcnn4_forward.4} parent=5 // pred_fallthru
        _
    $region6: #{pfmcnn4_forward.4} parent=1 // loop_footer
      %s13 = sadd.s32 1, %s9
    $region7: #{pfmcnn4_forward.4} parent=1 // loop_footer_branch
      %8 = sbr.rel target = $region3
    $region8: #{pfmcnn4_forward.4} parent=1 // loop_exit
      _

// kernel: pfmcnn4_forward.5
$region0: #{pfmcnn4_forward.5}
  #allocation0 [shape = 'u32[]', space=smem, size = 0x4, offset = 0x4, fixed_abs, tag = 'smem constant byte address 0x4 - core index']
  #allocation1 [shape = 'u32[144,128]{1,0:T(1,128)}', space=vmem, size = 0x12000, scoped, tag = 'internal scratch']
  %s0 = inlined_call_operand.vmem [shape: bf16[8,896], index: 0, kind: input, shape index: {}]
  %s1 = inlined_call_operand.vmem [shape: bf16[896,896], index: 1, kind: input, shape index: {}]
  %s2 = inlined_call_operand.vmem [shape: f32[1,896], index: 2, kind: input, shape index: {}]
  %s3 = inlined_call_operand.vmem [shape: bf16[896,512], index: 3, kind: input, shape index: {}]
  %s4 = inlined_call_operand.vmem [shape: f32[1,512], index: 4, kind: input, shape index: {}]
  %s5 = inlined_call_operand.vmem [shape: bf16[512,128], index: 5, kind: input, shape index: {}]
  %s6 = inlined_call_operand.vmem [shape: f32[1,128], index: 6, kind: input, shape index: {}]
  %s7 = inlined_call_operand.vmem [shape: f32[8,128], index: 7, kind: output, shape index: {}]
  %s8 = sld [smem:[#allocation0]]
  $region38: #{pfmcnn4_forward.5} parent=0
    _
  %s10 = ssub.s32 1, %s8
  %s11 = scalar_select 0, %s10, %s8
  // Predicated region
  $region2: #{pfmcnn4_forward.5} parent=0 // pred_check
    _
  $region3: #{pfmcnn4_forward.5} parent=0 // pred_check_branch
    %13 = sbr.rel (0) target = $region5
  $region4: #{pfmcnn4_forward.5} parent=0 // pred_region
    _
  $region5: #{pfmcnn4_forward.5} parent=0 // pred_fallthru
    _
  // Predicated region
  $region6: #{pfmcnn4_forward.5} parent=0 // pred_check
    _
  $region7: #{pfmcnn4_forward.5} parent=0 // pred_check_branch
    %15 = sbr.rel (0) target = $region9
  $region8: #{pfmcnn4_forward.5} parent=0 // pred_region
    _
  $region9: #{pfmcnn4_forward.5} parent=0 // pred_fallthru
    _
  // Predicated region
  $region10: #{pfmcnn4_forward.5} parent=0 // pred_check
    _
  $region11: #{pfmcnn4_forward.5} parent=0 // pred_check_branch
    %17 = sbr.rel (0) target = $region13
  $region12: #{pfmcnn4_forward.5} parent=0 // pred_region
    _
  $region13: #{pfmcnn4_forward.5} parent=0 // pred_fallthru
    _
  // Predicated region
  $region14: #{pfmcnn4_forward.5} parent=0 // pred_check
    _
  $region15: #{pfmcnn4_forward.5} parent=0 // pred_check_branch
    %19 = sbr.rel (0) target = $region17
  $region16: #{pfmcnn4_forward.5} parent=0 // pred_region
    _
  $region17: #{pfmcnn4_forward.5} parent=0 // pred_fallthru
    _
  // Predicated region
  $region18: #{pfmcnn4_forward.5} parent=0 // pred_check
    _
  $region19: #{pfmcnn4_forward.5} parent=0 // pred_check_branch
    %21 = sbr.rel (0) target = $region21
  $region20: #{pfmcnn4_forward.5} parent=0 // pred_region
    _
  $region21: #{pfmcnn4_forward.5} parent=0 // pred_fallthru
    _
  // Predicated region
  $region22: #{pfmcnn4_forward.5} parent=0 // pred_check
    _
  $region23: #{pfmcnn4_forward.5} parent=0 // pred_check_branch
    %23 = sbr.rel (0) target = $region25
  $region24: #{pfmcnn4_forward.5} parent=0 // pred_region
    _
  $region25: #{pfmcnn4_forward.5} parent=0 // pred_fallthru
    _
  // Predicated region
  $region26: #{pfmcnn4_forward.5} parent=0 // pred_check
    _
  $region27: #{pfmcnn4_forward.5} parent=0 // pred_check_branch
    %25 = sbr.rel (0) target = $region29
  $region28: #{pfmcnn4_forward.5} parent=0 // pred_region
    _
  $region29: #{pfmcnn4_forward.5} parent=0 // pred_fallthru
    _
  %v27 = vld [vmem:[%s0] sm:$0xff]
  %v28 = vld [vmem:[%s0 + $0x8] sm:$0xff]
  %v29 = vld [vmem:[%s0 + $0x10] sm:$0xff]
  %v30 = vld [vmem:[%s0 + $0x18] sm:$0xf]
  %v31 = vld [vmem:[%s1] sm:$0xff]
  %v32 = vld [vmem:[%s1 + $0x8] sm:$0xff]
  %v33 = vld [vmem:[%s1 + $0x10] sm:$0xff]
  %v34 = vld [vmem:[%s1 + $0x18] sm:$0xf]
  %v35 = vld [vmem:[%s1 + $0x1c] sm:$0xff]
  %v36 = vld [vmem:[%s1 + $0x24] sm:$0xff]
  %v37 = vld [vmem:[%s1 + $0x2c] sm:$0xff]
  %v38 = vld [vmem:[%s1 + $0x34] sm:$0xf]
  %v39 = vld [vmem:[%s1 + $0x38] sm:$0xff]
  %v40 = vld [vmem:[%s1 + $0x40] sm:$0xff]
  %v41 = vld [vmem:[%s1 + $0x48] sm:$0xff]
  %v42 = vld [vmem:[%s1 + $0x50] sm:$0xf]
  %v43 = vld [vmem:[%s1 + $0x54] sm:$0xff]
  %v44 = vld [vmem:[%s1 + $0x5c] sm:$0xff]
  %v45 = vld [vmem:[%s1 + $0x64] sm:$0xff]
  %v46 = vld [vmem:[%s1 + $0x6c] sm:$0xf]
  %v47 = vld [vmem:[%s1 + $0x70] sm:$0xff]
  %v48 = vld [vmem:[%s1 + $0x78] sm:$0xff]
  %v49 = vld [vmem:[%s1 + $0x80] sm:$0xff]
  %v50 = vld [vmem:[%s1 + $0x88] sm:$0xf]
  %v51 = vld [vmem:[%s1 + $0x8c] sm:$0xff]
  %v52 = vld [vmem:[%s1 + $0x94] sm:$0xff]
  %v53 = vld [vmem:[%s1 + $0x9c] sm:$0xff]
  %v54 = vld [vmem:[%s1 + $0xa4] sm:$0xf]
  %v55 = vld [vmem:[%s1 + $0xa8] sm:$0xff]
  %v56 = vld [vmem:[%s1 + $0xb0] sm:$0xff]
  %v57 = vld [vmem:[%s1 + $0xb8] sm:$0xff]
  %v58 = vld [vmem:[%s1 + $0xc0] sm:$0xf]
  %v59 = vld [vmem:[%s1 + $0xc4] sm:$0xff]
  %v60 = vld [vmem:[%s1 + $0xcc] sm:$0xff]
  %v61 = vld [vmem:[%s1 + $0xd4] sm:$0xff]
  %v62 = vld [vmem:[%s1 + $0xdc] sm:$0xf]
  %v63 = vld [vmem:[%s1 + $0xe0] sm:$0xff]
  %v64 = vld [vmem:[%s1 + $0xe8] sm:$0xff]
  %v65 = vld [vmem:[%s1 + $0xf0] sm:$0xff]
  %v66 = vld [vmem:[%s1 + $0xf8] sm:$0xf]
  %v67 = vld [vmem:[%s1 + $0xfc] sm:$0xff]
  %v68 = vld [vmem:[%s1 + $0x104] sm:$0xff]
  %v69 = vld [vmem:[%s1 + $0x10c] sm:$0xff]
  %v70 = vld [vmem:[%s1 + $0x114] sm:$0xf]
  %v71 = vld [vmem:[%s1 + $0x118] sm:$0xff]
  %v72 = vld [vmem:[%s1 + $0x120] sm:$0xff]
  %v73 = vld [vmem:[%s1 + $0x128] sm:$0xff]
  %v74 = vld [vmem:[%s1 + $0x130] sm:$0xf]
  %v75 = vld [vmem:[%s1 + $0x134] sm:$0xff]
  %v76 = vld [vmem:[%s1 + $0x13c] sm:$0xff]
  %v77 = vld [vmem:[%s1 + $0x144] sm:$0xff]
  %v78 = vld [vmem:[%s1 + $0x14c] sm:$0xf]
  %v79 = vld [vmem:[%s1 + $0x150] sm:$0xff]
  %v80 = vld [vmem:[%s1 + $0x158] sm:$0xff]
  %v81 = vld [vmem:[%s1 + $0x160] sm:$0xff]
  %v82 = vld [vmem:[%s1 + $0x168] sm:$0xf]
  %v83 = vld [vmem:[%s1 + $0x16c] sm:$0xff]
  %v84 = vld [vmem:[%s1 + $0x174] sm:$0xff]
  %v85 = vld [vmem:[%s1 + $0x17c] sm:$0xff]
  %v86 = vld [vmem:[%s1 + $0x184] sm:$0xf]
  %v87 = vld [vmem:[%s1 + $0x188] sm:$0xff]
  %v88 = vld [vmem:[%s1 + $0x190] sm:$0xff]
  %v89 = vld [vmem:[%s1 + $0x198] sm:$0xff]
  %v90 = vld [vmem:[%s1 + $0x1a0] sm:$0xf]
  %v91 = vld [vmem:[%s1 + $0x1a4] sm:$0xff]
  %v92 = vld [vmem:[%s1 + $0x1ac] sm:$0xff]
  %v93 = vld [vmem:[%s1 + $0x1b4] sm:$0xff]
  %v94 = vld [vmem:[%s1 + $0x1bc] sm:$0xf]
  %v95 = vld [vmem:[%s1 + $0x1c0] sm:$0xff]
  %v96 = vld [vmem:[%s1 + $0x1c8] sm:$0xff]
  %v97 = vld [vmem:[%s1 + $0x1d0] sm:$0xff]
  %v98 = vld [vmem:[%s1 + $0x1d8] sm:$0xf]
  %v99 = vld [vmem:[%s1 + $0x1dc] sm:$0xff]
  %v100 = vld [vmem:[%s1 + $0x1e4] sm:$0xff]
  %v101 = vld [vmem:[%s1 + $0x1ec] sm:$0xff]
  %v102 = vld [vmem:[%s1 + $0x1f4] sm:$0xf]
  %v103 = vld [vmem:[%s1 + $0x1f8] sm:$0xff]
  %v104 = vld [vmem:[%s1 + $0x200] sm:$0xff]
  %v105 = vld [vmem:[%s1 + $0x208] sm:$0xff]
  %v106 = vld [vmem:[%s1 + $0x210] sm:$0xf]
  %v107 = vld [vmem:[%s1 + $0x214] sm:$0xff]
  %v108 = vld [vmem:[%s1 + $0x21c] sm:$0xff]
  %v109 = vld [vmem:[%s1 + $0x224] sm:$0xff]
  %v110 = vld [vmem:[%s1 + $0x22c] sm:$0xf]
  %v111 = vld [vmem:[%s1 + $0x230] sm:$0xff]
  %v112 = vld [vmem:[%s1 + $0x238] sm:$0xff]
  %v113 = vld [vmem:[%s1 + $0x240] sm:$0xff]
  %v114 = vld [vmem:[%s1 + $0x248] sm:$0xf]
  %v115 = vld [vmem:[%s1 + $0x24c] sm:$0xff]
  %v116 = vld [vmem:[%s1 + $0x254] sm:$0xff]
  %v117 = vld [vmem:[%s1 + $0x25c] sm:$0xff]
  %v118 = vld [vmem:[%s1 + $0x264] sm:$0xf]
  %v119 = vld [vmem:[%s1 + $0x268] sm:$0xff]
  %v120 = vld [vmem:[%s1 + $0x270] sm:$0xff]
  %v121 = vld [vmem:[%s1 + $0x278] sm:$0xff]
  %v122 = vld [vmem:[%s1 + $0x280] sm:$0xf]
  %v123 = vld [vmem:[%s1 + $0x284] sm:$0xff]
  %v124 = vld [vmem:[%s1 + $0x28c] sm:$0xff]
  %v125 = vld [vmem:[%s1 + $0x294] sm:$0xff]
  %v126 = vld [vmem:[%s1 + $0x29c] sm:$0xf]
  %v127 = vld [vmem:[%s1 + $0x2a0] sm:$0xff]
  %v128 = vld [vmem:[%s1 + $0x2a8] sm:$0xff]
  %v129 = vld [vmem:[%s1 + $0x2b0] sm:$0xff]
  %v130 = vld [vmem:[%s1 + $0x2b8] sm:$0xf]
  %v131 = vld [vmem:[%s1 + $0x2bc] sm:$0xff]
  %v132 = vld [vmem:[%s1 + $0x2c4] sm:$0xff]
  %v133 = vld [vmem:[%s1 + $0x2cc] sm:$0xff]
  %v134 = vld [vmem:[%s1 + $0x2d4] sm:$0xf]
  %v135 = vld [vmem:[%s1 + $0x2d8] sm:$0xff]
  %v136 = vld [vmem:[%s1 + $0x2e0] sm:$0xff]
  %v137 = vld [vmem:[%s1 + $0x2e8] sm:$0xff]
  %v138 = vld [vmem:[%s1 + $0x2f0] sm:$0xf]
  %v139 = vld [vmem:[%s1 + $0x2f4] sm:$0xff]
  %v140 = vld [vmem:[%s1 + $0x2fc] sm:$0xff]
  %v141 = vld [vmem:[%s1 + $0x304] sm:$0xff]
  %v142 = vld [vmem:[%s1 + $0x30c] sm:$0xf]
  %v143 = vld [vmem:[%s1 + $0x310] sm:$0xff]
  %v144 = vld [vmem:[%s1 + $0x318] sm:$0xff]
  %v145 = vld [vmem:[%s1 + $0x320] sm:$0xff]
  %v146 = vld [vmem:[%s1 + $0x328] sm:$0xf]
  %v147 = vld [vmem:[%s1 + $0x32c] sm:$0xff]
  %v148 = vld [vmem:[%s1 + $0x334] sm:$0xff]
  %v149 = vld [vmem:[%s1 + $0x33c] sm:$0xff]
  %v150 = vld [vmem:[%s1 + $0x344] sm:$0xf]
  %v151 = vld [vmem:[%s1 + $0x348] sm:$0xff]
  %v152 = vld [vmem:[%s1 + $0x350] sm:$0xff]
  %v153 = vld [vmem:[%s1 + $0x358] sm:$0xff]
  %v154 = vld [vmem:[%s1 + $0x360] sm:$0xf]
  %v155 = vld [vmem:[%s1 + $0x364] sm:$0xff]
  %v156 = vld [vmem:[%s1 + $0x36c] sm:$0xff]
  %v157 = vld [vmem:[%s1 + $0x374] sm:$0xff]
  %v158 = vld [vmem:[%s1 + $0x37c] sm:$0xf]
  %v159 = vld [vmem:[%s1 + $0x380] sm:$0xff]
  %v160 = vld [vmem:[%s1 + $0x388] sm:$0xff]
  %v161 = vld [vmem:[%s1 + $0x390] sm:$0xff]
  %v162 = vld [vmem:[%s1 + $0x398] sm:$0xf]
  %v163 = vld [vmem:[%s1 + $0x39c] sm:$0xff]
  %v164 = vld [vmem:[%s1 + $0x3a4] sm:$0xff]
  %v165 = vld [vmem:[%s1 + $0x3ac] sm:$0xff]
  %v166 = vld [vmem:[%s1 + $0x3b4] sm:$0xf]
  %v167 = vld [vmem:[%s1 + $0x3b8] sm:$0xff]
  %v168 = vld [vmem:[%s1 + $0x3c0] sm:$0xff]
  %v169 = vld [vmem:[%s1 + $0x3c8] sm:$0xff]
  %v170 = vld [vmem:[%s1 + $0x3d0] sm:$0xf]
  %v171 = vld [vmem:[%s1 + $0x3d4] sm:$0xff]
  %v172 = vld [vmem:[%s1 + $0x3dc] sm:$0xff]
  %v173 = vld [vmem:[%s1 + $0x3e4] sm:$0xff]
  %v174 = vld [vmem:[%s1 + $0x3ec] sm:$0xf]
  %v175 = vld [vmem:[%s1 + $0x3f0] sm:$0xff]
  %v176 = vld [vmem:[%s1 + $0x3f8] sm:$0xff]
  %v177 = vld [vmem:[%s1 + $0x400] sm:$0xff]
  %v178 = vld [vmem:[%s1 + $0x408] sm:$0xf]
  %v179 = vld [vmem:[%s1 + $0x40c] sm:$0xff]
  %v180 = vld [vmem:[%s1 + $0x414] sm:$0xff]
  %v181 = vld [vmem:[%s1 + $0x41c] sm:$0xff]
  %v182 = vld [vmem:[%s1 + $0x424] sm:$0xf]
  %v183 = vld [vmem:[%s1 + $0x428] sm:$0xff]
  %v184 = vld [vmem:[%s1 + $0x430] sm:$0xff]
  %v185 = vld [vmem:[%s1 + $0x438] sm:$0xff]
  %v186 = vld [vmem:[%s1 + $0x440] sm:$0xf]
  %v187 = vld [vmem:[%s1 + $0x444] sm:$0xff]
  %v188 = vld [vmem:[%s1 + $0x44c] sm:$0xff]
  %v189 = vld [vmem:[%s1 + $0x454] sm:$0xff]
  %v190 = vld [vmem:[%s1 + $0x45c] sm:$0xf]
  %v191 = vld [vmem:[%s1 + $0x460] sm:$0xff]
  %v192 = vld [vmem:[%s1 + $0x468] sm:$0xff]
  %v193 = vld [vmem:[%s1 + $0x470] sm:$0xff]
  %v194 = vld [vmem:[%s1 + $0x478] sm:$0xf]
  %v195 = vld [vmem:[%s1 + $0x47c] sm:$0xff]
  %v196 = vld [vmem:[%s1 + $0x484] sm:$0xff]
  %v197 = vld [vmem:[%s1 + $0x48c] sm:$0xff]
  %v198 = vld [vmem:[%s1 + $0x494] sm:$0xf]
  %v199 = vld [vmem:[%s1 + $0x498] sm:$0xff]
  %v200 = vld [vmem:[%s1 + $0x4a0] sm:$0xff]
  %v201 = vld [vmem:[%s1 + $0x4a8] sm:$0xff]
  %v202 = vld [vmem:[%s1 + $0x4b0] sm:$0xf]
  %v203 = vld [vmem:[%s1 + $0x4b4] sm:$0xff]
  %v204 = vld [vmem:[%s1 + $0x4bc] sm:$0xff]
  %v205 = vld [vmem:[%s1 + $0x4c4] sm:$0xff]
  %v206 = vld [vmem:[%s1 + $0x4cc] sm:$0xf]
  %v207 = vld [vmem:[%s1 + $0x4d0] sm:$0xff]
  %v208 = vld [vmem:[%s1 + $0x4d8] sm:$0xff]
  %v209 = vld [vmem:[%s1 + $0x4e0] sm:$0xff]
  %v210 = vld [vmem:[%s1 + $0x4e8] sm:$0xf]
  %v211 = vld [vmem:[%s1 + $0x4ec] sm:$0xff]
  %v212 = vld [vmem:[%s1 + $0x4f4] sm:$0xff]
  %v213 = vld [vmem:[%s1 + $0x4fc] sm:$0xff]
  %v214 = vld [vmem:[%s1 + $0x504] sm:$0xf]
  %v215 = vld [vmem:[%s1 + $0x508] sm:$0xff]
  %v216 = vld [vmem:[%s1 + $0x510] sm:$0xff]
  %v217 = vld [vmem:[%s1 + $0x518] sm:$0xff]
  %v218 = vld [vmem:[%s1 + $0x520] sm:$0xf]
  %v219 = vld [vmem:[%s1 + $0x524] sm:$0xff]
  %v220 = vld [vmem:[%s1 + $0x52c] sm:$0xff]
  %v221 = vld [vmem:[%s1 + $0x534] sm:$0xff]
  %v222 = vld [vmem:[%s1 + $0x53c] sm:$0xf]
  %v223 = vld [vmem:[%s1 + $0x540] sm:$0xff]
  %v224 = vld [vmem:[%s1 + $0x548] sm:$0xff]
  %v225 = vld [vmem:[%s1 + $0x550] sm:$0xff]
  %v226 = vld [vmem:[%s1 + $0x558] sm:$0xf]
  %v227 = vld [vmem:[%s1 + $0x55c] sm:$0xff]
  %v228 = vld [vmem:[%s1 + $0x564] sm:$0xff]
  %v229 = vld [vmem:[%s1 + $0x56c] sm:$0xff]
  %v230 = vld [vmem:[%s1 + $0x574] sm:$0xf]
  %v231 = vld [vmem:[%s1 + $0x578] sm:$0xff]
  %v232 = vld [vmem:[%s1 + $0x580] sm:$0xff]
  %v233 = vld [vmem:[%s1 + $0x588] sm:$0xff]
  %v234 = vld [vmem:[%s1 + $0x590] sm:$0xf]
  %v235 = vld [vmem:[%s1 + $0x594] sm:$0xff]
  %v236 = vld [vmem:[%s1 + $0x59c] sm:$0xff]
  %v237 = vld [vmem:[%s1 + $0x5a4] sm:$0xff]
  %v238 = vld [vmem:[%s1 + $0x5ac] sm:$0xf]
  %v239 = vld [vmem:[%s1 + $0x5b0] sm:$0xff]
  %v240 = vld [vmem:[%s1 + $0x5b8] sm:$0xff]
  %v241 = vld [vmem:[%s1 + $0x5c0] sm:$0xff]
  %v242 = vld [vmem:[%s1 + $0x5c8] sm:$0xf]
  %v243 = vld [vmem:[%s1 + $0x5cc] sm:$0xff]
  %v244 = vld [vmem:[%s1 + $0x5d4] sm:$0xff]
  %v245 = vld [vmem:[%s1 + $0x5dc] sm:$0xff]
  %v246 = vld [vmem:[%s1 + $0x5e4] sm:$0xf]
  %v247 = vld [vmem:[%s1 + $0x5e8] sm:$0xff]
  %v248 = vld [vmem:[%s1 + $0x5f0] sm:$0xff]
  %v249 = vld [vmem:[%s1 + $0x5f8] sm:$0xff]
  %v250 = vld [vmem:[%s1 + $0x600] sm:$0xf]
  %v251 = vld [vmem:[%s1 + $0x604] sm:$0xff]
  %v252 = vld [vmem:[%s1 + $0x60c] sm:$0xff]
  %v253 = vld [vmem:[%s1 + $0x614] sm:$0xff]
  %v254 = vld [vmem:[%s1 + $0x61c] sm:$0xf]
  %v255 = vld [vmem:[%s1 + $0x620] sm:$0xff]
  %v256 = vld [vmem:[%s1 + $0x628] sm:$0xff]
  %v257 = vld [vmem:[%s1 + $0x630] sm:$0xff]
  %v258 = vld [vmem:[%s1 + $0x638] sm:$0xf]
  %v259 = vld [vmem:[%s1 + $0x63c] sm:$0xff]
  %v260 = vld [vmem:[%s1 + $0x644] sm:$0xff]
  %v261 = vld [vmem:[%s1 + $0x64c] sm:$0xff]
  %v262 = vld [vmem:[%s1 + $0x654] sm:$0xf]
  %v263 = vld [vmem:[%s1 + $0x658] sm:$0xff]
  %v264 = vld [vmem:[%s1 + $0x660] sm:$0xff]
  %v265 = vld [vmem:[%s1 + $0x668] sm:$0xff]
  %v266 = vld [vmem:[%s1 + $0x670] sm:$0xf]
  %v267 = vld [vmem:[%s1 + $0x674] sm:$0xff]
  %v268 = vld [vmem:[%s1 + $0x67c] sm:$0xff]
  %v269 = vld [vmem:[%s1 + $0x684] sm:$0xff]
  %v270 = vld [vmem:[%s1 + $0x68c] sm:$0xf]
  %v271 = vld [vmem:[%s1 + $0x690] sm:$0xff]
  %v272 = vld [vmem:[%s1 + $0x698] sm:$0xff]
  %v273 = vld [vmem:[%s1 + $0x6a0] sm:$0xff]
  %v274 = vld [vmem:[%s1 + $0x6a8] sm:$0xf]
  %v275 = vld [vmem:[%s1 + $0x6ac] sm:$0xff]
  %v276 = vld [vmem:[%s1 + $0x6b4] sm:$0xff]
  %v277 = vld [vmem:[%s1 + $0x6bc] sm:$0xff]
  %v278 = vld [vmem:[%s1 + $0x6c4] sm:$0xf]
  %v279 = vld [vmem:[%s1 + $0x6c8] sm:$0xff]
  %v280 = vld [vmem:[%s1 + $0x6d0] sm:$0xff]
  %v281 = vld [vmem:[%s1 + $0x6d8] sm:$0xff]
  %v282 = vld [vmem:[%s1 + $0x6e0] sm:$0xf]
  %v283 = vld [vmem:[%s1 + $0x6e4] sm:$0xff]
  %v284 = vld [vmem:[%s1 + $0x6ec] sm:$0xff]
  %v285 = vld [vmem:[%s1 + $0x6f4] sm:$0xff]
  %v286 = vld [vmem:[%s1 + $0x6fc] sm:$0xf]
  %v287 = vld [vmem:[%s1 + $0x700] sm:$0xff]
  %v288 = vld [vmem:[%s1 + $0x708] sm:$0xff]
  %v289 = vld [vmem:[%s1 + $0x710] sm:$0xff]
  %v290 = vld [vmem:[%s1 + $0x718] sm:$0xf]
  %v291 = vld [vmem:[%s1 + $0x71c] sm:$0xff]
  %v292 = vld [vmem:[%s1 + $0x724] sm:$0xff]
  %v293 = vld [vmem:[%s1 + $0x72c] sm:$0xff]
  %v294 = vld [vmem:[%s1 + $0x734] sm:$0xf]
  %v295 = vld [vmem:[%s1 + $0x738] sm:$0xff]
  %v296 = vld [vmem:[%s1 + $0x740] sm:$0xff]
  %v297 = vld [vmem:[%s1 + $0x748] sm:$0xff]
  %v298 = vld [vmem:[%s1 + $0x750] sm:$0xf]
  %v299 = vld [vmem:[%s1 + $0x754] sm:$0xff]
  %v300 = vld [vmem:[%s1 + $0x75c] sm:$0xff]
  %v301 = vld [vmem:[%s1 + $0x764] sm:$0xff]
  %v302 = vld [vmem:[%s1 + $0x76c] sm:$0xf]
  %v303 = vld [vmem:[%s1 + $0x770] sm:$0xff]
  %v304 = vld [vmem:[%s1 + $0x778] sm:$0xff]
  %v305 = vld [vmem:[%s1 + $0x780] sm:$0xff]
  %v306 = vld [vmem:[%s1 + $0x788] sm:$0xf]
  %v307 = vld [vmem:[%s1 + $0x78c] sm:$0xff]
  %v308 = vld [vmem:[%s1 + $0x794] sm:$0xff]
  %v309 = vld [vmem:[%s1 + $0x79c] sm:$0xff]
  %v310 = vld [vmem:[%s1 + $0x7a4] sm:$0xf]
  %v311 = vld [vmem:[%s1 + $0x7a8] sm:$0xff]
  %v312 = vld [vmem:[%s1 + $0x7b0] sm:$0xff]
  %v313 = vld [vmem:[%s1 + $0x7b8] sm:$0xff]
  %v314 = vld [vmem:[%s1 + $0x7c0] sm:$0xf]
  %v315 = vld [vmem:[%s1 + $0x7c4] sm:$0xff]
  %v316 = vld [vmem:[%s1 + $0x7cc] sm:$0xff]
  %v317 = vld [vmem:[%s1 + $0x7d4] sm:$0xff]
  %v318 = vld [vmem:[%s1 + $0x7dc] sm:$0xf]
  %v319 = vld [vmem:[%s1 + $0x7e0] sm:$0xff]
  %v320 = vld [vmem:[%s1 + $0x7e8] sm:$0xff]
  %v321 = vld [vmem:[%s1 + $0x7f0] sm:$0xff]
  %v322 = vld [vmem:[%s1 + $0x7f8] sm:$0xf]
  %v323 = vld [vmem:[%s1 + $0x7fc] sm:$0xff]
  %v324 = vld [vmem:[%s1 + $0x804] sm:$0xff]
  %v325 = vld [vmem:[%s1 + $0x80c] sm:$0xff]
  %v326 = vld [vmem:[%s1 + $0x814] sm:$0xf]
  %v327 = vld [vmem:[%s1 + $0x818] sm:$0xff]
  %v328 = vld [vmem:[%s1 + $0x820] sm:$0xff]
  %v329 = vld [vmem:[%s1 + $0x828] sm:$0xff]
  %v330 = vld [vmem:[%s1 + $0x830] sm:$0xf]
  %v331 = vld [vmem:[%s1 + $0x834] sm:$0xff]
  %v332 = vld [vmem:[%s1 + $0x83c] sm:$0xff]
  %v333 = vld [vmem:[%s1 + $0x844] sm:$0xff]
  %v334 = vld [vmem:[%s1 + $0x84c] sm:$0xf]
  %v335 = vld [vmem:[%s1 + $0x850] sm:$0xff]
  %v336 = vld [vmem:[%s1 + $0x858] sm:$0xff]
  %v337 = vld [vmem:[%s1 + $0x860] sm:$0xff]
  %v338 = vld [vmem:[%s1 + $0x868] sm:$0xf]
  %v339 = vld [vmem:[%s1 + $0x86c] sm:$0xff]
  %v340 = vld [vmem:[%s1 + $0x874] sm:$0xff]
  %v341 = vld [vmem:[%s1 + $0x87c] sm:$0xff]
  %v342 = vld [vmem:[%s1 + $0x884] sm:$0xf]
  %v343 = vld [vmem:[%s1 + $0x888] sm:$0xff]
  %v344 = vld [vmem:[%s1 + $0x890] sm:$0xff]
  %v345 = vld [vmem:[%s1 + $0x898] sm:$0xff]
  %v346 = vld [vmem:[%s1 + $0x8a0] sm:$0xf]
  %v347 = vld [vmem:[%s1 + $0x8a4] sm:$0xff]
  %v348 = vld [vmem:[%s1 + $0x8ac] sm:$0xff]
  %v349 = vld [vmem:[%s1 + $0x8b4] sm:$0xff]
  %v350 = vld [vmem:[%s1 + $0x8bc] sm:$0xf]
  %v351 = vld [vmem:[%s1 + $0x8c0] sm:$0xff]
  %v352 = vld [vmem:[%s1 + $0x8c8] sm:$0xff]
  %v353 = vld [vmem:[%s1 + $0x8d0] sm:$0xff]
  %v354 = vld [vmem:[%s1 + $0x8d8] sm:$0xf]
  %v355 = vld [vmem:[%s1 + $0x8dc] sm:$0xff]
  %v356 = vld [vmem:[%s1 + $0x8e4] sm:$0xff]
  %v357 = vld [vmem:[%s1 + $0x8ec] sm:$0xff]
  %v358 = vld [vmem:[%s1 + $0x8f4] sm:$0xf]
  %v359 = vld [vmem:[%s1 + $0x8f8] sm:$0xff]
  %v360 = vld [vmem:[%s1 + $0x900] sm:$0xff]
  %v361 = vld [vmem:[%s1 + $0x908] sm:$0xff]
  %v362 = vld [vmem:[%s1 + $0x910] sm:$0xf]
  %v363 = vld [vmem:[%s1 + $0x914] sm:$0xff]
  %v364 = vld [vmem:[%s1 + $0x91c] sm:$0xff]
  %v365 = vld [vmem:[%s1 + $0x924] sm:$0xff]
  %v366 = vld [vmem:[%s1 + $0x92c] sm:$0xf]
  %v367 = vld [vmem:[%s1 + $0x930] sm:$0xff]
  %v368 = vld [vmem:[%s1 + $0x938] sm:$0xff]
  %v369 = vld [vmem:[%s1 + $0x940] sm:$0xff]
  %v370 = vld [vmem:[%s1 + $0x948] sm:$0xf]
  %v371 = vld [vmem:[%s1 + $0x94c] sm:$0xff]
  %v372 = vld [vmem:[%s1 + $0x954] sm:$0xff]
  %v373 = vld [vmem:[%s1 + $0x95c] sm:$0xff]
  %v374 = vld [vmem:[%s1 + $0x964] sm:$0xf]
  %v375 = vld [vmem:[%s1 + $0x968] sm:$0xff]
  %v376 = vld [vmem:[%s1 + $0x970] sm:$0xff]
  %v377 = vld [vmem:[%s1 + $0x978] sm:$0xff]
  %v378 = vld [vmem:[%s1 + $0x980] sm:$0xf]
  %v379 = vld [vmem:[%s1 + $0x984] sm:$0xff]
  %v380 = vld [vmem:[%s1 + $0x98c] sm:$0xff]
  %v381 = vld [vmem:[%s1 + $0x994] sm:$0xff]
  %v382 = vld [vmem:[%s1 + $0x99c] sm:$0xf]
  %v383 = vld [vmem:[%s1 + $0x9a0] sm:$0xff]
  %v384 = vld [vmem:[%s1 + $0x9a8] sm:$0xff]
  %v385 = vld [vmem:[%s1 + $0x9b0] sm:$0xff]
  %v386 = vld [vmem:[%s1 + $0x9b8] sm:$0xf]
  %v387 = vld [vmem:[%s1 + $0x9bc] sm:$0xff]
  %v388 = vld [vmem:[%s1 + $0x9c4] sm:$0xff]
  %v389 = vld [vmem:[%s1 + $0x9cc] sm:$0xff]
  %v390 = vld [vmem:[%s1 + $0x9d4] sm:$0xf]
  %v391 = vld [vmem:[%s1 + $0x9d8] sm:$0xff]
  %v392 = vld [vmem:[%s1 + $0x9e0] sm:$0xff]
  %v393 = vld [vmem:[%s1 + $0x9e8] sm:$0xff]
  %v394 = vld [vmem:[%s1 + $0x9f0] sm:$0xf]
  %v395 = vld [vmem:[%s1 + $0x9f4] sm:$0xff]
  %v396 = vld [vmem:[%s1 + $0x9fc] sm:$0xff]
  %v397 = vld [vmem:[%s1 + $0xa04] sm:$0xff]
  %v398 = vld [vmem:[%s1 + $0xa0c] sm:$0xf]
  %v399 = vld [vmem:[%s1 + $0xa10] sm:$0xff]
  %v400 = vld [vmem:[%s1 + $0xa18] sm:$0xff]
  %v401 = vld [vmem:[%s1 + $0xa20] sm:$0xff]
  %v402 = vld [vmem:[%s1 + $0xa28] sm:$0xf]
  %v403 = vld [vmem:[%s1 + $0xa2c] sm:$0xff]
  %v404 = vld [vmem:[%s1 + $0xa34] sm:$0xff]
  %v405 = vld [vmem:[%s1 + $0xa3c] sm:$0xff]
  %v406 = vld [vmem:[%s1 + $0xa44] sm:$0xf]
  %v407 = vld [vmem:[%s1 + $0xa48] sm:$0xff]
  %v408 = vld [vmem:[%s1 + $0xa50] sm:$0xff]
  %v409 = vld [vmem:[%s1 + $0xa58] sm:$0xff]
  %v410 = vld [vmem:[%s1 + $0xa60] sm:$0xf]
  %v411 = vld [vmem:[%s1 + $0xa64] sm:$0xff]
  %v412 = vld [vmem:[%s1 + $0xa6c] sm:$0xff]
  %v413 = vld [vmem:[%s1 + $0xa74] sm:$0xff]
  %v414 = vld [vmem:[%s1 + $0xa7c] sm:$0xf]
  %v415 = vld [vmem:[%s1 + $0xa80] sm:$0xff]
  %v416 = vld [vmem:[%s1 + $0xa88] sm:$0xff]
  %v417 = vld [vmem:[%s1 + $0xa90] sm:$0xff]
  %v418 = vld [vmem:[%s1 + $0xa98] sm:$0xf]
  %v419 = vld [vmem:[%s1 + $0xa9c] sm:$0xff]
  %v420 = vld [vmem:[%s1 + $0xaa4] sm:$0xff]
  %v421 = vld [vmem:[%s1 + $0xaac] sm:$0xff]
  %v422 = vld [vmem:[%s1 + $0xab4] sm:$0xf]
  %v423 = vld [vmem:[%s1 + $0xab8] sm:$0xff]
  %v424 = vld [vmem:[%s1 + $0xac0] sm:$0xff]
  %v425 = vld [vmem:[%s1 + $0xac8] sm:$0xff]
  %v426 = vld [vmem:[%s1 + $0xad0] sm:$0xf]
  %v427 = vld [vmem:[%s1 + $0xad4] sm:$0xff]
  %v428 = vld [vmem:[%s1 + $0xadc] sm:$0xff]
  %v429 = vld [vmem:[%s1 + $0xae4] sm:$0xff]
  %v430 = vld [vmem:[%s1 + $0xaec] sm:$0xf]
  %v431 = vld [vmem:[%s1 + $0xaf0] sm:$0xff]
  %v432 = vld [vmem:[%s1 + $0xaf8] sm:$0xff]
  %v433 = vld [vmem:[%s1 + $0xb00] sm:$0xff]
  %v434 = vld [vmem:[%s1 + $0xb08] sm:$0xf]
  %v435 = vld [vmem:[%s1 + $0xb0c] sm:$0xff]
  %v436 = vld [vmem:[%s1 + $0xb14] sm:$0xff]
  %v437 = vld [vmem:[%s1 + $0xb1c] sm:$0xff]
  %v438 = vld [vmem:[%s1 + $0xb24] sm:$0xf]
  %v439 = vld [vmem:[%s1 + $0xb28] sm:$0xff]
  %v440 = vld [vmem:[%s1 + $0xb30] sm:$0xff]
  %v441 = vld [vmem:[%s1 + $0xb38] sm:$0xff]
  %v442 = vld [vmem:[%s1 + $0xb40] sm:$0xf]
  %v443 = vld [vmem:[%s1 + $0xb44] sm:$0xff]
  %v444 = vld [vmem:[%s1 + $0xb4c] sm:$0xff]
  %v445 = vld [vmem:[%s1 + $0xb54] sm:$0xff]
  %v446 = vld [vmem:[%s1 + $0xb5c] sm:$0xf]
  %v447 = vld [vmem:[%s1 + $0xb60] sm:$0xff]
  %v448 = vld [vmem:[%s1 + $0xb68] sm:$0xff]
  %v449 = vld [vmem:[%s1 + $0xb70] sm:$0xff]
  %v450 = vld [vmem:[%s1 + $0xb78] sm:$0xf]
  %v451 = vld [vmem:[%s1 + $0xb7c] sm:$0xff]
  %v452 = vld [vmem:[%s1 + $0xb84] sm:$0xff]
  %v453 = vld [vmem:[%s1 + $0xb8c] sm:$0xff]
  %v454 = vld [vmem:[%s1 + $0xb94] sm:$0xf]
  %v455 = vld [vmem:[%s1 + $0xb98] sm:$0xff]
  %v456 = vld [vmem:[%s1 + $0xba0] sm:$0xff]
  %v457 = vld [vmem:[%s1 + $0xba8] sm:$0xff]
  %v458 = vld [vmem:[%s1 + $0xbb0] sm:$0xf]
  %v459 = vld [vmem:[%s1 + $0xbb4] sm:$0xff]
  %v460 = vld [vmem:[%s1 + $0xbbc] sm:$0xff]
  %v461 = vld [vmem:[%s1 + $0xbc4] sm:$0xff]
  %v462 = vld [vmem:[%s1 + $0xbcc] sm:$0xf]
  %v463 = vld [vmem:[%s1 + $0xbd0] sm:$0xff]
  %v464 = vld [vmem:[%s1 + $0xbd8] sm:$0xff]
  %v465 = vld [vmem:[%s1 + $0xbe0] sm:$0xff]
  %v466 = vld [vmem:[%s1 + $0xbe8] sm:$0xf]
  %v467 = vld [vmem:[%s1 + $0xbec] sm:$0xff]
  %v468 = vld [vmem:[%s1 + $0xbf4] sm:$0xff]
  %v469 = vld [vmem:[%s1 + $0xbfc] sm:$0xff]
  %v470 = vld [vmem:[%s1 + $0xc04] sm:$0xf]
  %v471 = vld [vmem:[%s1 + $0xc08] sm:$0xff]
  %v472 = vld [vmem:[%s1 + $0xc10] sm:$0xff]
  %v473 = vld [vmem:[%s1 + $0xc18] sm:$0xff]
  %v474 = vld [vmem:[%s1 + $0xc20] sm:$0xf]
  %v475 = vld [vmem:[%s1 + $0xc24] sm:$0xff]
  %v476 = vld [vmem:[%s1 + $0xc2c] sm:$0xff]
  %v477 = vld [vmem:[%s1 + $0xc34] sm:$0xff]
  %v478 = vld [vmem:[%s1 + $0xc3c] sm:$0xf]
  %v479 = vld [vmem:[%s2] sm:$0xff]
  %v481 = vlaneseq
  %v482 = vshrl.u32 %v481, 7
  %v483 = vsub.s32 0, %v482
  %v484 = vrot.slane %v479, %v483
  %v485 = vlaneseq
  %v486 = vshrl.u32 %v485, 7
  %v487 = vsub.s32 1, %v486
  %v488 = vrot.slane %v479, %v487
  %v489 = vlaneseq
  %v490 = vshrl.u32 %v489, 7
  %v491 = vsub.s32 2, %v490
  %v492 = vrot.slane %v479, %v491
  %v493 = vlaneseq
  %v494 = vshrl.u32 %v493, 7
  %v495 = vsub.s32 3, %v494
  %v496 = vrot.slane %v479, %v495
  %v497 = vlaneseq
  %v498 = vshrl.u32 %v497, 7
  %v499 = vsub.s32 4, %v498
  %v500 = vrot.slane %v479, %v499
  %v501 = vlaneseq
  %v502 = vshrl.u32 %v501, 7
  %v503 = vsub.s32 5, %v502
  %v504 = vrot.slane %v479, %v503
  %v505 = vlaneseq
  %v506 = vshrl.u32 %v505, 7
  %v507 = vsub.s32 6, %v506
  %v508 = vrot.slane %v479, %v507
  %v520 = vunpack.c.l.b16 %v27
  %v521 = vunpack.c.h.b16 %v27
  %v522 = vunpack.c.l.b16 %v28
  %v523 = vunpack.c.h.b16 %v28
  %v524 = vunpack.c.l.b16 %v29
  %v525 = vunpack.c.h.b16 %v29
  %v526 = vunpack.c.l.b16 %v30
  %v527 = vpack.c.b16 %v520, %v520
  %v528 = vpack.c.b16 %v521, %v521
  %v529 = vpack.c.b16 %v522, %v522
  %v530 = vpack.c.b16 %v523, %v523
  %v531 = vpack.c.b16 %v524, %v524
  %v532 = vpack.c.b16 %v525, %v525
  %v533 = vpack.c.b16 %v526, %v526
  %v989 = vunpack.c.l.b16 %v31
  %v990 = vunpack.c.h.b16 %v31
  %v991 = vunpack.c.l.b16 %v32
  %v992 = vunpack.c.h.b16 %v32
  %v993 = vunpack.c.l.b16 %v33
  %v994 = vunpack.c.h.b16 %v33
  %v995 = vunpack.c.l.b16 %v34
  %v996 = vunpack.c.l.b16 %v35
  %v997 = vunpack.c.h.b16 %v35
  %v998 = vunpack.c.l.b16 %v36
  %v999 = vunpack.c.h.b16 %v36
  %v1000 = vunpack.c.l.b16 %v37
  %v1001 = vunpack.c.h.b16 %v37
  %v1002 = vunpack.c.l.b16 %v38
  %v1003 = vunpack.c.l.b16 %v39
  %v1004 = vunpack.c.h.b16 %v39
  %v1005 = vunpack.c.l.b16 %v40
  %v1006 = vunpack.c.h.b16 %v40
  %v1007 = vunpack.c.l.b16 %v41
  %v1008 = vunpack.c.h.b16 %v41
  %v1009 = vunpack.c.l.b16 %v42
  %v1010 = vunpack.c.l.b16 %v43
  %v1011 = vunpack.c.h.b16 %v43
  %v1012 = vunpack.c.l.b16 %v44
  %v1013 = vunpack.c.h.b16 %v44
  %v1014 = vunpack.c.l.b16 %v45
  %v1015 = vunpack.c.h.b16 %v45
  %v1016 = vunpack.c.l.b16 %v46
  %v1017 = vunpack.c.l.b16 %v47
  %v1018 = vunpack.c.h.b16 %v47
  %v1019 = vunpack.c.l.b16 %v48
  %v1020 = vunpack.c.h.b16 %v48
  %v1021 = vunpack.c.l.b16 %v49
  %v1022 = vunpack.c.h.b16 %v49
  %v1023 = vunpack.c.l.b16 %v50
  %v1024 = vunpack.c.l.b16 %v51
  %v1025 = vunpack.c.h.b16 %v51
  %v1026 = vunpack.c.l.b16 %v52
  %v1027 = vunpack.c.h.b16 %v52
  %v1028 = vunpack.c.l.b16 %v53
  %v1029 = vunpack.c.h.b16 %v53
  %v1030 = vunpack.c.l.b16 %v54
  %v1031 = vunpack.c.l.b16 %v55
  %v1032 = vunpack.c.h.b16 %v55
  %v1033 = vunpack.c.l.b16 %v56
  %v1034 = vunpack.c.h.b16 %v56
  %v1035 = vunpack.c.l.b16 %v57
  %v1036 = vunpack.c.h.b16 %v57
  %v1037 = vunpack.c.l.b16 %v58
  %v1038 = vunpack.c.l.b16 %v59
  %v1039 = vunpack.c.h.b16 %v59
  %v1040 = vunpack.c.l.b16 %v60
  %v1041 = vunpack.c.h.b16 %v60
  %v1042 = vunpack.c.l.b16 %v61
  %v1043 = vunpack.c.h.b16 %v61
  %v1044 = vunpack.c.l.b16 %v62
  %v1045 = vunpack.c.l.b16 %v63
  %v1046 = vunpack.c.h.b16 %v63
  %v1047 = vunpack.c.l.b16 %v64
  %v1048 = vunpack.c.h.b16 %v64
  %v1049 = vunpack.c.l.b16 %v65
  %v1050 = vunpack.c.h.b16 %v65
  %v1051 = vunpack.c.l.b16 %v66
  %v1052 = vunpack.c.l.b16 %v67
  %v1053 = vunpack.c.h.b16 %v67
  %v1054 = vunpack.c.l.b16 %v68
  %v1055 = vunpack.c.h.b16 %v68
  %v1056 = vunpack.c.l.b16 %v69
  %v1057 = vunpack.c.h.b16 %v69
  %v1058 = vunpack.c.l.b16 %v70
  %v1059 = vunpack.c.l.b16 %v71
  %v1060 = vunpack.c.h.b16 %v71
  %v1061 = vunpack.c.l.b16 %v72
  %v1062 = vunpack.c.h.b16 %v72
  %v1063 = vunpack.c.l.b16 %v73
  %v1064 = vunpack.c.h.b16 %v73
  %v1065 = vunpack.c.l.b16 %v74
  %v1066 = vunpack.c.l.b16 %v75
  %v1067 = vunpack.c.h.b16 %v75
  %v1068 = vunpack.c.l.b16 %v76
  %v1069 = vunpack.c.h.b16 %v76
  %v1070 = vunpack.c.l.b16 %v77
  %v1071 = vunpack.c.h.b16 %v77
  %v1072 = vunpack.c.l.b16 %v78
  %v1073 = vunpack.c.l.b16 %v79
  %v1074 = vunpack.c.h.b16 %v79
  %v1075 = vunpack.c.l.b16 %v80
  %v1076 = vunpack.c.h.b16 %v80
  %v1077 = vunpack.c.l.b16 %v81
  %v1078 = vunpack.c.h.b16 %v81
  %v1079 = vunpack.c.l.b16 %v82
  %v1080 = vunpack.c.l.b16 %v83
  %v1081 = vunpack.c.h.b16 %v83
  %v1082 = vunpack.c.l.b16 %v84
  %v1083 = vunpack.c.h.b16 %v84
  %v1084 = vunpack.c.l.b16 %v85
  %v1085 = vunpack.c.h.b16 %v85
  %v1086 = vunpack.c.l.b16 %v86
  %v1087 = vunpack.c.l.b16 %v87
  %v1088 = vunpack.c.h.b16 %v87
  %v1089 = vunpack.c.l.b16 %v88
  %v1090 = vunpack.c.h.b16 %v88
  %v1091 = vunpack.c.l.b16 %v89
  %v1092 = vunpack.c.h.b16 %v89
  %v1093 = vunpack.c.l.b16 %v90
  %v1094 = vunpack.c.l.b16 %v91
  %v1095 = vunpack.c.h.b16 %v91
  %v1096 = vunpack.c.l.b16 %v92
  %v1097 = vunpack.c.h.b16 %v92
  %v1098 = vunpack.c.l.b16 %v93
  %v1099 = vunpack.c.h.b16 %v93
  %v1100 = vunpack.c.l.b16 %v94
  %v1101 = vunpack.c.l.b16 %v95
  %v1102 = vunpack.c.h.b16 %v95
  %v1103 = vunpack.c.l.b16 %v96
  %v1104 = vunpack.c.h.b16 %v96
  %v1105 = vunpack.c.l.b16 %v97
  %v1106 = vunpack.c.h.b16 %v97
  %v1107 = vunpack.c.l.b16 %v98
  %v1108 = vunpack.c.l.b16 %v99
  %v1109 = vunpack.c.h.b16 %v99
  %v1110 = vunpack.c.l.b16 %v100
  %v1111 = vunpack.c.h.b16 %v100
  %v1112 = vunpack.c.l.b16 %v101
  %v1113 = vunpack.c.h.b16 %v101
  %v1114 = vunpack.c.l.b16 %v102
  %v1115 = vunpack.c.l.b16 %v103
  %v1116 = vunpack.c.h.b16 %v103
  %v1117 = vunpack.c.l.b16 %v104
  %v1118 = vunpack.c.h.b16 %v104
  %v1119 = vunpack.c.l.b16 %v105
  %v1120 = vunpack.c.h.b16 %v105
  %v1121 = vunpack.c.l.b16 %v106
  %v1122 = vunpack.c.l.b16 %v107
  %v1123 = vunpack.c.h.b16 %v107
  %v1124 = vunpack.c.l.b16 %v108
  %v1125 = vunpack.c.h.b16 %v108
  %v1126 = vunpack.c.l.b16 %v109
  %v1127 = vunpack.c.h.b16 %v109
  %v1128 = vunpack.c.l.b16 %v110
  %v1129 = vunpack.c.l.b16 %v111
  %v1130 = vunpack.c.h.b16 %v111
  %v1131 = vunpack.c.l.b16 %v112
  %v1132 = vunpack.c.h.b16 %v112
  %v1133 = vunpack.c.l.b16 %v113
  %v1134 = vunpack.c.h.b16 %v113
  %v1135 = vunpack.c.l.b16 %v114
  %v1136 = vunpack.c.l.b16 %v115
  %v1137 = vunpack.c.h.b16 %v115
  %v1138 = vunpack.c.l.b16 %v116
  %v1139 = vunpack.c.h.b16 %v116
  %v1140 = vunpack.c.l.b16 %v117
  %v1141 = vunpack.c.h.b16 %v117
  %v1142 = vunpack.c.l.b16 %v118
  %v1143 = vunpack.c.l.b16 %v119
  %v1144 = vunpack.c.h.b16 %v119
  %v1145 = vunpack.c.l.b16 %v120
  %v1146 = vunpack.c.h.b16 %v120
  %v1147 = vunpack.c.l.b16 %v121
  %v1148 = vunpack.c.h.b16 %v121
  %v1149 = vunpack.c.l.b16 %v122
  %v1150 = vunpack.c.l.b16 %v123
  %v1151 = vunpack.c.h.b16 %v123
  %v1152 = vunpack.c.l.b16 %v124
  %v1153 = vunpack.c.h.b16 %v124
  %v1154 = vunpack.c.l.b16 %v125
  %v1155 = vunpack.c.h.b16 %v125
  %v1156 = vunpack.c.l.b16 %v126
  %v1157 = vunpack.c.l.b16 %v127
  %v1158 = vunpack.c.h.b16 %v127
  %v1159 = vunpack.c.l.b16 %v128
  %v1160 = vunpack.c.h.b16 %v128
  %v1161 = vunpack.c.l.b16 %v129
  %v1162 = vunpack.c.h.b16 %v129
  %v1163 = vunpack.c.l.b16 %v130
  %v1164 = vunpack.c.l.b16 %v131
  %v1165 = vunpack.c.h.b16 %v131
  %v1166 = vunpack.c.l.b16 %v132
  %v1167 = vunpack.c.h.b16 %v132
  %v1168 = vunpack.c.l.b16 %v133
  %v1169 = vunpack.c.h.b16 %v133
  %v1170 = vunpack.c.l.b16 %v134
  %v1171 = vunpack.c.l.b16 %v135
  %v1172 = vunpack.c.h.b16 %v135
  %v1173 = vunpack.c.l.b16 %v136
  %v1174 = vunpack.c.h.b16 %v136
  %v1175 = vunpack.c.l.b16 %v137
  %v1176 = vunpack.c.h.b16 %v137
  %v1177 = vunpack.c.l.b16 %v138
  %v1178 = vunpack.c.l.b16 %v139
  %v1179 = vunpack.c.h.b16 %v139
  %v1180 = vunpack.c.l.b16 %v140
  %v1181 = vunpack.c.h.b16 %v140
  %v1182 = vunpack.c.l.b16 %v141
  %v1183 = vunpack.c.h.b16 %v141
  %v1184 = vunpack.c.l.b16 %v142
  %v1185 = vunpack.c.l.b16 %v143
  %v1186 = vunpack.c.h.b16 %v143
  %v1187 = vunpack.c.l.b16 %v144
  %v1188 = vunpack.c.h.b16 %v144
  %v1189 = vunpack.c.l.b16 %v145
  %v1190 = vunpack.c.h.b16 %v145
  %v1191 = vunpack.c.l.b16 %v146
  %v1192 = vunpack.c.l.b16 %v147
  %v1193 = vunpack.c.h.b16 %v147
  %v1194 = vunpack.c.l.b16 %v148
  %v1195 = vunpack.c.h.b16 %v148
  %v1196 = vunpack.c.l.b16 %v149
  %v1197 = vunpack.c.h.b16 %v149
  %v1198 = vunpack.c.l.b16 %v150
  %v1199 = vunpack.c.l.b16 %v151
  %v1200 = vunpack.c.h.b16 %v151
  %v1201 = vunpack.c.l.b16 %v152
  %v1202 = vunpack.c.h.b16 %v152
  %v1203 = vunpack.c.l.b16 %v153
  %v1204 = vunpack.c.h.b16 %v153
  %v1205 = vunpack.c.l.b16 %v154
  %v1206 = vunpack.c.l.b16 %v155
  %v1207 = vunpack.c.h.b16 %v155
  %v1208 = vunpack.c.l.b16 %v156
  %v1209 = vunpack.c.h.b16 %v156
  %v1210 = vunpack.c.l.b16 %v157
  %v1211 = vunpack.c.h.b16 %v157
  %v1212 = vunpack.c.l.b16 %v158
  %v1213 = vunpack.c.l.b16 %v159
  %v1214 = vunpack.c.h.b16 %v159
  %v1215 = vunpack.c.l.b16 %v160
  %v1216 = vunpack.c.h.b16 %v160
  %v1217 = vunpack.c.l.b16 %v161
  %v1218 = vunpack.c.h.b16 %v161
  %v1219 = vunpack.c.l.b16 %v162
  %v1220 = vunpack.c.l.b16 %v163
  %v1221 = vunpack.c.h.b16 %v163
  %v1222 = vunpack.c.l.b16 %v164
  %v1223 = vunpack.c.h.b16 %v164
  %v1224 = vunpack.c.l.b16 %v165
  %v1225 = vunpack.c.h.b16 %v165
  %v1226 = vunpack.c.l.b16 %v166
  %v1227 = vunpack.c.l.b16 %v167
  %v1228 = vunpack.c.h.b16 %v167
  %v1229 = vunpack.c.l.b16 %v168
  %v1230 = vunpack.c.h.b16 %v168
  %v1231 = vunpack.c.l.b16 %v169
  %v1232 = vunpack.c.h.b16 %v169
  %v1233 = vunpack.c.l.b16 %v170
  %v1234 = vunpack.c.l.b16 %v171
  %v1235 = vunpack.c.h.b16 %v171
  %v1236 = vunpack.c.l.b16 %v172
  %v1237 = vunpack.c.h.b16 %v172
  %v1238 = vunpack.c.l.b16 %v173
  %v1239 = vunpack.c.h.b16 %v173
  %v1240 = vunpack.c.l.b16 %v174
  %v1241 = vunpack.c.l.b16 %v175
  %v1242 = vunpack.c.h.b16 %v175
  %v1243 = vunpack.c.l.b16 %v176
  %v1244 = vunpack.c.h.b16 %v176
  %v1245 = vunpack.c.l.b16 %v177
  %v1246 = vunpack.c.h.b16 %v177
  %v1247 = vunpack.c.l.b16 %v178
  %v1248 = vunpack.c.l.b16 %v179
  %v1249 = vunpack.c.h.b16 %v179
  %v1250 = vunpack.c.l.b16 %v180
  %v1251 = vunpack.c.h.b16 %v180
  %v1252 = vunpack.c.l.b16 %v181
  %v1253 = vunpack.c.h.b16 %v181
  %v1254 = vunpack.c.l.b16 %v182
  %v1255 = vunpack.c.l.b16 %v183
  %v1256 = vunpack.c.h.b16 %v183
  %v1257 = vunpack.c.l.b16 %v184
  %v1258 = vunpack.c.h.b16 %v184
  %v1259 = vunpack.c.l.b16 %v185
  %v1260 = vunpack.c.h.b16 %v185
  %v1261 = vunpack.c.l.b16 %v186
  %v1262 = vunpack.c.l.b16 %v187
  %v1263 = vunpack.c.h.b16 %v187
  %v1264 = vunpack.c.l.b16 %v188
  %v1265 = vunpack.c.h.b16 %v188
  %v1266 = vunpack.c.l.b16 %v189
  %v1267 = vunpack.c.h.b16 %v189
  %v1268 = vunpack.c.l.b16 %v190
  %v1269 = vunpack.c.l.b16 %v191
  %v1270 = vunpack.c.h.b16 %v191
  %v1271 = vunpack.c.l.b16 %v192
  %v1272 = vunpack.c.h.b16 %v192
  %v1273 = vunpack.c.l.b16 %v193
  %v1274 = vunpack.c.h.b16 %v193
  %v1275 = vunpack.c.l.b16 %v194
  %v1276 = vunpack.c.l.b16 %v195
  %v1277 = vunpack.c.h.b16 %v195
  %v1278 = vunpack.c.l.b16 %v196
  %v1279 = vunpack.c.h.b16 %v196
  %v1280 = vunpack.c.l.b16 %v197
  %v1281 = vunpack.c.h.b16 %v197
  %v1282 = vunpack.c.l.b16 %v198
  %v1283 = vunpack.c.l.b16 %v199
  %v1284 = vunpack.c.h.b16 %v199
  %v1285 = vunpack.c.l.b16 %v200
  %v1286 = vunpack.c.h.b16 %v200
  %v1287 = vunpack.c.l.b16 %v201
  %v1288 = vunpack.c.h.b16 %v201
  %v1289 = vunpack.c.l.b16 %v202
  %v1290 = vunpack.c.l.b16 %v203
  %v1291 = vunpack.c.h.b16 %v203
  %v1292 = vunpack.c.l.b16 %v204
  %v1293 = vunpack.c.h.b16 %v204
  %v1294 = vunpack.c.l.b16 %v205
  %v1295 = vunpack.c.h.b16 %v205
  %v1296 = vunpack.c.l.b16 %v206
  %v1297 = vunpack.c.l.b16 %v207
  %v1298 = vunpack.c.h.b16 %v207
  %v1299 = vunpack.c.l.b16 %v208
  %v1300 = vunpack.c.h.b16 %v208
  %v1301 = vunpack.c.l.b16 %v209
  %v1302 = vunpack.c.h.b16 %v209
  %v1303 = vunpack.c.l.b16 %v210
  %v1304 = vunpack.c.l.b16 %v211
  %v1305 = vunpack.c.h.b16 %v211
  %v1306 = vunpack.c.l.b16 %v212
  %v1307 = vunpack.c.h.b16 %v212
  %v1308 = vunpack.c.l.b16 %v213
  %v1309 = vunpack.c.h.b16 %v213
  %v1310 = vunpack.c.l.b16 %v214
  %v1311 = vunpack.c.l.b16 %v215
  %v1312 = vunpack.c.h.b16 %v215
  %v1313 = vunpack.c.l.b16 %v216
  %v1314 = vunpack.c.h.b16 %v216
  %v1315 = vunpack.c.l.b16 %v217
  %v1316 = vunpack.c.h.b16 %v217
  %v1317 = vunpack.c.l.b16 %v218
  %v1318 = vunpack.c.l.b16 %v219
  %v1319 = vunpack.c.h.b16 %v219
  %v1320 = vunpack.c.l.b16 %v220
  %v1321 = vunpack.c.h.b16 %v220
  %v1322 = vunpack.c.l.b16 %v221
  %v1323 = vunpack.c.h.b16 %v221
  %v1324 = vunpack.c.l.b16 %v222
  %v1325 = vunpack.c.l.b16 %v223
  %v1326 = vunpack.c.h.b16 %v223
  %v1327 = vunpack.c.l.b16 %v224
  %v1328 = vunpack.c.h.b16 %v224
  %v1329 = vunpack.c.l.b16 %v225
  %v1330 = vunpack.c.h.b16 %v225
  %v1331 = vunpack.c.l.b16 %v226
  %v1332 = vunpack.c.l.b16 %v227
  %v1333 = vunpack.c.h.b16 %v227
  %v1334 = vunpack.c.l.b16 %v228
  %v1335 = vunpack.c.h.b16 %v228
  %v1336 = vunpack.c.l.b16 %v229
  %v1337 = vunpack.c.h.b16 %v229
  %v1338 = vunpack.c.l.b16 %v230
  %v1339 = vunpack.c.l.b16 %v231
  %v1340 = vunpack.c.h.b16 %v231
  %v1341 = vunpack.c.l.b16 %v232
  %v1342 = vunpack.c.h.b16 %v232
  %v1343 = vunpack.c.l.b16 %v233
  %v1344 = vunpack.c.h.b16 %v233
  %v1345 = vunpack.c.l.b16 %v234
  %v1346 = vunpack.c.l.b16 %v235
  %v1347 = vunpack.c.h.b16 %v235
  %v1348 = vunpack.c.l.b16 %v236
  %v1349 = vunpack.c.h.b16 %v236
  %v1350 = vunpack.c.l.b16 %v237
  %v1351 = vunpack.c.h.b16 %v237
  %v1352 = vunpack.c.l.b16 %v238
  %v1353 = vunpack.c.l.b16 %v239
  %v1354 = vunpack.c.h.b16 %v239
  %v1355 = vunpack.c.l.b16 %v240
  %v1356 = vunpack.c.h.b16 %v240
  %v1357 = vunpack.c.l.b16 %v241
  %v1358 = vunpack.c.h.b16 %v241
  %v1359 = vunpack.c.l.b16 %v242
  %v1360 = vunpack.c.l.b16 %v243
  %v1361 = vunpack.c.h.b16 %v243
  %v1362 = vunpack.c.l.b16 %v244
  %v1363 = vunpack.c.h.b16 %v244
  %v1364 = vunpack.c.l.b16 %v245
  %v1365 = vunpack.c.h.b16 %v245
  %v1366 = vunpack.c.l.b16 %v246
  %v1367 = vunpack.c.l.b16 %v247
  %v1368 = vunpack.c.h.b16 %v247
  %v1369 = vunpack.c.l.b16 %v248
  %v1370 = vunpack.c.h.b16 %v248
  %v1371 = vunpack.c.l.b16 %v249
  %v1372 = vunpack.c.h.b16 %v249
  %v1373 = vunpack.c.l.b16 %v250
  %v1374 = vunpack.c.l.b16 %v251
  %v1375 = vunpack.c.h.b16 %v251
  %v1376 = vunpack.c.l.b16 %v252
  %v1377 = vunpack.c.h.b16 %v252
  %v1378 = vunpack.c.l.b16 %v253
  %v1379 = vunpack.c.h.b16 %v253
  %v1380 = vunpack.c.l.b16 %v254
  %v1381 = vunpack.c.l.b16 %v255
  %v1382 = vunpack.c.h.b16 %v255
  %v1383 = vunpack.c.l.b16 %v256
  %v1384 = vunpack.c.h.b16 %v256
  %v1385 = vunpack.c.l.b16 %v257
  %v1386 = vunpack.c.h.b16 %v257
  %v1387 = vunpack.c.l.b16 %v258
  %v1388 = vunpack.c.l.b16 %v259
  %v1389 = vunpack.c.h.b16 %v259
  %v1390 = vunpack.c.l.b16 %v260
  %v1391 = vunpack.c.h.b16 %v260
  %v1392 = vunpack.c.l.b16 %v261
  %v1393 = vunpack.c.h.b16 %v261
  %v1394 = vunpack.c.l.b16 %v262
  %v1395 = vunpack.c.l.b16 %v263
  %v1396 = vunpack.c.h.b16 %v263
  %v1397 = vunpack.c.l.b16 %v264
  %v1398 = vunpack.c.h.b16 %v264
  %v1399 = vunpack.c.l.b16 %v265
  %v1400 = vunpack.c.h.b16 %v265
  %v1401 = vunpack.c.l.b16 %v266
  %v1402 = vunpack.c.l.b16 %v267
  %v1403 = vunpack.c.h.b16 %v267
  %v1404 = vunpack.c.l.b16 %v268
  %v1405 = vunpack.c.h.b16 %v268
  %v1406 = vunpack.c.l.b16 %v269
  %v1407 = vunpack.c.h.b16 %v269
  %v1408 = vunpack.c.l.b16 %v270
  %v1409 = vunpack.c.l.b16 %v271
  %v1410 = vunpack.c.h.b16 %v271
  %v1411 = vunpack.c.l.b16 %v272
  %v1412 = vunpack.c.h.b16 %v272
  %v1413 = vunpack.c.l.b16 %v273
  %v1414 = vunpack.c.h.b16 %v273
  %v1415 = vunpack.c.l.b16 %v274
  %v1416 = vunpack.c.l.b16 %v275
  %v1417 = vunpack.c.h.b16 %v275
  %v1418 = vunpack.c.l.b16 %v276
  %v1419 = vunpack.c.h.b16 %v276
  %v1420 = vunpack.c.l.b16 %v277
  %v1421 = vunpack.c.h.b16 %v277
  %v1422 = vunpack.c.l.b16 %v278
  %v1423 = vunpack.c.l.b16 %v279
  %v1424 = vunpack.c.h.b16 %v279
  %v1425 = vunpack.c.l.b16 %v280
  %v1426 = vunpack.c.h.b16 %v280
  %v1427 = vunpack.c.l.b16 %v281
  %v1428 = vunpack.c.h.b16 %v281
  %v1429 = vunpack.c.l.b16 %v282
  %v1430 = vunpack.c.l.b16 %v283
  %v1431 = vunpack.c.h.b16 %v283
  %v1432 = vunpack.c.l.b16 %v284
  %v1433 = vunpack.c.h.b16 %v284
  %v1434 = vunpack.c.l.b16 %v285
  %v1435 = vunpack.c.h.b16 %v285
  %v1436 = vunpack.c.l.b16 %v286
  %v1437 = vunpack.c.l.b16 %v287
  %v1438 = vunpack.c.h.b16 %v287
  %v1439 = vunpack.c.l.b16 %v288
  %v1440 = vunpack.c.h.b16 %v288
  %v1441 = vunpack.c.l.b16 %v289
  %v1442 = vunpack.c.h.b16 %v289
  %v1443 = vunpack.c.l.b16 %v290
  %v1444 = vunpack.c.l.b16 %v291
  %v1445 = vunpack.c.h.b16 %v291
  %v1446 = vunpack.c.l.b16 %v292
  %v1447 = vunpack.c.h.b16 %v292
  %v1448 = vunpack.c.l.b16 %v293
  %v1449 = vunpack.c.h.b16 %v293
  %v1450 = vunpack.c.l.b16 %v294
  %v1451 = vunpack.c.l.b16 %v295
  %v1452 = vunpack.c.h.b16 %v295
  %v1453 = vunpack.c.l.b16 %v296
  %v1454 = vunpack.c.h.b16 %v296
  %v1455 = vunpack.c.l.b16 %v297
  %v1456 = vunpack.c.h.b16 %v297
  %v1457 = vunpack.c.l.b16 %v298
  %v1458 = vunpack.c.l.b16 %v299
  %v1459 = vunpack.c.h.b16 %v299
  %v1460 = vunpack.c.l.b16 %v300
  %v1461 = vunpack.c.h.b16 %v300
  %v1462 = vunpack.c.l.b16 %v301
  %v1463 = vunpack.c.h.b16 %v301
  %v1464 = vunpack.c.l.b16 %v302
  %v1465 = vunpack.c.l.b16 %v303
  %v1466 = vunpack.c.h.b16 %v303
  %v1467 = vunpack.c.l.b16 %v304
  %v1468 = vunpack.c.h.b16 %v304
  %v1469 = vunpack.c.l.b16 %v305
  %v1470 = vunpack.c.h.b16 %v305
  %v1471 = vunpack.c.l.b16 %v306
  %v1472 = vunpack.c.l.b16 %v307
  %v1473 = vunpack.c.h.b16 %v307
  %v1474 = vunpack.c.l.b16 %v308
  %v1475 = vunpack.c.h.b16 %v308
  %v1476 = vunpack.c.l.b16 %v309
  %v1477 = vunpack.c.h.b16 %v309
  %v1478 = vunpack.c.l.b16 %v310
  %v1479 = vunpack.c.l.b16 %v311
  %v1480 = vunpack.c.h.b16 %v311
  %v1481 = vunpack.c.l.b16 %v312
  %v1482 = vunpack.c.h.b16 %v312
  %v1483 = vunpack.c.l.b16 %v313
  %v1484 = vunpack.c.h.b16 %v313
  %v1485 = vunpack.c.l.b16 %v314
  %v1486 = vunpack.c.l.b16 %v315
  %v1487 = vunpack.c.h.b16 %v315
  %v1488 = vunpack.c.l.b16 %v316
  %v1489 = vunpack.c.h.b16 %v316
  %v1490 = vunpack.c.l.b16 %v317
  %v1491 = vunpack.c.h.b16 %v317
  %v1492 = vunpack.c.l.b16 %v318
  %v1493 = vunpack.c.l.b16 %v319
  %v1494 = vunpack.c.h.b16 %v319
  %v1495 = vunpack.c.l.b16 %v320
  %v1496 = vunpack.c.h.b16 %v320
  %v1497 = vunpack.c.l.b16 %v321
  %v1498 = vunpack.c.h.b16 %v321
  %v1499 = vunpack.c.l.b16 %v322
  %v1500 = vunpack.c.l.b16 %v323
  %v1501 = vunpack.c.h.b16 %v323
  %v1502 = vunpack.c.l.b16 %v324
  %v1503 = vunpack.c.h.b16 %v324
  %v1504 = vunpack.c.l.b16 %v325
  %v1505 = vunpack.c.h.b16 %v325
  %v1506 = vunpack.c.l.b16 %v326
  %v1507 = vunpack.c.l.b16 %v327
  %v1508 = vunpack.c.h.b16 %v327
  %v1509 = vunpack.c.l.b16 %v328
  %v1510 = vunpack.c.h.b16 %v328
  %v1511 = vunpack.c.l.b16 %v329
  %v1512 = vunpack.c.h.b16 %v329
  %v1513 = vunpack.c.l.b16 %v330
  %v1514 = vunpack.c.l.b16 %v331
  %v1515 = vunpack.c.h.b16 %v331
  %v1516 = vunpack.c.l.b16 %v332
  %v1517 = vunpack.c.h.b16 %v332
  %v1518 = vunpack.c.l.b16 %v333
  %v1519 = vunpack.c.h.b16 %v333
  %v1520 = vunpack.c.l.b16 %v334
  %v1521 = vunpack.c.l.b16 %v335
  %v1522 = vunpack.c.h.b16 %v335
  %v1523 = vunpack.c.l.b16 %v336
  %v1524 = vunpack.c.h.b16 %v336
  %v1525 = vunpack.c.l.b16 %v337
  %v1526 = vunpack.c.h.b16 %v337
  %v1527 = vunpack.c.l.b16 %v338
  %v1528 = vunpack.c.l.b16 %v339
  %v1529 = vunpack.c.h.b16 %v339
  %v1530 = vunpack.c.l.b16 %v340
  %v1531 = vunpack.c.h.b16 %v340
  %v1532 = vunpack.c.l.b16 %v341
  %v1533 = vunpack.c.h.b16 %v341
  %v1534 = vunpack.c.l.b16 %v342
  %v1535 = vunpack.c.l.b16 %v343
  %v1536 = vunpack.c.h.b16 %v343
  %v1537 = vunpack.c.l.b16 %v344
  %v1538 = vunpack.c.h.b16 %v344
  %v1539 = vunpack.c.l.b16 %v345
  %v1540 = vunpack.c.h.b16 %v345
  %v1541 = vunpack.c.l.b16 %v346
  %v1542 = vunpack.c.l.b16 %v347
  %v1543 = vunpack.c.h.b16 %v347
  %v1544 = vunpack.c.l.b16 %v348
  %v1545 = vunpack.c.h.b16 %v348
  %v1546 = vunpack.c.l.b16 %v349
  %v1547 = vunpack.c.h.b16 %v349
  %v1548 = vunpack.c.l.b16 %v350
  %v1549 = vunpack.c.l.b16 %v351
  %v1550 = vunpack.c.h.b16 %v351
  %v1551 = vunpack.c.l.b16 %v352
  %v1552 = vunpack.c.h.b16 %v352
  %v1553 = vunpack.c.l.b16 %v353
  %v1554 = vunpack.c.h.b16 %v353
  %v1555 = vunpack.c.l.b16 %v354
  %v1556 = vunpack.c.l.b16 %v355
  %v1557 = vunpack.c.h.b16 %v355
  %v1558 = vunpack.c.l.b16 %v356
  %v1559 = vunpack.c.h.b16 %v356
  %v1560 = vunpack.c.l.b16 %v357
  %v1561 = vunpack.c.h.b16 %v357
  %v1562 = vunpack.c.l.b16 %v358
  %v1563 = vunpack.c.l.b16 %v359
  %v1564 = vunpack.c.h.b16 %v359
  %v1565 = vunpack.c.l.b16 %v360
  %v1566 = vunpack.c.h.b16 %v360
  %v1567 = vunpack.c.l.b16 %v361
  %v1568 = vunpack.c.h.b16 %v361
  %v1569 = vunpack.c.l.b16 %v362
  %v1570 = vunpack.c.l.b16 %v363
  %v1571 = vunpack.c.h.b16 %v363
  %v1572 = vunpack.c.l.b16 %v364
  %v1573 = vunpack.c.h.b16 %v364
  %v1574 = vunpack.c.l.b16 %v365
  %v1575 = vunpack.c.h.b16 %v365
  %v1576 = vunpack.c.l.b16 %v366
  %v1577 = vunpack.c.l.b16 %v367
  %v1578 = vunpack.c.h.b16 %v367
  %v1579 = vunpack.c.l.b16 %v368
  %v1580 = vunpack.c.h.b16 %v368
  %v1581 = vunpack.c.l.b16 %v369
  %v1582 = vunpack.c.h.b16 %v369
  %v1583 = vunpack.c.l.b16 %v370
  %v1584 = vunpack.c.l.b16 %v371
  %v1585 = vunpack.c.h.b16 %v371
  %v1586 = vunpack.c.l.b16 %v372
  %v1587 = vunpack.c.h.b16 %v372
  %v1588 = vunpack.c.l.b16 %v373
  %v1589 = vunpack.c.h.b16 %v373
  %v1590 = vunpack.c.l.b16 %v374
  %v1591 = vunpack.c.l.b16 %v375
  %v1592 = vunpack.c.h.b16 %v375
  %v1593 = vunpack.c.l.b16 %v376
  %v1594 = vunpack.c.h.b16 %v376
  %v1595 = vunpack.c.l.b16 %v377
  %v1596 = vunpack.c.h.b16 %v377
  %v1597 = vunpack.c.l.b16 %v378
  %v1598 = vunpack.c.l.b16 %v379
  %v1599 = vunpack.c.h.b16 %v379
  %v1600 = vunpack.c.l.b16 %v380
  %v1601 = vunpack.c.h.b16 %v380
  %v1602 = vunpack.c.l.b16 %v381
  %v1603 = vunpack.c.h.b16 %v381
  %v1604 = vunpack.c.l.b16 %v382
  %v1605 = vunpack.c.l.b16 %v383
  %v1606 = vunpack.c.h.b16 %v383
  %v1607 = vunpack.c.l.b16 %v384
  %v1608 = vunpack.c.h.b16 %v384
  %v1609 = vunpack.c.l.b16 %v385
  %v1610 = vunpack.c.h.b16 %v385
  %v1611 = vunpack.c.l.b16 %v386
  %v1612 = vunpack.c.l.b16 %v387
  %v1613 = vunpack.c.h.b16 %v387
  %v1614 = vunpack.c.l.b16 %v388
  %v1615 = vunpack.c.h.b16 %v388
  %v1616 = vunpack.c.l.b16 %v389
  %v1617 = vunpack.c.h.b16 %v389
  %v1618 = vunpack.c.l.b16 %v390
  %v1619 = vunpack.c.l.b16 %v391
  %v1620 = vunpack.c.h.b16 %v391
  %v1621 = vunpack.c.l.b16 %v392
  %v1622 = vunpack.c.h.b16 %v392
  %v1623 = vunpack.c.l.b16 %v393
  %v1624 = vunpack.c.h.b16 %v393
  %v1625 = vunpack.c.l.b16 %v394
  %v1626 = vunpack.c.l.b16 %v395
  %v1627 = vunpack.c.h.b16 %v395
  %v1628 = vunpack.c.l.b16 %v396
  %v1629 = vunpack.c.h.b16 %v396
  %v1630 = vunpack.c.l.b16 %v397
  %v1631 = vunpack.c.h.b16 %v397
  %v1632 = vunpack.c.l.b16 %v398
  %v1633 = vunpack.c.l.b16 %v399
  %v1634 = vunpack.c.h.b16 %v399
  %v1635 = vunpack.c.l.b16 %v400
  %v1636 = vunpack.c.h.b16 %v400
  %v1637 = vunpack.c.l.b16 %v401
  %v1638 = vunpack.c.h.b16 %v401
  %v1639 = vunpack.c.l.b16 %v402
  %v1640 = vunpack.c.l.b16 %v403
  %v1641 = vunpack.c.h.b16 %v403
  %v1642 = vunpack.c.l.b16 %v404
  %v1643 = vunpack.c.h.b16 %v404
  %v1644 = vunpack.c.l.b16 %v405
  %v1645 = vunpack.c.h.b16 %v405
  %v1646 = vunpack.c.l.b16 %v406
  %v1647 = vunpack.c.l.b16 %v407
  %v1648 = vunpack.c.h.b16 %v407
  %v1649 = vunpack.c.l.b16 %v408
  %v1650 = vunpack.c.h.b16 %v408
  %v1651 = vunpack.c.l.b16 %v409
  %v1652 = vunpack.c.h.b16 %v409
  %v1653 = vunpack.c.l.b16 %v410
  %v1654 = vunpack.c.l.b16 %v411
  %v1655 = vunpack.c.h.b16 %v411
  %v1656 = vunpack.c.l.b16 %v412
  %v1657 = vunpack.c.h.b16 %v412
  %v1658 = vunpack.c.l.b16 %v413
  %v1659 = vunpack.c.h.b16 %v413
  %v1660 = vunpack.c.l.b16 %v414
  %v1661 = vunpack.c.l.b16 %v415
  %v1662 = vunpack.c.h.b16 %v415
  %v1663 = vunpack.c.l.b16 %v416
  %v1664 = vunpack.c.h.b16 %v416
  %v1665 = vunpack.c.l.b16 %v417
  %v1666 = vunpack.c.h.b16 %v417
  %v1667 = vunpack.c.l.b16 %v418
  %v1668 = vunpack.c.l.b16 %v419
  %v1669 = vunpack.c.h.b16 %v419
  %v1670 = vunpack.c.l.b16 %v420
  %v1671 = vunpack.c.h.b16 %v420
  %v1672 = vunpack.c.l.b16 %v421
  %v1673 = vunpack.c.h.b16 %v421
  %v1674 = vunpack.c.l.b16 %v422
  %v1675 = vunpack.c.l.b16 %v423
  %v1676 = vunpack.c.h.b16 %v423
  %v1677 = vunpack.c.l.b16 %v424
  %v1678 = vunpack.c.h.b16 %v424
  %v1679 = vunpack.c.l.b16 %v425
  %v1680 = vunpack.c.h.b16 %v425
  %v1681 = vunpack.c.l.b16 %v426
  %v1682 = vunpack.c.l.b16 %v427
  %v1683 = vunpack.c.h.b16 %v427
  %v1684 = vunpack.c.l.b16 %v428
  %v1685 = vunpack.c.h.b16 %v428
  %v1686 = vunpack.c.l.b16 %v429
  %v1687 = vunpack.c.h.b16 %v429
  %v1688 = vunpack.c.l.b16 %v430
  %v1689 = vunpack.c.l.b16 %v431
  %v1690 = vunpack.c.h.b16 %v431
  %v1691 = vunpack.c.l.b16 %v432
  %v1692 = vunpack.c.h.b16 %v432
  %v1693 = vunpack.c.l.b16 %v433
  %v1694 = vunpack.c.h.b16 %v433
  %v1695 = vunpack.c.l.b16 %v434
  %v1696 = vunpack.c.l.b16 %v435
  %v1697 = vunpack.c.h.b16 %v435
  %v1698 = vunpack.c.l.b16 %v436
  %v1699 = vunpack.c.h.b16 %v436
  %v1700 = vunpack.c.l.b16 %v437
  %v1701 = vunpack.c.h.b16 %v437
  %v1702 = vunpack.c.l.b16 %v438
  %v1703 = vunpack.c.l.b16 %v439
  %v1704 = vunpack.c.h.b16 %v439
  %v1705 = vunpack.c.l.b16 %v440
  %v1706 = vunpack.c.h.b16 %v440
  %v1707 = vunpack.c.l.b16 %v441
  %v1708 = vunpack.c.h.b16 %v441
  %v1709 = vunpack.c.l.b16 %v442
  %v1710 = vunpack.c.l.b16 %v443
  %v1711 = vunpack.c.h.b16 %v443
  %v1712 = vunpack.c.l.b16 %v444
  %v1713 = vunpack.c.h.b16 %v444
  %v1714 = vunpack.c.l.b16 %v445
  %v1715 = vunpack.c.h.b16 %v445
  %v1716 = vunpack.c.l.b16 %v446
  %v1717 = vunpack.c.l.b16 %v447
  %v1718 = vunpack.c.h.b16 %v447
  %v1719 = vunpack.c.l.b16 %v448
  %v1720 = vunpack.c.h.b16 %v448
  %v1721 = vunpack.c.l.b16 %v449
  %v1722 = vunpack.c.h.b16 %v449
  %v1723 = vunpack.c.l.b16 %v450
  %v1724 = vunpack.c.l.b16 %v451
  %v1725 = vunpack.c.h.b16 %v451
  %v1726 = vunpack.c.l.b16 %v452
  %v1727 = vunpack.c.h.b16 %v452
  %v1728 = vunpack.c.l.b16 %v453
  %v1729 = vunpack.c.h.b16 %v453
  %v1730 = vunpack.c.l.b16 %v454
  %v1731 = vunpack.c.l.b16 %v455
  %v1732 = vunpack.c.h.b16 %v455
  %v1733 = vunpack.c.l.b16 %v456
  %v1734 = vunpack.c.h.b16 %v456
  %v1735 = vunpack.c.l.b16 %v457
  %v1736 = vunpack.c.h.b16 %v457
  %v1737 = vunpack.c.l.b16 %v458
  %v1738 = vunpack.c.l.b16 %v459
  %v1739 = vunpack.c.h.b16 %v459
  %v1740 = vunpack.c.l.b16 %v460
  %v1741 = vunpack.c.h.b16 %v460
  %v1742 = vunpack.c.l.b16 %v461
  %v1743 = vunpack.c.h.b16 %v461
  %v1744 = vunpack.c.l.b16 %v462
  %v1745 = vunpack.c.l.b16 %v463
  %v1746 = vunpack.c.h.b16 %v463
  %v1747 = vunpack.c.l.b16 %v464
  %v1748 = vunpack.c.h.b16 %v464
  %v1749 = vunpack.c.l.b16 %v465
  %v1750 = vunpack.c.h.b16 %v465
  %v1751 = vunpack.c.l.b16 %v466
  %v1752 = vunpack.c.l.b16 %v467
  %v1753 = vunpack.c.h.b16 %v467
  %v1754 = vunpack.c.l.b16 %v468
  %v1755 = vunpack.c.h.b16 %v468
  %v1756 = vunpack.c.l.b16 %v469
  %v1757 = vunpack.c.h.b16 %v469
  %v1758 = vunpack.c.l.b16 %v470
  %v1759 = vunpack.c.l.b16 %v471
  %v1760 = vunpack.c.h.b16 %v471
  %v1761 = vunpack.c.l.b16 %v472
  %v1762 = vunpack.c.h.b16 %v472
  %v1763 = vunpack.c.l.b16 %v473
  %v1764 = vunpack.c.h.b16 %v473
  %v1765 = vunpack.c.l.b16 %v474
  %v1766 = vunpack.c.l.b16 %v475
  %v1767 = vunpack.c.h.b16 %v475
  %v1768 = vunpack.c.l.b16 %v476
  %v1769 = vunpack.c.h.b16 %v476
  %v1770 = vunpack.c.l.b16 %v477
  %v1771 = vunpack.c.h.b16 %v477
  %v1772 = vunpack.c.l.b16 %v478
  %v1773 = vpack.c.b16 %v996, %v989
  %v1774 = vpack.c.b16 %v997, %v990
  %v1775 = vpack.c.b16 %v998, %v991
  %v1776 = vpack.c.b16 %v999, %v992
  %v1777 = vpack.c.b16 %v1000, %v993
  %v1778 = vpack.c.b16 %v1001, %v994
  %v1779 = vpack.c.b16 %v1002, %v995
  %v1780 = vpack.c.b16 %v1010, %v1003
  %v1781 = vpack.c.b16 %v1011, %v1004
  %v1782 = vpack.c.b16 %v1012, %v1005
  %v1783 = vpack.c.b16 %v1013, %v1006
  %v1784 = vpack.c.b16 %v1014, %v1007
  %v1785 = vpack.c.b16 %v1015, %v1008
  %v1786 = vpack.c.b16 %v1016, %v1009
  %v1787 = vpack.c.b16 %v1024, %v1017
  %v1788 = vpack.c.b16 %v1025, %v1018
  %v1789 = vpack.c.b16 %v1026, %v1019
  %v1790 = vpack.c.b16 %v1027, %v1020
  %v1791 = vpack.c.b16 %v1028, %v1021
  %v1792 = vpack.c.b16 %v1029, %v1022
  %v1793 = vpack.c.b16 %v1030, %v1023
  %v1794 = vpack.c.b16 %v1038, %v1031
  %v1795 = vpack.c.b16 %v1039, %v1032
  %v1796 = vpack.c.b16 %v1040, %v1033
  %v1797 = vpack.c.b16 %v1041, %v1034
  %v1798 = vpack.c.b16 %v1042, %v1035
  %v1799 = vpack.c.b16 %v1043, %v1036
  %v1800 = vpack.c.b16 %v1044, %v1037
  %v1801 = vpack.c.b16 %v1052, %v1045
  %v1802 = vpack.c.b16 %v1053, %v1046
  %v1803 = vpack.c.b16 %v1054, %v1047
  %v1804 = vpack.c.b16 %v1055, %v1048
  %v1805 = vpack.c.b16 %v1056, %v1049
  %v1806 = vpack.c.b16 %v1057, %v1050
  %v1807 = vpack.c.b16 %v1058, %v1051
  %v1808 = vpack.c.b16 %v1066, %v1059
  %v1809 = vpack.c.b16 %v1067, %v1060
  %v1810 = vpack.c.b16 %v1068, %v1061
  %v1811 = vpack.c.b16 %v1069, %v1062
  %v1812 = vpack.c.b16 %v1070, %v1063
  %v1813 = vpack.c.b16 %v1071, %v1064
  %v1814 = vpack.c.b16 %v1072, %v1065
  %v1815 = vpack.c.b16 %v1080, %v1073
  %v1816 = vpack.c.b16 %v1081, %v1074
  %v1817 = vpack.c.b16 %v1082, %v1075
  %v1818 = vpack.c.b16 %v1083, %v1076
  %v1819 = vpack.c.b16 %v1084, %v1077
  %v1820 = vpack.c.b16 %v1085, %v1078
  %v1821 = vpack.c.b16 %v1086, %v1079
  %v1822 = vpack.c.b16 %v1094, %v1087
  %v1823 = vpack.c.b16 %v1095, %v1088
  %v1824 = vpack.c.b16 %v1096, %v1089
  %v1825 = vpack.c.b16 %v1097, %v1090
  %v1826 = vpack.c.b16 %v1098, %v1091
  %v1827 = vpack.c.b16 %v1099, %v1092
  %v1828 = vpack.c.b16 %v1100, %v1093
  %v1829 = vpack.c.b16 %v1108, %v1101
  %v1830 = vpack.c.b16 %v1109, %v1102
  %v1831 = vpack.c.b16 %v1110, %v1103
  %v1832 = vpack.c.b16 %v1111, %v1104
  %v1833 = vpack.c.b16 %v1112, %v1105
  %v1834 = vpack.c.b16 %v1113, %v1106
  %v1835 = vpack.c.b16 %v1114, %v1107
  %v1836 = vpack.c.b16 %v1122, %v1115
  %v1837 = vpack.c.b16 %v1123, %v1116
  %v1838 = vpack.c.b16 %v1124, %v1117
  %v1839 = vpack.c.b16 %v1125, %v1118
  %v1840 = vpack.c.b16 %v1126, %v1119
  %v1841 = vpack.c.b16 %v1127, %v1120
  %v1842 = vpack.c.b16 %v1128, %v1121
  %v1843 = vpack.c.b16 %v1136, %v1129
  %v1844 = vpack.c.b16 %v1137, %v1130
  %v1845 = vpack.c.b16 %v1138, %v1131
  %v1846 = vpack.c.b16 %v1139, %v1132
  %v1847 = vpack.c.b16 %v1140, %v1133
  %v1848 = vpack.c.b16 %v1141, %v1134
  %v1849 = vpack.c.b16 %v1142, %v1135
  %v1850 = vpack.c.b16 %v1150, %v1143
  %v1851 = vpack.c.b16 %v1151, %v1144
  %v1852 = vpack.c.b16 %v1152, %v1145
  %v1853 = vpack.c.b16 %v1153, %v1146
  %v1854 = vpack.c.b16 %v1154, %v1147
  %v1855 = vpack.c.b16 %v1155, %v1148
  %v1856 = vpack.c.b16 %v1156, %v1149
  %v1857 = vpack.c.b16 %v1164, %v1157
  %v1858 = vpack.c.b16 %v1165, %v1158
  %v1859 = vpack.c.b16 %v1166, %v1159
  %v1860 = vpack.c.b16 %v1167, %v1160
  %v1861 = vpack.c.b16 %v1168, %v1161
  %v1862 = vpack.c.b16 %v1169, %v1162
  %v1863 = vpack.c.b16 %v1170, %v1163
  %v1864 = vpack.c.b16 %v1178, %v1171
  %v1865 = vpack.c.b16 %v1179, %v1172
  %v1866 = vpack.c.b16 %v1180, %v1173
  %v1867 = vpack.c.b16 %v1181, %v1174
  %v1868 = vpack.c.b16 %v1182, %v1175
  %v1869 = vpack.c.b16 %v1183, %v1176
  %v1870 = vpack.c.b16 %v1184, %v1177
  %v1871 = vpack.c.b16 %v1192, %v1185
  %v1872 = vpack.c.b16 %v1193, %v1186
  %v1873 = vpack.c.b16 %v1194, %v1187
  %v1874 = vpack.c.b16 %v1195, %v1188
  %v1875 = vpack.c.b16 %v1196, %v1189
  %v1876 = vpack.c.b16 %v1197, %v1190
  %v1877 = vpack.c.b16 %v1198, %v1191
  %v1878 = vpack.c.b16 %v1206, %v1199
  %v1879 = vpack.c.b16 %v1207, %v1200
  %v1880 = vpack.c.b16 %v1208, %v1201
  %v1881 = vpack.c.b16 %v1209, %v1202
  %v1882 = vpack.c.b16 %v1210, %v1203
  %v1883 = vpack.c.b16 %v1211, %v1204
  %v1884 = vpack.c.b16 %v1212, %v1205
  %v1885 = vpack.c.b16 %v1220, %v1213
  %v1886 = vpack.c.b16 %v1221, %v1214
  %v1887 = vpack.c.b16 %v1222, %v1215
  %v1888 = vpack.c.b16 %v1223, %v1216
  %v1889 = vpack.c.b16 %v1224, %v1217
  %v1890 = vpack.c.b16 %v1225, %v1218
  %v1891 = vpack.c.b16 %v1226, %v1219
  %v1892 = vpack.c.b16 %v1234, %v1227
  %v1893 = vpack.c.b16 %v1235, %v1228
  %v1894 = vpack.c.b16 %v1236, %v1229
  %v1895 = vpack.c.b16 %v1237, %v1230
  %v1896 = vpack.c.b16 %v1238, %v1231
  %v1897 = vpack.c.b16 %v1239, %v1232
  %v1898 = vpack.c.b16 %v1240, %v1233
  %v1899 = vpack.c.b16 %v1248, %v1241
  %v1900 = vpack.c.b16 %v1249, %v1242
  %v1901 = vpack.c.b16 %v1250, %v1243
  %v1902 = vpack.c.b16 %v1251, %v1244
  %v1903 = vpack.c.b16 %v1252, %v1245
  %v1904 = vpack.c.b16 %v1253, %v1246
  %v1905 = vpack.c.b16 %v1254, %v1247
  %v1906 = vpack.c.b16 %v1262, %v1255
  %v1907 = vpack.c.b16 %v1263, %v1256
  %v1908 = vpack.c.b16 %v1264, %v1257
  %v1909 = vpack.c.b16 %v1265, %v1258
  %v1910 = vpack.c.b16 %v1266, %v1259
  %v1911 = vpack.c.b16 %v1267, %v1260
  %v1912 = vpack.c.b16 %v1268, %v1261
  %v1913 = vpack.c.b16 %v1276, %v1269
  %v1914 = vpack.c.b16 %v1277, %v1270
  %v1915 = vpack.c.b16 %v1278, %v1271
  %v1916 = vpack.c.b16 %v1279, %v1272
  %v1917 = vpack.c.b16 %v1280, %v1273
  %v1918 = vpack.c.b16 %v1281, %v1274
  %v1919 = vpack.c.b16 %v1282, %v1275
  %v1920 = vpack.c.b16 %v1290, %v1283
  %v1921 = vpack.c.b16 %v1291, %v1284
  %v1922 = vpack.c.b16 %v1292, %v1285
  %v1923 = vpack.c.b16 %v1293, %v1286
  %v1924 = vpack.c.b16 %v1294, %v1287
  %v1925 = vpack.c.b16 %v1295, %v1288
  %v1926 = vpack.c.b16 %v1296, %v1289
  %v1927 = vpack.c.b16 %v1304, %v1297
  %v1928 = vpack.c.b16 %v1305, %v1298
  %v1929 = vpack.c.b16 %v1306, %v1299
  %v1930 = vpack.c.b16 %v1307, %v1300
  %v1931 = vpack.c.b16 %v1308, %v1301
  %v1932 = vpack.c.b16 %v1309, %v1302
  %v1933 = vpack.c.b16 %v1310, %v1303
  %v1934 = vpack.c.b16 %v1318, %v1311
  %v1935 = vpack.c.b16 %v1319, %v1312
  %v1936 = vpack.c.b16 %v1320, %v1313
  %v1937 = vpack.c.b16 %v1321, %v1314
  %v1938 = vpack.c.b16 %v1322, %v1315
  %v1939 = vpack.c.b16 %v1323, %v1316
  %v1940 = vpack.c.b16 %v1324, %v1317
  %v1941 = vpack.c.b16 %v1332, %v1325
  %v1942 = vpack.c.b16 %v1333, %v1326
  %v1943 = vpack.c.b16 %v1334, %v1327
  %v1944 = vpack.c.b16 %v1335, %v1328
  %v1945 = vpack.c.b16 %v1336, %v1329
  %v1946 = vpack.c.b16 %v1337, %v1330
  %v1947 = vpack.c.b16 %v1338, %v1331
  %v1948 = vpack.c.b16 %v1346, %v1339
  %v1949 = vpack.c.b16 %v1347, %v1340
  %v1950 = vpack.c.b16 %v1348, %v1341
  %v1951 = vpack.c.b16 %v1349, %v1342
  %v1952 = vpack.c.b16 %v1350, %v1343
  %v1953 = vpack.c.b16 %v1351, %v1344
  %v1954 = vpack.c.b16 %v1352, %v1345
  %v1955 = vpack.c.b16 %v1360, %v1353
  %v1956 = vpack.c.b16 %v1361, %v1354
  %v1957 = vpack.c.b16 %v1362, %v1355
  %v1958 = vpack.c.b16 %v1363, %v1356
  %v1959 = vpack.c.b16 %v1364, %v1357
  %v1960 = vpack.c.b16 %v1365, %v1358
  %v1961 = vpack.c.b16 %v1366, %v1359
  %v1962 = vpack.c.b16 %v1374, %v1367
  %v1963 = vpack.c.b16 %v1375, %v1368
  %v1964 = vpack.c.b16 %v1376, %v1369
  %v1965 = vpack.c.b16 %v1377, %v1370
  %v1966 = vpack.c.b16 %v1378, %v1371
  %v1967 = vpack.c.b16 %v1379, %v1372
  %v1968 = vpack.c.b16 %v1380, %v1373
  %v1969 = vpack.c.b16 %v1388, %v1381
  %v1970 = vpack.c.b16 %v1389, %v1382
  %v1971 = vpack.c.b16 %v1390, %v1383
  %v1972 = vpack.c.b16 %v1391, %v1384
  %v1973 = vpack.c.b16 %v1392, %v1385
  %v1974 = vpack.c.b16 %v1393, %v1386
  %v1975 = vpack.c.b16 %v1394, %v1387
  %v1976 = vpack.c.b16 %v1402, %v1395
  %v1977 = vpack.c.b16 %v1403, %v1396
  %v1978 = vpack.c.b16 %v1404, %v1397
  %v1979 = vpack.c.b16 %v1405, %v1398
  %v1980 = vpack.c.b16 %v1406, %v1399
  %v1981 = vpack.c.b16 %v1407, %v1400
  %v1982 = vpack.c.b16 %v1408, %v1401
  %v1983 = vpack.c.b16 %v1416, %v1409
  %v1984 = vpack.c.b16 %v1417, %v1410
  %v1985 = vpack.c.b16 %v1418, %v1411
  %v1986 = vpack.c.b16 %v1419, %v1412
  %v1987 = vpack.c.b16 %v1420, %v1413
  %v1988 = vpack.c.b16 %v1421, %v1414
  %v1989 = vpack.c.b16 %v1422, %v1415
  %v1990 = vpack.c.b16 %v1430, %v1423
  %v1991 = vpack.c.b16 %v1431, %v1424
  %v1992 = vpack.c.b16 %v1432, %v1425
  %v1993 = vpack.c.b16 %v1433, %v1426
  %v1994 = vpack.c.b16 %v1434, %v1427
  %v1995 = vpack.c.b16 %v1435, %v1428
  %v1996 = vpack.c.b16 %v1436, %v1429
  %v1997 = vpack.c.b16 %v1444, %v1437
  %v1998 = vpack.c.b16 %v1445, %v1438
  %v1999 = vpack.c.b16 %v1446, %v1439
  %v2000 = vpack.c.b16 %v1447, %v1440
  %v2001 = vpack.c.b16 %v1448, %v1441
  %v2002 = vpack.c.b16 %v1449, %v1442
  %v2003 = vpack.c.b16 %v1450, %v1443
  %v2004 = vpack.c.b16 %v1458, %v1451
  %v2005 = vpack.c.b16 %v1459, %v1452
  %v2006 = vpack.c.b16 %v1460, %v1453
  %v2007 = vpack.c.b16 %v1461, %v1454
  %v2008 = vpack.c.b16 %v1462, %v1455
  %v2009 = vpack.c.b16 %v1463, %v1456
  %v2010 = vpack.c.b16 %v1464, %v1457
  %v2011 = vpack.c.b16 %v1472, %v1465
  %v2012 = vpack.c.b16 %v1473, %v1466
  %v2013 = vpack.c.b16 %v1474, %v1467
  %v2014 = vpack.c.b16 %v1475, %v1468
  %v2015 = vpack.c.b16 %v1476, %v1469
  %v2016 = vpack.c.b16 %v1477, %v1470
  %v2017 = vpack.c.b16 %v1478, %v1471
  %v2018 = vpack.c.b16 %v1486, %v1479
  %v2019 = vpack.c.b16 %v1487, %v1480
  %v2020 = vpack.c.b16 %v1488, %v1481
  %v2021 = vpack.c.b16 %v1489, %v1482
  %v2022 = vpack.c.b16 %v1490, %v1483
  %v2023 = vpack.c.b16 %v1491, %v1484
  %v2024 = vpack.c.b16 %v1492, %v1485
  %v2025 = vpack.c.b16 %v1500, %v1493
  %v2026 = vpack.c.b16 %v1501, %v1494
  %v2027 = vpack.c.b16 %v1502, %v1495
  %v2028 = vpack.c.b16 %v1503, %v1496
  %v2029 = vpack.c.b16 %v1504, %v1497
  %v2030 = vpack.c.b16 %v1505, %v1498
  %v2031 = vpack.c.b16 %v1506, %v1499
  %v2032 = vpack.c.b16 %v1514, %v1507
  %v2033 = vpack.c.b16 %v1515, %v1508
  %v2034 = vpack.c.b16 %v1516, %v1509
  %v2035 = vpack.c.b16 %v1517, %v1510
  %v2036 = vpack.c.b16 %v1518, %v1511
  %v2037 = vpack.c.b16 %v1519, %v1512
  %v2038 = vpack.c.b16 %v1520, %v1513
  %v2039 = vpack.c.b16 %v1528, %v1521
  %v2040 = vpack.c.b16 %v1529, %v1522
  %v2041 = vpack.c.b16 %v1530, %v1523
  %v2042 = vpack.c.b16 %v1531, %v1524
  %v2043 = vpack.c.b16 %v1532, %v1525
  %v2044 = vpack.c.b16 %v1533, %v1526
  %v2045 = vpack.c.b16 %v1534, %v1527
  %v2046 = vpack.c.b16 %v1542, %v1535
  %v2047 = vpack.c.b16 %v1543, %v1536
  %v2048 = vpack.c.b16 %v1544, %v1537
  %v2049 = vpack.c.b16 %v1545, %v1538
  %v2050 = vpack.c.b16 %v1546, %v1539
  %v2051 = vpack.c.b16 %v1547, %v1540
  %v2052 = vpack.c.b16 %v1548, %v1541
  %v2053 = vpack.c.b16 %v1556, %v1549
  %v2054 = vpack.c.b16 %v1557, %v1550
  %v2055 = vpack.c.b16 %v1558, %v1551
  %v2056 = vpack.c.b16 %v1559, %v1552
  %v2057 = vpack.c.b16 %v1560, %v1553
  %v2058 = vpack.c.b16 %v1561, %v1554
  %v2059 = vpack.c.b16 %v1562, %v1555
  %v2060 = vpack.c.b16 %v1570, %v1563
  %v2061 = vpack.c.b16 %v1571, %v1564
  %v2062 = vpack.c.b16 %v1572, %v1565
  %v2063 = vpack.c.b16 %v1573, %v1566
  %v2064 = vpack.c.b16 %v1574, %v1567
  %v2065 = vpack.c.b16 %v1575, %v1568
  %v2066 = vpack.c.b16 %v1576, %v1569
  %v2067 = vpack.c.b16 %v1584, %v1577
  %v2068 = vpack.c.b16 %v1585, %v1578
  %v2069 = vpack.c.b16 %v1586, %v1579
  %v2070 = vpack.c.b16 %v1587, %v1580
  %v2071 = vpack.c.b16 %v1588, %v1581
  %v2072 = vpack.c.b16 %v1589, %v1582
  %v2073 = vpack.c.b16 %v1590, %v1583
  %v2074 = vpack.c.b16 %v1598, %v1591
  %v2075 = vpack.c.b16 %v1599, %v1592
  %v2076 = vpack.c.b16 %v1600, %v1593
  %v2077 = vpack.c.b16 %v1601, %v1594
  %v2078 = vpack.c.b16 %v1602, %v1595
  %v2079 = vpack.c.b16 %v1603, %v1596
  %v2080 = vpack.c.b16 %v1604, %v1597
  %v2081 = vpack.c.b16 %v1612, %v1605
  %v2082 = vpack.c.b16 %v1613, %v1606
  %v2083 = vpack.c.b16 %v1614, %v1607
  %v2084 = vpack.c.b16 %v1615, %v1608
  %v2085 = vpack.c.b16 %v1616, %v1609
  %v2086 = vpack.c.b16 %v1617, %v1610
  %v2087 = vpack.c.b16 %v1618, %v1611
  %v2088 = vpack.c.b16 %v1626, %v1619
  %v2089 = vpack.c.b16 %v1627, %v1620
  %v2090 = vpack.c.b16 %v1628, %v1621
  %v2091 = vpack.c.b16 %v1629, %v1622
  %v2092 = vpack.c.b16 %v1630, %v1623
  %v2093 = vpack.c.b16 %v1631, %v1624
  %v2094 = vpack.c.b16 %v1632, %v1625
  %v2095 = vpack.c.b16 %v1640, %v1633
  %v2096 = vpack.c.b16 %v1641, %v1634
  %v2097 = vpack.c.b16 %v1642, %v1635
  %v2098 = vpack.c.b16 %v1643, %v1636
  %v2099 = vpack.c.b16 %v1644, %v1637
  %v2100 = vpack.c.b16 %v1645, %v1638
  %v2101 = vpack.c.b16 %v1646, %v1639
  %v2102 = vpack.c.b16 %v1654, %v1647
  %v2103 = vpack.c.b16 %v1655, %v1648
  %v2104 = vpack.c.b16 %v1656, %v1649
  %v2105 = vpack.c.b16 %v1657, %v1650
  %v2106 = vpack.c.b16 %v1658, %v1651
  %v2107 = vpack.c.b16 %v1659, %v1652
  %v2108 = vpack.c.b16 %v1660, %v1653
  %v2109 = vpack.c.b16 %v1668, %v1661
  %v2110 = vpack.c.b16 %v1669, %v1662
  %v2111 = vpack.c.b16 %v1670, %v1663
  %v2112 = vpack.c.b16 %v1671, %v1664
  %v2113 = vpack.c.b16 %v1672, %v1665
  %v2114 = vpack.c.b16 %v1673, %v1666
  %v2115 = vpack.c.b16 %v1674, %v1667
  %v2116 = vpack.c.b16 %v1682, %v1675
  %v2117 = vpack.c.b16 %v1683, %v1676
  %v2118 = vpack.c.b16 %v1684, %v1677
  %v2119 = vpack.c.b16 %v1685, %v1678
  %v2120 = vpack.c.b16 %v1686, %v1679
  %v2121 = vpack.c.b16 %v1687, %v1680
  %v2122 = vpack.c.b16 %v1688, %v1681
  %v2123 = vpack.c.b16 %v1696, %v1689
  %v2124 = vpack.c.b16 %v1697, %v1690
  %v2125 = vpack.c.b16 %v1698, %v1691
  %v2126 = vpack.c.b16 %v1699, %v1692
  %v2127 = vpack.c.b16 %v1700, %v1693
  %v2128 = vpack.c.b16 %v1701, %v1694
  %v2129 = vpack.c.b16 %v1702, %v1695
  %v2130 = vpack.c.b16 %v1710, %v1703
  %v2131 = vpack.c.b16 %v1711, %v1704
  %v2132 = vpack.c.b16 %v1712, %v1705
  %v2133 = vpack.c.b16 %v1713, %v1706
  %v2134 = vpack.c.b16 %v1714, %v1707
  %v2135 = vpack.c.b16 %v1715, %v1708
  %v2136 = vpack.c.b16 %v1716, %v1709
  %v2137 = vpack.c.b16 %v1724, %v1717
  %v2138 = vpack.c.b16 %v1725, %v1718
  %v2139 = vpack.c.b16 %v1726, %v1719
  %v2140 = vpack.c.b16 %v1727, %v1720
  %v2141 = vpack.c.b16 %v1728, %v1721
  %v2142 = vpack.c.b16 %v1729, %v1722
  %v2143 = vpack.c.b16 %v1730, %v1723
  %v2144 = vpack.c.b16 %v1738, %v1731
  %v2145 = vpack.c.b16 %v1739, %v1732
  %v2146 = vpack.c.b16 %v1740, %v1733
  %v2147 = vpack.c.b16 %v1741, %v1734
  %v2148 = vpack.c.b16 %v1742, %v1735
  %v2149 = vpack.c.b16 %v1743, %v1736
  %v2150 = vpack.c.b16 %v1744, %v1737
  %v2151 = vpack.c.b16 %v1752, %v1745
  %v2152 = vpack.c.b16 %v1753, %v1746
  %v2153 = vpack.c.b16 %v1754, %v1747
  %v2154 = vpack.c.b16 %v1755, %v1748
  %v2155 = vpack.c.b16 %v1756, %v1749
  %v2156 = vpack.c.b16 %v1757, %v1750
  %v2157 = vpack.c.b16 %v1758, %v1751
  %v2158 = vpack.c.b16 %v1766, %v1759
  %v2159 = vpack.c.b16 %v1767, %v1760
  %v2160 = vpack.c.b16 %v1768, %v1761
  %v2161 = vpack.c.b16 %v1769, %v1762
  %v2162 = vpack.c.b16 %v1770, %v1763
  %v2163 = vpack.c.b16 %v1771, %v1764
  %v2164 = vpack.c.b16 %v1772, %v1765
  %2557 = vmatprep.subr.bf16.mxu0 %v1774
  %2558 = vmatpush1.bf16.msra.mxu0 %v1773
  %2559 = vmatprep.subr.bf16.mxu0 %v1781
  %2560 = vmatpush1.bf16.msra.mxu0 %v1780
  %2561 = vmatprep.subr.bf16.mxu0 %v1788
  %2562 = vmatpush1.bf16.msra.mxu0 %v1787
  %2563 = vmatprep.subr.bf16.mxu0 %v1795
  %2564 = vmatpush1.bf16.msra.mxu0 %v1794
  %2565 = vmatprep.subr.bf16.mxu0 %v1802
  %2566 = vmatpush1.bf16.msra.mxu0 %v1801
  %2567 = vmatprep.subr.bf16.mxu0 %v1809
  %2568 = vmatpush1.bf16.msra.mxu0 %v1808
  %2569 = vmatprep.subr.bf16.mxu0 %v1816
  %2570 = vmatpush1.bf16.msra.mxu0 %v1815
  %2571 = vmatprep.subr.bf16.mxu0 %v1823
  %2572 = vmatpush1.bf16.msra.mxu0 %v1822
  %2573 = vmatprep.subr.bf16.mxu0 %v1830
  %2574 = vmatpush1.bf16.msra.mxu0 %v1829
  %2575 = vmatprep.subr.bf16.mxu0 %v1837
  %2576 = vmatpush1.bf16.msra.mxu0 %v1836
  %2577 = vmatprep.subr.bf16.mxu0 %v1844
  %2578 = vmatpush1.bf16.msra.mxu0 %v1843
  %2579 = vmatprep.subr.bf16.mxu0 %v1851
  %2580 = vmatpush1.bf16.msra.mxu0 %v1850
  %2581 = vmatprep.subr.bf16.mxu0 %v1858
  %2582 = vmatpush1.bf16.msra.mxu0 %v1857
  %2583 = vmatprep.subr.bf16.mxu0 %v1865
  %2584 = vmatpush1.bf16.msra.mxu0 %v1864
  %2585 = vmatprep.subr.bf16.mxu0 %v1872
  %2586 = vmatpush1.bf16.msra.mxu0 %v1871
  %2587 = vmatprep.subr.bf16.mxu0 %v1879
  %2588 = vmatpush1.bf16.msra.mxu0 %v1878
  %2589 = vmatprep.mubr.bf16.mxu0 %v528
  %2590 = vmatmul.mubr.bf16.gmra.mrb[0].mxu0 %v527
  %v2591 = vpop.f32.mrb[0].mxu0
  %v2592 = vadd.f32 %v484, %v2591
  %v2593 = vpop.f32.mrb[0].mxu0
  %v2594 = vadd.f32 %v488, %v2593
  %v2595 = vpop.f32.mrb[0].mxu0
  %v2596 = vpop.f32.mrb[0].mxu0
  %2597 = vdwg.mxu0
  %2598 = vmatprep.subr.bf16.mxu0 %v1886
  %2599 = vmatpush1.bf16.msra.mxu0 %v1885
  %2600 = vmatprep.subr.bf16.mxu0 %v1893
  %2601 = vmatpush1.bf16.msra.mxu0 %v1892
  %2602 = vmatprep.subr.bf16.mxu0 %v1900
  %2603 = vmatpush1.bf16.msra.mxu0 %v1899
  %2604 = vmatprep.subr.bf16.mxu0 %v1907
  %2605 = vmatpush1.bf16.msra.mxu0 %v1906
  %2606 = vmatprep.subr.bf16.mxu0 %v1914
  %2607 = vmatpush1.bf16.msra.mxu0 %v1913
  %2608 = vmatprep.subr.bf16.mxu0 %v1921
  %2609 = vmatpush1.bf16.msra.mxu0 %v1920
  %2610 = vmatprep.subr.bf16.mxu0 %v1928
  %2611 = vmatpush1.bf16.msra.mxu0 %v1927
  %2612 = vmatprep.subr.bf16.mxu0 %v1935
  %2613 = vmatpush1.bf16.msra.mxu0 %v1934
  %2614 = vmatprep.subr.bf16.mxu0 %v1942
  %2615 = vmatpush1.bf16.msra.mxu0 %v1941
  %2616 = vmatprep.subr.bf16.mxu0 %v1949
  %2617 = vmatpush1.bf16.msra.mxu0 %v1948
  %2618 = vmatprep.subr.bf16.mxu0 %v1956
  %2619 = vmatpush1.bf16.msra.mxu0 %v1955
  %2620 = vmatprep.subr.bf16.mxu0 %v1963
  %2621 = vmatpush1.bf16.msra.mxu0 %v1962
  %2622 = vmatprep.subr.bf16.mxu0 %v1970
  %2623 = vmatpush1.bf16.msra.mxu0 %v1969
  %2624 = vmatprep.subr.bf16.mxu0 %v1977
  %2625 = vmatpush1.bf16.msra.mxu0 %v1976
  %2626 = vmatprep.subr.bf16.mxu0 %v1984
  %2627 = vmatpush1.bf16.msra.mxu0 %v1983
  %2628 = vmatprep.subr.bf16.mxu0 %v1991
  %2629 = vmatpush1.bf16.msra.mxu0 %v1990
  %2630 = vmatprep.mubr.bf16.mxu0 %v530
  %2631 = vmatmul.mubr.bf16.gmra.mrb[0].mxu0 %v529
  %v2632 = vpop.f32.mrb[0].mxu0
  %v2633 = vadd.f32 %v2592, %v2632
  %v2634 = vpop.f32.mrb[0].mxu0
  %v2635 = vadd.f32 %v2594, %v2634
  %v2636 = vpop.f32.mrb[0].mxu0
  %v2637 = vpop.f32.mrb[0].mxu0
  %2638 = vdwg.mxu0
  %2639 = vmatprep.subr.bf16.mxu0 %v1998
  %2640 = vmatpush1.bf16.msra.mxu0 %v1997
  %2641 = vmatprep.subr.bf16.mxu0 %v2005
  %2642 = vmatpush1.bf16.msra.mxu0 %v2004
  %2643 = vmatprep.subr.bf16.mxu0 %v2012
  %2644 = vmatpush1.bf16.msra.mxu0 %v2011
  %2645 = vmatprep.subr.bf16.mxu0 %v2019
  %2646 = vmatpush1.bf16.msra.mxu0 %v2018
  %2647 = vmatprep.subr.bf16.mxu0 %v2026
  %2648 = vmatpush1.bf16.msra.mxu0 %v2025
  %2649 = vmatprep.subr.bf16.mxu0 %v2033
  %2650 = vmatpush1.bf16.msra.mxu0 %v2032
  %2651 = vmatprep.subr.bf16.mxu0 %v2040
  %2652 = vmatpush1.bf16.msra.mxu0 %v2039
  %2653 = vmatprep.subr.bf16.mxu0 %v2047
  %2654 = vmatpush1.bf16.msra.mxu0 %v2046
  %2655 = vmatprep.subr.bf16.mxu0 %v2054
  %2656 = vmatpush1.bf16.msra.mxu0 %v2053
  %2657 = vmatprep.subr.bf16.mxu0 %v2061
  %2658 = vmatpush1.bf16.msra.mxu0 %v2060
  %2659 = vmatprep.subr.bf16.mxu0 %v2068
  %2660 = vmatpush1.bf16.msra.mxu0 %v2067
  %2661 = vmatprep.subr.bf16.mxu0 %v2075
  %2662 = vmatpush1.bf16.msra.mxu0 %v2074
  %2663 = vmatprep.subr.bf16.mxu0 %v2082
  %2664 = vmatpush1.bf16.msra.mxu0 %v2081
  %2665 = vmatprep.subr.bf16.mxu0 %v2089
  %2666 = vmatpush1.bf16.msra.mxu0 %v2088
  %2667 = vmatprep.subr.bf16.mxu0 %v2096
  %2668 = vmatpush1.bf16.msra.mxu0 %v2095
  %2669 = vmatprep.subr.bf16.mxu0 %v2103
  %2670 = vmatpush1.bf16.msra.mxu0 %v2102
  %2671 = vmatprep.mubr.bf16.mxu0 %v532
  %2672 = vmatmul.mubr.bf16.gmra.mrb[0].mxu0 %v531
  %v2673 = vpop.f32.mrb[0].mxu0
  %v2674 = vadd.f32 %v2633, %v2673
  %v2675 = vpop.f32.mrb[0].mxu0
  %v2676 = vadd.f32 %v2635, %v2675
  %v2677 = vpop.f32.mrb[0].mxu0
  %v2678 = vpop.f32.mrb[0].mxu0
  %2679 = vdwg.mxu0
  %2680 = vmatprep.subr.bf16.mxu0 %v2110
  %2681 = vmatpush1.bf16.msra.mxu0 %v2109
  %2682 = vmatprep.subr.bf16.mxu0 %v2117
  %2683 = vmatpush1.bf16.msra.mxu0 %v2116
  %2684 = vmatprep.subr.bf16.mxu0 %v2124
  %2685 = vmatpush1.bf16.msra.mxu0 %v2123
  %2686 = vmatprep.subr.bf16.mxu0 %v2131
  %2687 = vmatpush1.bf16.msra.mxu0 %v2130
  %2688 = vmatprep.subr.bf16.mxu0 %v2138
  %2689 = vmatpush1.bf16.msra.mxu0 %v2137
  %2690 = vmatprep.subr.bf16.mxu0 %v2145
  %2691 = vmatpush1.bf16.msra.mxu0 %v2144
  %2692 = vmatprep.subr.bf16.mxu0 %v2152
  %2693 = vmatpush1.bf16.msra.mxu0 %v2151
  %2694 = vmatprep.subr.bf16.mxu0 %v2159
  %2695 = vmatpush1.bf16.msra.mxu0 %v2158
  %2696 = vmatprep.subr.bf16.mxu0 0
  %2697 = vmatpush1.bf16.msra.mxu0 0
  %2698 = vmatprep.subr.bf16.mxu0 0
  %2699 = vmatpush1.bf16.msra.mxu0 0
  %2700 = vmatprep.subr.bf16.mxu0 0
  %2701 = vmatpush1.bf16.msra.mxu0 0
  %2702 = vmatprep.subr.bf16.mxu0 0
  %2703 = vmatpush1.bf16.msra.mxu0 0
  %2704 = vmatprep.subr.bf16.mxu0 0
  %2705 = vmatpush1.bf16.msra.mxu0 0
  %2706 = vmatprep.subr.bf16.mxu0 0
  %2707 = vmatpush1.bf16.msra.mxu0 0
  %2708 = vmatprep.subr.bf16.mxu0 0
  %2709 = vmatpush1.bf16.msra.mxu0 0
  %2710 = vmatprep.subr.bf16.mxu0 0
  %2711 = vmatpush1.bf16.msra.mxu0 0
  %2712 = vmatprep.mubr.bf16.mxu0 0
  %2713 = vmatmul.mubr.bf16.gmra.mrb[0].mxu0 %v533
  %v2714 = vpop.f32.mrb[0].mxu0
  %v2715 = vadd.f32 %v2674, %v2714
  %v2716 = vpop.f32.mrb[0].mxu0
  %v2717 = vadd.f32 %v2676, %v2716
  %v2718 = vpop.f32.mrb[0].mxu0
  %v2719 = vpop.f32.mrb[0].mxu0
  %2720 = vdwg.mxu0
  %2721 = vmatprep.subr.bf16.mxu0 %v1776
  %2722 = vmatpush1.bf16.msra.mxu0 %v1775
  %2723 = vmatprep.subr.bf16.mxu0 %v1783
  %2724 = vmatpush1.bf16.msra.mxu0 %v1782
  %2725 = vmatprep.subr.bf16.mxu0 %v1790
  %2726 = vmatpush1.bf16.msra.mxu0 %v1789
  %2727 = vmatprep.subr.bf16.mxu0 %v1797
  %2728 = vmatpush1.bf16.msra.mxu0 %v1796
  %2729 = vmatprep.subr.bf16.mxu0 %v1804
  %2730 = vmatpush1.bf16.msra.mxu0 %v1803
  %2731 = vmatprep.subr.bf16.mxu0 %v1811
  %2732 = vmatpush1.bf16.msra.mxu0 %v1810
  %2733 = vmatprep.subr.bf16.mxu0 %v1818
  %2734 = vmatpush1.bf16.msra.mxu0 %v1817
  %2735 = vmatprep.subr.bf16.mxu0 %v1825
  %2736 = vmatpush1.bf16.msra.mxu0 %v1824
  %2737 = vmatprep.subr.bf16.mxu0 %v1832
  %2738 = vmatpush1.bf16.msra.mxu0 %v1831
  %2739 = vmatprep.subr.bf16.mxu0 %v1839
  %2740 = vmatpush1.bf16.msra.mxu0 %v1838
  %2741 = vmatprep.subr.bf16.mxu0 %v1846
  %2742 = vmatpush1.bf16.msra.mxu0 %v1845
  %2743 = vmatprep.subr.bf16.mxu0 %v1853
  %2744 = vmatpush1.bf16.msra.mxu0 %v1852
  %2745 = vmatprep.subr.bf16.mxu0 %v1860
  %2746 = vmatpush1.bf16.msra.mxu0 %v1859
  %2747 = vmatprep.subr.bf16.mxu0 %v1867
  %2748 = vmatpush1.bf16.msra.mxu0 %v1866
  %2749 = vmatprep.subr.bf16.mxu0 %v1874
  %2750 = vmatpush1.bf16.msra.mxu0 %v1873
  %2751 = vmatprep.subr.bf16.mxu0 %v1881
  %2752 = vmatpush1.bf16.msra.mxu0 %v1880
  %2753 = vmatprep.mubr.bf16.mxu0 %v528
  %2754 = vmatmul.mubr.bf16.gmra.mrb[0].mxu0 %v527
  %v2755 = vpop.f32.mrb[0].mxu0
  %v2756 = vadd.f32 %v492, %v2755
  %v2757 = vpop.f32.mrb[0].mxu0
  %v2758 = vadd.f32 %v496, %v2757
  %v2759 = vpop.f32.mrb[0].mxu0
  %v2760 = vpop.f32.mrb[0].mxu0
  %2761 = vdwg.mxu0
  %2762 = vmatprep.subr.bf16.mxu0 %v1888
  %2763 = vmatpush1.bf16.msra.mxu0 %v1887
  %2764 = vmatprep.subr.bf16.mxu0 %v1895
  %2765 = vmatpush1.bf16.msra.mxu0 %v1894
  %2766 = vmatprep.subr.bf16.mxu0 %v1902
  %2767 = vmatpush1.bf16.msra.mxu0 %v1901
  %2768 = vmatprep.subr.bf16.mxu0 %v1909
  %2769 = vmatpush1.bf16.msra.mxu0 %v1908
  %2770 = vmatprep.subr.bf16.mxu0 %v1916
  %2771 = vmatpush1.bf16.msra.mxu0 %v1915
  %2772 = vmatprep.subr.bf16.mxu0 %v1923
  %2773 = vmatpush1.bf16.msra.mxu0 %v1922
  %2774 = vmatprep.subr.bf16.mxu0 %v1930
  %2775 = vmatpush1.bf16.msra.mxu0 %v1929
  %2776 = vmatprep.subr.bf16.mxu0 %v1937
  %2777 = vmatpush1.bf16.msra.mxu0 %v1936
  %2778 = vmatprep.subr.bf16.mxu0 %v1944
  %2779 = vmatpush1.bf16.msra.mxu0 %v1943
  %2780 = vmatprep.subr.bf16.mxu0 %v1951
  %2781 = vmatpush1.bf16.msra.mxu0 %v1950
  %2782 = vmatprep.subr.bf16.mxu0 %v1958
  %2783 = vmatpush1.bf16.msra.mxu0 %v1957
  %2784 = vmatprep.subr.bf16.mxu0 %v1965
  %2785 = vmatpush1.bf16.msra.mxu0 %v1964
  %2786 = vmatprep.subr.bf16.mxu0 %v1972
  %2787 = vmatpush1.bf16.msra.mxu0 %v1971
  %2788 = vmatprep.subr.bf16.mxu0 %v1979
  %2789 = vmatpush1.bf16.msra.mxu0 %v1978
  %2790 = vmatprep.subr.bf16.mxu0 %v1986
  %2791 = vmatpush1.bf16.msra.mxu0 %v1985
  %2792 = vmatprep.subr.bf16.mxu0 %v1993
  %2793 = vmatpush1.bf16.msra.mxu0 %v1992
  %2794 = vmatprep.mubr.bf16.mxu0 %v530
  %2795 = vmatmul.mubr.bf16.gmra.mrb[0].mxu0 %v529
  %v2796 = vpop.f32.mrb[0].mxu0
  %v2797 = vadd.f32 %v2756, %v2796
  %v2798 = vpop.f32.mrb[0].mxu0
  %v2799 = vadd.f32 %v2758, %v2798
  %v2800 = vpop.f32.mrb[0].mxu0
  %v2801 = vpop.f32.mrb[0].mxu0
  %2802 = vdwg.mxu0
  %2803 = vmatprep.subr.bf16.mxu0 %v2000
  %2804 = vmatpush1.bf16.msra.mxu0 %v1999
  %2805 = vmatprep.subr.bf16.mxu0 %v2007
  %2806 = vmatpush1.bf16.msra.mxu0 %v2006
  %2807 = vmatprep.subr.bf16.mxu0 %v2014
  %2808 = vmatpush1.bf16.msra.mxu0 %v2013
  %2809 = vmatprep.subr.bf16.mxu0 %v2021
  %2810 = vmatpush1.bf16.msra.mxu0 %v2020
  %2811 = vmatprep.subr.bf16.mxu0 %v2028
  %2812 = vmatpush1.bf16.msra.mxu0 %v2027
  %2813 = vmatprep.subr.bf16.mxu0 %v2035
  %2814 = vmatpush1.bf16.msra.mxu0 %v2034
  %2815 = vmatprep.subr.bf16.mxu0 %v2042
  %2816 = vmatpush1.bf16.msra.mxu0 %v2041
  %2817 = vmatprep.subr.bf16.mxu0 %v2049
  %2818 = vmatpush1.bf16.msra.mxu0 %v2048
  %2819 = vmatprep.subr.bf16.mxu0 %v2056
  %2820 = vmatpush1.bf16.msra.mxu0 %v2055
  %2821 = vmatprep.subr.bf16.mxu0 %v2063
  %2822 = vmatpush1.bf16.msra.mxu0 %v2062
  %2823 = vmatprep.subr.bf16.mxu0 %v2070
  %2824 = vmatpush1.bf16.msra.mxu0 %v2069
  %2825 = vmatprep.subr.bf16.mxu0 %v2077
  %2826 = vmatpush1.bf16.msra.mxu0 %v2076
  %2827 = vmatprep.subr.bf16.mxu0 %v2084
  %2828 = vmatpush1.bf16.msra.mxu0 %v2083
  %2829 = vmatprep.subr.bf16.mxu0 %v2091
  %2830 = vmatpush1.bf16.msra.mxu0 %v2090
  %2831 = vmatprep.subr.bf16.mxu0 %v2098
  %2832 = vmatpush1.bf16.msra.mxu0 %v2097
  %2833 = vmatprep.subr.bf16.mxu0 %v2105
  %2834 = vmatpush1.bf16.msra.mxu0 %v2104
  %2835 = vmatprep.mubr.bf16.mxu0 %v532
  %2836 = vmatmul.mubr.bf16.gmra.mrb[0].mxu0 %v531
  %v2837 = vpop.f32.mrb[0].mxu0
  %v2838 = vadd.f32 %v2797, %v2837
  %v2839 = vpop.f32.mrb[0].mxu0
  %v2840 = vadd.f32 %v2799, %v2839
  %v2841 = vpop.f32.mrb[0].mxu0
  %v2842 = vpop.f32.mrb[0].mxu0
  %2843 = vdwg.mxu0
  %2844 = vmatprep.subr.bf16.mxu0 %v2112
  %2845 = vmatpush1.bf16.msra.mxu0 %v2111
  %2846 = vmatprep.subr.bf16.mxu0 %v2119
  %2847 = vmatpush1.bf16.msra.mxu0 %v2118
  %2848 = vmatprep.subr.bf16.mxu0 %v2126
  %2849 = vmatpush1.bf16.msra.mxu0 %v2125
  %2850 = vmatprep.subr.bf16.mxu0 %v2133
  %2851 = vmatpush1.bf16.msra.mxu0 %v2132
  %2852 = vmatprep.subr.bf16.mxu0 %v2140
  %2853 = vmatpush1.bf16.msra.mxu0 %v2139
  %2854 = vmatprep.subr.bf16.mxu0 %v2147
  %2855 = vmatpush1.bf16.msra.mxu0 %v2146
  %2856 = vmatprep.subr.bf16.mxu0 %v2154
  %2857 = vmatpush1.bf16.msra.mxu0 %v2153
  %2858 = vmatprep.subr.bf16.mxu0 %v2161
  %2859 = vmatpush1.bf16.msra.mxu0 %v2160
  %2860 = vmatprep.subr.bf16.mxu0 0
  %2861 = vmatpush1.bf16.msra.mxu0 0
  %2862 = vmatprep.subr.bf16.mxu0 0
  %2863 = vmatpush1.bf16.msra.mxu0 0
  %2864 = vmatprep.subr.bf16.mxu0 0
  %2865 = vmatpush1.bf16.msra.mxu0 0
  %2866 = vmatprep.subr.bf16.mxu0 0
  %2867 = vmatpush1.bf16.msra.mxu0 0
  %2868 = vmatprep.subr.bf16.mxu0 0
  %2869 = vmatpush1.bf16.msra.mxu0 0
  %2870 = vmatprep.subr.bf16.mxu0 0
  %2871 = vmatpush1.bf16.msra.mxu0 0
  %2872 = vmatprep.subr.bf16.mxu0 0
  %2873 = vmatpush1.bf16.msra.mxu0 0
  %2874 = vmatprep.subr.bf16.mxu0 0
  %2875 = vmatpush1.bf16.msra.mxu0 0
  %2876 = vmatprep.mubr.bf16.mxu0 0
  %2877 = vmatmul.mubr.bf16.gmra.mrb[0].mxu0 %v533
  %v2878 = vpop.f32.mrb[0].mxu0
  %v2879 = vadd.f32 %v2838, %v2878
  %v2880 = vpop.f32.mrb[0].mxu0
  %v2881 = vadd.f32 %v2840, %v2880
  %v2882 = vpop.f32.mrb[0].mxu0
  %v2883 = vpop.f32.mrb[0].mxu0
  %2884 = vdwg.mxu0
  %2885 = vmatprep.subr.bf16.mxu0 %v1778
  %2886 = vmatpush1.bf16.msra.mxu0 %v1777
  %2887 = vmatprep.subr.bf16.mxu0 %v1785
  %2888 = vmatpush1.bf16.msra.mxu0 %v1784
  %2889 = vmatprep.subr.bf16.mxu0 %v1792
  %2890 = vmatpush1.bf16.msra.mxu0 %v1791
  %2891 = vmatprep.subr.bf16.mxu0 %v1799
  %2892 = vmatpush1.bf16.msra.mxu0 %v1798
  %2893 = vmatprep.subr.bf16.mxu0 %v1806
  %2894 = vmatpush1.bf16.msra.mxu0 %v1805
  %2895 = vmatprep.subr.bf16.mxu0 %v1813
  %2896 = vmatpush1.bf16.msra.mxu0 %v1812
  %2897 = vmatprep.subr.bf16.mxu0 %v1820
  %2898 = vmatpush1.bf16.msra.mxu0 %v1819
  %2899 = vmatprep.subr.bf16.mxu0 %v1827
  %2900 = vmatpush1.bf16.msra.mxu0 %v1826
  %2901 = vmatprep.subr.bf16.mxu0 %v1834
  %2902 = vmatpush1.bf16.msra.mxu0 %v1833
  %2903 = vmatprep.subr.bf16.mxu0 %v1841
  %2904 = vmatpush1.bf16.msra.mxu0 %v1840
  %2905 = vmatprep.subr.bf16.mxu0 %v1848
  %2906 = vmatpush1.bf16.msra.mxu0 %v1847
  %2907 = vmatprep.subr.bf16.mxu0 %v1855
  %2908 = vmatpush1.bf16.msra.mxu0 %v1854
  %2909 = vmatprep.subr.bf16.mxu0 %v1862
  %2910 = vmatpush1.bf16.msra.mxu0 %v1861
  %2911 = vmatprep.subr.bf16.mxu0 %v1869
  %2912 = vmatpush1.bf16.msra.mxu0 %v1868
  %2913 = vmatprep.subr.bf16.mxu0 %v1876
  %2914 = vmatpush1.bf16.msra.mxu0 %v1875
  %2915 = vmatprep.subr.bf16.mxu0 %v1883
  %2916 = vmatpush1.bf16.msra.mxu0 %v1882
  %2917 = vmatprep.mubr.bf16.mxu0 %v528
  %2918 = vmatmul.mubr.bf16.gmra.mrb[0].mxu0 %v527
  %v2919 = vpop.f32.mrb[0].mxu0
  %v2920 = vadd.f32 %v500, %v2919
  %v2921 = vpop.f32.mrb[0].mxu0
  %v2922 = vadd.f32 %v504, %v2921
  %v2923 = vpop.f32.mrb[0].mxu0
  %v2924 = vpop.f32.mrb[0].mxu0
  %2925 = vdwg.mxu0
  %2926 = vmatprep.subr.bf16.mxu0 %v1890
  %2927 = vmatpush1.bf16.msra.mxu0 %v1889
  %2928 = vmatprep.subr.bf16.mxu0 %v1897
  %2929 = vmatpush1.bf16.msra.mxu0 %v1896
  %2930 = vmatprep.subr.bf16.mxu0 %v1904
  %2931 = vmatpush1.bf16.msra.mxu0 %v1903
  %2932 = vmatprep.subr.bf16.mxu0 %v1911
  %2933 = vmatpush1.bf16.msra.mxu0 %v1910
  %2934 = vmatprep.subr.bf16.mxu0 %v1918
  %2935 = vmatpush1.bf16.msra.mxu0 %v1917
  %2936 = vmatprep.subr.bf16.mxu0 %v1925
  %2937 = vmatpush1.bf16.msra.mxu0 %v1924
  %2938 = vmatprep.subr.bf16.mxu0 %v1932
  %2939 = vmatpush1.bf16.msra.mxu0 %v1931
  %2940 = vmatprep.subr.bf16.mxu0 %v1939
  %2941 = vmatpush1.bf16.msra.mxu0 %v1938
  %2942 = vmatprep.subr.bf16.mxu0 %v1946
  %2943 = vmatpush1.bf16.msra.mxu0 %v1945
  %2944 = vmatprep.subr.bf16.mxu0 %v1953
  %2945 = vmatpush1.bf16.msra.mxu0 %v1952
  %2946 = vmatprep.subr.bf16.mxu0 %v1960
  %2947 = vmatpush1.bf16.msra.mxu0 %v1959
  %2948 = vmatprep.subr.bf16.mxu0 %v1967
  %2949 = vmatpush1.bf16.msra.mxu0 %v1966
  %2950 = vmatprep.subr.bf16.mxu0 %v1974
  %2951 = vmatpush1.bf16.msra.mxu0 %v1973
  %2952 = vmatprep.subr.bf16.mxu0 %v1981
  %2953 = vmatpush1.bf16.msra.mxu0 %v1980
  %2954 = vmatprep.subr.bf16.mxu0 %v1988
  %2955 = vmatpush1.bf16.msra.mxu0 %v1987
  %2956 = vmatprep.subr.bf16.mxu0 %v1995
  %2957 = vmatpush1.bf16.msra.mxu0 %v1994
  %2958 = vmatprep.mubr.bf16.mxu0 %v530
  %2959 = vmatmul.mubr.bf16.gmra.mrb[0].mxu0 %v529
  %v2960 = vpop.f32.mrb[0].mxu0
  %v2961 = vadd.f32 %v2920, %v2960
  %v2962 = vpop.f32.mrb[0].mxu0
  %v2963 = vadd.f32 %v2922, %v2962
  %v2964 = vpop.f32.mrb[0].mxu0
  %v2965 = vpop.f32.mrb[0].mxu0
  %2966 = vdwg.mxu0
  %2967 = vmatprep.subr.bf16.mxu0 %v2002
  %2968 = vmatpush1.bf16.msra.mxu0 %v2001
  %2969 = vmatprep.subr.bf16.mxu0 %v2009
  %2970 = vmatpush1.bf16.msra.mxu0 %v2008
  %2971 = vmatprep.subr.bf16.mxu0 %v2016
  %2972 = vmatpush1.bf16.msra.mxu0 %v2015
  %2973 = vmatprep.subr.bf16.mxu0 %v2023
  %2974 = vmatpush1.bf16.msra.mxu0 %v2022
  %2975 = vmatprep.subr.bf16.mxu0 %v2030
  %2976 = vmatpush1.bf16.msra.mxu0 %v2029
  %2977 = vmatprep.subr.bf16.mxu0 %v2037
  %2978 = vmatpush1.bf16.msra.mxu0 %v2036
  %2979 = vmatprep.subr.bf16.mxu0 %v2044
  %2980 = vmatpush1.bf16.msra.mxu0 %v2043
  %2981 = vmatprep.subr.bf16.mxu0 %v2051
  %2982 = vmatpush1.bf16.msra.mxu0 %v2050
  %2983 = vmatprep.subr.bf16.mxu0 %v2058
  %2984 = vmatpush1.bf16.msra.mxu0 %v2057
  %2985 = vmatprep.subr.bf16.mxu0 %v2065
  %2986 = vmatpush1.bf16.msra.mxu0 %v2064
  %2987 = vmatprep.subr.bf16.mxu0 %v2072
  %2988 = vmatpush1.bf16.msra.mxu0 %v2071
  %2989 = vmatprep.subr.bf16.mxu0 %v2079
  %2990 = vmatpush1.bf16.msra.mxu0 %v2078
  %2991 = vmatprep.subr.bf16.mxu0 %v2086
  %2992 = vmatpush1.bf16.msra.mxu0 %v2085
  %2993 = vmatprep.subr.bf16.mxu0 %v2093
  %2994 = vmatpush1.bf16.msra.mxu0 %v2092
  %2995 = vmatprep.subr.bf16.mxu0 %v2100
  %2996 = vmatpush1.bf16.msra.mxu0 %v2099
  %2997 = vmatprep.subr.bf16.mxu0 %v2107
  %2998 = vmatpush1.bf16.msra.mxu0 %v2106
  %2999 = vmatprep.mubr.bf16.mxu0 %v532
  %3000 = vmatmul.mubr.bf16.gmra.mrb[0].mxu0 %v531
  %v3001 = vpop.f32.mrb[0].mxu0
  %v3002 = vadd.f32 %v2961, %v3001
  %v3003 = vpop.f32.mrb[0].mxu0
  %v3004 = vadd.f32 %v2963, %v3003
  %v3005 = vpop.f32.mrb[0].mxu0
  %v3006 = vpop.f32.mrb[0].mxu0
  %3007 = vdwg.mxu0
  %3008 = vmatprep.subr.bf16.mxu0 %v2114
  %3009 = vmatpush1.bf16.msra.mxu0 %v2113
  %3010 = vmatprep.subr.bf16.mxu0 %v2121
  %3011 = vmatpush1.bf16.msra.mxu0 %v2120
  %3012 = vmatprep.subr.bf16.mxu0 %v2128
  %3013 = vmatpush1.bf16.msra.mxu0 %v2127
  %3014 = vmatprep.subr.bf16.mxu0 %v2135
  %3015 = vmatpush1.bf16.msra.mxu0 %v2134
  %3016 = vmatprep.subr.bf16.mxu0 %v2142
  %3017 = vmatpush1.bf16.msra.mxu0 %v2141
  %3018 = vmatprep.subr.bf16.mxu0 %v2149
  %3019 = vmatpush1.bf16.msra.mxu0 %v2148
  %3020 = vmatprep.subr.bf16.mxu0 %v2156
  %3021 = vmatpush1.bf16.msra.mxu0 %v2155
  %3022 = vmatprep.subr.bf16.mxu0 %v2163
  %3023 = vmatpush1.bf16.msra.mxu0 %v2162
  %3024 = vmatprep.subr.bf16.mxu0 0
  %3025 = vmatpush1.bf16.msra.mxu0 0
  %3026 = vmatprep.subr.bf16.mxu0 0
  %3027 = vmatpush1.bf16.msra.mxu0 0
  %3028 = vmatprep.subr.bf16.mxu0 0
  %3029 = vmatpush1.bf16.msra.mxu0 0
  %3030 = vmatprep.subr.bf16.mxu0 0
  %3031 = vmatpush1.bf16.msra.mxu0 0
  %3032 = vmatprep.subr.bf16.mxu0 0
  %3033 = vmatpush1.bf16.msra.mxu0 0
  %3034 = vmatprep.subr.bf16.mxu0 0
  %3035 = vmatpush1.bf16.msra.mxu0 0
  %3036 = vmatprep.subr.bf16.mxu0 0
  %3037 = vmatpush1.bf16.msra.mxu0 0
  %3038 = vmatprep.subr.bf16.mxu0 0
  %3039 = vmatpush1.bf16.msra.mxu0 0
  %3040 = vmatprep.mubr.bf16.mxu0 0
  %3041 = vmatmul.mubr.bf16.gmra.mrb[0].mxu0 %v533
  %v3042 = vpop.f32.mrb[0].mxu0
  %v3043 = vadd.f32 %v3002, %v3042
  %v3044 = vpop.f32.mrb[0].mxu0
  %v3045 = vadd.f32 %v3004, %v3044
  %v3046 = vpop.f32.mrb[0].mxu0
  %v3047 = vpop.f32.mrb[0].mxu0
  %3048 = vdwg.mxu0
  %3049 = vmatprep.subr.bf16.mxu0 0
  %3050 = vmatpush1.bf16.msra.mxu0 %v1779
  %3051 = vmatprep.subr.bf16.mxu0 0
  %3052 = vmatpush1.bf16.msra.mxu0 %v1786
  %3053 = vmatprep.subr.bf16.mxu0 0
  %3054 = vmatpush1.bf16.msra.mxu0 %v1793
  %3055 = vmatprep.subr.bf16.mxu0 0
  %3056 = vmatpush1.bf16.msra.mxu0 %v1800
  %3057 = vmatprep.subr.bf16.mxu0 0
  %3058 = vmatpush1.bf16.msra.mxu0 %v1807
  %3059 = vmatprep.subr.bf16.mxu0 0
  %3060 = vmatpush1.bf16.msra.mxu0 %v1814
  %3061 = vmatprep.subr.bf16.mxu0 0
  %3062 = vmatpush1.bf16.msra.mxu0 %v1821
  %3063 = vmatprep.subr.bf16.mxu0 0
  %3064 = vmatpush1.bf16.msra.mxu0 %v1828
  %3065 = vmatprep.subr.bf16.mxu0 0
  %3066 = vmatpush1.bf16.msra.mxu0 %v1835
  %3067 = vmatprep.subr.bf16.mxu0 0
  %3068 = vmatpush1.bf16.msra.mxu0 %v1842
  %3069 = vmatprep.subr.bf16.mxu0 0
  %3070 = vmatpush1.bf16.msra.mxu0 %v1849
  %3071 = vmatprep.subr.bf16.mxu0 0
  %3072 = vmatpush1.bf16.msra.mxu0 %v1856
  %3073 = vmatprep.subr.bf16.mxu0 0
  %3074 = vmatpush1.bf16.msra.mxu0 %v1863
  %3075 = vmatprep.subr.bf16.mxu0 0
  %3076 = vmatpush1.bf16.msra.mxu0 %v1870
  %3077 = vmatprep.subr.bf16.mxu0 0
  %3078 = vmatpush1.bf16.msra.mxu0 %v1877
  %3079 = vmatprep.subr.bf16.mxu0 0
  %3080 = vmatpush1.bf16.msra.mxu0 %v1884
  %3081 = vmatprep.mubr.bf16.mxu0 %v528
  %3082 = vmatmul.mubr.bf16.gmra.mrb[0].mxu0 %v527
  %v3083 = vpop.f32.mrb[0].mxu0
  %v3084 = vadd.f32 %v508, %v3083
  %v3085 = vpop.f32.mrb[0].mxu0
  %v3086 = vpop.f32.mrb[0].mxu0
  %v3087 = vpop.f32.mrb[0].mxu0
  %3088 = vdwg.mxu0
  %3089 = vmatprep.subr.bf16.mxu0 0
  %3090 = vmatpush1.bf16.msra.mxu0 %v1891
  %3091 = vmatprep.subr.bf16.mxu0 0
  %3092 = vmatpush1.bf16.msra.mxu0 %v1898
  %3093 = vmatprep.subr.bf16.mxu0 0
  %3094 = vmatpush1.bf16.msra.mxu0 %v1905
  %3095 = vmatprep.subr.bf16.mxu0 0
  %3096 = vmatpush1.bf16.msra.mxu0 %v1912
  %3097 = vmatprep.subr.bf16.mxu0 0
  %3098 = vmatpush1.bf16.msra.mxu0 %v1919
  %3099 = vmatprep.subr.bf16.mxu0 0
  %3100 = vmatpush1.bf16.msra.mxu0 %v1926
  %3101 = vmatprep.subr.bf16.mxu0 0
  %3102 = vmatpush1.bf16.msra.mxu0 %v1933
  %3103 = vmatprep.subr.bf16.mxu0 0
  %3104 = vmatpush1.bf16.msra.mxu0 %v1940
  %3105 = vmatprep.subr.bf16.mxu0 0
  %3106 = vmatpush1.bf16.msra.mxu0 %v1947
  %3107 = vmatprep.subr.bf16.mxu0 0
  %3108 = vmatpush1.bf16.msra.mxu0 %v1954
  %3109 = vmatprep.subr.bf16.mxu0 0
  %3110 = vmatpush1.bf16.msra.mxu0 %v1961
  %3111 = vmatprep.subr.bf16.mxu0 0
  %3112 = vmatpush1.bf16.msra.mxu0 %v1968
  %3113 = vmatprep.subr.bf16.mxu0 0
  %3114 = vmatpush1.bf16.msra.mxu0 %v1975
  %3115 = vmatprep.subr.bf16.mxu0 0
  %3116 = vmatpush1.bf16.msra.mxu0 %v1982
  %3117 = vmatprep.subr.bf16.mxu0 0
  %3118 = vmatpush1.bf16.msra.mxu0 %v1989
  %3119 = vmatprep.subr.bf16.mxu0 0
  %3120 = vmatpush1.bf16.msra.mxu0 %v1996
  %3121 = vmatprep.mubr.bf16.mxu0 %v530
  %3122 = vmatmul.mubr.bf16.gmra.mrb[0].mxu0 %v529
  %v3123 = vpop.f32.mrb[0].mxu0
  %v3124 = vadd.f32 %v3084, %v3123
  %v3125 = vpop.f32.mrb[0].mxu0
  %v3126 = vpop.f32.mrb[0].mxu0
  %v3127 = vpop.f32.mrb[0].mxu0
  %3128 = vdwg.mxu0
  %3129 = vmatprep.subr.bf16.mxu0 0
  %3130 = vmatpush1.bf16.msra.mxu0 %v2003
  %3131 = vmatprep.subr.bf16.mxu0 0
  %3132 = vmatpush1.bf16.msra.mxu0 %v2010
  %3133 = vmatprep.subr.bf16.mxu0 0
  %3134 = vmatpush1.bf16.msra.mxu0 %v2017
  %3135 = vmatprep.subr.bf16.mxu0 0
  %3136 = vmatpush1.bf16.msra.mxu0 %v2024
  %3137 = vmatprep.subr.bf16.mxu0 0
  %3138 = vmatpush1.bf16.msra.mxu0 %v2031
  %3139 = vmatprep.subr.bf16.mxu0 0
  %3140 = vmatpush1.bf16.msra.mxu0 %v2038
  %3141 = vmatprep.subr.bf16.mxu0 0
  %3142 = vmatpush1.bf16.msra.mxu0 %v2045
  %3143 = vmatprep.subr.bf16.mxu0 0
  %3144 = vmatpush1.bf16.msra.mxu0 %v2052
  %3145 = vmatprep.subr.bf16.mxu0 0
  %3146 = vmatpush1.bf16.msra.mxu0 %v2059
  %3147 = vmatprep.subr.bf16.mxu0 0
  %3148 = vmatpush1.bf16.msra.mxu0 %v2066
  %3149 = vmatprep.subr.bf16.mxu0 0
  %3150 = vmatpush1.bf16.msra.mxu0 %v2073
  %3151 = vmatprep.subr.bf16.mxu0 0
  %3152 = vmatpush1.bf16.msra.mxu0 %v2080
  %3153 = vmatprep.subr.bf16.mxu0 0
  %3154 = vmatpush1.bf16.msra.mxu0 %v2087
  %3155 = vmatprep.subr.bf16.mxu0 0
  %3156 = vmatpush1.bf16.msra.mxu0 %v2094
  %3157 = vmatprep.subr.bf16.mxu0 0
  %3158 = vmatpush1.bf16.msra.mxu0 %v2101
  %3159 = vmatprep.subr.bf16.mxu0 0
  %3160 = vmatpush1.bf16.msra.mxu0 %v2108
  %3161 = vmatprep.mubr.bf16.mxu0 %v532
  %3162 = vmatmul.mubr.bf16.gmra.mrb[0].mxu0 %v531
  %v3163 = vpop.f32.mrb[0].mxu0
  %v3164 = vadd.f32 %v3124, %v3163
  %v3165 = vpop.f32.mrb[0].mxu0
  %v3166 = vpop.f32.mrb[0].mxu0
  %v3167 = vpop.f32.mrb[0].mxu0
  %3168 = vdwg.mxu0
  %3169 = vmatprep.subr.bf16.mxu0 0
  %3170 = vmatpush1.bf16.msra.mxu0 %v2115
  %3171 = vmatprep.subr.bf16.mxu0 0
  %3172 = vmatpush1.bf16.msra.mxu0 %v2122
  %3173 = vmatprep.subr.bf16.mxu0 0
  %3174 = vmatpush1.bf16.msra.mxu0 %v2129
  %3175 = vmatprep.subr.bf16.mxu0 0
  %3176 = vmatpush1.bf16.msra.mxu0 %v2136
  %3177 = vmatprep.subr.bf16.mxu0 0
  %3178 = vmatpush1.bf16.msra.mxu0 %v2143
  %3179 = vmatprep.subr.bf16.mxu0 0
  %3180 = vmatpush1.bf16.msra.mxu0 %v2150
  %3181 = vmatprep.subr.bf16.mxu0 0
  %3182 = vmatpush1.bf16.msra.mxu0 %v2157
  %3183 = vmatprep.subr.bf16.mxu0 0
  %3184 = vmatpush1.bf16.msra.mxu0 %v2164
  %3185 = vmatprep.subr.bf16.mxu0 0
  %3186 = vmatpush1.bf16.msra.mxu0 0
  %3187 = vmatprep.subr.bf16.mxu0 0
  %3188 = vmatpush1.bf16.msra.mxu0 0
  %3189 = vmatprep.subr.bf16.mxu0 0
  %3190 = vmatpush1.bf16.msra.mxu0 0
  %3191 = vmatprep.subr.bf16.mxu0 0
  %3192 = vmatpush1.bf16.msra.mxu0 0
  %3193 = vmatprep.subr.bf16.mxu0 0
  %3194 = vmatpush1.bf16.msra.mxu0 0
  %3195 = vmatprep.subr.bf16.mxu0 0
  %3196 = vmatpush1.bf16.msra.mxu0 0
  %3197 = vmatprep.subr.bf16.mxu0 0
  %3198 = vmatpush1.bf16.msra.mxu0 0
  %3199 = vmatprep.subr.bf16.mxu0 0
  %3200 = vmatpush1.bf16.msra.mxu0 0
  %3201 = vmatprep.mubr.bf16.mxu0 0
  %3202 = vmatmul.mubr.bf16.gmra.mrb[0].mxu0 %v533
  %v3203 = vpop.f32.mrb[0].mxu0
  %v3204 = vadd.f32 %v3164, %v3203
  %v3205 = vpop.f32.mrb[0].mxu0
  %v3206 = vpop.f32.mrb[0].mxu0
  %v3207 = vpop.f32.mrb[0].mxu0
  %3208 = vdwg.mxu0
  %v3209 = vmax.f32 %v2715, 0.0
  %v3210 = vmax.f32 %v2717, 0.0
  %v3211 = vmax.f32 %v2879, 0.0
  %v3212 = vmax.f32 %v2881, 0.0
  %v3213 = vmax.f32 %v3043, 0.0
  %v3214 = vmax.f32 %v3045, 0.0
  %v3215 = vmax.f32 %v3204, 0.0
  %v3216 = vpack.c.bf16 %v3209, %v3209
  %v3217 = vpack.c.bf16 %v3210, %v3210
  %v3218 = vpack.c.bf16 %v3211, %v3211
  %v3219 = vpack.c.bf16 %v3212, %v3212
  %v3220 = vpack.c.bf16 %v3213, %v3213
  %v3221 = vpack.c.bf16 %v3214, %v3214
  %v3222 = vpack.c.bf16 %v3215, %v3215
  %v3223 = vld [vmem:[%s3] sm:$0xff]
  %v3224 = vld [vmem:[%s3 + $0x8] sm:$0xff]
  %v3225 = vld [vmem:[%s3 + $0x10] sm:$0xff]
  %v3226 = vld [vmem:[%s3 + $0x18] sm:$0xff]
  %v3227 = vld [vmem:[%s3 + $0x20] sm:$0xff]
  %v3228 = vld [vmem:[%s3 + $0x28] sm:$0xff]
  %v3229 = vld [vmem:[%s3 + $0x30] sm:$0xff]
  %v3230 = vld [vmem:[%s3 + $0x38] sm:$0xff]
  %v3231 = vld [vmem:[%s3 + $0x40] sm:$0xff]
  %v3232 = vld [vmem:[%s3 + $0x48] sm:$0xff]
  %v3233 = vld [vmem:[%s3 + $0x50] sm:$0xff]
  %v3234 = vld [vmem:[%s3 + $0x58] sm:$0xff]
  %v3235 = vld [vmem:[%s3 + $0x60] sm:$0xff]
  %v3236 = vld [vmem:[%s3 + $0x68] sm:$0xff]
  %v3237 = vld [vmem:[%s3 + $0x70] sm:$0xff]
  %v3238 = vld [vmem:[%s3 + $0x78] sm:$0xff]
  %v3239 = vld [vmem:[%s3 + $0x80] sm:$0xff]
  %v3240 = vld [vmem:[%s3 + $0x88] sm:$0xff]
  %v3241 = vld [vmem:[%s3 + $0x90] sm:$0xff]
  %v3242 = vld [vmem:[%s3 + $0x98] sm:$0xff]
  %v3243 = vld [vmem:[%s3 + $0xa0] sm:$0xff]
  %v3244 = vld [vmem:[%s3 + $0xa8] sm:$0xff]
  %v3245 = vld [vmem:[%s3 + $0xb0] sm:$0xff]
  %v3246 = vld [vmem:[%s3 + $0xb8] sm:$0xff]
  %v3247 = vld [vmem:[%s3 + $0xc0] sm:$0xff]
  %v3248 = vld [vmem:[%s3 + $0xc8] sm:$0xff]
  %v3249 = vld [vmem:[%s3 + $0xd0] sm:$0xff]
  %v3250 = vld [vmem:[%s3 + $0xd8] sm:$0xff]
  %v3251 = vld [vmem:[%s3 + $0xe0] sm:$0xff]
  %v3252 = vld [vmem:[%s3 + $0xe8] sm:$0xff]
  %v3253 = vld [vmem:[%s3 + $0xf0] sm:$0xff]
  %v3254 = vld [vmem:[%s3 + $0xf8] sm:$0xff]
  %v3255 = vld [vmem:[%s3 + $0x100] sm:$0xff]
  %v3256 = vld [vmem:[%s3 + $0x108] sm:$0xff]
  %v3257 = vld [vmem:[%s3 + $0x110] sm:$0xff]
  %v3258 = vld [vmem:[%s3 + $0x118] sm:$0xff]
  %v3259 = vld [vmem:[%s3 + $0x120] sm:$0xff]
  %v3260 = vld [vmem:[%s3 + $0x128] sm:$0xff]
  %v3261 = vld [vmem:[%s3 + $0x130] sm:$0xff]
  %v3262 = vld [vmem:[%s3 + $0x138] sm:$0xff]
  %v3263 = vld [vmem:[%s3 + $0x140] sm:$0xff]
  %v3264 = vld [vmem:[%s3 + $0x148] sm:$0xff]
  %v3265 = vld [vmem:[%s3 + $0x150] sm:$0xff]
  %v3266 = vld [vmem:[%s3 + $0x158] sm:$0xff]
  %v3267 = vld [vmem:[%s3 + $0x160] sm:$0xff]
  %v3268 = vld [vmem:[%s3 + $0x168] sm:$0xff]
  %v3269 = vld [vmem:[%s3 + $0x170] sm:$0xff]
  %v3270 = vld [vmem:[%s3 + $0x178] sm:$0xff]
  %v3271 = vld [vmem:[%s3 + $0x180] sm:$0xff]
  %v3272 = vld [vmem:[%s3 + $0x188] sm:$0xff]
  %v3273 = vld [vmem:[%s3 + $0x190] sm:$0xff]
  %v3274 = vld [vmem:[%s3 + $0x198] sm:$0xff]
  %v3275 = vld [vmem:[%s3 + $0x1a0] sm:$0xff]
  %v3276 = vld [vmem:[%s3 + $0x1a8] sm:$0xff]
  %v3277 = vld [vmem:[%s3 + $0x1b0] sm:$0xff]
  %v3278 = vld [vmem:[%s3 + $0x1b8] sm:$0xff]
  %v3279 = vld [vmem:[%s3 + $0x1c0] sm:$0xff]
  %v3280 = vld [vmem:[%s3 + $0x1c8] sm:$0xff]
  %v3281 = vld [vmem:[%s3 + $0x1d0] sm:$0xff]
  %v3282 = vld [vmem:[%s3 + $0x1d8] sm:$0xff]
  %v3283 = vld [vmem:[%s3 + $0x1e0] sm:$0xff]
  %v3284 = vld [vmem:[%s3 + $0x1e8] sm:$0xff]
  %v3285 = vld [vmem:[%s3 + $0x1f0] sm:$0xff]
  %v3286 = vld [vmem:[%s3 + $0x1f8] sm:$0xff]
  %v3287 = vld [vmem:[%s3 + $0x200] sm:$0xff]
  %v3288 = vld [vmem:[%s3 + $0x208] sm:$0xff]
  %v3289 = vld [vmem:[%s3 + $0x210] sm:$0xff]
  %v3290 = vld [vmem:[%s3 + $0x218] sm:$0xff]
  %v3291 = vld [vmem:[%s3 + $0x220] sm:$0xff]
  %v3292 = vld [vmem:[%s3 + $0x228] sm:$0xff]
  %v3293 = vld [vmem:[%s3 + $0x230] sm:$0xff]
  %v3294 = vld [vmem:[%s3 + $0x238] sm:$0xff]
  %v3295 = vld [vmem:[%s3 + $0x240] sm:$0xff]
  %v3296 = vld [vmem:[%s3 + $0x248] sm:$0xff]
  %v3297 = vld [vmem:[%s3 + $0x250] sm:$0xff]
  %v3298 = vld [vmem:[%s3 + $0x258] sm:$0xff]
  %v3299 = vld [vmem:[%s3 + $0x260] sm:$0xff]
  %v3300 = vld [vmem:[%s3 + $0x268] sm:$0xff]
  %v3301 = vld [vmem:[%s3 + $0x270] sm:$0xff]
  %v3302 = vld [vmem:[%s3 + $0x278] sm:$0xff]
  %v3303 = vld [vmem:[%s3 + $0x280] sm:$0xff]
  %v3304 = vld [vmem:[%s3 + $0x288] sm:$0xff]
  %v3305 = vld [vmem:[%s3 + $0x290] sm:$0xff]
  %v3306 = vld [vmem:[%s3 + $0x298] sm:$0xff]
  %v3307 = vld [vmem:[%s3 + $0x2a0] sm:$0xff]
  %v3308 = vld [vmem:[%s3 + $0x2a8] sm:$0xff]
  %v3309 = vld [vmem:[%s3 + $0x2b0] sm:$0xff]
  %v3310 = vld [vmem:[%s3 + $0x2b8] sm:$0xff]
  %v3311 = vld [vmem:[%s3 + $0x2c0] sm:$0xff]
  %v3312 = vld [vmem:[%s3 + $0x2c8] sm:$0xff]
  %v3313 = vld [vmem:[%s3 + $0x2d0] sm:$0xff]
  %v3314 = vld [vmem:[%s3 + $0x2d8] sm:$0xff]
  %v3315 = vld [vmem:[%s3 + $0x2e0] sm:$0xff]
  %v3316 = vld [vmem:[%s3 + $0x2e8] sm:$0xff]
  %v3317 = vld [vmem:[%s3 + $0x2f0] sm:$0xff]
  %v3318 = vld [vmem:[%s3 + $0x2f8] sm:$0xff]
  %v3319 = vld [vmem:[%s3 + $0x300] sm:$0xff]
  %v3320 = vld [vmem:[%s3 + $0x308] sm:$0xff]
  %v3321 = vld [vmem:[%s3 + $0x310] sm:$0xff]
  %v3322 = vld [vmem:[%s3 + $0x318] sm:$0xff]
  %v3323 = vld [vmem:[%s3 + $0x320] sm:$0xff]
  %v3324 = vld [vmem:[%s3 + $0x328] sm:$0xff]
  %v3325 = vld [vmem:[%s3 + $0x330] sm:$0xff]
  %v3326 = vld [vmem:[%s3 + $0x338] sm:$0xff]
  %v3327 = vld [vmem:[%s3 + $0x340] sm:$0xff]
  %v3328 = vld [vmem:[%s3 + $0x348] sm:$0xff]
  %v3329 = vld [vmem:[%s3 + $0x350] sm:$0xff]
  %v3330 = vld [vmem:[%s3 + $0x358] sm:$0xff]
  %v3331 = vld [vmem:[%s3 + $0x360] sm:$0xff]
  %v3332 = vld [vmem:[%s3 + $0x368] sm:$0xff]
  %v3333 = vld [vmem:[%s3 + $0x370] sm:$0xff]
  %v3334 = vld [vmem:[%s3 + $0x378] sm:$0xff]
  %v3335 = vld [vmem:[%s3 + $0x380] sm:$0xff]
  %v3336 = vld [vmem:[%s3 + $0x388] sm:$0xff]
  %v3337 = vld [vmem:[%s3 + $0x390] sm:$0xff]
  %v3338 = vld [vmem:[%s3 + $0x398] sm:$0xff]
  %v3339 = vld [vmem:[%s3 + $0x3a0] sm:$0xff]
  %v3340 = vld [vmem:[%s3 + $0x3a8] sm:$0xff]
  %v3341 = vld [vmem:[%s3 + $0x3b0] sm:$0xff]
  %v3342 = vld [vmem:[%s3 + $0x3b8] sm:$0xff]
  %v3343 = vld [vmem:[%s3 + $0x3c0] sm:$0xff]
  %v3344 = vld [vmem:[%s3 + $0x3c8] sm:$0xff]
  %v3345 = vld [vmem:[%s3 + $0x3d0] sm:$0xff]
  %v3346 = vld [vmem:[%s3 + $0x3d8] sm:$0xff]
  %v3347 = vld [vmem:[%s3 + $0x3e0] sm:$0xff]
  %v3348 = vld [vmem:[%s3 + $0x3e8] sm:$0xff]
  %v3349 = vld [vmem:[%s3 + $0x3f0] sm:$0xff]
  %v3350 = vld [vmem:[%s3 + $0x3f8] sm:$0xff]
  %v3351 = vld [vmem:[%s3 + $0x400] sm:$0xff]
  %v3352 = vld [vmem:[%s3 + $0x408] sm:$0xff]
  %v3353 = vld [vmem:[%s3 + $0x410] sm:$0xff]
  %v3354 = vld [vmem:[%s3 + $0x418] sm:$0xff]
  %v3355 = vld [vmem:[%s3 + $0x420] sm:$0xff]
  %v3356 = vld [vmem:[%s3 + $0x428] sm:$0xff]
  %v3357 = vld [vmem:[%s3 + $0x430] sm:$0xff]
  %v3358 = vld [vmem:[%s3 + $0x438] sm:$0xff]
  %v3359 = vld [vmem:[%s3 + $0x440] sm:$0xff]
  %v3360 = vld [vmem:[%s3 + $0x448] sm:$0xff]
  %v3361 = vld [vmem:[%s3 + $0x450] sm:$0xff]
  %v3362 = vld [vmem:[%s3 + $0x458] sm:$0xff]
  %v3363 = vld [vmem:[%s3 + $0x460] sm:$0xff]
  %v3364 = vld [vmem:[%s3 + $0x468] sm:$0xff]
  %v3365 = vld [vmem:[%s3 + $0x470] sm:$0xff]
  %v3366 = vld [vmem:[%s3 + $0x478] sm:$0xff]
  %v3367 = vld [vmem:[%s3 + $0x480] sm:$0xff]
  %v3368 = vld [vmem:[%s3 + $0x488] sm:$0xff]
  %v3369 = vld [vmem:[%s3 + $0x490] sm:$0xff]
  %v3370 = vld [vmem:[%s3 + $0x498] sm:$0xff]
  %v3371 = vld [vmem:[%s3 + $0x4a0] sm:$0xff]
  %v3372 = vld [vmem:[%s3 + $0x4a8] sm:$0xff]
  %v3373 = vld [vmem:[%s3 + $0x4b0] sm:$0xff]
  %v3374 = vld [vmem:[%s3 + $0x4b8] sm:$0xff]
  %v3375 = vld [vmem:[%s3 + $0x4c0] sm:$0xff]
  %v3376 = vld [vmem:[%s3 + $0x4c8] sm:$0xff]
  %v3377 = vld [vmem:[%s3 + $0x4d0] sm:$0xff]
  %v3378 = vld [vmem:[%s3 + $0x4d8] sm:$0xff]
  %v3379 = vld [vmem:[%s3 + $0x4e0] sm:$0xff]
  %v3380 = vld [vmem:[%s3 + $0x4e8] sm:$0xff]
  %v3381 = vld [vmem:[%s3 + $0x4f0] sm:$0xff]
  %v3382 = vld [vmem:[%s3 + $0x4f8] sm:$0xff]
  %v3383 = vld [vmem:[%s3 + $0x500] sm:$0xff]
  %v3384 = vld [vmem:[%s3 + $0x508] sm:$0xff]
  %v3385 = vld [vmem:[%s3 + $0x510] sm:$0xff]
  %v3386 = vld [vmem:[%s3 + $0x518] sm:$0xff]
  %v3387 = vld [vmem:[%s3 + $0x520] sm:$0xff]
  %v3388 = vld [vmem:[%s3 + $0x528] sm:$0xff]
  %v3389 = vld [vmem:[%s3 + $0x530] sm:$0xff]
  %v3390 = vld [vmem:[%s3 + $0x538] sm:$0xff]
  %v3391 = vld [vmem:[%s3 + $0x540] sm:$0xff]
  %v3392 = vld [vmem:[%s3 + $0x548] sm:$0xff]
  %v3393 = vld [vmem:[%s3 + $0x550] sm:$0xff]
  %v3394 = vld [vmem:[%s3 + $0x558] sm:$0xff]
  %v3395 = vld [vmem:[%s3 + $0x560] sm:$0xff]
  %v3396 = vld [vmem:[%s3 + $0x568] sm:$0xff]
  %v3397 = vld [vmem:[%s3 + $0x570] sm:$0xff]
  %v3398 = vld [vmem:[%s3 + $0x578] sm:$0xff]
  %v3399 = vld [vmem:[%s3 + $0x580] sm:$0xff]
  %v3400 = vld [vmem:[%s3 + $0x588] sm:$0xff]
  %v3401 = vld [vmem:[%s3 + $0x590] sm:$0xff]
  %v3402 = vld [vmem:[%s3 + $0x598] sm:$0xff]
  %v3403 = vld [vmem:[%s3 + $0x5a0] sm:$0xff]
  %v3404 = vld [vmem:[%s3 + $0x5a8] sm:$0xff]
  %v3405 = vld [vmem:[%s3 + $0x5b0] sm:$0xff]
  %v3406 = vld [vmem:[%s3 + $0x5b8] sm:$0xff]
  %v3407 = vld [vmem:[%s3 + $0x5c0] sm:$0xff]
  %v3408 = vld [vmem:[%s3 + $0x5c8] sm:$0xff]
  %v3409 = vld [vmem:[%s3 + $0x5d0] sm:$0xff]
  %v3410 = vld [vmem:[%s3 + $0x5d8] sm:$0xff]
  %v3411 = vld [vmem:[%s3 + $0x5e0] sm:$0xff]
  %v3412 = vld [vmem:[%s3 + $0x5e8] sm:$0xff]
  %v3413 = vld [vmem:[%s3 + $0x5f0] sm:$0xff]
  %v3414 = vld [vmem:[%s3 + $0x5f8] sm:$0xff]
  %v3415 = vld [vmem:[%s3 + $0x600] sm:$0xff]
  %v3416 = vld [vmem:[%s3 + $0x608] sm:$0xff]
  %v3417 = vld [vmem:[%s3 + $0x610] sm:$0xff]
  %v3418 = vld [vmem:[%s3 + $0x618] sm:$0xff]
  %v3419 = vld [vmem:[%s3 + $0x620] sm:$0xff]
  %v3420 = vld [vmem:[%s3 + $0x628] sm:$0xff]
  %v3421 = vld [vmem:[%s3 + $0x630] sm:$0xff]
  %v3422 = vld [vmem:[%s3 + $0x638] sm:$0xff]
  %v3423 = vld [vmem:[%s3 + $0x640] sm:$0xff]
  %v3424 = vld [vmem:[%s3 + $0x648] sm:$0xff]
  %v3425 = vld [vmem:[%s3 + $0x650] sm:$0xff]
  %v3426 = vld [vmem:[%s3 + $0x658] sm:$0xff]
  %v3427 = vld [vmem:[%s3 + $0x660] sm:$0xff]
  %v3428 = vld [vmem:[%s3 + $0x668] sm:$0xff]
  %v3429 = vld [vmem:[%s3 + $0x670] sm:$0xff]
  %v3430 = vld [vmem:[%s3 + $0x678] sm:$0xff]
  %v3431 = vld [vmem:[%s3 + $0x680] sm:$0xff]
  %v3432 = vld [vmem:[%s3 + $0x688] sm:$0xff]
  %v3433 = vld [vmem:[%s3 + $0x690] sm:$0xff]
  %v3434 = vld [vmem:[%s3 + $0x698] sm:$0xff]
  %v3435 = vld [vmem:[%s3 + $0x6a0] sm:$0xff]
  %v3436 = vld [vmem:[%s3 + $0x6a8] sm:$0xff]
  %v3437 = vld [vmem:[%s3 + $0x6b0] sm:$0xff]
  %v3438 = vld [vmem:[%s3 + $0x6b8] sm:$0xff]
  %v3439 = vld [vmem:[%s3 + $0x6c0] sm:$0xff]
  %v3440 = vld [vmem:[%s3 + $0x6c8] sm:$0xff]
  %v3441 = vld [vmem:[%s3 + $0x6d0] sm:$0xff]
  %v3442 = vld [vmem:[%s3 + $0x6d8] sm:$0xff]
  %v3443 = vld [vmem:[%s3 + $0x6e0] sm:$0xff]
  %v3444 = vld [vmem:[%s3 + $0x6e8] sm:$0xff]
  %v3445 = vld [vmem:[%s3 + $0x6f0] sm:$0xff]
  %v3446 = vld [vmem:[%s3 + $0x6f8] sm:$0xff]
  %v3447 = vld [vmem:[%s4] sm:$0xf]
  %v3449 = vlaneseq
  %v3450 = vshrl.u32 %v3449, 7
  %v3451 = vsub.s32 0, %v3450
  %v3452 = vrot.slane %v3447, %v3451
  %v3453 = vlaneseq
  %v3454 = vshrl.u32 %v3453, 7
  %v3455 = vsub.s32 1, %v3454
  %v3456 = vrot.slane %v3447, %v3455
  %v3457 = vlaneseq
  %v3458 = vshrl.u32 %v3457, 7
  %v3459 = vsub.s32 2, %v3458
  %v3460 = vrot.slane %v3447, %v3459
  %v3461 = vlaneseq
  %v3462 = vshrl.u32 %v3461, 7
  %v3463 = vsub.s32 3, %v3462
  %v3464 = vrot.slane %v3447, %v3463
  %v3693 = vunpack.c.l.b16 %v3223
  %v3694 = vunpack.c.h.b16 %v3223
  %v3695 = vunpack.c.l.b16 %v3224
  %v3696 = vunpack.c.h.b16 %v3224
  %v3697 = vunpack.c.l.b16 %v3225
  %v3698 = vunpack.c.h.b16 %v3225
  %v3699 = vunpack.c.l.b16 %v3226
  %v3700 = vunpack.c.h.b16 %v3226
  %v3701 = vunpack.c.l.b16 %v3227
  %v3702 = vunpack.c.h.b16 %v3227
  %v3703 = vunpack.c.l.b16 %v3228
  %v3704 = vunpack.c.h.b16 %v3228
  %v3705 = vunpack.c.l.b16 %v3229
  %v3706 = vunpack.c.h.b16 %v3229
  %v3707 = vunpack.c.l.b16 %v3230
  %v3708 = vunpack.c.h.b16 %v3230
  %v3709 = vunpack.c.l.b16 %v3231
  %v3710 = vunpack.c.h.b16 %v3231
  %v3711 = vunpack.c.l.b16 %v3232
  %v3712 = vunpack.c.h.b16 %v3232
  %v3713 = vunpack.c.l.b16 %v3233
  %v3714 = vunpack.c.h.b16 %v3233
  %v3715 = vunpack.c.l.b16 %v3234
  %v3716 = vunpack.c.h.b16 %v3234
  %v3717 = vunpack.c.l.b16 %v3235
  %v3718 = vunpack.c.h.b16 %v3235
  %v3719 = vunpack.c.l.b16 %v3236
  %v3720 = vunpack.c.h.b16 %v3236
  %v3721 = vunpack.c.l.b16 %v3237
  %v3722 = vunpack.c.h.b16 %v3237
  %v3723 = vunpack.c.l.b16 %v3238
  %v3724 = vunpack.c.h.b16 %v3238
  %v3725 = vunpack.c.l.b16 %v3239
  %v3726 = vunpack.c.h.b16 %v3239
  %v3727 = vunpack.c.l.b16 %v3240
  %v3728 = vunpack.c.h.b16 %v3240
  %v3729 = vunpack.c.l.b16 %v3241
  %v3730 = vunpack.c.h.b16 %v3241
  %v3731 = vunpack.c.l.b16 %v3242
  %v3732 = vunpack.c.h.b16 %v3242
  %v3733 = vunpack.c.l.b16 %v3243
  %v3734 = vunpack.c.h.b16 %v3243
  %v3735 = vunpack.c.l.b16 %v3244
  %v3736 = vunpack.c.h.b16 %v3244
  %v3737 = vunpack.c.l.b16 %v3245
  %v3738 = vunpack.c.h.b16 %v3245
  %v3739 = vunpack.c.l.b16 %v3246
  %v3740 = vunpack.c.h.b16 %v3246
  %v3741 = vunpack.c.l.b16 %v3247
  %v3742 = vunpack.c.h.b16 %v3247
  %v3743 = vunpack.c.l.b16 %v3248
  %v3744 = vunpack.c.h.b16 %v3248
  %v3745 = vunpack.c.l.b16 %v3249
  %v3746 = vunpack.c.h.b16 %v3249
  %v3747 = vunpack.c.l.b16 %v3250
  %v3748 = vunpack.c.h.b16 %v3250
  %v3749 = vunpack.c.l.b16 %v3251
  %v3750 = vunpack.c.h.b16 %v3251
  %v3751 = vunpack.c.l.b16 %v3252
  %v3752 = vunpack.c.h.b16 %v3252
  %v3753 = vunpack.c.l.b16 %v3253
  %v3754 = vunpack.c.h.b16 %v3253
  %v3755 = vunpack.c.l.b16 %v3254
  %v3756 = vunpack.c.h.b16 %v3254
  %v3757 = vunpack.c.l.b16 %v3255
  %v3758 = vunpack.c.h.b16 %v3255
  %v3759 = vunpack.c.l.b16 %v3256
  %v3760 = vunpack.c.h.b16 %v3256
  %v3761 = vunpack.c.l.b16 %v3257
  %v3762 = vunpack.c.h.b16 %v3257
  %v3763 = vunpack.c.l.b16 %v3258
  %v3764 = vunpack.c.h.b16 %v3258
  %v3765 = vunpack.c.l.b16 %v3259
  %v3766 = vunpack.c.h.b16 %v3259
  %v3767 = vunpack.c.l.b16 %v3260
  %v3768 = vunpack.c.h.b16 %v3260
  %v3769 = vunpack.c.l.b16 %v3261
  %v3770 = vunpack.c.h.b16 %v3261
  %v3771 = vunpack.c.l.b16 %v3262
  %v3772 = vunpack.c.h.b16 %v3262
  %v3773 = vunpack.c.l.b16 %v3263
  %v3774 = vunpack.c.h.b16 %v3263
  %v3775 = vunpack.c.l.b16 %v3264
  %v3776 = vunpack.c.h.b16 %v3264
  %v3777 = vunpack.c.l.b16 %v3265
  %v3778 = vunpack.c.h.b16 %v3265
  %v3779 = vunpack.c.l.b16 %v3266
  %v3780 = vunpack.c.h.b16 %v3266
  %v3781 = vunpack.c.l.b16 %v3267
  %v3782 = vunpack.c.h.b16 %v3267
  %v3783 = vunpack.c.l.b16 %v3268
  %v3784 = vunpack.c.h.b16 %v3268
  %v3785 = vunpack.c.l.b16 %v3269
  %v3786 = vunpack.c.h.b16 %v3269
  %v3787 = vunpack.c.l.b16 %v3270
  %v3788 = vunpack.c.h.b16 %v3270
  %v3789 = vunpack.c.l.b16 %v3271
  %v3790 = vunpack.c.h.b16 %v3271
  %v3791 = vunpack.c.l.b16 %v3272
  %v3792 = vunpack.c.h.b16 %v3272
  %v3793 = vunpack.c.l.b16 %v3273
  %v3794 = vunpack.c.h.b16 %v3273
  %v3795 = vunpack.c.l.b16 %v3274
  %v3796 = vunpack.c.h.b16 %v3274
  %v3797 = vunpack.c.l.b16 %v3275
  %v3798 = vunpack.c.h.b16 %v3275
  %v3799 = vunpack.c.l.b16 %v3276
  %v3800 = vunpack.c.h.b16 %v3276
  %v3801 = vunpack.c.l.b16 %v3277
  %v3802 = vunpack.c.h.b16 %v3277
  %v3803 = vunpack.c.l.b16 %v3278
  %v3804 = vunpack.c.h.b16 %v3278
  %v3805 = vunpack.c.l.b16 %v3279
  %v3806 = vunpack.c.h.b16 %v3279
  %v3807 = vunpack.c.l.b16 %v3280
  %v3808 = vunpack.c.h.b16 %v3280
  %v3809 = vunpack.c.l.b16 %v3281
  %v3810 = vunpack.c.h.b16 %v3281
  %v3811 = vunpack.c.l.b16 %v3282
  %v3812 = vunpack.c.h.b16 %v3282
  %v3813 = vunpack.c.l.b16 %v3283
  %v3814 = vunpack.c.h.b16 %v3283
  %v3815 = vunpack.c.l.b16 %v3284
  %v3816 = vunpack.c.h.b16 %v3284
  %v3817 = vunpack.c.l.b16 %v3285
  %v3818 = vunpack.c.h.b16 %v3285
  %v3819 = vunpack.c.l.b16 %v3286
  %v3820 = vunpack.c.h.b16 %v3286
  %v3821 = vunpack.c.l.b16 %v3287
  %v3822 = vunpack.c.h.b16 %v3287
  %v3823 = vunpack.c.l.b16 %v3288
  %v3824 = vunpack.c.h.b16 %v3288
  %v3825 = vunpack.c.l.b16 %v3289
  %v3826 = vunpack.c.h.b16 %v3289
  %v3827 = vunpack.c.l.b16 %v3290
  %v3828 = vunpack.c.h.b16 %v3290
  %v3829 = vunpack.c.l.b16 %v3291
  %v3830 = vunpack.c.h.b16 %v3291
  %v3831 = vunpack.c.l.b16 %v3292
  %v3832 = vunpack.c.h.b16 %v3292
  %v3833 = vunpack.c.l.b16 %v3293
  %v3834 = vunpack.c.h.b16 %v3293
  %v3835 = vunpack.c.l.b16 %v3294
  %v3836 = vunpack.c.h.b16 %v3294
  %v3837 = vunpack.c.l.b16 %v3295
  %v3838 = vunpack.c.h.b16 %v3295
  %v3839 = vunpack.c.l.b16 %v3296
  %v3840 = vunpack.c.h.b16 %v3296
  %v3841 = vunpack.c.l.b16 %v3297
  %v3842 = vunpack.c.h.b16 %v3297
  %v3843 = vunpack.c.l.b16 %v3298
  %v3844 = vunpack.c.h.b16 %v3298
  %v3845 = vunpack.c.l.b16 %v3299
  %v3846 = vunpack.c.h.b16 %v3299
  %v3847 = vunpack.c.l.b16 %v3300
  %v3848 = vunpack.c.h.b16 %v3300
  %v3849 = vunpack.c.l.b16 %v3301
  %v3850 = vunpack.c.h.b16 %v3301
  %v3851 = vunpack.c.l.b16 %v3302
  %v3852 = vunpack.c.h.b16 %v3302
  %v3853 = vunpack.c.l.b16 %v3303
  %v3854 = vunpack.c.h.b16 %v3303
  %v3855 = vunpack.c.l.b16 %v3304
  %v3856 = vunpack.c.h.b16 %v3304
  %v3857 = vunpack.c.l.b16 %v3305
  %v3858 = vunpack.c.h.b16 %v3305
  %v3859 = vunpack.c.l.b16 %v3306
  %v3860 = vunpack.c.h.b16 %v3306
  %v3861 = vunpack.c.l.b16 %v3307
  %v3862 = vunpack.c.h.b16 %v3307
  %v3863 = vunpack.c.l.b16 %v3308
  %v3864 = vunpack.c.h.b16 %v3308
  %v3865 = vunpack.c.l.b16 %v3309
  %v3866 = vunpack.c.h.b16 %v3309
  %v3867 = vunpack.c.l.b16 %v3310
  %v3868 = vunpack.c.h.b16 %v3310
  %v3869 = vunpack.c.l.b16 %v3311
  %v3870 = vunpack.c.h.b16 %v3311
  %v3871 = vunpack.c.l.b16 %v3312
  %v3872 = vunpack.c.h.b16 %v3312
  %v3873 = vunpack.c.l.b16 %v3313
  %v3874 = vunpack.c.h.b16 %v3313
  %v3875 = vunpack.c.l.b16 %v3314
  %v3876 = vunpack.c.h.b16 %v3314
  %v3877 = vunpack.c.l.b16 %v3315
  %v3878 = vunpack.c.h.b16 %v3315
  %v3879 = vunpack.c.l.b16 %v3316
  %v3880 = vunpack.c.h.b16 %v3316
  %v3881 = vunpack.c.l.b16 %v3317
  %v3882 = vunpack.c.h.b16 %v3317
  %v3883 = vunpack.c.l.b16 %v3318
  %v3884 = vunpack.c.h.b16 %v3318
  %v3885 = vunpack.c.l.b16 %v3319
  %v3886 = vunpack.c.h.b16 %v3319
  %v3887 = vunpack.c.l.b16 %v3320
  %v3888 = vunpack.c.h.b16 %v3320
  %v3889 = vunpack.c.l.b16 %v3321
  %v3890 = vunpack.c.h.b16 %v3321
  %v3891 = vunpack.c.l.b16 %v3322
  %v3892 = vunpack.c.h.b16 %v3322
  %v3893 = vunpack.c.l.b16 %v3323
  %v3894 = vunpack.c.h.b16 %v3323
  %v3895 = vunpack.c.l.b16 %v3324
  %v3896 = vunpack.c.h.b16 %v3324
  %v3897 = vunpack.c.l.b16 %v3325
  %v3898 = vunpack.c.h.b16 %v3325
  %v3899 = vunpack.c.l.b16 %v3326
  %v3900 = vunpack.c.h.b16 %v3326
  %v3901 = vunpack.c.l.b16 %v3327
  %v3902 = vunpack.c.h.b16 %v3327
  %v3903 = vunpack.c.l.b16 %v3328
  %v3904 = vunpack.c.h.b16 %v3328
  %v3905 = vunpack.c.l.b16 %v3329
  %v3906 = vunpack.c.h.b16 %v3329
  %v3907 = vunpack.c.l.b16 %v3330
  %v3908 = vunpack.c.h.b16 %v3330
  %v3909 = vunpack.c.l.b16 %v3331
  %v3910 = vunpack.c.h.b16 %v3331
  %v3911 = vunpack.c.l.b16 %v3332
  %v3912 = vunpack.c.h.b16 %v3332
  %v3913 = vunpack.c.l.b16 %v3333
  %v3914 = vunpack.c.h.b16 %v3333
  %v3915 = vunpack.c.l.b16 %v3334
  %v3916 = vunpack.c.h.b16 %v3334
  %v3917 = vunpack.c.l.b16 %v3335
  %v3918 = vunpack.c.h.b16 %v3335
  %v3919 = vunpack.c.l.b16 %v3336
  %v3920 = vunpack.c.h.b16 %v3336
  %v3921 = vunpack.c.l.b16 %v3337
  %v3922 = vunpack.c.h.b16 %v3337
  %v3923 = vunpack.c.l.b16 %v3338
  %v3924 = vunpack.c.h.b16 %v3338
  %v3925 = vunpack.c.l.b16 %v3339
  %v3926 = vunpack.c.h.b16 %v3339
  %v3927 = vunpack.c.l.b16 %v3340
  %v3928 = vunpack.c.h.b16 %v3340
  %v3929 = vunpack.c.l.b16 %v3341
  %v3930 = vunpack.c.h.b16 %v3341
  %v3931 = vunpack.c.l.b16 %v3342
  %v3932 = vunpack.c.h.b16 %v3342
  %v3933 = vunpack.c.l.b16 %v3343
  %v3934 = vunpack.c.h.b16 %v3343
  %v3935 = vunpack.c.l.b16 %v3344
  %v3936 = vunpack.c.h.b16 %v3344
  %v3937 = vunpack.c.l.b16 %v3345
  %v3938 = vunpack.c.h.b16 %v3345
  %v3939 = vunpack.c.l.b16 %v3346
  %v3940 = vunpack.c.h.b16 %v3346
  %v3941 = vunpack.c.l.b16 %v3347
  %v3942 = vunpack.c.h.b16 %v3347
  %v3943 = vunpack.c.l.b16 %v3348
  %v3944 = vunpack.c.h.b16 %v3348
  %v3945 = vunpack.c.l.b16 %v3349
  %v3946 = vunpack.c.h.b16 %v3349
  %v3947 = vunpack.c.l.b16 %v3350
  %v3948 = vunpack.c.h.b16 %v3350
  %v3949 = vunpack.c.l.b16 %v3351
  %v3950 = vunpack.c.h.b16 %v3351
  %v3951 = vunpack.c.l.b16 %v3352
  %v3952 = vunpack.c.h.b16 %v3352
  %v3953 = vunpack.c.l.b16 %v3353
  %v3954 = vunpack.c.h.b16 %v3353
  %v3955 = vunpack.c.l.b16 %v3354
  %v3956 = vunpack.c.h.b16 %v3354
  %v3957 = vunpack.c.l.b16 %v3355
  %v3958 = vunpack.c.h.b16 %v3355
  %v3959 = vunpack.c.l.b16 %v3356
  %v3960 = vunpack.c.h.b16 %v3356
  %v3961 = vunpack.c.l.b16 %v3357
  %v3962 = vunpack.c.h.b16 %v3357
  %v3963 = vunpack.c.l.b16 %v3358
  %v3964 = vunpack.c.h.b16 %v3358
  %v3965 = vunpack.c.l.b16 %v3359
  %v3966 = vunpack.c.h.b16 %v3359
  %v3967 = vunpack.c.l.b16 %v3360
  %v3968 = vunpack.c.h.b16 %v3360
  %v3969 = vunpack.c.l.b16 %v3361
  %v3970 = vunpack.c.h.b16 %v3361
  %v3971 = vunpack.c.l.b16 %v3362
  %v3972 = vunpack.c.h.b16 %v3362
  %v3973 = vunpack.c.l.b16 %v3363
  %v3974 = vunpack.c.h.b16 %v3363
  %v3975 = vunpack.c.l.b16 %v3364
  %v3976 = vunpack.c.h.b16 %v3364
  %v3977 = vunpack.c.l.b16 %v3365
  %v3978 = vunpack.c.h.b16 %v3365
  %v3979 = vunpack.c.l.b16 %v3366
  %v3980 = vunpack.c.h.b16 %v3366
  %v3981 = vunpack.c.l.b16 %v3367
  %v3982 = vunpack.c.h.b16 %v3367
  %v3983 = vunpack.c.l.b16 %v3368
  %v3984 = vunpack.c.h.b16 %v3368
  %v3985 = vunpack.c.l.b16 %v3369
  %v3986 = vunpack.c.h.b16 %v3369
  %v3987 = vunpack.c.l.b16 %v3370
  %v3988 = vunpack.c.h.b16 %v3370
  %v3989 = vunpack.c.l.b16 %v3371
  %v3990 = vunpack.c.h.b16 %v3371
  %v3991 = vunpack.c.l.b16 %v3372
  %v3992 = vunpack.c.h.b16 %v3372
  %v3993 = vunpack.c.l.b16 %v3373
  %v3994 = vunpack.c.h.b16 %v3373
  %v3995 = vunpack.c.l.b16 %v3374
  %v3996 = vunpack.c.h.b16 %v3374
  %v3997 = vunpack.c.l.b16 %v3375
  %v3998 = vunpack.c.h.b16 %v3375
  %v3999 = vunpack.c.l.b16 %v3376
  %v4000 = vunpack.c.h.b16 %v3376
  %v4001 = vunpack.c.l.b16 %v3377
  %v4002 = vunpack.c.h.b16 %v3377
  %v4003 = vunpack.c.l.b16 %v3378
  %v4004 = vunpack.c.h.b16 %v3378
  %v4005 = vunpack.c.l.b16 %v3379
  %v4006 = vunpack.c.h.b16 %v3379
  %v4007 = vunpack.c.l.b16 %v3380
  %v4008 = vunpack.c.h.b16 %v3380
  %v4009 = vunpack.c.l.b16 %v3381
  %v4010 = vunpack.c.h.b16 %v3381
  %v4011 = vunpack.c.l.b16 %v3382
  %v4012 = vunpack.c.h.b16 %v3382
  %v4013 = vunpack.c.l.b16 %v3383
  %v4014 = vunpack.c.h.b16 %v3383
  %v4015 = vunpack.c.l.b16 %v3384
  %v4016 = vunpack.c.h.b16 %v3384
  %v4017 = vunpack.c.l.b16 %v3385
  %v4018 = vunpack.c.h.b16 %v3385
  %v4019 = vunpack.c.l.b16 %v3386
  %v4020 = vunpack.c.h.b16 %v3386
  %v4021 = vunpack.c.l.b16 %v3387
  %v4022 = vunpack.c.h.b16 %v3387
  %v4023 = vunpack.c.l.b16 %v3388
  %v4024 = vunpack.c.h.b16 %v3388
  %v4025 = vunpack.c.l.b16 %v3389
  %v4026 = vunpack.c.h.b16 %v3389
  %v4027 = vunpack.c.l.b16 %v3390
  %v4028 = vunpack.c.h.b16 %v3390
  %v4029 = vunpack.c.l.b16 %v3391
  %v4030 = vunpack.c.h.b16 %v3391
  %v4031 = vunpack.c.l.b16 %v3392
  %v4032 = vunpack.c.h.b16 %v3392
  %v4033 = vunpack.c.l.b16 %v3393
  %v4034 = vunpack.c.h.b16 %v3393
  %v4035 = vunpack.c.l.b16 %v3394
  %v4036 = vunpack.c.h.b16 %v3394
  %v4037 = vunpack.c.l.b16 %v3395
  %v4038 = vunpack.c.h.b16 %v3395
  %v4039 = vunpack.c.l.b16 %v3396
  %v4040 = vunpack.c.h.b16 %v3396
  %v4041 = vunpack.c.l.b16 %v3397
  %v4042 = vunpack.c.h.b16 %v3397
  %v4043 = vunpack.c.l.b16 %v3398
  %v4044 = vunpack.c.h.b16 %v3398
  %v4045 = vunpack.c.l.b16 %v3399
  %v4046 = vunpack.c.h.b16 %v3399
  %v4047 = vunpack.c.l.b16 %v3400
  %v4048 = vunpack.c.h.b16 %v3400
  %v4049 = vunpack.c.l.b16 %v3401
  %v4050 = vunpack.c.h.b16 %v3401
  %v4051 = vunpack.c.l.b16 %v3402
  %v4052 = vunpack.c.h.b16 %v3402
  %v4053 = vunpack.c.l.b16 %v3403
  %v4054 = vunpack.c.h.b16 %v3403
  %v4055 = vunpack.c.l.b16 %v3404
  %v4056 = vunpack.c.h.b16 %v3404
  %v4057 = vunpack.c.l.b16 %v3405
  %v4058 = vunpack.c.h.b16 %v3405
  %v4059 = vunpack.c.l.b16 %v3406
  %v4060 = vunpack.c.h.b16 %v3406
  %v4061 = vunpack.c.l.b16 %v3407
  %v4062 = vunpack.c.h.b16 %v3407
  %v4063 = vunpack.c.l.b16 %v3408
  %v4064 = vunpack.c.h.b16 %v3408
  %v4065 = vunpack.c.l.b16 %v3409
  %v4066 = vunpack.c.h.b16 %v3409
  %v4067 = vunpack.c.l.b16 %v3410
  %v4068 = vunpack.c.h.b16 %v3410
  %v4069 = vunpack.c.l.b16 %v3411
  %v4070 = vunpack.c.h.b16 %v3411
  %v4071 = vunpack.c.l.b16 %v3412
  %v4072 = vunpack.c.h.b16 %v3412
  %v4073 = vunpack.c.l.b16 %v3413
  %v4074 = vunpack.c.h.b16 %v3413
  %v4075 = vunpack.c.l.b16 %v3414
  %v4076 = vunpack.c.h.b16 %v3414
  %v4077 = vunpack.c.l.b16 %v3415
  %v4078 = vunpack.c.h.b16 %v3415
  %v4079 = vunpack.c.l.b16 %v3416
  %v4080 = vunpack.c.h.b16 %v3416
  %v4081 = vunpack.c.l.b16 %v3417
  %v4082 = vunpack.c.h.b16 %v3417
  %v4083 = vunpack.c.l.b16 %v3418
  %v4084 = vunpack.c.h.b16 %v3418
  %v4085 = vunpack.c.l.b16 %v3419
  %v4086 = vunpack.c.h.b16 %v3419
  %v4087 = vunpack.c.l.b16 %v3420
  %v4088 = vunpack.c.h.b16 %v3420
  %v4089 = vunpack.c.l.b16 %v3421
  %v4090 = vunpack.c.h.b16 %v3421
  %v4091 = vunpack.c.l.b16 %v3422
  %v4092 = vunpack.c.h.b16 %v3422
  %v4093 = vunpack.c.l.b16 %v3423
  %v4094 = vunpack.c.h.b16 %v3423
  %v4095 = vunpack.c.l.b16 %v3424
  %v4096 = vunpack.c.h.b16 %v3424
  %v4097 = vunpack.c.l.b16 %v3425
  %v4098 = vunpack.c.h.b16 %v3425
  %v4099 = vunpack.c.l.b16 %v3426
  %v4100 = vunpack.c.h.b16 %v3426
  %v4101 = vunpack.c.l.b16 %v3427
  %v4102 = vunpack.c.h.b16 %v3427
  %v4103 = vunpack.c.l.b16 %v3428
  %v4104 = vunpack.c.h.b16 %v3428
  %v4105 = vunpack.c.l.b16 %v3429
  %v4106 = vunpack.c.h.b16 %v3429
  %v4107 = vunpack.c.l.b16 %v3430
  %v4108 = vunpack.c.h.b16 %v3430
  %v4109 = vunpack.c.l.b16 %v3431
  %v4110 = vunpack.c.h.b16 %v3431
  %v4111 = vunpack.c.l.b16 %v3432
  %v4112 = vunpack.c.h.b16 %v3432
  %v4113 = vunpack.c.l.b16 %v3433
  %v4114 = vunpack.c.h.b16 %v3433
  %v4115 = vunpack.c.l.b16 %v3434
  %v4116 = vunpack.c.h.b16 %v3434
  %v4117 = vunpack.c.l.b16 %v3435
  %v4118 = vunpack.c.h.b16 %v3435
  %v4119 = vunpack.c.l.b16 %v3436
  %v4120 = vunpack.c.h.b16 %v3436
  %v4121 = vunpack.c.l.b16 %v3437
  %v4122 = vunpack.c.h.b16 %v3437
  %v4123 = vunpack.c.l.b16 %v3438
  %v4124 = vunpack.c.h.b16 %v3438
  %v4125 = vunpack.c.l.b16 %v3439
  %v4126 = vunpack.c.h.b16 %v3439
  %v4127 = vunpack.c.l.b16 %v3440
  %v4128 = vunpack.c.h.b16 %v3440
  %v4129 = vunpack.c.l.b16 %v3441
  %v4130 = vunpack.c.h.b16 %v3441
  %v4131 = vunpack.c.l.b16 %v3442
  %v4132 = vunpack.c.h.b16 %v3442
  %v4133 = vunpack.c.l.b16 %v3443
  %v4134 = vunpack.c.h.b16 %v3443
  %v4135 = vunpack.c.l.b16 %v3444
  %v4136 = vunpack.c.h.b16 %v3444
  %v4137 = vunpack.c.l.b16 %v3445
  %v4138 = vunpack.c.h.b16 %v3445
  %v4139 = vunpack.c.l.b16 %v3446
  %v4140 = vunpack.c.h.b16 %v3446
  %v4141 = vpack.c.b16 %v3697, %v3693
  %v4142 = vpack.c.b16 %v3698, %v3694
  %v4143 = vpack.c.b16 %v3699, %v3695
  %v4144 = vpack.c.b16 %v3700, %v3696
  %v4145 = vpack.c.b16 %v3705, %v3701
  %v4146 = vpack.c.b16 %v3706, %v3702
  %v4147 = vpack.c.b16 %v3707, %v3703
  %v4148 = vpack.c.b16 %v3708, %v3704
  %v4149 = vpack.c.b16 %v3713, %v3709
  %v4150 = vpack.c.b16 %v3714, %v3710
  %v4151 = vpack.c.b16 %v3715, %v3711
  %v4152 = vpack.c.b16 %v3716, %v3712
  %v4153 = vpack.c.b16 %v3721, %v3717
  %v4154 = vpack.c.b16 %v3722, %v3718
  %v4155 = vpack.c.b16 %v3723, %v3719
  %v4156 = vpack.c.b16 %v3724, %v3720
  %v4157 = vpack.c.b16 %v3729, %v3725
  %v4158 = vpack.c.b16 %v3730, %v3726
  %v4159 = vpack.c.b16 %v3731, %v3727
  %v4160 = vpack.c.b16 %v3732, %v3728
  %v4161 = vpack.c.b16 %v3737, %v3733
  %v4162 = vpack.c.b16 %v3738, %v3734
  %v4163 = vpack.c.b16 %v3739, %v3735
  %v4164 = vpack.c.b16 %v3740, %v3736
  %v4165 = vpack.c.b16 %v3745, %v3741
  %v4166 = vpack.c.b16 %v3746, %v3742
  %v4167 = vpack.c.b16 %v3747, %v3743
  %v4168 = vpack.c.b16 %v3748, %v3744
  %v4169 = vpack.c.b16 %v3753, %v3749
  %v4170 = vpack.c.b16 %v3754, %v3750
  %v4171 = vpack.c.b16 %v3755, %v3751
  %v4172 = vpack.c.b16 %v3756, %v3752
  %v4173 = vpack.c.b16 %v3761, %v3757
  %v4174 = vpack.c.b16 %v3762, %v3758
  %v4175 = vpack.c.b16 %v3763, %v3759
  %v4176 = vpack.c.b16 %v3764, %v3760
  %v4177 = vpack.c.b16 %v3769, %v3765
  %v4178 = vpack.c.b16 %v3770, %v3766
  %v4179 = vpack.c.b16 %v3771, %v3767
  %v4180 = vpack.c.b16 %v3772, %v3768
  %v4181 = vpack.c.b16 %v3777, %v3773
  %v4182 = vpack.c.b16 %v3778, %v3774
  %v4183 = vpack.c.b16 %v3779, %v3775
  %v4184 = vpack.c.b16 %v3780, %v3776
  %v4185 = vpack.c.b16 %v3785, %v3781
  %v4186 = vpack.c.b16 %v3786, %v3782
  %v4187 = vpack.c.b16 %v3787, %v3783
  %v4188 = vpack.c.b16 %v3788, %v3784
  %v4189 = vpack.c.b16 %v3793, %v3789
  %v4190 = vpack.c.b16 %v3794, %v3790
  %v4191 = vpack.c.b16 %v3795, %v3791
  %v4192 = vpack.c.b16 %v3796, %v3792
  %v4193 = vpack.c.b16 %v3801, %v3797
  %v4194 = vpack.c.b16 %v3802, %v3798
  %v4195 = vpack.c.b16 %v3803, %v3799
  %v4196 = vpack.c.b16 %v3804, %v3800
  %v4197 = vpack.c.b16 %v3809, %v3805
  %v4198 = vpack.c.b16 %v3810, %v3806
  %v4199 = vpack.c.b16 %v3811, %v3807
  %v4200 = vpack.c.b16 %v3812, %v3808
  %v4201 = vpack.c.b16 %v3817, %v3813
  %v4202 = vpack.c.b16 %v3818, %v3814
  %v4203 = vpack.c.b16 %v3819, %v3815
  %v4204 = vpack.c.b16 %v3820, %v3816
  %v4205 = vpack.c.b16 %v3825, %v3821
  %v4206 = vpack.c.b16 %v3826, %v3822
  %v4207 = vpack.c.b16 %v3827, %v3823
  %v4208 = vpack.c.b16 %v3828, %v3824
  %v4209 = vpack.c.b16 %v3833, %v3829
  %v4210 = vpack.c.b16 %v3834, %v3830
  %v4211 = vpack.c.b16 %v3835, %v3831
  %v4212 = vpack.c.b16 %v3836, %v3832
  %v4213 = vpack.c.b16 %v3841, %v3837
  %v4214 = vpack.c.b16 %v3842, %v3838
  %v4215 = vpack.c.b16 %v3843, %v3839
  %v4216 = vpack.c.b16 %v3844, %v3840
  %v4217 = vpack.c.b16 %v3849, %v3845
  %v4218 = vpack.c.b16 %v3850, %v3846
  %v4219 = vpack.c.b16 %v3851, %v3847
  %v4220 = vpack.c.b16 %v3852, %v3848
  %v4221 = vpack.c.b16 %v3857, %v3853
  %v4222 = vpack.c.b16 %v3858, %v3854
  %v4223 = vpack.c.b16 %v3859, %v3855
  %v4224 = vpack.c.b16 %v3860, %v3856
  %v4225 = vpack.c.b16 %v3865, %v3861
  %v4226 = vpack.c.b16 %v3866, %v3862
  %v4227 = vpack.c.b16 %v3867, %v3863
  %v4228 = vpack.c.b16 %v3868, %v3864
  %v4229 = vpack.c.b16 %v3873, %v3869
  %v4230 = vpack.c.b16 %v3874, %v3870
  %v4231 = vpack.c.b16 %v3875, %v3871
  %v4232 = vpack.c.b16 %v3876, %v3872
  %v4233 = vpack.c.b16 %v3881, %v3877
  %v4234 = vpack.c.b16 %v3882, %v3878
  %v4235 = vpack.c.b16 %v3883, %v3879
  %v4236 = vpack.c.b16 %v3884, %v3880
  %v4237 = vpack.c.b16 %v3889, %v3885
  %v4238 = vpack.c.b16 %v3890, %v3886
  %v4239 = vpack.c.b16 %v3891, %v3887
  %v4240 = vpack.c.b16 %v3892, %v3888
  %v4241 = vpack.c.b16 %v3897, %v3893
  %v4242 = vpack.c.b16 %v3898, %v3894
  %v4243 = vpack.c.b16 %v3899, %v3895
  %v4244 = vpack.c.b16 %v3900, %v3896
  %v4245 = vpack.c.b16 %v3905, %v3901
  %v4246 = vpack.c.b16 %v3906, %v3902
  %v4247 = vpack.c.b16 %v3907, %v3903
  %v4248 = vpack.c.b16 %v3908, %v3904
  %v4249 = vpack.c.b16 %v3913, %v3909
  %v4250 = vpack.c.b16 %v3914, %v3910
  %v4251 = vpack.c.b16 %v3915, %v3911
  %v4252 = vpack.c.b16 %v3916, %v3912
  %v4253 = vpack.c.b16 %v3921, %v3917
  %v4254 = vpack.c.b16 %v3922, %v3918
  %v4255 = vpack.c.b16 %v3923, %v3919
  %v4256 = vpack.c.b16 %v3924, %v3920
  %v4257 = vpack.c.b16 %v3929, %v3925
  %v4258 = vpack.c.b16 %v3930, %v3926
  %v4259 = vpack.c.b16 %v3931, %v3927
  %v4260 = vpack.c.b16 %v3932, %v3928
  %v4261 = vpack.c.b16 %v3937, %v3933
  %v4262 = vpack.c.b16 %v3938, %v3934
  %v4263 = vpack.c.b16 %v3939, %v3935
  %v4264 = vpack.c.b16 %v3940, %v3936
  %v4265 = vpack.c.b16 %v3945, %v3941
  %v4266 = vpack.c.b16 %v3946, %v3942
  %v4267 = vpack.c.b16 %v3947, %v3943
  %v4268 = vpack.c.b16 %v3948, %v3944
  %v4269 = vpack.c.b16 %v3953, %v3949
  %v4270 = vpack.c.b16 %v3954, %v3950
  %v4271 = vpack.c.b16 %v3955, %v3951
  %v4272 = vpack.c.b16 %v3956, %v3952
  %v4273 = vpack.c.b16 %v3961, %v3957
  %v4274 = vpack.c.b16 %v3962, %v3958
  %v4275 = vpack.c.b16 %v3963, %v3959
  %v4276 = vpack.c.b16 %v3964, %v3960
  %v4277 = vpack.c.b16 %v3969, %v3965
  %v4278 = vpack.c.b16 %v3970, %v3966
  %v4279 = vpack.c.b16 %v3971, %v3967
  %v4280 = vpack.c.b16 %v3972, %v3968
  %v4281 = vpack.c.b16 %v3977, %v3973
  %v4282 = vpack.c.b16 %v3978, %v3974
  %v4283 = vpack.c.b16 %v3979, %v3975
  %v4284 = vpack.c.b16 %v3980, %v3976
  %v4285 = vpack.c.b16 %v3985, %v3981
  %v4286 = vpack.c.b16 %v3986, %v3982
  %v4287 = vpack.c.b16 %v3987, %v3983
  %v4288 = vpack.c.b16 %v3988, %v3984
  %v4289 = vpack.c.b16 %v3993, %v3989
  %v4290 = vpack.c.b16 %v3994, %v3990
  %v4291 = vpack.c.b16 %v3995, %v3991
  %v4292 = vpack.c.b16 %v3996, %v3992
  %v4293 = vpack.c.b16 %v4001, %v3997
  %v4294 = vpack.c.b16 %v4002, %v3998
  %v4295 = vpack.c.b16 %v4003, %v3999
  %v4296 = vpack.c.b16 %v4004, %v4000
  %v4297 = vpack.c.b16 %v4009, %v4005
  %v4298 = vpack.c.b16 %v4010, %v4006
  %v4299 = vpack.c.b16 %v4011, %v4007
  %v4300 = vpack.c.b16 %v4012, %v4008
  %v4301 = vpack.c.b16 %v4017, %v4013
  %v4302 = vpack.c.b16 %v4018, %v4014
  %v4303 = vpack.c.b16 %v4019, %v4015
  %v4304 = vpack.c.b16 %v4020, %v4016
  %v4305 = vpack.c.b16 %v4025, %v4021
  %v4306 = vpack.c.b16 %v4026, %v4022
  %v4307 = vpack.c.b16 %v4027, %v4023
  %v4308 = vpack.c.b16 %v4028, %v4024
  %v4309 = vpack.c.b16 %v4033, %v4029
  %v4310 = vpack.c.b16 %v4034, %v4030
  %v4311 = vpack.c.b16 %v4035, %v4031
  %v4312 = vpack.c.b16 %v4036, %v4032
  %v4313 = vpack.c.b16 %v4041, %v4037
  %v4314 = vpack.c.b16 %v4042, %v4038
  %v4315 = vpack.c.b16 %v4043, %v4039
  %v4316 = vpack.c.b16 %v4044, %v4040
  %v4317 = vpack.c.b16 %v4049, %v4045
  %v4318 = vpack.c.b16 %v4050, %v4046
  %v4319 = vpack.c.b16 %v4051, %v4047
  %v4320 = vpack.c.b16 %v4052, %v4048
  %v4321 = vpack.c.b16 %v4057, %v4053
  %v4322 = vpack.c.b16 %v4058, %v4054
  %v4323 = vpack.c.b16 %v4059, %v4055
  %v4324 = vpack.c.b16 %v4060, %v4056
  %v4325 = vpack.c.b16 %v4065, %v4061
  %v4326 = vpack.c.b16 %v4066, %v4062
  %v4327 = vpack.c.b16 %v4067, %v4063
  %v4328 = vpack.c.b16 %v4068, %v4064
  %v4329 = vpack.c.b16 %v4073, %v4069
  %v4330 = vpack.c.b16 %v4074, %v4070
  %v4331 = vpack.c.b16 %v4075, %v4071
  %v4332 = vpack.c.b16 %v4076, %v4072
  %v4333 = vpack.c.b16 %v4081, %v4077
  %v4334 = vpack.c.b16 %v4082, %v4078
  %v4335 = vpack.c.b16 %v4083, %v4079
  %v4336 = vpack.c.b16 %v4084, %v4080
  %v4337 = vpack.c.b16 %v4089, %v4085
  %v4338 = vpack.c.b16 %v4090, %v4086
  %v4339 = vpack.c.b16 %v4091, %v4087
  %v4340 = vpack.c.b16 %v4092, %v4088
  %v4341 = vpack.c.b16 %v4097, %v4093
  %v4342 = vpack.c.b16 %v4098, %v4094
  %v4343 = vpack.c.b16 %v4099, %v4095
  %v4344 = vpack.c.b16 %v4100, %v4096
  %v4345 = vpack.c.b16 %v4105, %v4101
  %v4346 = vpack.c.b16 %v4106, %v4102
  %v4347 = vpack.c.b16 %v4107, %v4103
  %v4348 = vpack.c.b16 %v4108, %v4104
  %v4349 = vpack.c.b16 %v4113, %v4109
  %v4350 = vpack.c.b16 %v4114, %v4110
  %v4351 = vpack.c.b16 %v4115, %v4111
  %v4352 = vpack.c.b16 %v4116, %v4112
  %v4353 = vpack.c.b16 %v4121, %v4117
  %v4354 = vpack.c.b16 %v4122, %v4118
  %v4355 = vpack.c.b16 %v4123, %v4119
  %v4356 = vpack.c.b16 %v4124, %v4120
  %v4357 = vpack.c.b16 %v4129, %v4125
  %v4358 = vpack.c.b16 %v4130, %v4126
  %v4359 = vpack.c.b16 %v4131, %v4127
  %v4360 = vpack.c.b16 %v4132, %v4128
  %v4361 = vpack.c.b16 %v4137, %v4133
  %v4362 = vpack.c.b16 %v4138, %v4134
  %v4363 = vpack.c.b16 %v4139, %v4135
  %v4364 = vpack.c.b16 %v4140, %v4136
  %4589 = vmatprep.subr.bf16.mxu0 %v4142
  %4590 = vmatpush1.bf16.msra.mxu0 %v4141
  %4591 = vmatprep.subr.bf16.mxu0 %v4146
  %4592 = vmatpush1.bf16.msra.mxu0 %v4145
  %4593 = vmatprep.subr.bf16.mxu0 %v4150
  %4594 = vmatpush1.bf16.msra.mxu0 %v4149
  %4595 = vmatprep.subr.bf16.mxu0 %v4154
  %4596 = vmatpush1.bf16.msra.mxu0 %v4153
  %4597 = vmatprep.subr.bf16.mxu0 %v4158
  %4598 = vmatpush1.bf16.msra.mxu0 %v4157
  %4599 = vmatprep.subr.bf16.mxu0 %v4162
  %4600 = vmatpush1.bf16.msra.mxu0 %v4161
  %4601 = vmatprep.subr.bf16.mxu0 %v4166
  %4602 = vmatpush1.bf16.msra.mxu0 %v4165
  %4603 = vmatprep.subr.bf16.mxu0 %v4170
  %4604 = vmatpush1.bf16.msra.mxu0 %v4169
  %4605 = vmatprep.subr.bf16.mxu0 %v4174
  %4606 = vmatpush1.bf16.msra.mxu0 %v4173
  %4607 = vmatprep.subr.bf16.mxu0 %v4178
  %4608 = vmatpush1.bf16.msra.mxu0 %v4177
  %4609 = vmatprep.subr.bf16.mxu0 %v4182
  %4610 = vmatpush1.bf16.msra.mxu0 %v4181
  %4611 = vmatprep.subr.bf16.mxu0 %v4186
  %4612 = vmatpush1.bf16.msra.mxu0 %v4185
  %4613 = vmatprep.subr.bf16.mxu0 %v4190
  %4614 = vmatpush1.bf16.msra.mxu0 %v4189
  %4615 = vmatprep.subr.bf16.mxu0 %v4194
  %4616 = vmatpush1.bf16.msra.mxu0 %v4193
  %4617 = vmatprep.subr.bf16.mxu0 %v4198
  %4618 = vmatpush1.bf16.msra.mxu0 %v4197
  %4619 = vmatprep.subr.bf16.mxu0 %v4202
  %4620 = vmatpush1.bf16.msra.mxu0 %v4201
  %4621 = vmatprep.mubr.bf16.mxu0 %v3217
  %4622 = vmatmul.mubr.bf16.gmra.mrb[0].mxu0 %v3216
  %v4623 = vpop.f32.mrb[0].mxu0
  %v4624 = vadd.f32 %v3452, %v4623
  %v4625 = vpop.f32.mrb[0].mxu0
  %v4626 = vadd.f32 %v3456, %v4625
  %v4627 = vpop.f32.mrb[0].mxu0
  %v4628 = vpop.f32.mrb[0].mxu0
  %4629 = vdwg.mxu0
  %4630 = vmatprep.subr.bf16.mxu0 %v4206
  %4631 = vmatpush1.bf16.msra.mxu0 %v4205
  %4632 = vmatprep.subr.bf16.mxu0 %v4210
  %4633 = vmatpush1.bf16.msra.mxu0 %v4209
  %4634 = vmatprep.subr.bf16.mxu0 %v4214
  %4635 = vmatpush1.bf16.msra.mxu0 %v4213
  %4636 = vmatprep.subr.bf16.mxu0 %v4218
  %4637 = vmatpush1.bf16.msra.mxu0 %v4217
  %4638 = vmatprep.subr.bf16.mxu0 %v4222
  %4639 = vmatpush1.bf16.msra.mxu0 %v4221
  %4640 = vmatprep.subr.bf16.mxu0 %v4226
  %4641 = vmatpush1.bf16.msra.mxu0 %v4225
  %4642 = vmatprep.subr.bf16.mxu0 %v4230
  %4643 = vmatpush1.bf16.msra.mxu0 %v4229
  %4644 = vmatprep.subr.bf16.mxu0 %v4234
  %4645 = vmatpush1.bf16.msra.mxu0 %v4233
  %4646 = vmatprep.subr.bf16.mxu0 %v4238
  %4647 = vmatpush1.bf16.msra.mxu0 %v4237
  %4648 = vmatprep.subr.bf16.mxu0 %v4242
  %4649 = vmatpush1.bf16.msra.mxu0 %v4241
  %4650 = vmatprep.subr.bf16.mxu0 %v4246
  %4651 = vmatpush1.bf16.msra.mxu0 %v4245
  %4652 = vmatprep.subr.bf16.mxu0 %v4250
  %4653 = vmatpush1.bf16.msra.mxu0 %v4249
  %4654 = vmatprep.subr.bf16.mxu0 %v4254
  %4655 = vmatpush1.bf16.msra.mxu0 %v4253
  %4656 = vmatprep.subr.bf16.mxu0 %v4258
  %4657 = vmatpush1.bf16.msra.mxu0 %v4257
  %4658 = vmatprep.subr.bf16.mxu0 %v4262
  %4659 = vmatpush1.bf16.msra.mxu0 %v4261
  %4660 = vmatprep.subr.bf16.mxu0 %v4266
  %4661 = vmatpush1.bf16.msra.mxu0 %v4265
  %4662 = vmatprep.mubr.bf16.mxu0 %v3219
  %4663 = vmatmul.mubr.bf16.gmra.mrb[0].mxu0 %v3218
  %v4664 = vpop.f32.mrb[0].mxu0
  %v4665 = vadd.f32 %v4624, %v4664
  %v4666 = vpop.f32.mrb[0].mxu0
  %v4667 = vadd.f32 %v4626, %v4666
  %v4668 = vpop.f32.mrb[0].mxu0
  %v4669 = vpop.f32.mrb[0].mxu0
  %4670 = vdwg.mxu0
  %4671 = vmatprep.subr.bf16.mxu0 %v4270
  %4672 = vmatpush1.bf16.msra.mxu0 %v4269
  %4673 = vmatprep.subr.bf16.mxu0 %v4274
  %4674 = vmatpush1.bf16.msra.mxu0 %v4273
  %4675 = vmatprep.subr.bf16.mxu0 %v4278
  %4676 = vmatpush1.bf16.msra.mxu0 %v4277
  %4677 = vmatprep.subr.bf16.mxu0 %v4282
  %4678 = vmatpush1.bf16.msra.mxu0 %v4281
  %4679 = vmatprep.subr.bf16.mxu0 %v4286
  %4680 = vmatpush1.bf16.msra.mxu0 %v4285
  %4681 = vmatprep.subr.bf16.mxu0 %v4290
  %4682 = vmatpush1.bf16.msra.mxu0 %v4289
  %4683 = vmatprep.subr.bf16.mxu0 %v4294
  %4684 = vmatpush1.bf16.msra.mxu0 %v4293
  %4685 = vmatprep.subr.bf16.mxu0 %v4298
  %4686 = vmatpush1.bf16.msra.mxu0 %v4297
  %4687 = vmatprep.subr.bf16.mxu0 %v4302
  %4688 = vmatpush1.bf16.msra.mxu0 %v4301
  %4689 = vmatprep.subr.bf16.mxu0 %v4306
  %4690 = vmatpush1.bf16.msra.mxu0 %v4305
  %4691 = vmatprep.subr.bf16.mxu0 %v4310
  %4692 = vmatpush1.bf16.msra.mxu0 %v4309
  %4693 = vmatprep.subr.bf16.mxu0 %v4314
  %4694 = vmatpush1.bf16.msra.mxu0 %v4313
  %4695 = vmatprep.subr.bf16.mxu0 %v4318
  %4696 = vmatpush1.bf16.msra.mxu0 %v4317
  %4697 = vmatprep.subr.bf16.mxu0 %v4322
  %4698 = vmatpush1.bf16.msra.mxu0 %v4321
  %4699 = vmatprep.subr.bf16.mxu0 %v4326
  %4700 = vmatpush1.bf16.msra.mxu0 %v4325
  %4701 = vmatprep.subr.bf16.mxu0 %v4330
  %4702 = vmatpush1.bf16.msra.mxu0 %v4329
  %4703 = vmatprep.mubr.bf16.mxu0 %v3221
  %4704 = vmatmul.mubr.bf16.gmra.mrb[0].mxu0 %v3220
  %v4705 = vpop.f32.mrb[0].mxu0
  %v4706 = vadd.f32 %v4665, %v4705
  %v4707 = vpop.f32.mrb[0].mxu0
  %v4708 = vadd.f32 %v4667, %v4707
  %v4709 = vpop.f32.mrb[0].mxu0
  %v4710 = vpop.f32.mrb[0].mxu0
  %4711 = vdwg.mxu0
  %4712 = vmatprep.subr.bf16.mxu0 %v4334
  %4713 = vmatpush1.bf16.msra.mxu0 %v4333
  %4714 = vmatprep.subr.bf16.mxu0 %v4338
  %4715 = vmatpush1.bf16.msra.mxu0 %v4337
  %4716 = vmatprep.subr.bf16.mxu0 %v4342
  %4717 = vmatpush1.bf16.msra.mxu0 %v4341
  %4718 = vmatprep.subr.bf16.mxu0 %v4346
  %4719 = vmatpush1.bf16.msra.mxu0 %v4345
  %4720 = vmatprep.subr.bf16.mxu0 %v4350
  %4721 = vmatpush1.bf16.msra.mxu0 %v4349
  %4722 = vmatprep.subr.bf16.mxu0 %v4354
  %4723 = vmatpush1.bf16.msra.mxu0 %v4353
  %4724 = vmatprep.subr.bf16.mxu0 %v4358
  %4725 = vmatpush1.bf16.msra.mxu0 %v4357
  %4726 = vmatprep.subr.bf16.mxu0 %v4362
  %4727 = vmatpush1.bf16.msra.mxu0 %v4361
  %4728 = vmatprep.subr.bf16.mxu0 0
  %4729 = vmatpush1.bf16.msra.mxu0 0
  %4730 = vmatprep.subr.bf16.mxu0 0
  %4731 = vmatpush1.bf16.msra.mxu0 0
  %4732 = vmatprep.subr.bf16.mxu0 0
  %4733 = vmatpush1.bf16.msra.mxu0 0
  %4734 = vmatprep.subr.bf16.mxu0 0
  %4735 = vmatpush1.bf16.msra.mxu0 0
  %4736 = vmatprep.subr.bf16.mxu0 0
  %4737 = vmatpush1.bf16.msra.mxu0 0
  %4738 = vmatprep.subr.bf16.mxu0 0
  %4739 = vmatpush1.bf16.msra.mxu0 0
  %4740 = vmatprep.subr.bf16.mxu0 0
  %4741 = vmatpush1.bf16.msra.mxu0 0
  %4742 = vmatprep.subr.bf16.mxu0 0
  %4743 = vmatpush1.bf16.msra.mxu0 0
  %4744 = vmatprep.mubr.bf16.mxu0 0
  %4745 = vmatmul.mubr.bf16.gmra.mrb[0].mxu0 %v3222
  %v4746 = vpop.f32.mrb[0].mxu0
  %v4747 = vadd.f32 %v4706, %v4746
  %v4748 = vpop.f32.mrb[0].mxu0
  %v4749 = vadd.f32 %v4708, %v4748
  %v4750 = vpop.f32.mrb[0].mxu0
  %v4751 = vpop.f32.mrb[0].mxu0
  %4752 = vdwg.mxu0
  %4753 = vmatprep.subr.bf16.mxu0 %v4144
  %4754 = vmatpush1.bf16.msra.mxu0 %v4143
  %4755 = vmatprep.subr.bf16.mxu0 %v4148
  %4756 = vmatpush1.bf16.msra.mxu0 %v4147
  %4757 = vmatprep.subr.bf16.mxu0 %v4152
  %4758 = vmatpush1.bf16.msra.mxu0 %v4151
  %4759 = vmatprep.subr.bf16.mxu0 %v4156
  %4760 = vmatpush1.bf16.msra.mxu0 %v4155
  %4761 = vmatprep.subr.bf16.mxu0 %v4160
  %4762 = vmatpush1.bf16.msra.mxu0 %v4159
  %4763 = vmatprep.subr.bf16.mxu0 %v4164
  %4764 = vmatpush1.bf16.msra.mxu0 %v4163
  %4765 = vmatprep.subr.bf16.mxu0 %v4168
  %4766 = vmatpush1.bf16.msra.mxu0 %v4167
  %4767 = vmatprep.subr.bf16.mxu0 %v4172
  %4768 = vmatpush1.bf16.msra.mxu0 %v4171
  %4769 = vmatprep.subr.bf16.mxu0 %v4176
  %4770 = vmatpush1.bf16.msra.mxu0 %v4175
  %4771 = vmatprep.subr.bf16.mxu0 %v4180
  %4772 = vmatpush1.bf16.msra.mxu0 %v4179
  %4773 = vmatprep.subr.bf16.mxu0 %v4184
  %4774 = vmatpush1.bf16.msra.mxu0 %v4183
  %4775 = vmatprep.subr.bf16.mxu0 %v4188
  %4776 = vmatpush1.bf16.msra.mxu0 %v4187
  %4777 = vmatprep.subr.bf16.mxu0 %v4192
  %4778 = vmatpush1.bf16.msra.mxu0 %v4191
  %4779 = vmatprep.subr.bf16.mxu0 %v4196
  %4780 = vmatpush1.bf16.msra.mxu0 %v4195
  %4781 = vmatprep.subr.bf16.mxu0 %v4200
  %4782 = vmatpush1.bf16.msra.mxu0 %v4199
  %4783 = vmatprep.subr.bf16.mxu0 %v4204
  %4784 = vmatpush1.bf16.msra.mxu0 %v4203
  %4785 = vmatprep.mubr.bf16.mxu0 %v3217
  %4786 = vmatmul.mubr.bf16.gmra.mrb[0].mxu0 %v3216
  %v4787 = vpop.f32.mrb[0].mxu0
  %v4788 = vadd.f32 %v3460, %v4787
  %v4789 = vpop.f32.mrb[0].mxu0
  %v4790 = vadd.f32 %v3464, %v4789
  %v4791 = vpop.f32.mrb[0].mxu0
  %v4792 = vpop.f32.mrb[0].mxu0
  %4793 = vdwg.mxu0
  %4794 = vmatprep.subr.bf16.mxu0 %v4208
  %4795 = vmatpush1.bf16.msra.mxu0 %v4207
  %4796 = vmatprep.subr.bf16.mxu0 %v4212
  %4797 = vmatpush1.bf16.msra.mxu0 %v4211
  %4798 = vmatprep.subr.bf16.mxu0 %v4216
  %4799 = vmatpush1.bf16.msra.mxu0 %v4215
  %4800 = vmatprep.subr.bf16.mxu0 %v4220
  %4801 = vmatpush1.bf16.msra.mxu0 %v4219
  %4802 = vmatprep.subr.bf16.mxu0 %v4224
  %4803 = vmatpush1.bf16.msra.mxu0 %v4223
  %4804 = vmatprep.subr.bf16.mxu0 %v4228
  %4805 = vmatpush1.bf16.msra.mxu0 %v4227
  %4806 = vmatprep.subr.bf16.mxu0 %v4232
  %4807 = vmatpush1.bf16.msra.mxu0 %v4231
  %4808 = vmatprep.subr.bf16.mxu0 %v4236
  %4809 = vmatpush1.bf16.msra.mxu0 %v4235
  %4810 = vmatprep.subr.bf16.mxu0 %v4240
  %4811 = vmatpush1.bf16.msra.mxu0 %v4239
  %4812 = vmatprep.subr.bf16.mxu0 %v4244
  %4813 = vmatpush1.bf16.msra.mxu0 %v4243
  %4814 = vmatprep.subr.bf16.mxu0 %v4248
  %4815 = vmatpush1.bf16.msra.mxu0 %v4247
  %4816 = vmatprep.subr.bf16.mxu0 %v4252
  %4817 = vmatpush1.bf16.msra.mxu0 %v4251
  %4818 = vmatprep.subr.bf16.mxu0 %v4256
  %4819 = vmatpush1.bf16.msra.mxu0 %v4255
  %4820 = vmatprep.subr.bf16.mxu0 %v4260
  %4821 = vmatpush1.bf16.msra.mxu0 %v4259
  %4822 = vmatprep.subr.bf16.mxu0 %v4264
  %4823 = vmatpush1.bf16.msra.mxu0 %v4263
  %4824 = vmatprep.subr.bf16.mxu0 %v4268
  %4825 = vmatpush1.bf16.msra.mxu0 %v4267
  %4826 = vmatprep.mubr.bf16.mxu0 %v3219
  %4827 = vmatmul.mubr.bf16.gmra.mrb[0].mxu0 %v3218
  %v4828 = vpop.f32.mrb[0].mxu0
  %v4829 = vadd.f32 %v4788, %v4828
  %v4830 = vpop.f32.mrb[0].mxu0
  %v4831 = vadd.f32 %v4790, %v4830
  %v4832 = vpop.f32.mrb[0].mxu0
  %v4833 = vpop.f32.mrb[0].mxu0
  %4834 = vdwg.mxu0
  %4835 = vmatprep.subr.bf16.mxu0 %v4272
  %4836 = vmatpush1.bf16.msra.mxu0 %v4271
  %4837 = vmatprep.subr.bf16.mxu0 %v4276
  %4838 = vmatpush1.bf16.msra.mxu0 %v4275
  %4839 = vmatprep.subr.bf16.mxu0 %v4280
  %4840 = vmatpush1.bf16.msra.mxu0 %v4279
  %4841 = vmatprep.subr.bf16.mxu0 %v4284
  %4842 = vmatpush1.bf16.msra.mxu0 %v4283
  %4843 = vmatprep.subr.bf16.mxu0 %v4288
  %4844 = vmatpush1.bf16.msra.mxu0 %v4287
  %4845 = vmatprep.subr.bf16.mxu0 %v4292
  %4846 = vmatpush1.bf16.msra.mxu0 %v4291
  %4847 = vmatprep.subr.bf16.mxu0 %v4296
  %4848 = vmatpush1.bf16.msra.mxu0 %v4295
  %4849 = vmatprep.subr.bf16.mxu0 %v4300
  %4850 = vmatpush1.bf16.msra.mxu0 %v4299
  %4851 = vmatprep.subr.bf16.mxu0 %v4304
  %4852 = vmatpush1.bf16.msra.mxu0 %v4303
  %4853 = vmatprep.subr.bf16.mxu0 %v4308
  %4854 = vmatpush1.bf16.msra.mxu0 %v4307
  %4855 = vmatprep.subr.bf16.mxu0 %v4312
  %4856 = vmatpush1.bf16.msra.mxu0 %v4311
  %4857 = vmatprep.subr.bf16.mxu0 %v4316
  %4858 = vmatpush1.bf16.msra.mxu0 %v4315
  %4859 = vmatprep.subr.bf16.mxu0 %v4320
  %4860 = vmatpush1.bf16.msra.mxu0 %v4319
  %4861 = vmatprep.subr.bf16.mxu0 %v4324
  %4862 = vmatpush1.bf16.msra.mxu0 %v4323
  %4863 = vmatprep.subr.bf16.mxu0 %v4328
  %4864 = vmatpush1.bf16.msra.mxu0 %v4327
  %4865 = vmatprep.subr.bf16.mxu0 %v4332
  %4866 = vmatpush1.bf16.msra.mxu0 %v4331
  %4867 = vmatprep.mubr.bf16.mxu0 %v3221
  %4868 = vmatmul.mubr.bf16.gmra.mrb[0].mxu0 %v3220
  %v4869 = vpop.f32.mrb[0].mxu0
  %v4870 = vadd.f32 %v4829, %v4869
  %v4871 = vpop.f32.mrb[0].mxu0
  %v4872 = vadd.f32 %v4831, %v4871
  %v4873 = vpop.f32.mrb[0].mxu0
  %v4874 = vpop.f32.mrb[0].mxu0
  %4875 = vdwg.mxu0
  %4876 = vmatprep.subr.bf16.mxu0 %v4336
  %4877 = vmatpush1.bf16.msra.mxu0 %v4335
  %4878 = vmatprep.subr.bf16.mxu0 %v4340
  %4879 = vmatpush1.bf16.msra.mxu0 %v4339
  %4880 = vmatprep.subr.bf16.mxu0 %v4344
  %4881 = vmatpush1.bf16.msra.mxu0 %v4343
  %4882 = vmatprep.subr.bf16.mxu0 %v4348
  %4883 = vmatpush1.bf16.msra.mxu0 %v4347
  %4884 = vmatprep.subr.bf16.mxu0 %v4352
  %4885 = vmatpush1.bf16.msra.mxu0 %v4351
  %4886 = vmatprep.subr.bf16.mxu0 %v4356
  %4887 = vmatpush1.bf16.msra.mxu0 %v4355
  %4888 = vmatprep.subr.bf16.mxu0 %v4360
  %4889 = vmatpush1.bf16.msra.mxu0 %v4359
  %4890 = vmatprep.subr.bf16.mxu0 %v4364
  %4891 = vmatpush1.bf16.msra.mxu0 %v4363
  %4892 = vmatprep.subr.bf16.mxu0 0
  %4893 = vmatpush1.bf16.msra.mxu0 0
  %4894 = vmatprep.subr.bf16.mxu0 0
  %4895 = vmatpush1.bf16.msra.mxu0 0
  %4896 = vmatprep.subr.bf16.mxu0 0
  %4897 = vmatpush1.bf16.msra.mxu0 0
  %4898 = vmatprep.subr.bf16.mxu0 0
  %4899 = vmatpush1.bf16.msra.mxu0 0
  %4900 = vmatprep.subr.bf16.mxu0 0
  %4901 = vmatpush1.bf16.msra.mxu0 0
  %4902 = vmatprep.subr.bf16.mxu0 0
  %4903 = vmatpush1.bf16.msra.mxu0 0
  %4904 = vmatprep.subr.bf16.mxu0 0
  %4905 = vmatpush1.bf16.msra.mxu0 0
  %4906 = vmatprep.subr.bf16.mxu0 0
  %4907 = vmatpush1.bf16.msra.mxu0 0
  %4908 = vmatprep.mubr.bf16.mxu0 0
  %4909 = vmatmul.mubr.bf16.gmra.mrb[0].mxu0 %v3222
  %v4910 = vpop.f32.mrb[0].mxu0
  %v4911 = vadd.f32 %v4870, %v4910
  %v4912 = vpop.f32.mrb[0].mxu0
  %v4913 = vadd.f32 %v4872, %v4912
  %v4914 = vpop.f32.mrb[0].mxu0
  %v4915 = vpop.f32.mrb[0].mxu0
  %4916 = vdwg.mxu0
  %v4917 = vmax.f32 %v4747, 0.0
  %v4918 = vmax.f32 %v4749, 0.0
  %v4919 = vmax.f32 %v4911, 0.0
  %v4920 = vmax.f32 %v4913, 0.0
  %v4921 = vpack.c.bf16 %v4917, %v4917
  %v4922 = vpack.c.bf16 %v4918, %v4918
  %v4923 = vpack.c.bf16 %v4919, %v4919
  %v4924 = vpack.c.bf16 %v4920, %v4920
  %v4925 = vld [vmem:[%s5] sm:$0xf]
  %v4926 = vld [vmem:[%s5 + $0x4] sm:$0xf]
  %v4927 = vld [vmem:[%s5 + $0x8] sm:$0xf]
  %v4928 = vld [vmem:[%s5 + $0xc] sm:$0xf]
  %v4929 = vld [vmem:[%s5 + $0x10] sm:$0xf]
  %v4930 = vld [vmem:[%s5 + $0x14] sm:$0xf]
  %v4931 = vld [vmem:[%s5 + $0x18] sm:$0xf]
  %v4932 = vld [vmem:[%s5 + $0x1c] sm:$0xf]
  %v4933 = vld [vmem:[%s5 + $0x20] sm:$0xf]
  %v4934 = vld [vmem:[%s5 + $0x24] sm:$0xf]
  %v4935 = vld [vmem:[%s5 + $0x28] sm:$0xf]
  %v4936 = vld [vmem:[%s5 + $0x2c] sm:$0xf]
  %v4937 = vld [vmem:[%s5 + $0x30] sm:$0xf]
  %v4938 = vld [vmem:[%s5 + $0x34] sm:$0xf]
  %v4939 = vld [vmem:[%s5 + $0x38] sm:$0xf]
  %v4940 = vld [vmem:[%s5 + $0x3c] sm:$0xf]
  %v4941 = vld [vmem:[%s5 + $0x40] sm:$0xf]
  %v4942 = vld [vmem:[%s5 + $0x44] sm:$0xf]
  %v4943 = vld [vmem:[%s5 + $0x48] sm:$0xf]
  %v4944 = vld [vmem:[%s5 + $0x4c] sm:$0xf]
  %v4945 = vld [vmem:[%s5 + $0x50] sm:$0xf]
  %v4946 = vld [vmem:[%s5 + $0x54] sm:$0xf]
  %v4947 = vld [vmem:[%s5 + $0x58] sm:$0xf]
  %v4948 = vld [vmem:[%s5 + $0x5c] sm:$0xf]
  %v4949 = vld [vmem:[%s5 + $0x60] sm:$0xf]
  %v4950 = vld [vmem:[%s5 + $0x64] sm:$0xf]
  %v4951 = vld [vmem:[%s5 + $0x68] sm:$0xf]
  %v4952 = vld [vmem:[%s5 + $0x6c] sm:$0xf]
  %v4953 = vld [vmem:[%s5 + $0x70] sm:$0xf]
  %v4954 = vld [vmem:[%s5 + $0x74] sm:$0xf]
  %v4955 = vld [vmem:[%s5 + $0x78] sm:$0xf]
  %v4956 = vld [vmem:[%s5 + $0x7c] sm:$0xf]
  %v4957 = vld [vmem:[%s5 + $0x80] sm:$0xf]
  %v4958 = vld [vmem:[%s5 + $0x84] sm:$0xf]
  %v4959 = vld [vmem:[%s5 + $0x88] sm:$0xf]
  %v4960 = vld [vmem:[%s5 + $0x8c] sm:$0xf]
  %v4961 = vld [vmem:[%s5 + $0x90] sm:$0xf]
  %v4962 = vld [vmem:[%s5 + $0x94] sm:$0xf]
  %v4963 = vld [vmem:[%s5 + $0x98] sm:$0xf]
  %v4964 = vld [vmem:[%s5 + $0x9c] sm:$0xf]
  %v4965 = vld [vmem:[%s5 + $0xa0] sm:$0xf]
  %v4966 = vld [vmem:[%s5 + $0xa4] sm:$0xf]
  %v4967 = vld [vmem:[%s5 + $0xa8] sm:$0xf]
  %v4968 = vld [vmem:[%s5 + $0xac] sm:$0xf]
  %v4969 = vld [vmem:[%s5 + $0xb0] sm:$0xf]
  %v4970 = vld [vmem:[%s5 + $0xb4] sm:$0xf]
  %v4971 = vld [vmem:[%s5 + $0xb8] sm:$0xf]
  %v4972 = vld [vmem:[%s5 + $0xbc] sm:$0xf]
  %v4973 = vld [vmem:[%s5 + $0xc0] sm:$0xf]
  %v4974 = vld [vmem:[%s5 + $0xc4] sm:$0xf]
  %v4975 = vld [vmem:[%s5 + $0xc8] sm:$0xf]
  %v4976 = vld [vmem:[%s5 + $0xcc] sm:$0xf]
  %v4977 = vld [vmem:[%s5 + $0xd0] sm:$0xf]
  %v4978 = vld [vmem:[%s5 + $0xd4] sm:$0xf]
  %v4979 = vld [vmem:[%s5 + $0xd8] sm:$0xf]
  %v4980 = vld [vmem:[%s5 + $0xdc] sm:$0xf]
  %v4981 = vld [vmem:[%s5 + $0xe0] sm:$0xf]
  %v4982 = vld [vmem:[%s5 + $0xe4] sm:$0xf]
  %v4983 = vld [vmem:[%s5 + $0xe8] sm:$0xf]
  %v4984 = vld [vmem:[%s5 + $0xec] sm:$0xf]
  %v4985 = vld [vmem:[%s5 + $0xf0] sm:$0xf]
  %v4986 = vld [vmem:[%s5 + $0xf4] sm:$0xf]
  %v4987 = vld [vmem:[%s5 + $0xf8] sm:$0xf]
  %v4988 = vld [vmem:[%s5 + $0xfc] sm:$0xf]
  %v4989 = vld [vmem:[%s6] sm:$0x1]
  %v4991 = vlaneseq
  %v4992 = vshrl.u32 %v4991, 7
  %v4993 = vsub.s32 0, %v4992
  %v4994 = vrot.slane %v4989, %v4993
  %v5060 = vunpack.c.l.b16 %v4925
  %v5061 = vunpack.c.l.b16 %v4926
  %v5062 = vunpack.c.l.b16 %v4927
  %v5063 = vunpack.c.l.b16 %v4928
  %v5064 = vunpack.c.l.b16 %v4929
  %v5065 = vunpack.c.l.b16 %v4930
  %v5066 = vunpack.c.l.b16 %v4931
  %v5067 = vunpack.c.l.b16 %v4932
  %v5068 = vunpack.c.l.b16 %v4933
  %v5069 = vunpack.c.l.b16 %v4934
  %v5070 = vunpack.c.l.b16 %v4935
  %v5071 = vunpack.c.l.b16 %v4936
  %v5072 = vunpack.c.l.b16 %v4937
  %v5073 = vunpack.c.l.b16 %v4938
  %v5074 = vunpack.c.l.b16 %v4939
  %v5075 = vunpack.c.l.b16 %v4940
  %v5076 = vunpack.c.l.b16 %v4941
  %v5077 = vunpack.c.l.b16 %v4942
  %v5078 = vunpack.c.l.b16 %v4943
  %v5079 = vunpack.c.l.b16 %v4944
  %v5080 = vunpack.c.l.b16 %v4945
  %v5081 = vunpack.c.l.b16 %v4946
  %v5082 = vunpack.c.l.b16 %v4947
  %v5083 = vunpack.c.l.b16 %v4948
  %v5084 = vunpack.c.l.b16 %v4949
  %v5085 = vunpack.c.l.b16 %v4950
  %v5086 = vunpack.c.l.b16 %v4951
  %v5087 = vunpack.c.l.b16 %v4952
  %v5088 = vunpack.c.l.b16 %v4953
  %v5089 = vunpack.c.l.b16 %v4954
  %v5090 = vunpack.c.l.b16 %v4955
  %v5091 = vunpack.c.l.b16 %v4956
  %v5092 = vunpack.c.l.b16 %v4957
  %v5093 = vunpack.c.l.b16 %v4958
  %v5094 = vunpack.c.l.b16 %v4959
  %v5095 = vunpack.c.l.b16 %v4960
  %v5096 = vunpack.c.l.b16 %v4961
  %v5097 = vunpack.c.l.b16 %v4962
  %v5098 = vunpack.c.l.b16 %v4963
  %v5099 = vunpack.c.l.b16 %v4964
  %v5100 = vunpack.c.l.b16 %v4965
  %v5101 = vunpack.c.l.b16 %v4966
  %v5102 = vunpack.c.l.b16 %v4967
  %v5103 = vunpack.c.l.b16 %v4968
  %v5104 = vunpack.c.l.b16 %v4969
  %v5105 = vunpack.c.l.b16 %v4970
  %v5106 = vunpack.c.l.b16 %v4971
  %v5107 = vunpack.c.l.b16 %v4972
  %v5108 = vunpack.c.l.b16 %v4973
  %v5109 = vunpack.c.l.b16 %v4974
  %v5110 = vunpack.c.l.b16 %v4975
  %v5111 = vunpack.c.l.b16 %v4976
  %v5112 = vunpack.c.l.b16 %v4977
  %v5113 = vunpack.c.l.b16 %v4978
  %v5114 = vunpack.c.l.b16 %v4979
  %v5115 = vunpack.c.l.b16 %v4980
  %v5116 = vunpack.c.l.b16 %v4981
  %v5117 = vunpack.c.l.b16 %v4982
  %v5118 = vunpack.c.l.b16 %v4983
  %v5119 = vunpack.c.l.b16 %v4984
  %v5120 = vunpack.c.l.b16 %v4985
  %v5121 = vunpack.c.l.b16 %v4986
  %v5122 = vunpack.c.l.b16 %v4987
  %v5123 = vunpack.c.l.b16 %v4988
  %v5124 = vpack.c.b16 %v5061, %v5060
  %v5125 = vpack.c.b16 %v5063, %v5062
  %v5126 = vpack.c.b16 %v5065, %v5064
  %v5127 = vpack.c.b16 %v5067, %v5066
  %v5128 = vpack.c.b16 %v5069, %v5068
  %v5129 = vpack.c.b16 %v5071, %v5070
  %v5130 = vpack.c.b16 %v5073, %v5072
  %v5131 = vpack.c.b16 %v5075, %v5074
  %v5132 = vpack.c.b16 %v5077, %v5076
  %v5133 = vpack.c.b16 %v5079, %v5078
  %v5134 = vpack.c.b16 %v5081, %v5080
  %v5135 = vpack.c.b16 %v5083, %v5082
  %v5136 = vpack.c.b16 %v5085, %v5084
  %v5137 = vpack.c.b16 %v5087, %v5086
  %v5138 = vpack.c.b16 %v5089, %v5088
  %v5139 = vpack.c.b16 %v5091, %v5090
  %v5140 = vpack.c.b16 %v5093, %v5092
  %v5141 = vpack.c.b16 %v5095, %v5094
  %v5142 = vpack.c.b16 %v5097, %v5096
  %v5143 = vpack.c.b16 %v5099, %v5098
  %v5144 = vpack.c.b16 %v5101, %v5100
  %v5145 = vpack.c.b16 %v5103, %v5102
  %v5146 = vpack.c.b16 %v5105, %v5104
  %v5147 = vpack.c.b16 %v5107, %v5106
  %v5148 = vpack.c.b16 %v5109, %v5108
  %v5149 = vpack.c.b16 %v5111, %v5110
  %v5150 = vpack.c.b16 %v5113, %v5112
  %v5151 = vpack.c.b16 %v5115, %v5114
  %v5152 = vpack.c.b16 %v5117, %v5116
  %v5153 = vpack.c.b16 %v5119, %v5118
  %v5154 = vpack.c.b16 %v5121, %v5120
  %v5155 = vpack.c.b16 %v5123, %v5122
  %5188 = vmatprep.subr.bf16.mxu0 0
  %5189 = vmatpush1.bf16.msra.mxu0 %v5124
  %5190 = vmatprep.subr.bf16.mxu0 0
  %5191 = vmatpush1.bf16.msra.mxu0 %v5125
  %5192 = vmatprep.subr.bf16.mxu0 0
  %5193 = vmatpush1.bf16.msra.mxu0 %v5126
  %5194 = vmatprep.subr.bf16.mxu0 0
  %5195 = vmatpush1.bf16.msra.mxu0 %v5127
  %5196 = vmatprep.subr.bf16.mxu0 0
  %5197 = vmatpush1.bf16.msra.mxu0 %v5128
  %5198 = vmatprep.subr.bf16.mxu0 0
  %5199 = vmatpush1.bf16.msra.mxu0 %v5129
  %5200 = vmatprep.subr.bf16.mxu0 0
  %5201 = vmatpush1.bf16.msra.mxu0 %v5130
  %5202 = vmatprep.subr.bf16.mxu0 0
  %5203 = vmatpush1.bf16.msra.mxu0 %v5131
  %5204 = vmatprep.subr.bf16.mxu0 0
  %5205 = vmatpush1.bf16.msra.mxu0 %v5132
  %5206 = vmatprep.subr.bf16.mxu0 0
  %5207 = vmatpush1.bf16.msra.mxu0 %v5133
  %5208 = vmatprep.subr.bf16.mxu0 0
  %5209 = vmatpush1.bf16.msra.mxu0 %v5134
  %5210 = vmatprep.subr.bf16.mxu0 0
  %5211 = vmatpush1.bf16.msra.mxu0 %v5135
  %5212 = vmatprep.subr.bf16.mxu0 0
  %5213 = vmatpush1.bf16.msra.mxu0 %v5136
  %5214 = vmatprep.subr.bf16.mxu0 0
  %5215 = vmatpush1.bf16.msra.mxu0 %v5137
  %5216 = vmatprep.subr.bf16.mxu0 0
  %5217 = vmatpush1.bf16.msra.mxu0 %v5138
  %5218 = vmatprep.subr.bf16.mxu0 0
  %5219 = vmatpush1.bf16.msra.mxu0 %v5139
  %5220 = vmatprep.mubr.bf16.mxu0 %v4922
  %5221 = vmatmul.mubr.bf16.gmra.mrb[0].mxu0 %v4921
  %v5222 = vpop.f32.mrb[0].mxu0
  %v5223 = vadd.f32 %v4994, %v5222
  %v5224 = vpop.f32.mrb[0].mxu0
  %v5225 = vpop.f32.mrb[0].mxu0
  %v5226 = vpop.f32.mrb[0].mxu0
  %5227 = vdwg.mxu0
  %5228 = vmatprep.subr.bf16.mxu0 0
  %5229 = vmatpush1.bf16.msra.mxu0 %v5140
  %5230 = vmatprep.subr.bf16.mxu0 0
  %5231 = vmatpush1.bf16.msra.mxu0 %v5141
  %5232 = vmatprep.subr.bf16.mxu0 0
  %5233 = vmatpush1.bf16.msra.mxu0 %v5142
  %5234 = vmatprep.subr.bf16.mxu0 0
  %5235 = vmatpush1.bf16.msra.mxu0 %v5143
  %5236 = vmatprep.subr.bf16.mxu0 0
  %5237 = vmatpush1.bf16.msra.mxu0 %v5144
  %5238 = vmatprep.subr.bf16.mxu0 0
  %5239 = vmatpush1.bf16.msra.mxu0 %v5145
  %5240 = vmatprep.subr.bf16.mxu0 0
  %5241 = vmatpush1.bf16.msra.mxu0 %v5146
  %5242 = vmatprep.subr.bf16.mxu0 0
  %5243 = vmatpush1.bf16.msra.mxu0 %v5147
  %5244 = vmatprep.subr.bf16.mxu0 0
  %5245 = vmatpush1.bf16.msra.mxu0 %v5148
  %5246 = vmatprep.subr.bf16.mxu0 0
  %5247 = vmatpush1.bf16.msra.mxu0 %v5149
  %5248 = vmatprep.subr.bf16.mxu0 0
  %5249 = vmatpush1.bf16.msra.mxu0 %v5150
  %5250 = vmatprep.subr.bf16.mxu0 0
  %5251 = vmatpush1.bf16.msra.mxu0 %v5151
  %5252 = vmatprep.subr.bf16.mxu0 0
  %5253 = vmatpush1.bf16.msra.mxu0 %v5152
  %5254 = vmatprep.subr.bf16.mxu0 0
  %5255 = vmatpush1.bf16.msra.mxu0 %v5153
  %5256 = vmatprep.subr.bf16.mxu0 0
  %5257 = vmatpush1.bf16.msra.mxu0 %v5154
  %5258 = vmatprep.subr.bf16.mxu0 0
  %5259 = vmatpush1.bf16.msra.mxu0 %v5155
  %5260 = vmatprep.mubr.bf16.mxu0 %v4924
  %5261 = vmatmul.mubr.bf16.gmra.mrb[0].mxu0 %v4923
  %v5262 = vpop.f32.mrb[0].mxu0
  %v5263 = vadd.f32 %v5223, %v5262
  %v5264 = vpop.f32.mrb[0].mxu0
  %v5265 = vpop.f32.mrb[0].mxu0
  %v5266 = vpop.f32.mrb[0].mxu0
  %5267 = vdwg.mxu0
  %5268 = vst [vmem:[%s7] sm:$0xff] %v5263
  // Predicated region
  $region30: #{pfmcnn4_forward.5} parent=0 // pred_check
    _
  $region31: #{pfmcnn4_forward.5} parent=0 // pred_check_branch
    %5270 = sbr.rel (0) target = $region33
  $region32: #{pfmcnn4_forward.5} parent=0 // pred_region
    _
  $region33: #{pfmcnn4_forward.5} parent=0 // pred_fallthru
    _
  // Predicated region
  $region34: #{pfmcnn4_forward.5} parent=0 // pred_check
    _
  $region35: #{pfmcnn4_forward.5} parent=0 // pred_check_branch
    %5272 = sbr.rel (0) target = $region37
  $region36: #{pfmcnn4_forward.5} parent=0 // pred_region
    _
  $region37: #{pfmcnn4_forward.5} parent=0 // pred_fallthru
    _

</llo_original>
